<compile_context>
chip_gen: v7x
topology: tpu7x:2x2x1
jax: 0.10.0
libtpu: 0.0.40
codegen_flags: <defaults>
</compile_context>

<pallas_src>
import functools

import numpy as np
import jax
import jax.numpy as jnp
from jax.experimental import pallas as pl
from jax.experimental.pallas import tpu as pltpu


# 3x3 tap offsets, row-major; tap k corresponds to weight[:, :, k // 3, k % 3].
_OFFSETS = tuple((dy, dx) for dy in (-1, 0, 1) for dx in (-1, 0, 1))


def _conv_block_kernel(*refs, W, HW, num_convs):
    """refs = (x, masks, biases, w_0..w_{L-1}, out, slab_scratch).

    x      : (1, Cin0, HW)       channels-major pixels of one image (f32)
    masks  : (9, HW)             1.0 where the 3x3 tap is spatially valid (f32)
    biases : (Cout, num_convs)   per-layer biases as columns (f32)
    w_l    : (Cout, 9*Cin_l)     tap-stacked conv weights (bf16)
    out    : (1, Cout, HW)       f32
    slab   : (9*Cin_max, HW)     bf16 VMEM scratch holding the tap slab
    """
    x_ref, mask_ref, bias_ref = refs[0], refs[1], refs[2]
    w_refs = refs[3:3 + num_convs]
    o_ref = refs[3 + num_convs]
    slab_ref = refs[4 + num_convs]

    h = x_ref[0]                                          # (Cin_l, HW) f32
    for l in range(num_convs):
        k_dim = w_refs[l].shape[1]                        # 9 * Cin_l (static)
        cin = k_dim // 9
        # Build the bf16 tap slab: row block k holds mask_k * roll(h, tap_k).
        for k, (dy, dx) in enumerate(_OFFSETS):
            s = dy * W + dx
            if s == 0:
                xs = h                                    # centre tap: always valid
            else:
                # xs[:, p] = h[:, p + s]; wrapped / out-of-image lanes masked.
                xs = pltpu.roll(h, (-s) % HW, axis=1) * mask_ref[k:k + 1, :]
            slab_ref[k * cin:(k + 1) * cin, :] = xs.astype(jnp.bfloat16)
        # Single MXU matmul per layer: (Cout, 9*Cin) @ (9*Cin, HW) -> f32.
        acc = jnp.dot(w_refs[l][...], slab_ref[0:k_dim, :],
                      preferred_element_type=jnp.float32)
        h = jnp.maximum(acc + bias_ref[:, l:l + 1], 0.0)  # bias + ReLU in f32
    o_ref[0] = h


def _shift_masks(H, W):
    """(9, H*W) float32 validity mask for each 3x3 tap (zero padding)."""
    p = np.arange(H * W)
    hh, ww = p // W, p % W
    m = np.stack([((hh + dy >= 0) & (hh + dy < H) &
                   (ww + dx >= 0) & (ww + dx < W)).astype(np.float32)
                  for dy, dx in _OFFSETS])
    return jnp.asarray(m)


def _conv_block(x, weights, biases):
    """num_convs x [3x3 conv(pad=1) + ReLU] on (N, Cin, H, W) in one pallas_call."""
    N, Cin, H, W = x.shape
    HW = H * W
    num_convs = len(weights)
    Cout = weights[0].shape[0]

    x_flat = x.reshape(N, Cin, HW)               # NCHW: already channels-major
    masks = _shift_masks(H, W)
    bias_cols = jnp.stack(list(biases), axis=1)  # (Cout, num_convs)

    operands = [x_flat, masks, bias_cols]
    in_specs = [
        pl.BlockSpec((1, Cin, HW), lambda n: (n, 0, 0)),
        pl.BlockSpec((9, HW), lambda n: (0, 0)),
        pl.BlockSpec((Cout, num_convs), lambda n: (0, 0)),
    ]
    cin_max, flops = 0, 0
    for w in weights:
        co, ci = w.shape[0], w.shape[1]
        cin_max = max(cin_max, ci)
        # (Cout, Cin, 3, 3) -> (Cout, 9*Cin), tap-major / channel-minor rows to
        # match the slab layout built in the kernel; pre-cast to bf16 (half DMA).
        w_stk = jnp.transpose(w, (0, 2, 3, 1)).reshape(co, 9 * ci).astype(jnp.bfloat16)
        operands.append(w_stk)
        in_specs.append(pl.BlockSpec((co, 9 * ci), lambda n: (0, 0)))
        flops += 2 * co * 9 * ci * HW * N

    bytes_accessed = int(sum(int(np.prod(o.shape)) * o.dtype.itemsize
                             for o in operands) + N * Cout * HW * 4)

    out = pl.pallas_call(
        functools.partial(_conv_block_kernel, W=W, HW=HW, num_convs=num_convs),
        out_shape=jax.ShapeDtypeStruct((N, Cout, HW), jnp.float32),
        grid_spec=pltpu.PrefetchScalarGridSpec(
            num_scalar_prefetch=0,
            grid=(N,),
            in_specs=in_specs,
            out_specs=pl.BlockSpec((1, Cout, HW), lambda n: (n, 0, 0)),
            scratch_shapes=[pltpu.VMEM((9 * cin_max, HW), jnp.bfloat16)],
        ),
        compiler_params=pltpu.CompilerParams(
            dimension_semantics=("parallel",),
            vmem_limit_bytes=32 * 1024 * 1024),   # actual use is well under 2 MiB
        cost_estimate=pl.CostEstimate(flops=int(flops), transcendentals=0,
                                      bytes_accessed=bytes_accessed),
    )(*operands)
    return out.reshape(N, Cout, H, W)


def encoder_forward(x_nchw, params):
    """params: list of (weights, biases) per block; weights[l]: (Cout, Cin, 3, 3)."""
    feats = []
    h = x_nchw
    for bi, (ws, bs) in enumerate(params):
        if bi != 0:
            # AvgPool2d(2, 2): cheap XLA reshape-mean in the wrapper (replaces
            # the previous O(HW^2) dense in-kernel pooling matmul).
            N, C, H, W = h.shape
            h = h.reshape(N, C, H // 2, 2, W // 2, 2).mean(axis=(3, 5))
        h = _conv_block(h, ws, bs)
        feats.append(h)
    return feats


# ----------------------------- reference path ------------------------------
def _ref_block(x, weights, biases, down_sample):
    if down_sample:
        N, C, H, W = x.shape
        x = x.reshape(N, C, H // 2, 2, W // 2, 2).mean(axis=(3, 5))
    for w, b in zip(weights, biases):
        N, C, H, W = x.shape
        xp = jnp.pad(x, ((0, 0), (0, 0), (1, 1), (1, 1)))
        out = b[None, :, None, None]
        for ky in range(3):
            for kx in range(3):
                out = out + jnp.einsum(
                    'nchw,oc->nohw', xp[:, :, ky:ky + H, kx:kx + W],
                    w[:, :, ky, kx], precision=jax.lax.Precision.HIGHEST)
        x = jnp.maximum(out, 0.0)
    return x


def _reference(x, params):
    feats = []
    for bi, (ws, bs) in enumerate(params):
        x = _ref_block(x, ws, bs, down_sample=bi != 0)
        feats.append(x)
    return feats


def _init_params(key, num_channels, num_convs):
    """Synthetic init mirroring the module: kaiming-ish weights, tiny biases."""
    params = []
    for cin, cout in zip(num_channels[:-1], num_channels[1:]):
        ws, bs = [], []
        for l in range(num_convs):
            ci = cin if l == 0 else cout
            key, kw, kb = jax.random.split(key, 3)
            w = jax.random.normal(kw, (cout, ci, 3, 3), jnp.float32) * np.sqrt(2.0 / (ci * 9))
            b = jax.random.normal(kb, (cout,), jnp.float32) * 0.001
            ws.append(w)
            bs.append(b)
        params.append((ws, bs))
    return params


if __name__ == "__main__":
    key = jax.random.PRNGKey(0)

    N, C0, H, W = 2, 4, 32, 32          # lane dims 1024 / 256: dense multiples of 128
    num_channels = [C0, 32, 64]         # -> 2 down_blocks (block 1 downsamples)
    num_convs = 3

    k_x, k_p = jax.random.split(key)
    x = jax.random.normal(k_x, (N, C0, H, W), jnp.float32)
    params = _init_params(k_p, num_channels, num_convs)

    feats = jax.jit(encoder_forward)(x, params)
    feats = jax.block_until_ready(feats)

    refs = _reference(x, params)
    assert len(feats) == len(num_channels) - 1
    for f, r in zip(feats, refs):
        assert f.shape == r.shape, (f.shape, r.shape)
        err = f - r
        max_abs = float(jnp.max(jnp.abs(err)))
        rel_l2 = float(jnp.linalg.norm(err) / (jnp.linalg.norm(r) + 1e-12))
        # Tolerance (deliberate): bf16 MXU operands vs. an f32 HIGHEST-precision
        # reference.  Per-layer dot rounding is ~2^-9 relative and compounds
        # over <=6 conv layers -> expected rel-L2 ~1e-2 and worst-element ~0.1
        # on O(1) activations; any structural bug (wrong tap / mask / weight
        # layout) produces rel-L2 of O(1), far above these bounds.
        assert rel_l2 < 3e-2, ("rel_l2", rel_l2, "max_abs", max_abs)
        assert max_abs < 0.3, ("rel_l2", rel_l2, "max_abs", max_abs)

    print("KERNEL_OK")
</pallas_src>

<mosaic_0001>
module attributes {stable_mosaic.version = 11 : i64} {
  func.func @_conv_block_kernel(%arg0: i32, %arg1: memref<1x4x1024xf32, #tpu.memory_space<vmem>>, %arg2: memref<9x1024xf32, #tpu.memory_space<vmem>>, %arg3: memref<32x3xf32, #tpu.memory_space<vmem>>, %arg4: memref<32x36xbf16, #tpu.memory_space<vmem>>, %arg5: memref<32x288xbf16, #tpu.memory_space<vmem>>, %arg6: memref<32x288xbf16, #tpu.memory_space<vmem>>, %arg7: memref<1x32x1024xf32, #tpu.memory_space<vmem>>, %arg8: memref<288x1024xbf16, #tpu.memory_space<vmem>>) attributes {dimension_semantics = [#tpu.dimension_semantics<parallel>], iteration_bounds = array<i64: 2>, scalar_prefetch = 0 : i64, scratch_operands = 1 : i64, tpu.core_type = #tpu.core_type<tc>, window_params = [{transform_indices = @transform_0, window_bounds = array<i64: 1, 4, 1024>}, {pipeline_mode = #tpu.pipeline_mode<synchronous>, transform_indices = @transform_1, window_bounds = array<i64: 9, 1024>}, {pipeline_mode = #tpu.pipeline_mode<synchronous>, transform_indices = @transform_2, window_bounds = array<i64: 32, 3>}, {pipeline_mode = #tpu.pipeline_mode<synchronous>, transform_indices = @transform_3, window_bounds = array<i64: 32, 36>}, {pipeline_mode = #tpu.pipeline_mode<synchronous>, transform_indices = @transform_4, window_bounds = array<i64: 32, 288>}, {pipeline_mode = #tpu.pipeline_mode<synchronous>, transform_indices = @transform_5, window_bounds = array<i64: 32, 288>}, {transform_indices = @transform_6, window_bounds = array<i64: 1, 32, 1024>}]} {
    %c0 = arith.constant 0 : index
    %c0_0 = arith.constant 0 : index
    %c0_1 = arith.constant 0 : index
    %0 = vector.load %arg1[%c0, %c0_0, %c0_1] : memref<1x4x1024xf32, #tpu.memory_space<vmem>>, vector<1x4x1024xf32>
    %1 = vector.shape_cast %0 : vector<1x4x1024xf32> to vector<4x1024xf32>
    %c33_i32 = arith.constant 33 : i32
    %2 = tpu.dynamic_rotate %1 by %c33_i32 dim 1 : vector<4x1024xf32>, i32 -> vector<4x1024xf32>
    %c0_2 = arith.constant 0 : index
    %c0_3 = arith.constant 0 : index
    %3 = vector.load %arg2[%c0_2, %c0_3] : memref<9x1024xf32, #tpu.memory_space<vmem>>, vector<1x1024xf32>
    %4 = vector.broadcast %3 : vector<1x1024xf32> to vector<4x1024xf32>
    %5 = arith.mulf %2, %4 : vector<4x1024xf32>
    %6 = arith.truncf %5 : vector<4x1024xf32> to vector<4x1024xbf16>
    %c0_4 = arith.constant 0 : index
    %c0_5 = arith.constant 0 : index
    %7 = vector.load %arg8[%c0_4, %c0_5] : memref<288x1024xbf16, #tpu.memory_space<vmem>>, vector<4x1024xbf16>
    tpu.vector_store %arg8[%c0_4, %c0_5], %6 {strides = array<i32>} : memref<288x1024xbf16, #tpu.memory_space<vmem>>, vector<4x1024xbf16>,
    %c32_i32 = arith.constant 32 : i32
    %8 = tpu.dynamic_rotate %1 by %c32_i32 dim 1 : vector<4x1024xf32>, i32 -> vector<4x1024xf32>
    %c1 = arith.constant 1 : index
    %c0_6 = arith.constant 0 : index
    %9 = vector.load %arg2[%c1, %c0_6] : memref<9x1024xf32, #tpu.memory_space<vmem>>, vector<1x1024xf32>
    %10 = vector.broadcast %9 : vector<1x1024xf32> to vector<4x1024xf32>
    %11 = arith.mulf %8, %10 : vector<4x1024xf32>
    %12 = arith.truncf %11 : vector<4x1024xf32> to vector<4x1024xbf16>
    %c4 = arith.constant 4 : index
    %c0_7 = arith.constant 0 : index
    %13 = vector.load %arg8[%c4, %c0_7] : memref<288x1024xbf16, #tpu.memory_space<vmem>>, vector<4x1024xbf16>
    tpu.vector_store %arg8[%c4, %c0_7], %12 {strides = array<i32>} : memref<288x1024xbf16, #tpu.memory_space<vmem>>, vector<4x1024xbf16>,
    %c31_i32 = arith.constant 31 : i32
    %14 = tpu.dynamic_rotate %1 by %c31_i32 dim 1 : vector<4x1024xf32>, i32 -> vector<4x1024xf32>
    %c2 = arith.constant 2 : index
    %c0_8 = arith.constant 0 : index
    %15 = vector.load %arg2[%c2, %c0_8] : memref<9x1024xf32, #tpu.memory_space<vmem>>, vector<1x1024xf32>
    %16 = vector.broadcast %15 : vector<1x1024xf32> to vector<4x1024xf32>
    %17 = arith.mulf %14, %16 : vector<4x1024xf32>
    %18 = arith.truncf %17 : vector<4x1024xf32> to vector<4x1024xbf16>
    %c8 = arith.constant 8 : index
    %c0_9 = arith.constant 0 : index
    %19 = vector.load %arg8[%c8, %c0_9] : memref<288x1024xbf16, #tpu.memory_space<vmem>>, vector<4x1024xbf16>
    tpu.vector_store %arg8[%c8, %c0_9], %18 {strides = array<i32>} : memref<288x1024xbf16, #tpu.memory_space<vmem>>, vector<4x1024xbf16>,
    %c1_i32 = arith.constant 1 : i32
    %20 = tpu.dynamic_rotate %1 by %c1_i32 dim 1 : vector<4x1024xf32>, i32 -> vector<4x1024xf32>
    %c3 = arith.constant 3 : index
    %c0_10 = arith.constant 0 : index
    %21 = vector.load %arg2[%c3, %c0_10] : memref<9x1024xf32, #tpu.memory_space<vmem>>, vector<1x1024xf32>
    %22 = vector.broadcast %21 : vector<1x1024xf32> to vector<4x1024xf32>
    %23 = arith.mulf %20, %22 : vector<4x1024xf32>
    %24 = arith.truncf %23 : vector<4x1024xf32> to vector<4x1024xbf16>
    %c12 = arith.constant 12 : index
    %c0_11 = arith.constant 0 : index
    %25 = vector.load %arg8[%c12, %c0_11] : memref<288x1024xbf16, #tpu.memory_space<vmem>>, vector<4x1024xbf16>
    tpu.vector_store %arg8[%c12, %c0_11], %24 {strides = array<i32>} : memref<288x1024xbf16, #tpu.memory_space<vmem>>, vector<4x1024xbf16>,
    %26 = arith.truncf %1 : vector<4x1024xf32> to vector<4x1024xbf16>
    %c16 = arith.constant 16 : index
    %c0_12 = arith.constant 0 : index
    %27 = vector.load %arg8[%c16, %c0_12] : memref<288x1024xbf16, #tpu.memory_space<vmem>>, vector<4x1024xbf16>
    tpu.vector_store %arg8[%c16, %c0_12], %26 {strides = array<i32>} : memref<288x1024xbf16, #tpu.memory_space<vmem>>, vector<4x1024xbf16>,
    %c1023_i32 = arith.constant 1023 : i32
    %28 = tpu.dynamic_rotate %1 by %c1023_i32 dim 1 : vector<4x1024xf32>, i32 -> vector<4x1024xf32>
    %c5 = arith.constant 5 : index
    %c0_13 = arith.constant 0 : index
    %29 = vector.load %arg2[%c5, %c0_13] : memref<9x1024xf32, #tpu.memory_space<vmem>>, vector<1x1024xf32>
    %30 = vector.broadcast %29 : vector<1x1024xf32> to vector<4x1024xf32>
    %31 = arith.mulf %28, %30 : vector<4x1024xf32>
    %32 = arith.truncf %31 : vector<4x1024xf32> to vector<4x1024xbf16>
    %c20 = arith.constant 20 : index
    %c0_14 = arith.constant 0 : index
    %33 = vector.load %arg8[%c20, %c0_14] : memref<288x1024xbf16, #tpu.memory_space<vmem>>, vector<4x1024xbf16>
    tpu.vector_store %arg8[%c20, %c0_14], %32 {strides = array<i32>} : memref<288x1024xbf16, #tpu.memory_space<vmem>>, vector<4x1024xbf16>,
    %c993_i32 = arith.constant 993 : i32
    %34 = tpu.dynamic_rotate %1 by %c993_i32 dim 1 : vector<4x1024xf32>, i32 -> vector<4x1024xf32>
    %c6 = arith.constant 6 : index
    %c0_15 = arith.constant 0 : index
    %35 = vector.load %arg2[%c6, %c0_15] : memref<9x1024xf32, #tpu.memory_space<vmem>>, vector<1x1024xf32>
    %36 = vector.broadcast %35 : vector<1x1024xf32> to vector<4x1024xf32>
    %37 = arith.mulf %34, %36 : vector<4x1024xf32>
    %38 = arith.truncf %37 : vector<4x1024xf32> to vector<4x1024xbf16>
    %c24 = arith.constant 24 : index
    %c0_16 = arith.constant 0 : index
    %39 = vector.load %arg8[%c24, %c0_16] : memref<288x1024xbf16, #tpu.memory_space<vmem>>, vector<4x1024xbf16>
    tpu.vector_store %arg8[%c24, %c0_16], %38 {strides = array<i32>} : memref<288x1024xbf16, #tpu.memory_space<vmem>>, vector<4x1024xbf16>,
    %c992_i32 = arith.constant 992 : i32
    %40 = tpu.dynamic_rotate %1 by %c992_i32 dim 1 : vector<4x1024xf32>, i32 -> vector<4x1024xf32>
    %c7 = arith.constant 7 : index
    %c0_17 = arith.constant 0 : index
    %41 = vector.load %arg2[%c7, %c0_17] : memref<9x1024xf32, #tpu.memory_space<vmem>>, vector<1x1024xf32>
    %42 = vector.broadcast %41 : vector<1x1024xf32> to vector<4x1024xf32>
    %43 = arith.mulf %40, %42 : vector<4x1024xf32>
    %44 = arith.truncf %43 : vector<4x1024xf32> to vector<4x1024xbf16>
    %c28 = arith.constant 28 : index
    %c0_18 = arith.constant 0 : index
    %45 = vector.load %arg8[%c28, %c0_18] : memref<288x1024xbf16, #tpu.memory_space<vmem>>, vector<4x1024xbf16>
    tpu.vector_store %arg8[%c28, %c0_18], %44 {strides = array<i32>} : memref<288x1024xbf16, #tpu.memory_space<vmem>>, vector<4x1024xbf16>,
    %c991_i32 = arith.constant 991 : i32
    %46 = tpu.dynamic_rotate %1 by %c991_i32 dim 1 : vector<4x1024xf32>, i32 -> vector<4x1024xf32>
    %c8_19 = arith.constant 8 : index
    %c0_20 = arith.constant 0 : index
    %47 = vector.load %arg2[%c8_19, %c0_20] : memref<9x1024xf32, #tpu.memory_space<vmem>>, vector<1x1024xf32>
    %48 = vector.broadcast %47 : vector<1x1024xf32> to vector<4x1024xf32>
    %49 = arith.mulf %46, %48 : vector<4x1024xf32>
    %50 = arith.truncf %49 : vector<4x1024xf32> to vector<4x1024xbf16>
    %c32 = arith.constant 32 : index
    %c0_21 = arith.constant 0 : index
    %51 = vector.load %arg8[%c32, %c0_21] : memref<288x1024xbf16, #tpu.memory_space<vmem>>, vector<4x1024xbf16>
    tpu.vector_store %arg8[%c32, %c0_21], %50 {strides = array<i32>} : memref<288x1024xbf16, #tpu.memory_space<vmem>>, vector<4x1024xbf16>,
    %c0_22 = arith.constant 0 : index
    %c0_23 = arith.constant 0 : index
    %52 = vector.load %arg4[%c0_22, %c0_23] : memref<32x36xbf16, #tpu.memory_space<vmem>>, vector<32x36xbf16>
    %c0_24 = arith.constant 0 : index
    %c0_25 = arith.constant 0 : index
    %53 = vector.load %arg8[%c0_24, %c0_25] : memref<288x1024xbf16, #tpu.memory_space<vmem>>, vector<36x1024xbf16>
    %cst = arith.constant dense<0.000000e+00> : vector<32x1024xf32>
    %54 = tpu.matmul %52, %53, %cst {dimension_numbers = #tpu.dot_dimension_numbers<[1], [0], [0], [1], [0, 0, 1, 1], [], []>} : vector<32x36xbf16>, vector<36x1024xbf16>, vector<32x1024xf32> -> vector<32x1024xf32>
    %c0_26 = arith.constant 0 : index
    %c0_27 = arith.constant 0 : index
    %55 = vector.load %arg3[%c0_26, %c0_27] : memref<32x3xf32, #tpu.memory_space<vmem>>, vector<32x1xf32>
    %56 = vector.broadcast %55 : vector<32x1xf32> to vector<32x1024xf32>
    %57 = arith.addf %54, %56 : vector<32x1024xf32>
    %cst_28 = arith.constant 0.000000e+00 : f32
    %58 = vector.broadcast %cst_28 : f32 to vector<32x1024xf32>
    %59 = arith.maximumf %57, %58 : vector<32x1024xf32>
    %c33_i32_29 = arith.constant 33 : i32
    %60 = tpu.dynamic_rotate %59 by %c33_i32_29 dim 1 : vector<32x1024xf32>, i32 -> vector<32x1024xf32>
    %c0_30 = arith.constant 0 : index
    %c0_31 = arith.constant 0 : index
    %61 = vector.load %arg2[%c0_30, %c0_31] : memref<9x1024xf32, #tpu.memory_space<vmem>>, vector<1x1024xf32>
    %62 = vector.broadcast %61 : vector<1x1024xf32> to vector<32x1024xf32>
    %63 = arith.mulf %60, %62 : vector<32x1024xf32>
    %64 = arith.truncf %63 : vector<32x1024xf32> to vector<32x1024xbf16>
    %c0_32 = arith.constant 0 : index
    %c0_33 = arith.constant 0 : index
    %65 = vector.load %arg8[%c0_32, %c0_33] : memref<288x1024xbf16, #tpu.memory_space<vmem>>, vector<32x1024xbf16>
    tpu.vector_store %arg8[%c0_32, %c0_33], %64 {strides = array<i32>} : memref<288x1024xbf16, #tpu.memory_space<vmem>>, vector<32x1024xbf16>,
    %c32_i32_34 = arith.constant 32 : i32
    %66 = tpu.dynamic_rotate %59 by %c32_i32_34 dim 1 : vector<32x1024xf32>, i32 -> vector<32x1024xf32>
    %c1_35 = arith.constant 1 : index
    %c0_36 = arith.constant 0 : index
    %67 = vector.load %arg2[%c1_35, %c0_36] : memref<9x1024xf32, #tpu.memory_space<vmem>>, vector<1x1024xf32>
    %68 = vector.broadcast %67 : vector<1x1024xf32> to vector<32x1024xf32>
    %69 = arith.mulf %66, %68 : vector<32x1024xf32>
    %70 = arith.truncf %69 : vector<32x1024xf32> to vector<32x1024xbf16>
    %c32_37 = arith.constant 32 : index
    %c0_38 = arith.constant 0 : index
    %71 = vector.load %arg8[%c32_37, %c0_38] : memref<288x1024xbf16, #tpu.memory_space<vmem>>, vector<32x1024xbf16>
    tpu.vector_store %arg8[%c32_37, %c0_38], %70 {strides = array<i32>} : memref<288x1024xbf16, #tpu.memory_space<vmem>>, vector<32x1024xbf16>,
    %c31_i32_39 = arith.constant 31 : i32
    %72 = tpu.dynamic_rotate %59 by %c31_i32_39 dim 1 : vector<32x1024xf32>, i32 -> vector<32x1024xf32>
    %c2_40 = arith.constant 2 : index
    %c0_41 = arith.constant 0 : index
    %73 = vector.load %arg2[%c2_40, %c0_41] : memref<9x1024xf32, #tpu.memory_space<vmem>>, vector<1x1024xf32>
    %74 = vector.broadcast %73 : vector<1x1024xf32> to vector<32x1024xf32>
    %75 = arith.mulf %72, %74 : vector<32x1024xf32>
    %76 = arith.truncf %75 : vector<32x1024xf32> to vector<32x1024xbf16>
    %c64 = arith.constant 64 : index
    %c0_42 = arith.constant 0 : index
    %77 = vector.load %arg8[%c64, %c0_42] : memref<288x1024xbf16, #tpu.memory_space<vmem>>, vector<32x1024xbf16>
    tpu.vector_store %arg8[%c64, %c0_42], %76 {strides = array<i32>} : memref<288x1024xbf16, #tpu.memory_space<vmem>>, vector<32x1024xbf16>,
    %c1_i32_43 = arith.constant 1 : i32
    %78 = tpu.dynamic_rotate %59 by %c1_i32_43 dim 1 : vector<32x1024xf32>, i32 -> vector<32x1024xf32>
    %c3_44 = arith.constant 3 : index
    %c0_45 = arith.constant 0 : index
    %79 = vector.load %arg2[%c3_44, %c0_45] : memref<9x1024xf32, #tpu.memory_space<vmem>>, vector<1x1024xf32>
    %80 = vector.broadcast %79 : vector<1x1024xf32> to vector<32x1024xf32>
    %81 = arith.mulf %78, %80 : vector<32x1024xf32>
    %82 = arith.truncf %81 : vector<32x1024xf32> to vector<32x1024xbf16>
    %c96 = arith.constant 96 : index
    %c0_46 = arith.constant 0 : index
    %83 = vector.load %arg8[%c96, %c0_46] : memref<288x1024xbf16, #tpu.memory_space<vmem>>, vector<32x1024xbf16>
    tpu.vector_store %arg8[%c96, %c0_46], %82 {strides = array<i32>} : memref<288x1024xbf16, #tpu.memory_space<vmem>>, vector<32x1024xbf16>,
    %84 = arith.truncf %59 : vector<32x1024xf32> to vector<32x1024xbf16>
    %c128 = arith.constant 128 : index
    %c0_47 = arith.constant 0 : index
    %85 = vector.load %arg8[%c128, %c0_47] : memref<288x1024xbf16, #tpu.memory_space<vmem>>, vector<32x1024xbf16>
    tpu.vector_store %arg8[%c128, %c0_47], %84 {strides = array<i32>} : memref<288x1024xbf16, #tpu.memory_space<vmem>>, vector<32x1024xbf16>,
    %c1023_i32_48 = arith.constant 1023 : i32
    %86 = tpu.dynamic_rotate %59 by %c1023_i32_48 dim 1 : vector<32x1024xf32>, i32 -> vector<32x1024xf32>
    %c5_49 = arith.constant 5 : index
    %c0_50 = arith.constant 0 : index
    %87 = vector.load %arg2[%c5_49, %c0_50] : memref<9x1024xf32, #tpu.memory_space<vmem>>, vector<1x1024xf32>
    %88 = vector.broadcast %87 : vector<1x1024xf32> to vector<32x1024xf32>
    %89 = arith.mulf %86, %88 : vector<32x1024xf32>
    %90 = arith.truncf %89 : vector<32x1024xf32> to vector<32x1024xbf16>
    %c160 = arith.constant 160 : index
    %c0_51 = arith.constant 0 : index
    %91 = vector.load %arg8[%c160, %c0_51] : memref<288x1024xbf16, #tpu.memory_space<vmem>>, vector<32x1024xbf16>
    tpu.vector_store %arg8[%c160, %c0_51], %90 {strides = array<i32>} : memref<288x1024xbf16, #tpu.memory_space<vmem>>, vector<32x1024xbf16>,
    %c993_i32_52 = arith.constant 993 : i32
    %92 = tpu.dynamic_rotate %59 by %c993_i32_52 dim 1 : vector<32x1024xf32>, i32 -> vector<32x1024xf32>
    %c6_53 = arith.constant 6 : index
    %c0_54 = arith.constant 0 : index
    %93 = vector.load %arg2[%c6_53, %c0_54] : memref<9x1024xf32, #tpu.memory_space<vmem>>, vector<1x1024xf32>
    %94 = vector.broadcast %93 : vector<1x1024xf32> to vector<32x1024xf32>
    %95 = arith.mulf %92, %94 : vector<32x1024xf32>
    %96 = arith.truncf %95 : vector<32x1024xf32> to vector<32x1024xbf16>
    %c192 = arith.constant 192 : index
    %c0_55 = arith.constant 0 : index
    %97 = vector.load %arg8[%c192, %c0_55] : memref<288x1024xbf16, #tpu.memory_space<vmem>>, vector<32x1024xbf16>
    tpu.vector_store %arg8[%c192, %c0_55], %96 {strides = array<i32>} : memref<288x1024xbf16, #tpu.memory_space<vmem>>, vector<32x1024xbf16>,
    %c992_i32_56 = arith.constant 992 : i32
    %98 = tpu.dynamic_rotate %59 by %c992_i32_56 dim 1 : vector<32x1024xf32>, i32 -> vector<32x1024xf32>
    %c7_57 = arith.constant 7 : index
    %c0_58 = arith.constant 0 : index
    %99 = vector.load %arg2[%c7_57, %c0_58] : memref<9x1024xf32, #tpu.memory_space<vmem>>, vector<1x1024xf32>
    %100 = vector.broadcast %99 : vector<1x1024xf32> to vector<32x1024xf32>
    %101 = arith.mulf %98, %100 : vector<32x1024xf32>
    %102 = arith.truncf %101 : vector<32x1024xf32> to vector<32x1024xbf16>
    %c224 = arith.constant 224 : index
    %c0_59 = arith.constant 0 : index
    %103 = vector.load %arg8[%c224, %c0_59] : memref<288x1024xbf16, #tpu.memory_space<vmem>>, vector<32x1024xbf16>
    tpu.vector_store %arg8[%c224, %c0_59], %102 {strides = array<i32>} : memref<288x1024xbf16, #tpu.memory_space<vmem>>, vector<32x1024xbf16>,
    %c991_i32_60 = arith.constant 991 : i32
    %104 = tpu.dynamic_rotate %59 by %c991_i32_60 dim 1 : vector<32x1024xf32>, i32 -> vector<32x1024xf32>
    %c8_61 = arith.constant 8 : index
    %c0_62 = arith.constant 0 : index
    %105 = vector.load %arg2[%c8_61, %c0_62] : memref<9x1024xf32, #tpu.memory_space<vmem>>, vector<1x1024xf32>
    %106 = vector.broadcast %105 : vector<1x1024xf32> to vector<32x1024xf32>
    %107 = arith.mulf %104, %106 : vector<32x1024xf32>
    %108 = arith.truncf %107 : vector<32x1024xf32> to vector<32x1024xbf16>
    %c256 = arith.constant 256 : index
    %c0_63 = arith.constant 0 : index
    %109 = vector.load %arg8[%c256, %c0_63] : memref<288x1024xbf16, #tpu.memory_space<vmem>>, vector<32x1024xbf16>
    tpu.vector_store %arg8[%c256, %c0_63], %108 {strides = array<i32>} : memref<288x1024xbf16, #tpu.memory_space<vmem>>, vector<32x1024xbf16>,
    %c0_64 = arith.constant 0 : index
    %c0_65 = arith.constant 0 : index
    %110 = vector.load %arg5[%c0_64, %c0_65] : memref<32x288xbf16, #tpu.memory_space<vmem>>, vector<32x288xbf16>
    %c0_66 = arith.constant 0 : index
    %c0_67 = arith.constant 0 : index
    %111 = vector.load %arg8[%c0_66, %c0_67] : memref<288x1024xbf16, #tpu.memory_space<vmem>>, vector<288x1024xbf16>
    %cst_68 = arith.constant dense<0.000000e+00> : vector<32x1024xf32>
    %112 = tpu.matmul %110, %111, %cst_68 {dimension_numbers = #tpu.dot_dimension_numbers<[1], [0], [0], [1], [0, 0, 1, 1], [], []>} : vector<32x288xbf16>, vector<288x1024xbf16>, vector<32x1024xf32> -> vector<32x1024xf32>
    %c0_69 = arith.constant 0 : index
    %c1_70 = arith.constant 1 : index
    %113 = vector.load %arg3[%c0_69, %c1_70] : memref<32x3xf32, #tpu.memory_space<vmem>>, vector<32x1xf32>
    %114 = vector.broadcast %113 : vector<32x1xf32> to vector<32x1024xf32>
    %115 = arith.addf %112, %114 : vector<32x1024xf32>
    %cst_71 = arith.constant 0.000000e+00 : f32
    %116 = vector.broadcast %cst_71 : f32 to vector<32x1024xf32>
    %117 = arith.maximumf %115, %116 : vector<32x1024xf32>
    %c33_i32_72 = arith.constant 33 : i32
    %118 = tpu.dynamic_rotate %117 by %c33_i32_72 dim 1 : vector<32x1024xf32>, i32 -> vector<32x1024xf32>
    %c0_73 = arith.constant 0 : index
    %c0_74 = arith.constant 0 : index
    %119 = vector.load %arg2[%c0_73, %c0_74] : memref<9x1024xf32, #tpu.memory_space<vmem>>, vector<1x1024xf32>
    %120 = vector.broadcast %119 : vector<1x1024xf32> to vector<32x1024xf32>
    %121 = arith.mulf %118, %120 : vector<32x1024xf32>
    %122 = arith.truncf %121 : vector<32x1024xf32> to vector<32x1024xbf16>
    %c0_75 = arith.constant 0 : index
    %c0_76 = arith.constant 0 : index
    %123 = vector.load %arg8[%c0_75, %c0_76] : memref<288x1024xbf16, #tpu.memory_space<vmem>>, vector<32x1024xbf16>
    tpu.vector_store %arg8[%c0_75, %c0_76], %122 {strides = array<i32>} : memref<288x1024xbf16, #tpu.memory_space<vmem>>, vector<32x1024xbf16>,
    %c32_i32_77 = arith.constant 32 : i32
    %124 = tpu.dynamic_rotate %117 by %c32_i32_77 dim 1 : vector<32x1024xf32>, i32 -> vector<32x1024xf32>
    %c1_78 = arith.constant 1 : index
    %c0_79 = arith.constant 0 : index
    %125 = vector.load %arg2[%c1_78, %c0_79] : memref<9x1024xf32, #tpu.memory_space<vmem>>, vector<1x1024xf32>
    %126 = vector.broadcast %125 : vector<1x1024xf32> to vector<32x1024xf32>
    %127 = arith.mulf %124, %126 : vector<32x1024xf32>
    %128 = arith.truncf %127 : vector<32x1024xf32> to vector<32x1024xbf16>
    %c32_80 = arith.constant 32 : index
    %c0_81 = arith.constant 0 : index
    %129 = vector.load %arg8[%c32_80, %c0_81] : memref<288x1024xbf16, #tpu.memory_space<vmem>>, vector<32x1024xbf16>
    tpu.vector_store %arg8[%c32_80, %c0_81], %128 {strides = array<i32>} : memref<288x1024xbf16, #tpu.memory_space<vmem>>, vector<32x1024xbf16>,
    %c31_i32_82 = arith.constant 31 : i32
    %130 = tpu.dynamic_rotate %117 by %c31_i32_82 dim 1 : vector<32x1024xf32>, i32 -> vector<32x1024xf32>
    %c2_83 = arith.constant 2 : index
    %c0_84 = arith.constant 0 : index
    %131 = vector.load %arg2[%c2_83, %c0_84] : memref<9x1024xf32, #tpu.memory_space<vmem>>, vector<1x1024xf32>
    %132 = vector.broadcast %131 : vector<1x1024xf32> to vector<32x1024xf32>
    %133 = arith.mulf %130, %132 : vector<32x1024xf32>
    %134 = arith.truncf %133 : vector<32x1024xf32> to vector<32x1024xbf16>
    %c64_85 = arith.constant 64 : index
    %c0_86 = arith.constant 0 : index
    %135 = vector.load %arg8[%c64_85, %c0_86] : memref<288x1024xbf16, #tpu.memory_space<vmem>>, vector<32x1024xbf16>
    tpu.vector_store %arg8[%c64_85, %c0_86], %134 {strides = array<i32>} : memref<288x1024xbf16, #tpu.memory_space<vmem>>, vector<32x1024xbf16>,
    %c1_i32_87 = arith.constant 1 : i32
    %136 = tpu.dynamic_rotate %117 by %c1_i32_87 dim 1 : vector<32x1024xf32>, i32 -> vector<32x1024xf32>
    %c3_88 = arith.constant 3 : index
    %c0_89 = arith.constant 0 : index
    %137 = vector.load %arg2[%c3_88, %c0_89] : memref<9x1024xf32, #tpu.memory_space<vmem>>, vector<1x1024xf32>
    %138 = vector.broadcast %137 : vector<1x1024xf32> to vector<32x1024xf32>
    %139 = arith.mulf %136, %138 : vector<32x1024xf32>
    %140 = arith.truncf %139 : vector<32x1024xf32> to vector<32x1024xbf16>
    %c96_90 = arith.constant 96 : index
    %c0_91 = arith.constant 0 : index
    %141 = vector.load %arg8[%c96_90, %c0_91] : memref<288x1024xbf16, #tpu.memory_space<vmem>>, vector<32x1024xbf16>
    tpu.vector_store %arg8[%c96_90, %c0_91], %140 {strides = array<i32>} : memref<288x1024xbf16, #tpu.memory_space<vmem>>, vector<32x1024xbf16>,
    %142 = arith.truncf %117 : vector<32x1024xf32> to vector<32x1024xbf16>
    %c128_92 = arith.constant 128 : index
    %c0_93 = arith.constant 0 : index
    %143 = vector.load %arg8[%c128_92, %c0_93] : memref<288x1024xbf16, #tpu.memory_space<vmem>>, vector<32x1024xbf16>
    tpu.vector_store %arg8[%c128_92, %c0_93], %142 {strides = array<i32>} : memref<288x1024xbf16, #tpu.memory_space<vmem>>, vector<32x1024xbf16>,
    %c1023_i32_94 = arith.constant 1023 : i32
    %144 = tpu.dynamic_rotate %117 by %c1023_i32_94 dim 1 : vector<32x1024xf32>, i32 -> vector<32x1024xf32>
    %c5_95 = arith.constant 5 : index
    %c0_96 = arith.constant 0 : index
    %145 = vector.load %arg2[%c5_95, %c0_96] : memref<9x1024xf32, #tpu.memory_space<vmem>>, vector<1x1024xf32>
    %146 = vector.broadcast %145 : vector<1x1024xf32> to vector<32x1024xf32>
    %147 = arith.mulf %144, %146 : vector<32x1024xf32>
    %148 = arith.truncf %147 : vector<32x1024xf32> to vector<32x1024xbf16>
    %c160_97 = arith.constant 160 : index
    %c0_98 = arith.constant 0 : index
    %149 = vector.load %arg8[%c160_97, %c0_98] : memref<288x1024xbf16, #tpu.memory_space<vmem>>, vector<32x1024xbf16>
    tpu.vector_store %arg8[%c160_97, %c0_98], %148 {strides = array<i32>} : memref<288x1024xbf16, #tpu.memory_space<vmem>>, vector<32x1024xbf16>,
    %c993_i32_99 = arith.constant 993 : i32
    %150 = tpu.dynamic_rotate %117 by %c993_i32_99 dim 1 : vector<32x1024xf32>, i32 -> vector<32x1024xf32>
    %c6_100 = arith.constant 6 : index
    %c0_101 = arith.constant 0 : index
    %151 = vector.load %arg2[%c6_100, %c0_101] : memref<9x1024xf32, #tpu.memory_space<vmem>>, vector<1x1024xf32>
    %152 = vector.broadcast %151 : vector<1x1024xf32> to vector<32x1024xf32>
    %153 = arith.mulf %150, %152 : vector<32x1024xf32>
    %154 = arith.truncf %153 : vector<32x1024xf32> to vector<32x1024xbf16>
    %c192_102 = arith.constant 192 : index
    %c0_103 = arith.constant 0 : index
    %155 = vector.load %arg8[%c192_102, %c0_103] : memref<288x1024xbf16, #tpu.memory_space<vmem>>, vector<32x1024xbf16>
    tpu.vector_store %arg8[%c192_102, %c0_103], %154 {strides = array<i32>} : memref<288x1024xbf16, #tpu.memory_space<vmem>>, vector<32x1024xbf16>,
    %c992_i32_104 = arith.constant 992 : i32
    %156 = tpu.dynamic_rotate %117 by %c992_i32_104 dim 1 : vector<32x1024xf32>, i32 -> vector<32x1024xf32>
    %c7_105 = arith.constant 7 : index
    %c0_106 = arith.constant 0 : index
    %157 = vector.load %arg2[%c7_105, %c0_106] : memref<9x1024xf32, #tpu.memory_space<vmem>>, vector<1x1024xf32>
    %158 = vector.broadcast %157 : vector<1x1024xf32> to vector<32x1024xf32>
    %159 = arith.mulf %156, %158 : vector<32x1024xf32>
    %160 = arith.truncf %159 : vector<32x1024xf32> to vector<32x1024xbf16>
    %c224_107 = arith.constant 224 : index
    %c0_108 = arith.constant 0 : index
    %161 = vector.load %arg8[%c224_107, %c0_108] : memref<288x1024xbf16, #tpu.memory_space<vmem>>, vector<32x1024xbf16>
    tpu.vector_store %arg8[%c224_107, %c0_108], %160 {strides = array<i32>} : memref<288x1024xbf16, #tpu.memory_space<vmem>>, vector<32x1024xbf16>,
    %c991_i32_109 = arith.constant 991 : i32
    %162 = tpu.dynamic_rotate %117 by %c991_i32_109 dim 1 : vector<32x1024xf32>, i32 -> vector<32x1024xf32>
    %c8_110 = arith.constant 8 : index
    %c0_111 = arith.constant 0 : index
    %163 = vector.load %arg2[%c8_110, %c0_111] : memref<9x1024xf32, #tpu.memory_space<vmem>>, vector<1x1024xf32>
    %164 = vector.broadcast %163 : vector<1x1024xf32> to vector<32x1024xf32>
    %165 = arith.mulf %162, %164 : vector<32x1024xf32>
    %166 = arith.truncf %165 : vector<32x1024xf32> to vector<32x1024xbf16>
    %c256_112 = arith.constant 256 : index
    %c0_113 = arith.constant 0 : index
    %167 = vector.load %arg8[%c256_112, %c0_113] : memref<288x1024xbf16, #tpu.memory_space<vmem>>, vector<32x1024xbf16>
    tpu.vector_store %arg8[%c256_112, %c0_113], %166 {strides = array<i32>} : memref<288x1024xbf16, #tpu.memory_space<vmem>>, vector<32x1024xbf16>,
    %c0_114 = arith.constant 0 : index
    %c0_115 = arith.constant 0 : index
    %168 = vector.load %arg6[%c0_114, %c0_115] : memref<32x288xbf16, #tpu.memory_space<vmem>>, vector<32x288xbf16>
    %c0_116 = arith.constant 0 : index
    %c0_117 = arith.constant 0 : index
    %169 = vector.load %arg8[%c0_116, %c0_117] : memref<288x1024xbf16, #tpu.memory_space<vmem>>, vector<288x1024xbf16>
    %cst_118 = arith.constant dense<0.000000e+00> : vector<32x1024xf32>
    %170 = tpu.matmul %168, %169, %cst_118 {dimension_numbers = #tpu.dot_dimension_numbers<[1], [0], [0], [1], [0, 0, 1, 1], [], []>} : vector<32x288xbf16>, vector<288x1024xbf16>, vector<32x1024xf32> -> vector<32x1024xf32>
    %c0_119 = arith.constant 0 : index
    %c2_120 = arith.constant 2 : index
    %171 = vector.load %arg3[%c0_119, %c2_120] : memref<32x3xf32, #tpu.memory_space<vmem>>, vector<32x1xf32>
    %172 = vector.broadcast %171 : vector<32x1xf32> to vector<32x1024xf32>
    %173 = arith.addf %170, %172 : vector<32x1024xf32>
    %cst_121 = arith.constant 0.000000e+00 : f32
    %174 = vector.broadcast %cst_121 : f32 to vector<32x1024xf32>
    %175 = arith.maximumf %173, %174 : vector<32x1024xf32>
    %c0_122 = arith.constant 0 : index
    %c0_123 = arith.constant 0 : index
    %c0_124 = arith.constant 0 : index
    %176 = vector.load %arg7[%c0_122, %c0_123, %c0_124] : memref<1x32x1024xf32, #tpu.memory_space<vmem>>, vector<1x32x1024xf32>
    %177 = vector.shape_cast %176 : vector<1x32x1024xf32> to vector<32x1024xf32>
    %178 = vector.shape_cast %175 : vector<32x1024xf32> to vector<1x32x1024xf32>
    tpu.vector_store %arg7[%c0_122, %c0_123, %c0_124], %178 {strides = array<i32>} : memref<1x32x1024xf32, #tpu.memory_space<vmem>>, vector<1x32x1024xf32>,
    return
  }
  func.func @transform_0(%arg0: i32) -> (i32, i32, i32) {
    %c0_i32 = arith.constant 0 : i32
    %c0_i32_0 = arith.constant 0 : i32
    %c0_i32_1 = arith.constant 0 : i32
    return %arg0, %c0_i32, %c0_i32_0 : i32, i32, i32
  }
  func.func @transform_1(%arg0: i32) -> (i32, i32) {
    %c0_i32 = arith.constant 0 : i32
    %c0_i32_0 = arith.constant 0 : i32
    %c0_i32_1 = arith.constant 0 : i32
    return %c0_i32, %c0_i32_0 : i32, i32
  }
  func.func @transform_2(%arg0: i32) -> (i32, i32) {
    %c0_i32 = arith.constant 0 : i32
    %c0_i32_0 = arith.constant 0 : i32
    %c0_i32_1 = arith.constant 0 : i32
    return %c0_i32, %c0_i32_0 : i32, i32
  }
  func.func @transform_3(%arg0: i32) -> (i32, i32) {
    %c0_i32 = arith.constant 0 : i32
    %c0_i32_0 = arith.constant 0 : i32
    %c0_i32_1 = arith.constant 0 : i32
    return %c0_i32, %c0_i32_0 : i32, i32
  }
  func.func @transform_4(%arg0: i32) -> (i32, i32) {
    %c0_i32 = arith.constant 0 : i32
    %c0_i32_0 = arith.constant 0 : i32
    %c0_i32_1 = arith.constant 0 : i32
    return %c0_i32, %c0_i32_0 : i32, i32
  }
  func.func @transform_5(%arg0: i32) -> (i32, i32) {
    %c0_i32 = arith.constant 0 : i32
    %c0_i32_0 = arith.constant 0 : i32
    %c0_i32_1 = arith.constant 0 : i32
    return %c0_i32, %c0_i32_0 : i32, i32
  }
  func.func @transform_6(%arg0: i32) -> (i32, i32, i32) {
    %c0_i32 = arith.constant 0 : i32
    %c0_i32_0 = arith.constant 0 : i32
    %c0_i32_1 = arith.constant 0 : i32
    return %arg0, %c0_i32, %c0_i32_0 : i32, i32, i32
  }
}

module attributes {stable_mosaic.version = 11 : i64} {
  func.func @_conv_block_kernel(%arg0: i32, %arg1: memref<1x32x256xf32, #tpu.memory_space<vmem>>, %arg2: memref<9x256xf32, #tpu.memory_space<vmem>>, %arg3: memref<64x3xf32, #tpu.memory_space<vmem>>, %arg4: memref<64x288xbf16, #tpu.memory_space<vmem>>, %arg5: memref<64x576xbf16, #tpu.memory_space<vmem>>, %arg6: memref<64x576xbf16, #tpu.memory_space<vmem>>, %arg7: memref<1x64x256xf32, #tpu.memory_space<vmem>>, %arg8: memref<576x256xbf16, #tpu.memory_space<vmem>>) attributes {dimension_semantics = [#tpu.dimension_semantics<parallel>], iteration_bounds = array<i64: 2>, scalar_prefetch = 0 : i64, scratch_operands = 1 : i64, tpu.core_type = #tpu.core_type<tc>, window_params = [{transform_indices = @transform_0, window_bounds = array<i64: 1, 32, 256>}, {pipeline_mode = #tpu.pipeline_mode<synchronous>, transform_indices = @transform_1, window_bounds = array<i64: 9, 256>}, {pipeline_mode = #tpu.pipeline_mode<synchronous>, transform_indices = @transform_2, window_bounds = array<i64: 64, 3>}, {pipeline_mode = #tpu.pipeline_mode<synchronous>, transform_indices = @transform_3, window_bounds = array<i64: 64, 288>}, {pipeline_mode = #tpu.pipeline_mode<synchronous>, transform_indices = @transform_4, window_bounds = array<i64: 64, 576>}, {pipeline_mode = #tpu.pipeline_mode<synchronous>, transform_indices = @transform_5, window_bounds = array<i64: 64, 576>}, {transform_indices = @transform_6, window_bounds = array<i64: 1, 64, 256>}]} {
    %c0 = arith.constant 0 : index
    %c0_0 = arith.constant 0 : index
    %c0_1 = arith.constant 0 : index
    %0 = vector.load %arg1[%c0, %c0_0, %c0_1] : memref<1x32x256xf32, #tpu.memory_space<vmem>>, vector<1x32x256xf32>
    %1 = vector.shape_cast %0 : vector<1x32x256xf32> to vector<32x256xf32>
    %c17_i32 = arith.constant 17 : i32
    %2 = tpu.dynamic_rotate %1 by %c17_i32 dim 1 : vector<32x256xf32>, i32 -> vector<32x256xf32>
    %c0_2 = arith.constant 0 : index
    %c0_3 = arith.constant 0 : index
    %3 = vector.load %arg2[%c0_2, %c0_3] : memref<9x256xf32, #tpu.memory_space<vmem>>, vector<1x256xf32>
    %4 = vector.broadcast %3 : vector<1x256xf32> to vector<32x256xf32>
    %5 = arith.mulf %2, %4 : vector<32x256xf32>
    %6 = arith.truncf %5 : vector<32x256xf32> to vector<32x256xbf16>
    %c0_4 = arith.constant 0 : index
    %c0_5 = arith.constant 0 : index
    %7 = vector.load %arg8[%c0_4, %c0_5] : memref<576x256xbf16, #tpu.memory_space<vmem>>, vector<32x256xbf16>
    tpu.vector_store %arg8[%c0_4, %c0_5], %6 {strides = array<i32>} : memref<576x256xbf16, #tpu.memory_space<vmem>>, vector<32x256xbf16>,
    %c16_i32 = arith.constant 16 : i32
    %8 = tpu.dynamic_rotate %1 by %c16_i32 dim 1 : vector<32x256xf32>, i32 -> vector<32x256xf32>
    %c1 = arith.constant 1 : index
    %c0_6 = arith.constant 0 : index
    %9 = vector.load %arg2[%c1, %c0_6] : memref<9x256xf32, #tpu.memory_space<vmem>>, vector<1x256xf32>
    %10 = vector.broadcast %9 : vector<1x256xf32> to vector<32x256xf32>
    %11 = arith.mulf %8, %10 : vector<32x256xf32>
    %12 = arith.truncf %11 : vector<32x256xf32> to vector<32x256xbf16>
    %c32 = arith.constant 32 : index
    %c0_7 = arith.constant 0 : index
    %13 = vector.load %arg8[%c32, %c0_7] : memref<576x256xbf16, #tpu.memory_space<vmem>>, vector<32x256xbf16>
    tpu.vector_store %arg8[%c32, %c0_7], %12 {strides = array<i32>} : memref<576x256xbf16, #tpu.memory_space<vmem>>, vector<32x256xbf16>,
    %c15_i32 = arith.constant 15 : i32
    %14 = tpu.dynamic_rotate %1 by %c15_i32 dim 1 : vector<32x256xf32>, i32 -> vector<32x256xf32>
    %c2 = arith.constant 2 : index
    %c0_8 = arith.constant 0 : index
    %15 = vector.load %arg2[%c2, %c0_8] : memref<9x256xf32, #tpu.memory_space<vmem>>, vector<1x256xf32>
    %16 = vector.broadcast %15 : vector<1x256xf32> to vector<32x256xf32>
    %17 = arith.mulf %14, %16 : vector<32x256xf32>
    %18 = arith.truncf %17 : vector<32x256xf32> to vector<32x256xbf16>
    %c64 = arith.constant 64 : index
    %c0_9 = arith.constant 0 : index
    %19 = vector.load %arg8[%c64, %c0_9] : memref<576x256xbf16, #tpu.memory_space<vmem>>, vector<32x256xbf16>
    tpu.vector_store %arg8[%c64, %c0_9], %18 {strides = array<i32>} : memref<576x256xbf16, #tpu.memory_space<vmem>>, vector<32x256xbf16>,
    %c1_i32 = arith.constant 1 : i32
    %20 = tpu.dynamic_rotate %1 by %c1_i32 dim 1 : vector<32x256xf32>, i32 -> vector<32x256xf32>
    %c3 = arith.constant 3 : index
    %c0_10 = arith.constant 0 : index
    %21 = vector.load %arg2[%c3, %c0_10] : memref<9x256xf32, #tpu.memory_space<vmem>>, vector<1x256xf32>
    %22 = vector.broadcast %21 : vector<1x256xf32> to vector<32x256xf32>
    %23 = arith.mulf %20, %22 : vector<32x256xf32>
    %24 = arith.truncf %23 : vector<32x256xf32> to vector<32x256xbf16>
    %c96 = arith.constant 96 : index
    %c0_11 = arith.constant 0 : index
    %25 = vector.load %arg8[%c96, %c0_11] : memref<576x256xbf16, #tpu.memory_space<vmem>>, vector<32x256xbf16>
    tpu.vector_store %arg8[%c96, %c0_11], %24 {strides = array<i32>} : memref<576x256xbf16, #tpu.memory_space<vmem>>, vector<32x256xbf16>,
    %26 = arith.truncf %1 : vector<32x256xf32> to vector<32x256xbf16>
    %c128 = arith.constant 128 : index
    %c0_12 = arith.constant 0 : index
    %27 = vector.load %arg8[%c128, %c0_12] : memref<576x256xbf16, #tpu.memory_space<vmem>>, vector<32x256xbf16>
    tpu.vector_store %arg8[%c128, %c0_12], %26 {strides = array<i32>} : memref<576x256xbf16, #tpu.memory_space<vmem>>, vector<32x256xbf16>,
    %c255_i32 = arith.constant 255 : i32
    %28 = tpu.dynamic_rotate %1 by %c255_i32 dim 1 : vector<32x256xf32>, i32 -> vector<32x256xf32>
    %c5 = arith.constant 5 : index
    %c0_13 = arith.constant 0 : index
    %29 = vector.load %arg2[%c5, %c0_13] : memref<9x256xf32, #tpu.memory_space<vmem>>, vector<1x256xf32>
    %30 = vector.broadcast %29 : vector<1x256xf32> to vector<32x256xf32>
    %31 = arith.mulf %28, %30 : vector<32x256xf32>
    %32 = arith.truncf %31 : vector<32x256xf32> to vector<32x256xbf16>
    %c160 = arith.constant 160 : index
    %c0_14 = arith.constant 0 : index
    %33 = vector.load %arg8[%c160, %c0_14] : memref<576x256xbf16, #tpu.memory_space<vmem>>, vector<32x256xbf16>
    tpu.vector_store %arg8[%c160, %c0_14], %32 {strides = array<i32>} : memref<576x256xbf16, #tpu.memory_space<vmem>>, vector<32x256xbf16>,
    %c241_i32 = arith.constant 241 : i32
    %34 = tpu.dynamic_rotate %1 by %c241_i32 dim 1 : vector<32x256xf32>, i32 -> vector<32x256xf32>
    %c6 = arith.constant 6 : index
    %c0_15 = arith.constant 0 : index
    %35 = vector.load %arg2[%c6, %c0_15] : memref<9x256xf32, #tpu.memory_space<vmem>>, vector<1x256xf32>
    %36 = vector.broadcast %35 : vector<1x256xf32> to vector<32x256xf32>
    %37 = arith.mulf %34, %36 : vector<32x256xf32>
    %38 = arith.truncf %37 : vector<32x256xf32> to vector<32x256xbf16>
    %c192 = arith.constant 192 : index
    %c0_16 = arith.constant 0 : index
    %39 = vector.load %arg8[%c192, %c0_16] : memref<576x256xbf16, #tpu.memory_space<vmem>>, vector<32x256xbf16>
    tpu.vector_store %arg8[%c192, %c0_16], %38 {strides = array<i32>} : memref<576x256xbf16, #tpu.memory_space<vmem>>, vector<32x256xbf16>,
    %c240_i32 = arith.constant 240 : i32
    %40 = tpu.dynamic_rotate %1 by %c240_i32 dim 1 : vector<32x256xf32>, i32 -> vector<32x256xf32>
    %c7 = arith.constant 7 : index
    %c0_17 = arith.constant 0 : index
    %41 = vector.load %arg2[%c7, %c0_17] : memref<9x256xf32, #tpu.memory_space<vmem>>, vector<1x256xf32>
    %42 = vector.broadcast %41 : vector<1x256xf32> to vector<32x256xf32>
    %43 = arith.mulf %40, %42 : vector<32x256xf32>
    %44 = arith.truncf %43 : vector<32x256xf32> to vector<32x256xbf16>
    %c224 = arith.constant 224 : index
    %c0_18 = arith.constant 0 : index
    %45 = vector.load %arg8[%c224, %c0_18] : memref<576x256xbf16, #tpu.memory_space<vmem>>, vector<32x256xbf16>
    tpu.vector_store %arg8[%c224, %c0_18], %44 {strides = array<i32>} : memref<576x256xbf16, #tpu.memory_space<vmem>>, vector<32x256xbf16>,
    %c239_i32 = arith.constant 239 : i32
    %46 = tpu.dynamic_rotate %1 by %c239_i32 dim 1 : vector<32x256xf32>, i32 -> vector<32x256xf32>
    %c8 = arith.constant 8 : index
    %c0_19 = arith.constant 0 : index
    %47 = vector.load %arg2[%c8, %c0_19] : memref<9x256xf32, #tpu.memory_space<vmem>>, vector<1x256xf32>
    %48 = vector.broadcast %47 : vector<1x256xf32> to vector<32x256xf32>
    %49 = arith.mulf %46, %48 : vector<32x256xf32>
    %50 = arith.truncf %49 : vector<32x256xf32> to vector<32x256xbf16>
    %c256 = arith.constant 256 : index
    %c0_20 = arith.constant 0 : index
    %51 = vector.load %arg8[%c256, %c0_20] : memref<576x256xbf16, #tpu.memory_space<vmem>>, vector<32x256xbf16>
    tpu.vector_store %arg8[%c256, %c0_20], %50 {strides = array<i32>} : memref<576x256xbf16, #tpu.memory_space<vmem>>, vector<32x256xbf16>,
    %c0_21 = arith.constant 0 : index
    %c0_22 = arith.constant 0 : index
    %52 = vector.load %arg4[%c0_21, %c0_22] : memref<64x288xbf16, #tpu.memory_space<vmem>>, vector<64x288xbf16>
    %c0_23 = arith.constant 0 : index
    %c0_24 = arith.constant 0 : index
    %53 = vector.load %arg8[%c0_23, %c0_24] : memref<576x256xbf16, #tpu.memory_space<vmem>>, vector<288x256xbf16>
    %cst = arith.constant dense<0.000000e+00> : vector<64x256xf32>
    %54 = tpu.matmul %52, %53, %cst {dimension_numbers = #tpu.dot_dimension_numbers<[1], [0], [0], [1], [0, 0, 1, 1], [], []>} : vector<64x288xbf16>, vector<288x256xbf16>, vector<64x256xf32> -> vector<64x256xf32>
    %c0_25 = arith.constant 0 : index
    %c0_26 = arith.constant 0 : index
    %55 = vector.load %arg3[%c0_25, %c0_26] : memref<64x3xf32, #tpu.memory_space<vmem>>, vector<64x1xf32>
    %56 = vector.broadcast %55 : vector<64x1xf32> to vector<64x256xf32>
    %57 = arith.addf %54, %56 : vector<64x256xf32>
    %cst_27 = arith.constant 0.000000e+00 : f32
    %58 = vector.broadcast %cst_27 : f32 to vector<64x256xf32>
    %59 = arith.maximumf %57, %58 : vector<64x256xf32>
    %c17_i32_28 = arith.constant 17 : i32
    %60 = tpu.dynamic_rotate %59 by %c17_i32_28 dim 1 : vector<64x256xf32>, i32 -> vector<64x256xf32>
    %c0_29 = arith.constant 0 : index
    %c0_30 = arith.constant 0 : index
    %61 = vector.load %arg2[%c0_29, %c0_30] : memref<9x256xf32, #tpu.memory_space<vmem>>, vector<1x256xf32>
    %62 = vector.broadcast %61 : vector<1x256xf32> to vector<64x256xf32>
    %63 = arith.mulf %60, %62 : vector<64x256xf32>
    %64 = arith.truncf %63 : vector<64x256xf32> to vector<64x256xbf16>
    %c0_31 = arith.constant 0 : index
    %c0_32 = arith.constant 0 : index
    %65 = vector.load %arg8[%c0_31, %c0_32] : memref<576x256xbf16, #tpu.memory_space<vmem>>, vector<64x256xbf16>
    tpu.vector_store %arg8[%c0_31, %c0_32], %64 {strides = array<i32>} : memref<576x256xbf16, #tpu.memory_space<vmem>>, vector<64x256xbf16>,
    %c16_i32_33 = arith.constant 16 : i32
    %66 = tpu.dynamic_rotate %59 by %c16_i32_33 dim 1 : vector<64x256xf32>, i32 -> vector<64x256xf32>
    %c1_34 = arith.constant 1 : index
    %c0_35 = arith.constant 0 : index
    %67 = vector.load %arg2[%c1_34, %c0_35] : memref<9x256xf32, #tpu.memory_space<vmem>>, vector<1x256xf32>
    %68 = vector.broadcast %67 : vector<1x256xf32> to vector<64x256xf32>
    %69 = arith.mulf %66, %68 : vector<64x256xf32>
    %70 = arith.truncf %69 : vector<64x256xf32> to vector<64x256xbf16>
    %c64_36 = arith.constant 64 : index
    %c0_37 = arith.constant 0 : index
    %71 = vector.load %arg8[%c64_36, %c0_37] : memref<576x256xbf16, #tpu.memory_space<vmem>>, vector<64x256xbf16>
    tpu.vector_store %arg8[%c64_36, %c0_37], %70 {strides = array<i32>} : memref<576x256xbf16, #tpu.memory_space<vmem>>, vector<64x256xbf16>,
    %c15_i32_38 = arith.constant 15 : i32
    %72 = tpu.dynamic_rotate %59 by %c15_i32_38 dim 1 : vector<64x256xf32>, i32 -> vector<64x256xf32>
    %c2_39 = arith.constant 2 : index
    %c0_40 = arith.constant 0 : index
    %73 = vector.load %arg2[%c2_39, %c0_40] : memref<9x256xf32, #tpu.memory_space<vmem>>, vector<1x256xf32>
    %74 = vector.broadcast %73 : vector<1x256xf32> to vector<64x256xf32>
    %75 = arith.mulf %72, %74 : vector<64x256xf32>
    %76 = arith.truncf %75 : vector<64x256xf32> to vector<64x256xbf16>
    %c128_41 = arith.constant 128 : index
    %c0_42 = arith.constant 0 : index
    %77 = vector.load %arg8[%c128_41, %c0_42] : memref<576x256xbf16, #tpu.memory_space<vmem>>, vector<64x256xbf16>
    tpu.vector_store %arg8[%c128_41, %c0_42], %76 {strides = array<i32>} : memref<576x256xbf16, #tpu.memory_space<vmem>>, vector<64x256xbf16>,
    %c1_i32_43 = arith.constant 1 : i32
    %78 = tpu.dynamic_rotate %59 by %c1_i32_43 dim 1 : vector<64x256xf32>, i32 -> vector<64x256xf32>
    %c3_44 = arith.constant 3 : index
    %c0_45 = arith.constant 0 : index
    %79 = vector.load %arg2[%c3_44, %c0_45] : memref<9x256xf32, #tpu.memory_space<vmem>>, vector<1x256xf32>
    %80 = vector.broadcast %79 : vector<1x256xf32> to vector<64x256xf32>
    %81 = arith.mulf %78, %80 : vector<64x256xf32>
    %82 = arith.truncf %81 : vector<64x256xf32> to vector<64x256xbf16>
    %c192_46 = arith.constant 192 : index
    %c0_47 = arith.constant 0 : index
    %83 = vector.load %arg8[%c192_46, %c0_47] : memref<576x256xbf16, #tpu.memory_space<vmem>>, vector<64x256xbf16>
    tpu.vector_store %arg8[%c192_46, %c0_47], %82 {strides = array<i32>} : memref<576x256xbf16, #tpu.memory_space<vmem>>, vector<64x256xbf16>,
    %84 = arith.truncf %59 : vector<64x256xf32> to vector<64x256xbf16>
    %c256_48 = arith.constant 256 : index
    %c0_49 = arith.constant 0 : index
    %85 = vector.load %arg8[%c256_48, %c0_49] : memref<576x256xbf16, #tpu.memory_space<vmem>>, vector<64x256xbf16>
    tpu.vector_store %arg8[%c256_48, %c0_49], %84 {strides = array<i32>} : memref<576x256xbf16, #tpu.memory_space<vmem>>, vector<64x256xbf16>,
    %c255_i32_50 = arith.constant 255 : i32
    %86 = tpu.dynamic_rotate %59 by %c255_i32_50 dim 1 : vector<64x256xf32>, i32 -> vector<64x256xf32>
    %c5_51 = arith.constant 5 : index
    %c0_52 = arith.constant 0 : index
    %87 = vector.load %arg2[%c5_51, %c0_52] : memref<9x256xf32, #tpu.memory_space<vmem>>, vector<1x256xf32>
    %88 = vector.broadcast %87 : vector<1x256xf32> to vector<64x256xf32>
    %89 = arith.mulf %86, %88 : vector<64x256xf32>
    %90 = arith.truncf %89 : vector<64x256xf32> to vector<64x256xbf16>
    %c320 = arith.constant 320 : index
    %c0_53 = arith.constant 0 : index
    %91 = vector.load %arg8[%c320, %c0_53] : memref<576x256xbf16, #tpu.memory_space<vmem>>, vector<64x256xbf16>
    tpu.vector_store %arg8[%c320, %c0_53], %90 {strides = array<i32>} : memref<576x256xbf16, #tpu.memory_space<vmem>>, vector<64x256xbf16>,
    %c241_i32_54 = arith.constant 241 : i32
    %92 = tpu.dynamic_rotate %59 by %c241_i32_54 dim 1 : vector<64x256xf32>, i32 -> vector<64x256xf32>
    %c6_55 = arith.constant 6 : index
    %c0_56 = arith.constant 0 : index
    %93 = vector.load %arg2[%c6_55, %c0_56] : memref<9x256xf32, #tpu.memory_space<vmem>>, vector<1x256xf32>
    %94 = vector.broadcast %93 : vector<1x256xf32> to vector<64x256xf32>
    %95 = arith.mulf %92, %94 : vector<64x256xf32>
    %96 = arith.truncf %95 : vector<64x256xf32> to vector<64x256xbf16>
    %c384 = arith.constant 384 : index
    %c0_57 = arith.constant 0 : index
    %97 = vector.load %arg8[%c384, %c0_57] : memref<576x256xbf16, #tpu.memory_space<vmem>>, vector<64x256xbf16>
    tpu.vector_store %arg8[%c384, %c0_57], %96 {strides = array<i32>} : memref<576x256xbf16, #tpu.memory_space<vmem>>, vector<64x256xbf16>,
    %c240_i32_58 = arith.constant 240 : i32
    %98 = tpu.dynamic_rotate %59 by %c240_i32_58 dim 1 : vector<64x256xf32>, i32 -> vector<64x256xf32>
    %c7_59 = arith.constant 7 : index
    %c0_60 = arith.constant 0 : index
    %99 = vector.load %arg2[%c7_59, %c0_60] : memref<9x256xf32, #tpu.memory_space<vmem>>, vector<1x256xf32>
    %100 = vector.broadcast %99 : vector<1x256xf32> to vector<64x256xf32>
    %101 = arith.mulf %98, %100 : vector<64x256xf32>
    %102 = arith.truncf %101 : vector<64x256xf32> to vector<64x256xbf16>
    %c448 = arith.constant 448 : index
    %c0_61 = arith.constant 0 : index
    %103 = vector.load %arg8[%c448, %c0_61] : memref<576x256xbf16, #tpu.memory_space<vmem>>, vector<64x256xbf16>
    tpu.vector_store %arg8[%c448, %c0_61], %102 {strides = array<i32>} : memref<576x256xbf16, #tpu.memory_space<vmem>>, vector<64x256xbf16>,
    %c239_i32_62 = arith.constant 239 : i32
    %104 = tpu.dynamic_rotate %59 by %c239_i32_62 dim 1 : vector<64x256xf32>, i32 -> vector<64x256xf32>
    %c8_63 = arith.constant 8 : index
    %c0_64 = arith.constant 0 : index
    %105 = vector.load %arg2[%c8_63, %c0_64] : memref<9x256xf32, #tpu.memory_space<vmem>>, vector<1x256xf32>
    %106 = vector.broadcast %105 : vector<1x256xf32> to vector<64x256xf32>
    %107 = arith.mulf %104, %106 : vector<64x256xf32>
    %108 = arith.truncf %107 : vector<64x256xf32> to vector<64x256xbf16>
    %c512 = arith.constant 512 : index
    %c0_65 = arith.constant 0 : index
    %109 = vector.load %arg8[%c512, %c0_65] : memref<576x256xbf16, #tpu.memory_space<vmem>>, vector<64x256xbf16>
    tpu.vector_store %arg8[%c512, %c0_65], %108 {strides = array<i32>} : memref<576x256xbf16, #tpu.memory_space<vmem>>, vector<64x256xbf16>,
    %c0_66 = arith.constant 0 : index
    %c0_67 = arith.constant 0 : index
    %110 = vector.load %arg5[%c0_66, %c0_67] : memref<64x576xbf16, #tpu.memory_space<vmem>>, vector<64x576xbf16>
    %c0_68 = arith.constant 0 : index
    %c0_69 = arith.constant 0 : index
    %111 = vector.load %arg8[%c0_68, %c0_69] : memref<576x256xbf16, #tpu.memory_space<vmem>>, vector<576x256xbf16>
    %cst_70 = arith.constant dense<0.000000e+00> : vector<64x256xf32>
    %112 = tpu.matmul %110, %111, %cst_70 {dimension_numbers = #tpu.dot_dimension_numbers<[1], [0], [0], [1], [0, 0, 1, 1], [], []>} : vector<64x576xbf16>, vector<576x256xbf16>, vector<64x256xf32> -> vector<64x256xf32>
    %c0_71 = arith.constant 0 : index
    %c1_72 = arith.constant 1 : index
    %113 = vector.load %arg3[%c0_71, %c1_72] : memref<64x3xf32, #tpu.memory_space<vmem>>, vector<64x1xf32>
    %114 = vector.broadcast %113 : vector<64x1xf32> to vector<64x256xf32>
    %115 = arith.addf %112, %114 : vector<64x256xf32>
    %cst_73 = arith.constant 0.000000e+00 : f32
    %116 = vector.broadcast %cst_73 : f32 to vector<64x256xf32>
    %117 = arith.maximumf %115, %116 : vector<64x256xf32>
    %c17_i32_74 = arith.constant 17 : i32
    %118 = tpu.dynamic_rotate %117 by %c17_i32_74 dim 1 : vector<64x256xf32>, i32 -> vector<64x256xf32>
    %c0_75 = arith.constant 0 : index
    %c0_76 = arith.constant 0 : index
    %119 = vector.load %arg2[%c0_75, %c0_76] : memref<9x256xf32, #tpu.memory_space<vmem>>, vector<1x256xf32>
    %120 = vector.broadcast %119 : vector<1x256xf32> to vector<64x256xf32>
    %121 = arith.mulf %118, %120 : vector<64x256xf32>
    %122 = arith.truncf %121 : vector<64x256xf32> to vector<64x256xbf16>
    %c0_77 = arith.constant 0 : index
    %c0_78 = arith.constant 0 : index
    %123 = vector.load %arg8[%c0_77, %c0_78] : memref<576x256xbf16, #tpu.memory_space<vmem>>, vector<64x256xbf16>
    tpu.vector_store %arg8[%c0_77, %c0_78], %122 {strides = array<i32>} : memref<576x256xbf16, #tpu.memory_space<vmem>>, vector<64x256xbf16>,
    %c16_i32_79 = arith.constant 16 : i32
    %124 = tpu.dynamic_rotate %117 by %c16_i32_79 dim 1 : vector<64x256xf32>, i32 -> vector<64x256xf32>
    %c1_80 = arith.constant 1 : index
    %c0_81 = arith.constant 0 : index
    %125 = vector.load %arg2[%c1_80, %c0_81] : memref<9x256xf32, #tpu.memory_space<vmem>>, vector<1x256xf32>
    %126 = vector.broadcast %125 : vector<1x256xf32> to vector<64x256xf32>
    %127 = arith.mulf %124, %126 : vector<64x256xf32>
    %128 = arith.truncf %127 : vector<64x256xf32> to vector<64x256xbf16>
    %c64_82 = arith.constant 64 : index
    %c0_83 = arith.constant 0 : index
    %129 = vector.load %arg8[%c64_82, %c0_83] : memref<576x256xbf16, #tpu.memory_space<vmem>>, vector<64x256xbf16>
    tpu.vector_store %arg8[%c64_82, %c0_83], %128 {strides = array<i32>} : memref<576x256xbf16, #tpu.memory_space<vmem>>, vector<64x256xbf16>,
    %c15_i32_84 = arith.constant 15 : i32
    %130 = tpu.dynamic_rotate %117 by %c15_i32_84 dim 1 : vector<64x256xf32>, i32 -> vector<64x256xf32>
    %c2_85 = arith.constant 2 : index
    %c0_86 = arith.constant 0 : index
    %131 = vector.load %arg2[%c2_85, %c0_86] : memref<9x256xf32, #tpu.memory_space<vmem>>, vector<1x256xf32>
    %132 = vector.broadcast %131 : vector<1x256xf32> to vector<64x256xf32>
    %133 = arith.mulf %130, %132 : vector<64x256xf32>
    %134 = arith.truncf %133 : vector<64x256xf32> to vector<64x256xbf16>
    %c128_87 = arith.constant 128 : index
    %c0_88 = arith.constant 0 : index
    %135 = vector.load %arg8[%c128_87, %c0_88] : memref<576x256xbf16, #tpu.memory_space<vmem>>, vector<64x256xbf16>
    tpu.vector_store %arg8[%c128_87, %c0_88], %134 {strides = array<i32>} : memref<576x256xbf16, #tpu.memory_space<vmem>>, vector<64x256xbf16>,
    %c1_i32_89 = arith.constant 1 : i32
    %136 = tpu.dynamic_rotate %117 by %c1_i32_89 dim 1 : vector<64x256xf32>, i32 -> vector<64x256xf32>
    %c3_90 = arith.constant 3 : index
    %c0_91 = arith.constant 0 : index
    %137 = vector.load %arg2[%c3_90, %c0_91] : memref<9x256xf32, #tpu.memory_space<vmem>>, vector<1x256xf32>
    %138 = vector.broadcast %137 : vector<1x256xf32> to vector<64x256xf32>
    %139 = arith.mulf %136, %138 : vector<64x256xf32>
    %140 = arith.truncf %139 : vector<64x256xf32> to vector<64x256xbf16>
    %c192_92 = arith.constant 192 : index
    %c0_93 = arith.constant 0 : index
    %141 = vector.load %arg8[%c192_92, %c0_93] : memref<576x256xbf16, #tpu.memory_space<vmem>>, vector<64x256xbf16>
    tpu.vector_store %arg8[%c192_92, %c0_93], %140 {strides = array<i32>} : memref<576x256xbf16, #tpu.memory_space<vmem>>, vector<64x256xbf16>,
    %142 = arith.truncf %117 : vector<64x256xf32> to vector<64x256xbf16>
    %c256_94 = arith.constant 256 : index
    %c0_95 = arith.constant 0 : index
    %143 = vector.load %arg8[%c256_94, %c0_95] : memref<576x256xbf16, #tpu.memory_space<vmem>>, vector<64x256xbf16>
    tpu.vector_store %arg8[%c256_94, %c0_95], %142 {strides = array<i32>} : memref<576x256xbf16, #tpu.memory_space<vmem>>, vector<64x256xbf16>,
    %c255_i32_96 = arith.constant 255 : i32
    %144 = tpu.dynamic_rotate %117 by %c255_i32_96 dim 1 : vector<64x256xf32>, i32 -> vector<64x256xf32>
    %c5_97 = arith.constant 5 : index
    %c0_98 = arith.constant 0 : index
    %145 = vector.load %arg2[%c5_97, %c0_98] : memref<9x256xf32, #tpu.memory_space<vmem>>, vector<1x256xf32>
    %146 = vector.broadcast %145 : vector<1x256xf32> to vector<64x256xf32>
    %147 = arith.mulf %144, %146 : vector<64x256xf32>
    %148 = arith.truncf %147 : vector<64x256xf32> to vector<64x256xbf16>
    %c320_99 = arith.constant 320 : index
    %c0_100 = arith.constant 0 : index
    %149 = vector.load %arg8[%c320_99, %c0_100] : memref<576x256xbf16, #tpu.memory_space<vmem>>, vector<64x256xbf16>
    tpu.vector_store %arg8[%c320_99, %c0_100], %148 {strides = array<i32>} : memref<576x256xbf16, #tpu.memory_space<vmem>>, vector<64x256xbf16>,
    %c241_i32_101 = arith.constant 241 : i32
    %150 = tpu.dynamic_rotate %117 by %c241_i32_101 dim 1 : vector<64x256xf32>, i32 -> vector<64x256xf32>
    %c6_102 = arith.constant 6 : index
    %c0_103 = arith.constant 0 : index
    %151 = vector.load %arg2[%c6_102, %c0_103] : memref<9x256xf32, #tpu.memory_space<vmem>>, vector<1x256xf32>
    %152 = vector.broadcast %151 : vector<1x256xf32> to vector<64x256xf32>
    %153 = arith.mulf %150, %152 : vector<64x256xf32>
    %154 = arith.truncf %153 : vector<64x256xf32> to vector<64x256xbf16>
    %c384_104 = arith.constant 384 : index
    %c0_105 = arith.constant 0 : index
    %155 = vector.load %arg8[%c384_104, %c0_105] : memref<576x256xbf16, #tpu.memory_space<vmem>>, vector<64x256xbf16>
    tpu.vector_store %arg8[%c384_104, %c0_105], %154 {strides = array<i32>} : memref<576x256xbf16, #tpu.memory_space<vmem>>, vector<64x256xbf16>,
    %c240_i32_106 = arith.constant 240 : i32
    %156 = tpu.dynamic_rotate %117 by %c240_i32_106 dim 1 : vector<64x256xf32>, i32 -> vector<64x256xf32>
    %c7_107 = arith.constant 7 : index
    %c0_108 = arith.constant 0 : index
    %157 = vector.load %arg2[%c7_107, %c0_108] : memref<9x256xf32, #tpu.memory_space<vmem>>, vector<1x256xf32>
    %158 = vector.broadcast %157 : vector<1x256xf32> to vector<64x256xf32>
    %159 = arith.mulf %156, %158 : vector<64x256xf32>
    %160 = arith.truncf %159 : vector<64x256xf32> to vector<64x256xbf16>
    %c448_109 = arith.constant 448 : index
    %c0_110 = arith.constant 0 : index
    %161 = vector.load %arg8[%c448_109, %c0_110] : memref<576x256xbf16, #tpu.memory_space<vmem>>, vector<64x256xbf16>
    tpu.vector_store %arg8[%c448_109, %c0_110], %160 {strides = array<i32>} : memref<576x256xbf16, #tpu.memory_space<vmem>>, vector<64x256xbf16>,
    %c239_i32_111 = arith.constant 239 : i32
    %162 = tpu.dynamic_rotate %117 by %c239_i32_111 dim 1 : vector<64x256xf32>, i32 -> vector<64x256xf32>
    %c8_112 = arith.constant 8 : index
    %c0_113 = arith.constant 0 : index
    %163 = vector.load %arg2[%c8_112, %c0_113] : memref<9x256xf32, #tpu.memory_space<vmem>>, vector<1x256xf32>
    %164 = vector.broadcast %163 : vector<1x256xf32> to vector<64x256xf32>
    %165 = arith.mulf %162, %164 : vector<64x256xf32>
    %166 = arith.truncf %165 : vector<64x256xf32> to vector<64x256xbf16>
    %c512_114 = arith.constant 512 : index
    %c0_115 = arith.constant 0 : index
    %167 = vector.load %arg8[%c512_114, %c0_115] : memref<576x256xbf16, #tpu.memory_space<vmem>>, vector<64x256xbf16>
    tpu.vector_store %arg8[%c512_114, %c0_115], %166 {strides = array<i32>} : memref<576x256xbf16, #tpu.memory_space<vmem>>, vector<64x256xbf16>,
    %c0_116 = arith.constant 0 : index
    %c0_117 = arith.constant 0 : index
    %168 = vector.load %arg6[%c0_116, %c0_117] : memref<64x576xbf16, #tpu.memory_space<vmem>>, vector<64x576xbf16>
    %c0_118 = arith.constant 0 : index
    %c0_119 = arith.constant 0 : index
    %169 = vector.load %arg8[%c0_118, %c0_119] : memref<576x256xbf16, #tpu.memory_space<vmem>>, vector<576x256xbf16>
    %cst_120 = arith.constant dense<0.000000e+00> : vector<64x256xf32>
    %170 = tpu.matmul %168, %169, %cst_120 {dimension_numbers = #tpu.dot_dimension_numbers<[1], [0], [0], [1], [0, 0, 1, 1], [], []>} : vector<64x576xbf16>, vector<576x256xbf16>, vector<64x256xf32> -> vector<64x256xf32>
    %c0_121 = arith.constant 0 : index
    %c2_122 = arith.constant 2 : index
    %171 = vector.load %arg3[%c0_121, %c2_122] : memref<64x3xf32, #tpu.memory_space<vmem>>, vector<64x1xf32>
    %172 = vector.broadcast %171 : vector<64x1xf32> to vector<64x256xf32>
    %173 = arith.addf %170, %172 : vector<64x256xf32>
    %cst_123 = arith.constant 0.000000e+00 : f32
    %174 = vector.broadcast %cst_123 : f32 to vector<64x256xf32>
    %175 = arith.maximumf %173, %174 : vector<64x256xf32>
    %c0_124 = arith.constant 0 : index
    %c0_125 = arith.constant 0 : index
    %c0_126 = arith.constant 0 : index
    %176 = vector.load %arg7[%c0_124, %c0_125, %c0_126] : memref<1x64x256xf32, #tpu.memory_space<vmem>>, vector<1x64x256xf32>
    %177 = vector.shape_cast %176 : vector<1x64x256xf32> to vector<64x256xf32>
    %178 = vector.shape_cast %175 : vector<64x256xf32> to vector<1x64x256xf32>
    tpu.vector_store %arg7[%c0_124, %c0_125, %c0_126], %178 {strides = array<i32>} : memref<1x64x256xf32, #tpu.memory_space<vmem>>, vector<1x64x256xf32>,
    return
  }
  func.func @transform_0(%arg0: i32) -> (i32, i32, i32) {
    %c0_i32 = arith.constant 0 : i32
    %c0_i32_0 = arith.constant 0 : i32
    %c0_i32_1 = arith.constant 0 : i32
    return %arg0, %c0_i32, %c0_i32_0 : i32, i32, i32
  }
  func.func @transform_1(%arg0: i32) -> (i32, i32) {
    %c0_i32 = arith.constant 0 : i32
    %c0_i32_0 = arith.constant 0 : i32
    %c0_i32_1 = arith.constant 0 : i32
    return %c0_i32, %c0_i32_0 : i32, i32
  }
  func.func @transform_2(%arg0: i32) -> (i32, i32) {
    %c0_i32 = arith.constant 0 : i32
    %c0_i32_0 = arith.constant 0 : i32
    %c0_i32_1 = arith.constant 0 : i32
    return %c0_i32, %c0_i32_0 : i32, i32
  }
  func.func @transform_3(%arg0: i32) -> (i32, i32) {
    %c0_i32 = arith.constant 0 : i32
    %c0_i32_0 = arith.constant 0 : i32
    %c0_i32_1 = arith.constant 0 : i32
    return %c0_i32, %c0_i32_0 : i32, i32
  }
  func.func @transform_4(%arg0: i32) -> (i32, i32) {
    %c0_i32 = arith.constant 0 : i32
    %c0_i32_0 = arith.constant 0 : i32
    %c0_i32_1 = arith.constant 0 : i32
    return %c0_i32, %c0_i32_0 : i32, i32
  }
  func.func @transform_5(%arg0: i32) -> (i32, i32) {
    %c0_i32 = arith.constant 0 : i32
    %c0_i32_0 = arith.constant 0 : i32
    %c0_i32_1 = arith.constant 0 : i32
    return %c0_i32, %c0_i32_0 : i32, i32
  }
  func.func @transform_6(%arg0: i32) -> (i32, i32, i32) {
    %c0_i32 = arith.constant 0 : i32
    %c0_i32_0 = arith.constant 0 : i32
    %c0_i32_1 = arith.constant 0 : i32
    return %arg0, %c0_i32, %c0_i32_0 : i32, i32, i32
  }
}

</mosaic_0001>

<llo_original>
// kernel: encoder_forward.3
$region0: #{encoder_forward.3}
  #allocation0 [shape = 'u32[]', space=smem, size = 0x4, offset = 0x4, fixed_abs, tag = 'smem constant byte address 0x4 - core index']
  #allocation1 [shape = 'u32[144,128]{1,0:T(1,128)}', space=vmem, size = 0x12000, scoped, tag = 'internal scratch']
  #allocation2 [shape = 'bf16[576,256]{1,0:T(16,128)(2,1)}', space=vmem, size = 0x48000, scoped, tag = 'scratch operand']
  %s0 = inlined_call_operand.vmem [shape: f32[2,32,256], index: 0, kind: input, shape index: {}]
  %s1 = inlined_call_operand.vmem [shape: f32[9,256], index: 1, kind: input, shape index: {}]
  %s2 = inlined_call_operand.vmem [shape: f32[64,3], index: 2, kind: input, shape index: {}]
  %s3 = inlined_call_operand.vmem [shape: bf16[64,288], index: 3, kind: input, shape index: {}]
  %s4 = inlined_call_operand.vmem [shape: bf16[64,576], index: 4, kind: input, shape index: {}]
  %s5 = inlined_call_operand.vmem [shape: bf16[64,576], index: 5, kind: input, shape index: {}]
  %s6 = inlined_call_operand.vmem [shape: f32[2,64,256], index: 6, kind: output, shape index: {}]
  %s7 = sld [smem:[#allocation0]]
  $region57: #{encoder_forward.3} parent=0
    _
  %s9 = ssub.s32 1, %s7
  %s10 = scalar_select 0, %s9, %s7
  loop: start=0, step=1, limit=4
  $region2: #{encoder_forward.3} parent=0 // loop_pre_header
    _
  $region3: #{encoder_forward.3} parent=0 // loop_header
    %s12 = sphi 0, %s16
    %p13 = scmp.ge.s32.totalorder %s12, 4
    %s22 = sphi 0, %s24
    %s25 = sphi 0, %s22
    %s26 = sphi 0, %s25
    %s42 = sphi 0, %s26
    %s46 = sphi 0, %s46
    %s48 = sphi 0, %s46
    %s49 = sphi 0, %s48
    %s63 = sphi 0, %s49
    %s67 = sphi 0, %s67
    %s69 = sphi 0, %s67
    %s70 = sphi 0, %s69
    %s84 = sphi 0, %s70
    %s88 = sphi 0, %s88
    %s90 = sphi 0, %s88
    %s91 = sphi 0, %s90
    %s105 = sphi 0, %s91
    %s109 = sphi 0, %s109
    %s111 = sphi 0, %s109
    %s112 = sphi 0, %s111
    %s126 = sphi 0, %s112
    %s130 = sphi 0, %s130
    %s132 = sphi 0, %s130
    %s133 = sphi 0, %s132
    %s147 = sphi 0, %s133
    %s153 = sphi 0, %s155
    %s156 = sphi 0, %s153
    %s157 = sphi 0, %s156
    %s173 = sphi 0, %s157
  $region4: #{encoder_forward.3} parent=0 // loop_header_branch
    %15 = sbr.rel (%p13) target = $region8
  $region5: #{encoder_forward.3} parent=0 // loop_body
    %s17 = ssub.s32 %s12, 1
    %s18 = ssub.s32 %s12, 2
    %s19 = sadd.s32 %s12, 1
    %s20 = ssub.s32 %s12, %s19
    %p21 = scmp.eq.s32.totalorder %s20, 0
    %s23 = sadd.s32 %s22, 1
    %s24 = scalar_select %p21, %s22, %s23
    %p27 = pneg %p21
    %p28 = scmp.eq.s32.totalorder %s12, 1
    %p29 = por %p27, %p28
    %p30 = scmp.ne.s32.totalorder %s22, %s25
    %p31 = scmp.eq.s32.totalorder %s12, 0
    %p32 = por %p30, %p31
    %p33 = scmp.ne.s32.totalorder %s22, %s25
    %p34 = scmp.eq.s32.totalorder %s17, 1
    %p35 = por %p33, %p34
    %p36 = scmp.ne.s32.totalorder %s25, %s26
    %p37 = scmp.eq.s32.totalorder %s17, 0
    %p38 = por %p36, %p37
    %p39 = scmp.ne.s32.totalorder %s25, %s26
    %p40 = scmp.eq.s32.totalorder %s18, 1
    %p41 = por %p39, %p40
    %p43 = scmp.ne.s32.totalorder %s26, %s42
    %p44 = scmp.eq.s32.totalorder %s18, 0
    %p45 = por %p43, %p44
    %s47 = sadd.s32 %s46, 1
    %p50 = scmp.eq.s32.totalorder %s12, 1
    %p51 = scmp.ne.s32.totalorder %s46, %s48
    %p52 = scmp.eq.s32.totalorder %s12, 0
    %p53 = por %p51, %p52
    %p54 = scmp.ne.s32.totalorder %s46, %s48
    %p55 = scmp.eq.s32.totalorder %s17, 1
    %p56 = por %p54, %p55
    %p57 = scmp.ne.s32.totalorder %s48, %s49
    %p58 = scmp.eq.s32.totalorder %s17, 0
    %p59 = por %p57, %p58
    %p60 = scmp.ne.s32.totalorder %s48, %s49
    %p61 = scmp.eq.s32.totalorder %s18, 1
    %p62 = por %p60, %p61
    %p64 = scmp.ne.s32.totalorder %s49, %s63
    %p65 = scmp.eq.s32.totalorder %s18, 0
    %p66 = por %p64, %p65
    %s68 = sadd.s32 %s67, 1
    %p71 = scmp.eq.s32.totalorder %s12, 1
    %p72 = scmp.ne.s32.totalorder %s67, %s69
    %p73 = scmp.eq.s32.totalorder %s12, 0
    %p74 = por %p72, %p73
    %p75 = scmp.ne.s32.totalorder %s67, %s69
    %p76 = scmp.eq.s32.totalorder %s17, 1
    %p77 = por %p75, %p76
    %p78 = scmp.ne.s32.totalorder %s69, %s70
    %p79 = scmp.eq.s32.totalorder %s17, 0
    %p80 = por %p78, %p79
    %p81 = scmp.ne.s32.totalorder %s69, %s70
    %p82 = scmp.eq.s32.totalorder %s18, 1
    %p83 = por %p81, %p82
    %p85 = scmp.ne.s32.totalorder %s70, %s84
    %p86 = scmp.eq.s32.totalorder %s18, 0
    %p87 = por %p85, %p86
    %s89 = sadd.s32 %s88, 1
    %p92 = scmp.eq.s32.totalorder %s12, 1
    %p93 = scmp.ne.s32.totalorder %s88, %s90
    %p94 = scmp.eq.s32.totalorder %s12, 0
    %p95 = por %p93, %p94
    %p96 = scmp.ne.s32.totalorder %s88, %s90
    %p97 = scmp.eq.s32.totalorder %s17, 1
    %p98 = por %p96, %p97
    %p99 = scmp.ne.s32.totalorder %s90, %s91
    %p100 = scmp.eq.s32.totalorder %s17, 0
    %p101 = por %p99, %p100
    %p102 = scmp.ne.s32.totalorder %s90, %s91
    %p103 = scmp.eq.s32.totalorder %s18, 1
    %p104 = por %p102, %p103
    %p106 = scmp.ne.s32.totalorder %s91, %s105
    %p107 = scmp.eq.s32.totalorder %s18, 0
    %p108 = por %p106, %p107
    %s110 = sadd.s32 %s109, 1
    %p113 = scmp.eq.s32.totalorder %s12, 1
    %p114 = scmp.ne.s32.totalorder %s109, %s111
    %p115 = scmp.eq.s32.totalorder %s12, 0
    %p116 = por %p114, %p115
    %p117 = scmp.ne.s32.totalorder %s109, %s111
    %p118 = scmp.eq.s32.totalorder %s17, 1
    %p119 = por %p117, %p118
    %p120 = scmp.ne.s32.totalorder %s111, %s112
    %p121 = scmp.eq.s32.totalorder %s17, 0
    %p122 = por %p120, %p121
    %p123 = scmp.ne.s32.totalorder %s111, %s112
    %p124 = scmp.eq.s32.totalorder %s18, 1
    %p125 = por %p123, %p124
    %p127 = scmp.ne.s32.totalorder %s112, %s126
    %p128 = scmp.eq.s32.totalorder %s18, 0
    %p129 = por %p127, %p128
    %s131 = sadd.s32 %s130, 1
    %p134 = scmp.eq.s32.totalorder %s12, 1
    %p135 = scmp.ne.s32.totalorder %s130, %s132
    %p136 = scmp.eq.s32.totalorder %s12, 0
    %p137 = por %p135, %p136
    %p138 = scmp.ne.s32.totalorder %s130, %s132
    %p139 = scmp.eq.s32.totalorder %s17, 1
    %p140 = por %p138, %p139
    %p141 = scmp.ne.s32.totalorder %s132, %s133
    %p142 = scmp.eq.s32.totalorder %s17, 0
    %p143 = por %p141, %p142
    %p144 = scmp.ne.s32.totalorder %s132, %s133
    %p145 = scmp.eq.s32.totalorder %s18, 1
    %p146 = por %p144, %p145
    %p148 = scmp.ne.s32.totalorder %s133, %s147
    %p149 = scmp.eq.s32.totalorder %s18, 0
    %p150 = por %p148, %p149
    %s151 = ssub.s32 %s12, %s19
    %p152 = scmp.eq.s32.totalorder %s151, 0
    %s154 = sadd.s32 %s153, 1
    %s155 = scalar_select %p152, %s153, %s154
    %p158 = pneg %p152
    %p159 = scmp.eq.s32.totalorder %s12, 1
    %p160 = por %p158, %p159
    %p161 = scmp.ne.s32.totalorder %s153, %s156
    %p162 = scmp.eq.s32.totalorder %s12, 0
    %p163 = por %p161, %p162
    %p164 = scmp.ne.s32.totalorder %s153, %s156
    %p165 = scmp.eq.s32.totalorder %s17, 1
    %p166 = por %p164, %p165
    %p167 = scmp.ne.s32.totalorder %s156, %s157
    %p168 = scmp.eq.s32.totalorder %s17, 0
    %p169 = por %p167, %p168
    %p170 = scmp.ne.s32.totalorder %s156, %s157
    %p171 = scmp.eq.s32.totalorder %s18, 1
    %p172 = por %p170, %p171
    %p174 = scmp.ne.s32.totalorder %s157, %s173
    %p175 = scmp.eq.s32.totalorder %s18, 0
    %p176 = por %p174, %p175
    %p177 = scmp.le.s32.totalorder 1, %s12
    %p178 = scmp.lt.s32.totalorder %s12, 3
    %p179 = pnand %p177, %p178
    %p180 = pneg %p179
    // Predicated region
    $region9: #{encoder_forward.3} parent=5 // pred_check
      _
    $region10: #{encoder_forward.3} parent=5 // pred_check_branch
      %182 = sbr.rel (%p179) target = $region12
    $region11: #{encoder_forward.3} parent=5 // pred_region
      %s183 = ssub.s32 %s12, 1
      // Predicated region
      $region13: #{encoder_forward.3} parent=11 // pred_check
        %p184 = pneg %p59
      $region14: #{encoder_forward.3} parent=11 // pred_check_branch
        %186 = sbr.rel (%p184) target = $region16
      $region15: #{encoder_forward.3} parent=11 // pred_region
        _
      $region16: #{encoder_forward.3} parent=11 // pred_fallthru
        _
      // Predicated region
      $region17: #{encoder_forward.3} parent=11 // pred_check
        %p187 = pneg %p80
      $region18: #{encoder_forward.3} parent=11 // pred_check_branch
        %189 = sbr.rel (%p187) target = $region20
      $region19: #{encoder_forward.3} parent=11 // pred_region
        _
      $region20: #{encoder_forward.3} parent=11 // pred_fallthru
        _
      // Predicated region
      $region21: #{encoder_forward.3} parent=11 // pred_check
        %p190 = pneg %p101
      $region22: #{encoder_forward.3} parent=11 // pred_check_branch
        %192 = sbr.rel (%p190) target = $region24
      $region23: #{encoder_forward.3} parent=11 // pred_region
        _
      $region24: #{encoder_forward.3} parent=11 // pred_fallthru
        _
      // Predicated region
      $region25: #{encoder_forward.3} parent=11 // pred_check
        %p193 = pneg %p122
      $region26: #{encoder_forward.3} parent=11 // pred_check_branch
        %195 = sbr.rel (%p193) target = $region28
      $region27: #{encoder_forward.3} parent=11 // pred_region
        _
      $region28: #{encoder_forward.3} parent=11 // pred_fallthru
        _
      // Predicated region
      $region29: #{encoder_forward.3} parent=11 // pred_check
        %p196 = pneg %p143
      $region30: #{encoder_forward.3} parent=11 // pred_check_branch
        %198 = sbr.rel (%p196) target = $region32
      $region31: #{encoder_forward.3} parent=11 // pred_region
        _
      $region32: #{encoder_forward.3} parent=11 // pred_fallthru
        _
    $region12: #{encoder_forward.3} parent=5 // pred_fallthru
      _
    %p199 = scmp.lt.s32.totalorder %s12, 2
    // Predicated region
    $region33: #{encoder_forward.3} parent=5 // pred_check
      %p200 = pneg %p199
    $region34: #{encoder_forward.3} parent=5 // pred_check_branch
      %202 = sbr.rel (%p200) target = $region36
    $region35: #{encoder_forward.3} parent=5 // pred_region
      // Predicated region
      $region37: #{encoder_forward.3} parent=35 // pred_check
        %p203 = pneg %p32
      $region38: #{encoder_forward.3} parent=35 // pred_check_branch
        %205 = sbr.rel (%p203) target = $region40
      $region39: #{encoder_forward.3} parent=35 // pred_region
        %p206 = scmp.lt.s32.totalorder %s12, 1
        %s207 = scalar_select %p206, %s12, 1
        %s208 = smul.addr %s207, 8
        %s209 = smul.addr %s208, 8
        %s210 = scalar_lea.vmem %s0, %s209
      $region40: #{encoder_forward.3} parent=35 // pred_fallthru
        _
    $region36: #{encoder_forward.3} parent=5 // pred_fallthru
      _
    %p211 = scmp.le.s32.totalorder 1, %s12
    %p212 = scmp.lt.s32.totalorder %s12, 3
    %p213 = pnand %p211, %p212
    %p214 = pneg %p213
    // Predicated region
    $region41: #{encoder_forward.3} parent=5 // pred_check
      _
    $region42: #{encoder_forward.3} parent=5 // pred_check_branch
      %216 = sbr.rel (%p213) target = $region44
    $region43: #{encoder_forward.3} parent=5 // pred_region
      %s217 = ssub.s32 %s12, 1
      %p218 = scmp.lt.s32.totalorder %s17, 1
      %s219 = scalar_select %p218, %s17, 1
      %s220 = smul.addr %s219, 8
      %s221 = smul.addr %s220, 8
      %s222 = scalar_lea.vmem %s0, %s221
      %p223 = pneg %p38
      %p224 = pneg %p35
      %p225 = pneg %p59
      %p226 = pneg %p56
      %p227 = pneg %p80
      %p228 = pneg %p77
      %p229 = pneg %p101
      %p230 = pneg %p98
      %p231 = pneg %p122
      %p232 = pneg %p119
      %p233 = pneg %p143
      %p234 = pneg %p140
      %p235 = pneg %p169
      %p236 = pneg %p166
      %p237 = scmp.lt.s32.totalorder %s17, 1
      %s238 = scalar_select %p237, %s17, 1
      %s239 = smul.addr %s238, 16
      %s240 = smul.addr %s239, 8
      %s241 = scalar_lea.vmem %s6, %s240
      %p242 = scmp.lt.s32.totalorder %s17, 1
      %s243 = scalar_select %p242, %s17, 1
      %s244 = smul.addr %s243, 8
      %s245 = smul.addr %s244, 8
      %s246 = scalar_lea.vmem %s0, %s245
      %p247 = scmp.lt.s32.totalorder %s17, 1
      %s248 = scalar_select %p247, %s17, 1
      %s249 = smul.addr %s248, 16
      %s250 = smul.addr %s249, 8
      %s251 = scalar_lea.vmem %s6, %s250
      %v253 = vld [vmem:[%s246] sm:$0xff]
      %v254 = vld [vmem:[%s246 + $0x8] sm:$0xff]
      %v255 = vld [vmem:[%s246 + $0x10] sm:$0xff]
      %v256 = vld [vmem:[%s246 + $0x18] sm:$0xff]
      %v257 = vld [vmem:[%s246 + $0x20] sm:$0xff]
      %v258 = vld [vmem:[%s246 + $0x28] sm:$0xff]
      %v259 = vld [vmem:[%s246 + $0x30] sm:$0xff]
      %v260 = vld [vmem:[%s246 + $0x38] sm:$0xff]
      %261 = vrot.lane.b32.xlu0 %v253, 17
      %v262 = vpop.permute.xlu0 %261
      %263 = vrot.lane.b32.xlu0 %v255, 17
      %v264 = vpop.permute.xlu0 %263
      %265 = vrot.lane.b32.xlu0 %v257, 17
      %v266 = vpop.permute.xlu0 %265
      %267 = vrot.lane.b32.xlu0 %v259, 17
      %v268 = vpop.permute.xlu0 %267
      %269 = vrot.lane.b32.xlu0 %v254, 17
      %v270 = vpop.permute.xlu0 %269
      %271 = vrot.lane.b32.xlu0 %v256, 17
      %v272 = vpop.permute.xlu0 %271
      %273 = vrot.lane.b32.xlu0 %v258, 17
      %v274 = vpop.permute.xlu0 %273
      %275 = vrot.lane.b32.xlu0 %v260, 17
      %v276 = vpop.permute.xlu0 %275
      %v277 = vlaneseq
      %v278 = vand.u32 %v277, 127
      %vm279 = vcmp.lt.s32.totalorder %v278, 17
      %v280 = vsel %vm279, %v262, %v270
      %v281 = vsel %vm279, %v264, %v272
      %v282 = vsel %vm279, %v266, %v274
      %v283 = vsel %vm279, %v268, %v276
      %v284 = vsel %vm279, %v270, %v262
      %v285 = vsel %vm279, %v272, %v264
      %v286 = vsel %vm279, %v274, %v266
      %v287 = vsel %vm279, %v276, %v268
      %v288 = vld [vmem:[%s1] ss:$8 sm:$0x3]
      %v290 = vlaneseq
      %v291 = vshrl.u32 %v290, 7
      %v292 = vsub.s32 0, %v291
      %v293 = vrot.slane %v288, %v292
      %v294 = vlaneseq
      %v295 = vshrl.u32 %v294, 7
      %v296 = vsub.s32 1, %v295
      %v297 = vrot.slane %v288, %v296
      %v300 = vmul.f32 %v284, %v293
      %v301 = vmul.f32 %v280, %v297
      %v302 = vmul.f32 %v285, %v293
      %v303 = vmul.f32 %v281, %v297
      %v304 = vmul.f32 %v286, %v293
      %v305 = vmul.f32 %v282, %v297
      %v306 = vmul.f32 %v287, %v293
      %v307 = vmul.f32 %v283, %v297
      %v308 = vpack.c.bf16 %v302, %v300
      %v309 = vpack.c.bf16 %v303, %v301
      %v310 = vpack.c.bf16 %v306, %v304
      %v311 = vpack.c.bf16 %v307, %v305
      %312 = vst [vmem:[#allocation2] sm:$0xff] %v308
      %313 = vst [vmem:[#allocation2 + $0x8] sm:$0xff] %v309
      %314 = vst [vmem:[#allocation2 + $0x10] sm:$0xff] %v310
      %315 = vst [vmem:[#allocation2 + $0x18] sm:$0xff] %v311
      %316 = vrot.lane.b32.xlu0 %v253, 16
      %v317 = vpop.permute.xlu0 %316
      %318 = vrot.lane.b32.xlu0 %v255, 16
      %v319 = vpop.permute.xlu0 %318
      %320 = vrot.lane.b32.xlu0 %v257, 16
      %v321 = vpop.permute.xlu0 %320
      %322 = vrot.lane.b32.xlu0 %v259, 16
      %v323 = vpop.permute.xlu0 %322
      %324 = vrot.lane.b32.xlu0 %v254, 16
      %v325 = vpop.permute.xlu0 %324
      %326 = vrot.lane.b32.xlu0 %v256, 16
      %v327 = vpop.permute.xlu0 %326
      %328 = vrot.lane.b32.xlu0 %v258, 16
      %v329 = vpop.permute.xlu0 %328
      %330 = vrot.lane.b32.xlu0 %v260, 16
      %v331 = vpop.permute.xlu0 %330
      %vm332 = vcmp.lt.s32.totalorder %v278, 16
      %v333 = vsel %vm332, %v317, %v325
      %v334 = vsel %vm332, %v319, %v327
      %v335 = vsel %vm332, %v321, %v329
      %v336 = vsel %vm332, %v323, %v331
      %v337 = vsel %vm332, %v325, %v317
      %v338 = vsel %vm332, %v327, %v319
      %v339 = vsel %vm332, %v329, %v321
      %v340 = vsel %vm332, %v331, %v323
      %s341 = scalar_lea.vmem %s1, 1
      %v342 = vld [vmem:[%s341] ss:$8 sm:$0x3]
      %v344 = vlaneseq
      %v345 = vshrl.u32 %v344, 7
      %v346 = vsub.s32 0, %v345
      %v347 = vrot.slane %v342, %v346
      %v348 = vlaneseq
      %v349 = vshrl.u32 %v348, 7
      %v350 = vsub.s32 1, %v349
      %v351 = vrot.slane %v342, %v350
      %v354 = vmul.f32 %v337, %v347
      %v355 = vmul.f32 %v333, %v351
      %v356 = vmul.f32 %v338, %v347
      %v357 = vmul.f32 %v334, %v351
      %v358 = vmul.f32 %v339, %v347
      %v359 = vmul.f32 %v335, %v351
      %v360 = vmul.f32 %v340, %v347
      %v361 = vmul.f32 %v336, %v351
      %v362 = vpack.c.bf16 %v356, %v354
      %v363 = vpack.c.bf16 %v357, %v355
      %v364 = vpack.c.bf16 %v360, %v358
      %v365 = vpack.c.bf16 %v361, %v359
      %366 = vst [vmem:[#allocation2 + $0x20] sm:$0xff] %v362
      %367 = vst [vmem:[#allocation2 + $0x28] sm:$0xff] %v363
      %368 = vst [vmem:[#allocation2 + $0x30] sm:$0xff] %v364
      %369 = vst [vmem:[#allocation2 + $0x38] sm:$0xff] %v365
      %370 = vrot.lane.b32.xlu0 %v253, 15
      %v371 = vpop.permute.xlu0 %370
      %372 = vrot.lane.b32.xlu0 %v255, 15
      %v373 = vpop.permute.xlu0 %372
      %374 = vrot.lane.b32.xlu0 %v257, 15
      %v375 = vpop.permute.xlu0 %374
      %376 = vrot.lane.b32.xlu0 %v259, 15
      %v377 = vpop.permute.xlu0 %376
      %378 = vrot.lane.b32.xlu0 %v254, 15
      %v379 = vpop.permute.xlu0 %378
      %380 = vrot.lane.b32.xlu0 %v256, 15
      %v381 = vpop.permute.xlu0 %380
      %382 = vrot.lane.b32.xlu0 %v258, 15
      %v383 = vpop.permute.xlu0 %382
      %384 = vrot.lane.b32.xlu0 %v260, 15
      %v385 = vpop.permute.xlu0 %384
      %vm386 = vcmp.lt.s32.totalorder %v278, 15
      %v387 = vsel %vm386, %v371, %v379
      %v388 = vsel %vm386, %v373, %v381
      %v389 = vsel %vm386, %v375, %v383
      %v390 = vsel %vm386, %v377, %v385
      %v391 = vsel %vm386, %v379, %v371
      %v392 = vsel %vm386, %v381, %v373
      %v393 = vsel %vm386, %v383, %v375
      %v394 = vsel %vm386, %v385, %v377
      %s395 = scalar_lea.vmem %s1, 2
      %v396 = vld [vmem:[%s395] ss:$8 sm:$0x3]
      %v398 = vlaneseq
      %v399 = vshrl.u32 %v398, 7
      %v400 = vsub.s32 0, %v399
      %v401 = vrot.slane %v396, %v400
      %v402 = vlaneseq
      %v403 = vshrl.u32 %v402, 7
      %v404 = vsub.s32 1, %v403
      %v405 = vrot.slane %v396, %v404
      %v408 = vmul.f32 %v391, %v401
      %v409 = vmul.f32 %v387, %v405
      %v410 = vmul.f32 %v392, %v401
      %v411 = vmul.f32 %v388, %v405
      %v412 = vmul.f32 %v393, %v401
      %v413 = vmul.f32 %v389, %v405
      %v414 = vmul.f32 %v394, %v401
      %v415 = vmul.f32 %v390, %v405
      %v416 = vpack.c.bf16 %v410, %v408
      %v417 = vpack.c.bf16 %v411, %v409
      %v418 = vpack.c.bf16 %v414, %v412
      %v419 = vpack.c.bf16 %v415, %v413
      %420 = vst [vmem:[#allocation2 + $0x40] sm:$0xff] %v416
      %421 = vst [vmem:[#allocation2 + $0x48] sm:$0xff] %v417
      %422 = vst [vmem:[#allocation2 + $0x50] sm:$0xff] %v418
      %423 = vst [vmem:[#allocation2 + $0x58] sm:$0xff] %v419
      %424 = vrot.lane.b32.xlu0 %v253, 1
      %v425 = vpop.permute.xlu0 %424
      %426 = vrot.lane.b32.xlu0 %v255, 1
      %v427 = vpop.permute.xlu0 %426
      %428 = vrot.lane.b32.xlu0 %v257, 1
      %v429 = vpop.permute.xlu0 %428
      %430 = vrot.lane.b32.xlu0 %v259, 1
      %v431 = vpop.permute.xlu0 %430
      %432 = vrot.lane.b32.xlu0 %v254, 1
      %v433 = vpop.permute.xlu0 %432
      %434 = vrot.lane.b32.xlu0 %v256, 1
      %v435 = vpop.permute.xlu0 %434
      %436 = vrot.lane.b32.xlu0 %v258, 1
      %v437 = vpop.permute.xlu0 %436
      %438 = vrot.lane.b32.xlu0 %v260, 1
      %v439 = vpop.permute.xlu0 %438
      %vm440 = vcmp.lt.s32.totalorder %v278, 1
      %v441 = vsel %vm440, %v425, %v433
      %v442 = vsel %vm440, %v427, %v435
      %v443 = vsel %vm440, %v429, %v437
      %v444 = vsel %vm440, %v431, %v439
      %v445 = vsel %vm440, %v433, %v425
      %v446 = vsel %vm440, %v435, %v427
      %v447 = vsel %vm440, %v437, %v429
      %v448 = vsel %vm440, %v439, %v431
      %s449 = scalar_lea.vmem %s1, 3
      %v450 = vld [vmem:[%s449] ss:$8 sm:$0x3]
      %v452 = vlaneseq
      %v453 = vshrl.u32 %v452, 7
      %v454 = vsub.s32 0, %v453
      %v455 = vrot.slane %v450, %v454
      %v456 = vlaneseq
      %v457 = vshrl.u32 %v456, 7
      %v458 = vsub.s32 1, %v457
      %v459 = vrot.slane %v450, %v458
      %v462 = vmul.f32 %v445, %v455
      %v463 = vmul.f32 %v441, %v459
      %v464 = vmul.f32 %v446, %v455
      %v465 = vmul.f32 %v442, %v459
      %v466 = vmul.f32 %v447, %v455
      %v467 = vmul.f32 %v443, %v459
      %v468 = vmul.f32 %v448, %v455
      %v469 = vmul.f32 %v444, %v459
      %v470 = vpack.c.bf16 %v464, %v462
      %v471 = vpack.c.bf16 %v465, %v463
      %v472 = vpack.c.bf16 %v468, %v466
      %v473 = vpack.c.bf16 %v469, %v467
      %474 = vst [vmem:[#allocation2 + $0x60] sm:$0xff] %v470
      %475 = vst [vmem:[#allocation2 + $0x68] sm:$0xff] %v471
      %476 = vst [vmem:[#allocation2 + $0x70] sm:$0xff] %v472
      %477 = vst [vmem:[#allocation2 + $0x78] sm:$0xff] %v473
      %v478 = vpack.c.bf16 %v255, %v253
      %v479 = vpack.c.bf16 %v256, %v254
      %v480 = vpack.c.bf16 %v259, %v257
      %v481 = vpack.c.bf16 %v260, %v258
      %482 = vst [vmem:[#allocation2 + $0x80] sm:$0xff] %v478
      %483 = vst [vmem:[#allocation2 + $0x88] sm:$0xff] %v479
      %484 = vst [vmem:[#allocation2 + $0x90] sm:$0xff] %v480
      %485 = vst [vmem:[#allocation2 + $0x98] sm:$0xff] %v481
      %486 = vrot.lane.b32.xlu0 %v253, 127
      %v487 = vpop.permute.xlu0 %486
      %488 = vrot.lane.b32.xlu0 %v255, 127
      %v489 = vpop.permute.xlu0 %488
      %490 = vrot.lane.b32.xlu0 %v257, 127
      %v491 = vpop.permute.xlu0 %490
      %492 = vrot.lane.b32.xlu0 %v259, 127
      %v493 = vpop.permute.xlu0 %492
      %494 = vrot.lane.b32.xlu0 %v254, 127
      %v495 = vpop.permute.xlu0 %494
      %496 = vrot.lane.b32.xlu0 %v256, 127
      %v497 = vpop.permute.xlu0 %496
      %498 = vrot.lane.b32.xlu0 %v258, 127
      %v499 = vpop.permute.xlu0 %498
      %500 = vrot.lane.b32.xlu0 %v260, 127
      %v501 = vpop.permute.xlu0 %500
      %vm502 = vcmp.lt.s32.totalorder %v278, 127
      %v503 = vsel %vm502, %v487, %v495
      %v504 = vsel %vm502, %v489, %v497
      %v505 = vsel %vm502, %v491, %v499
      %v506 = vsel %vm502, %v493, %v501
      %v507 = vsel %vm502, %v495, %v487
      %v508 = vsel %vm502, %v497, %v489
      %v509 = vsel %vm502, %v499, %v491
      %v510 = vsel %vm502, %v501, %v493
      %s511 = scalar_lea.vmem %s1, 5
      %v512 = vld [vmem:[%s511] ss:$8 sm:$0x3]
      %v514 = vlaneseq
      %v515 = vshrl.u32 %v514, 7
      %v516 = vsub.s32 0, %v515
      %v517 = vrot.slane %v512, %v516
      %v518 = vlaneseq
      %v519 = vshrl.u32 %v518, 7
      %v520 = vsub.s32 1, %v519
      %v521 = vrot.slane %v512, %v520
      %v524 = vmul.f32 %v503, %v517
      %v525 = vmul.f32 %v507, %v521
      %v526 = vmul.f32 %v504, %v517
      %v527 = vmul.f32 %v508, %v521
      %v528 = vmul.f32 %v505, %v517
      %v529 = vmul.f32 %v509, %v521
      %v530 = vmul.f32 %v506, %v517
      %v531 = vmul.f32 %v510, %v521
      %v532 = vpack.c.bf16 %v526, %v524
      %v533 = vpack.c.bf16 %v527, %v525
      %v534 = vpack.c.bf16 %v530, %v528
      %v535 = vpack.c.bf16 %v531, %v529
      %536 = vst [vmem:[#allocation2 + $0xa0] sm:$0xff] %v532
      %537 = vst [vmem:[#allocation2 + $0xa8] sm:$0xff] %v533
      %538 = vst [vmem:[#allocation2 + $0xb0] sm:$0xff] %v534
      %539 = vst [vmem:[#allocation2 + $0xb8] sm:$0xff] %v535
      %540 = vrot.lane.b32.xlu0 %v253, 113
      %v541 = vpop.permute.xlu0 %540
      %542 = vrot.lane.b32.xlu0 %v255, 113
      %v543 = vpop.permute.xlu0 %542
      %544 = vrot.lane.b32.xlu0 %v257, 113
      %v545 = vpop.permute.xlu0 %544
      %546 = vrot.lane.b32.xlu0 %v259, 113
      %v547 = vpop.permute.xlu0 %546
      %548 = vrot.lane.b32.xlu0 %v254, 113
      %v549 = vpop.permute.xlu0 %548
      %550 = vrot.lane.b32.xlu0 %v256, 113
      %v551 = vpop.permute.xlu0 %550
      %552 = vrot.lane.b32.xlu0 %v258, 113
      %v553 = vpop.permute.xlu0 %552
      %554 = vrot.lane.b32.xlu0 %v260, 113
      %v555 = vpop.permute.xlu0 %554
      %vm556 = vcmp.lt.s32.totalorder %v278, 113
      %v557 = vsel %vm556, %v541, %v549
      %v558 = vsel %vm556, %v543, %v551
      %v559 = vsel %vm556, %v545, %v553
      %v560 = vsel %vm556, %v547, %v555
      %v561 = vsel %vm556, %v549, %v541
      %v562 = vsel %vm556, %v551, %v543
      %v563 = vsel %vm556, %v553, %v545
      %v564 = vsel %vm556, %v555, %v547
      %s565 = scalar_lea.vmem %s1, 6
      %v566 = vld [vmem:[%s565] ss:$8 sm:$0x3]
      %v568 = vlaneseq
      %v569 = vshrl.u32 %v568, 7
      %v570 = vsub.s32 0, %v569
      %v571 = vrot.slane %v566, %v570
      %v572 = vlaneseq
      %v573 = vshrl.u32 %v572, 7
      %v574 = vsub.s32 1, %v573
      %v575 = vrot.slane %v566, %v574
      %v578 = vmul.f32 %v557, %v571
      %v579 = vmul.f32 %v561, %v575
      %v580 = vmul.f32 %v558, %v571
      %v581 = vmul.f32 %v562, %v575
      %v582 = vmul.f32 %v559, %v571
      %v583 = vmul.f32 %v563, %v575
      %v584 = vmul.f32 %v560, %v571
      %v585 = vmul.f32 %v564, %v575
      %v586 = vpack.c.bf16 %v580, %v578
      %v587 = vpack.c.bf16 %v581, %v579
      %v588 = vpack.c.bf16 %v584, %v582
      %v589 = vpack.c.bf16 %v585, %v583
      %590 = vst [vmem:[#allocation2 + $0xc0] sm:$0xff] %v586
      %591 = vst [vmem:[#allocation2 + $0xc8] sm:$0xff] %v587
      %592 = vst [vmem:[#allocation2 + $0xd0] sm:$0xff] %v588
      %593 = vst [vmem:[#allocation2 + $0xd8] sm:$0xff] %v589
      %594 = vrot.lane.b32.xlu0 %v253, 112
      %v595 = vpop.permute.xlu0 %594
      %596 = vrot.lane.b32.xlu0 %v255, 112
      %v597 = vpop.permute.xlu0 %596
      %598 = vrot.lane.b32.xlu0 %v257, 112
      %v599 = vpop.permute.xlu0 %598
      %600 = vrot.lane.b32.xlu0 %v259, 112
      %v601 = vpop.permute.xlu0 %600
      %602 = vrot.lane.b32.xlu0 %v254, 112
      %v603 = vpop.permute.xlu0 %602
      %604 = vrot.lane.b32.xlu0 %v256, 112
      %v605 = vpop.permute.xlu0 %604
      %606 = vrot.lane.b32.xlu0 %v258, 112
      %v607 = vpop.permute.xlu0 %606
      %608 = vrot.lane.b32.xlu0 %v260, 112
      %v609 = vpop.permute.xlu0 %608
      %vm610 = vcmp.lt.s32.totalorder %v278, 112
      %v611 = vsel %vm610, %v595, %v603
      %v612 = vsel %vm610, %v597, %v605
      %v613 = vsel %vm610, %v599, %v607
      %v614 = vsel %vm610, %v601, %v609
      %v615 = vsel %vm610, %v603, %v595
      %v616 = vsel %vm610, %v605, %v597
      %v617 = vsel %vm610, %v607, %v599
      %v618 = vsel %vm610, %v609, %v601
      %s619 = scalar_lea.vmem %s1, 7
      %v620 = vld [vmem:[%s619] ss:$8 sm:$0x3]
      %v622 = vlaneseq
      %v623 = vshrl.u32 %v622, 7
      %v624 = vsub.s32 0, %v623
      %v625 = vrot.slane %v620, %v624
      %v626 = vlaneseq
      %v627 = vshrl.u32 %v626, 7
      %v628 = vsub.s32 1, %v627
      %v629 = vrot.slane %v620, %v628
      %v632 = vmul.f32 %v611, %v625
      %v633 = vmul.f32 %v615, %v629
      %v634 = vmul.f32 %v612, %v625
      %v635 = vmul.f32 %v616, %v629
      %v636 = vmul.f32 %v613, %v625
      %v637 = vmul.f32 %v617, %v629
      %v638 = vmul.f32 %v614, %v625
      %v639 = vmul.f32 %v618, %v629
      %v640 = vpack.c.bf16 %v634, %v632
      %v641 = vpack.c.bf16 %v635, %v633
      %v642 = vpack.c.bf16 %v638, %v636
      %v643 = vpack.c.bf16 %v639, %v637
      %644 = vst [vmem:[#allocation2 + $0xe0] sm:$0xff] %v640
      %645 = vst [vmem:[#allocation2 + $0xe8] sm:$0xff] %v641
      %646 = vst [vmem:[#allocation2 + $0xf0] sm:$0xff] %v642
      %647 = vst [vmem:[#allocation2 + $0xf8] sm:$0xff] %v643
      %648 = vrot.lane.b32.xlu0 %v253, 111
      %v649 = vpop.permute.xlu0 %648
      %650 = vrot.lane.b32.xlu0 %v255, 111
      %v651 = vpop.permute.xlu0 %650
      %652 = vrot.lane.b32.xlu0 %v257, 111
      %v653 = vpop.permute.xlu0 %652
      %654 = vrot.lane.b32.xlu0 %v259, 111
      %v655 = vpop.permute.xlu0 %654
      %656 = vrot.lane.b32.xlu0 %v254, 111
      %v657 = vpop.permute.xlu0 %656
      %658 = vrot.lane.b32.xlu0 %v256, 111
      %v659 = vpop.permute.xlu0 %658
      %660 = vrot.lane.b32.xlu0 %v258, 111
      %v661 = vpop.permute.xlu0 %660
      %662 = vrot.lane.b32.xlu0 %v260, 111
      %v663 = vpop.permute.xlu0 %662
      %vm664 = vcmp.lt.s32.totalorder %v278, 111
      %v665 = vsel %vm664, %v649, %v657
      %v666 = vsel %vm664, %v651, %v659
      %v667 = vsel %vm664, %v653, %v661
      %v668 = vsel %vm664, %v655, %v663
      %v669 = vsel %vm664, %v657, %v649
      %v670 = vsel %vm664, %v659, %v651
      %v671 = vsel %vm664, %v661, %v653
      %v672 = vsel %vm664, %v663, %v655
      %s673 = scalar_lea.vmem %s1, 16
      %v674 = vld [vmem:[%s673] ss:$8 sm:$0x3]
      %v676 = vlaneseq
      %v677 = vshrl.u32 %v676, 7
      %v678 = vsub.s32 0, %v677
      %v679 = vrot.slane %v674, %v678
      %v680 = vlaneseq
      %v681 = vshrl.u32 %v680, 7
      %v682 = vsub.s32 1, %v681
      %v683 = vrot.slane %v674, %v682
      %v686 = vmul.f32 %v665, %v679
      %v687 = vmul.f32 %v669, %v683
      %v688 = vmul.f32 %v666, %v679
      %v689 = vmul.f32 %v670, %v683
      %v690 = vmul.f32 %v667, %v679
      %v691 = vmul.f32 %v671, %v683
      %v692 = vmul.f32 %v668, %v679
      %v693 = vmul.f32 %v672, %v683
      %v694 = vpack.c.bf16 %v688, %v686
      %v695 = vpack.c.bf16 %v689, %v687
      %v696 = vpack.c.bf16 %v692, %v690
      %v697 = vpack.c.bf16 %v693, %v691
      %698 = vst [vmem:[#allocation2 + $0x100] sm:$0xff] %v694
      %699 = vst [vmem:[#allocation2 + $0x108] sm:$0xff] %v695
      %700 = vst [vmem:[#allocation2 + $0x110] sm:$0xff] %v696
      %701 = vst [vmem:[#allocation2 + $0x118] sm:$0xff] %v697
      %v702 = vld [vmem:[%s3] sm:$0xff]
      %v703 = vld [vmem:[%s3 + $0x8] sm:$0xf]
      %v704 = vld [vmem:[%s3 + $0xc] sm:$0xff]
      %v705 = vld [vmem:[%s3 + $0x14] sm:$0xf]
      %v706 = vld [vmem:[%s3 + $0x18] sm:$0xff]
      %v707 = vld [vmem:[%s3 + $0x20] sm:$0xf]
      %v708 = vld [vmem:[%s3 + $0x24] sm:$0xff]
      %v709 = vld [vmem:[%s3 + $0x2c] sm:$0xf]
      %v710 = vld [vmem:[%s3 + $0x30] sm:$0xff]
      %v711 = vld [vmem:[%s3 + $0x38] sm:$0xf]
      %v712 = vld [vmem:[%s3 + $0x3c] sm:$0xff]
      %v713 = vld [vmem:[%s3 + $0x44] sm:$0xf]
      %v714 = vld [vmem:[%s3 + $0x48] sm:$0xff]
      %v715 = vld [vmem:[%s3 + $0x50] sm:$0xf]
      %v716 = vld [vmem:[%s3 + $0x54] sm:$0xff]
      %v717 = vld [vmem:[%s3 + $0x5c] sm:$0xf]
      %v718 = vld [vmem:[#allocation2] sm:$0xff]
      %v719 = vld [vmem:[#allocation2 + $0x8] sm:$0xff]
      %v720 = vld [vmem:[#allocation2 + $0x10] sm:$0xff]
      %v721 = vld [vmem:[#allocation2 + $0x18] sm:$0xff]
      %v722 = vld [vmem:[#allocation2 + $0x20] sm:$0xff]
      %v723 = vld [vmem:[#allocation2 + $0x28] sm:$0xff]
      %v724 = vld [vmem:[#allocation2 + $0x30] sm:$0xff]
      %v725 = vld [vmem:[#allocation2 + $0x38] sm:$0xff]
      %v726 = vld [vmem:[#allocation2 + $0x40] sm:$0xff]
      %v727 = vld [vmem:[#allocation2 + $0x48] sm:$0xff]
      %v728 = vld [vmem:[#allocation2 + $0x50] sm:$0xff]
      %v729 = vld [vmem:[#allocation2 + $0x58] sm:$0xff]
      %v730 = vld [vmem:[#allocation2 + $0x60] sm:$0xff]
      %v731 = vld [vmem:[#allocation2 + $0x68] sm:$0xff]
      %v732 = vld [vmem:[#allocation2 + $0x70] sm:$0xff]
      %v733 = vld [vmem:[#allocation2 + $0x78] sm:$0xff]
      %v734 = vld [vmem:[#allocation2 + $0x80] sm:$0xff]
      %v735 = vld [vmem:[#allocation2 + $0x88] sm:$0xff]
      %v736 = vld [vmem:[#allocation2 + $0x90] sm:$0xff]
      %v737 = vld [vmem:[#allocation2 + $0x98] sm:$0xff]
      %v738 = vld [vmem:[#allocation2 + $0xa0] sm:$0xff]
      %v739 = vld [vmem:[#allocation2 + $0xa8] sm:$0xff]
      %v740 = vld [vmem:[#allocation2 + $0xb0] sm:$0xff]
      %v741 = vld [vmem:[#allocation2 + $0xb8] sm:$0xff]
      %v742 = vld [vmem:[#allocation2 + $0xc0] sm:$0xff]
      %v743 = vld [vmem:[#allocation2 + $0xc8] sm:$0xff]
      %v744 = vld [vmem:[#allocation2 + $0xd0] sm:$0xff]
      %v745 = vld [vmem:[#allocation2 + $0xd8] sm:$0xff]
      %v746 = vld [vmem:[#allocation2 + $0xe0] sm:$0xff]
      %v747 = vld [vmem:[#allocation2 + $0xe8] sm:$0xff]
      %v748 = vld [vmem:[#allocation2 + $0xf0] sm:$0xff]
      %v749 = vld [vmem:[#allocation2 + $0xf8] sm:$0xff]
      %v750 = vld [vmem:[#allocation2 + $0x100] sm:$0xff]
      %v751 = vld [vmem:[#allocation2 + $0x108] sm:$0xff]
      %v752 = vld [vmem:[#allocation2 + $0x110] sm:$0xff]
      %v753 = vld [vmem:[#allocation2 + $0x118] sm:$0xff]
      %v754 = vld [vmem:[%s2] sm:$0xff]
      %v755 = vld [vmem:[%s2 + $0x8] sm:$0xff]
      %v756 = vld [vmem:[%s2 + $0x10] sm:$0xff]
      %v757 = vld [vmem:[%s2 + $0x18] sm:$0xff]
      %v758 = vld [vmem:[%s2 + $0x20] sm:$0xff]
      %v759 = vld [vmem:[%s2 + $0x28] sm:$0xff]
      %v760 = vld [vmem:[%s2 + $0x30] sm:$0xff]
      %v761 = vld [vmem:[%s2 + $0x38] sm:$0xff]
      %763 = vset.pattern.permute.xlu0 0
      %764 = vperm.xlu0 %763, %v754
      %v765 = vpop.permute.xlu0 %764
      %768 = vset.pattern.permute.xlu0 0
      %769 = vperm.xlu0 %768, %v755
      %v770 = vpop.permute.xlu0 %769
      %773 = vset.pattern.permute.xlu0 0
      %774 = vperm.xlu0 %773, %v756
      %v775 = vpop.permute.xlu0 %774
      %778 = vset.pattern.permute.xlu0 0
      %779 = vperm.xlu0 %778, %v757
      %v780 = vpop.permute.xlu0 %779
      %783 = vset.pattern.permute.xlu0 0
      %784 = vperm.xlu0 %783, %v758
      %v785 = vpop.permute.xlu0 %784
      %788 = vset.pattern.permute.xlu0 0
      %789 = vperm.xlu0 %788, %v759
      %v790 = vpop.permute.xlu0 %789
      %793 = vset.pattern.permute.xlu0 0
      %794 = vperm.xlu0 %793, %v760
      %v795 = vpop.permute.xlu0 %794
      %798 = vset.pattern.permute.xlu0 0
      %799 = vperm.xlu0 %798, %v761
      %v800 = vpop.permute.xlu0 %799
      %v818 = vunpack.c.l.b16 %v702
      %v819 = vunpack.c.h.b16 %v702
      %v820 = vunpack.c.l.b16 %v703
      %v821 = vunpack.c.l.b16 %v704
      %v822 = vunpack.c.h.b16 %v704
      %v823 = vunpack.c.l.b16 %v705
      %v824 = vunpack.c.l.b16 %v706
      %v825 = vunpack.c.h.b16 %v706
      %v826 = vunpack.c.l.b16 %v707
      %v827 = vunpack.c.l.b16 %v708
      %v828 = vunpack.c.h.b16 %v708
      %v829 = vunpack.c.l.b16 %v709
      %v830 = vunpack.c.l.b16 %v710
      %v831 = vunpack.c.h.b16 %v710
      %v832 = vunpack.c.l.b16 %v711
      %v833 = vunpack.c.l.b16 %v712
      %v834 = vunpack.c.h.b16 %v712
      %v835 = vunpack.c.l.b16 %v713
      %v836 = vunpack.c.l.b16 %v714
      %v837 = vunpack.c.h.b16 %v714
      %v838 = vunpack.c.l.b16 %v715
      %v839 = vunpack.c.l.b16 %v716
      %v840 = vunpack.c.h.b16 %v716
      %v841 = vunpack.c.l.b16 %v717
      %v842 = vpack.c.b16 %v821, %v818
      %v843 = vpack.c.b16 %v822, %v819
      %v844 = vpack.c.b16 %v823, %v820
      %v845 = vpack.c.b16 %v827, %v824
      %v846 = vpack.c.b16 %v828, %v825
      %v847 = vpack.c.b16 %v829, %v826
      %v848 = vpack.c.b16 %v833, %v830
      %v849 = vpack.c.b16 %v834, %v831
      %v850 = vpack.c.b16 %v835, %v832
      %v851 = vpack.c.b16 %v839, %v836
      %v852 = vpack.c.b16 %v840, %v837
      %v853 = vpack.c.b16 %v841, %v838
      %vm862 = vcmask 261120
      %v864 = vsel %vm862, %v844, 0
      %v867 = vsel %vm862, %v847, 0
      %v870 = vsel %vm862, %v850, 0
      %v873 = vsel %vm862, %v853, 0
      %875 = vmatprep.subr.bf16.mxu0 %v719
      %876 = vmatpush1.bf16.msra.mxu0 %v718
      %877 = vmatprep.subr.bf16.mxu0 %v721
      %878 = vmatpush1.bf16.msra.mxu0 %v720
      %879 = vmatprep.subr.bf16.mxu0 %v723
      %880 = vmatpush1.bf16.msra.mxu0 %v722
      %881 = vmatprep.subr.bf16.mxu0 %v725
      %882 = vmatpush1.bf16.msra.mxu0 %v724
      %883 = vmatprep.subr.bf16.mxu0 %v727
      %884 = vmatpush1.bf16.msra.mxu0 %v726
      %885 = vmatprep.subr.bf16.mxu0 %v729
      %886 = vmatpush1.bf16.msra.mxu0 %v728
      %887 = vmatprep.subr.bf16.mxu0 %v731
      %888 = vmatpush1.bf16.msra.mxu0 %v730
      %889 = vmatprep.subr.bf16.mxu0 %v733
      %890 = vmatpush1.bf16.msra.mxu0 %v732
      %891 = vmatprep.subr.bf16.mxu0 %v735
      %892 = vmatpush1.bf16.msra.mxu0 %v734
      %893 = vmatprep.subr.bf16.mxu0 %v737
      %894 = vmatpush1.bf16.msra.mxu0 %v736
      %895 = vmatprep.subr.bf16.mxu0 %v739
      %896 = vmatpush1.bf16.msra.mxu0 %v738
      %897 = vmatprep.subr.bf16.mxu0 %v741
      %898 = vmatpush1.bf16.msra.mxu0 %v740
      %899 = vmatprep.subr.bf16.mxu0 %v743
      %900 = vmatpush1.bf16.msra.mxu0 %v742
      %901 = vmatprep.subr.bf16.mxu0 %v745
      %902 = vmatpush1.bf16.msra.mxu0 %v744
      %903 = vmatprep.subr.bf16.mxu0 %v747
      %904 = vmatpush1.bf16.msra.mxu0 %v746
      %905 = vmatprep.subr.bf16.mxu0 %v749
      %906 = vmatpush1.bf16.msra.mxu0 %v748
      %907 = vmatprep.mubr.bf16.mxu0 %v843
      %908 = vmatmul.mubr.bf16.gmra.mrb[0].mxu0 %v842
      %v909 = vpop.f32.mrb[0].mxu0
      %v910 = vadd.f32 %v765, %v909
      %v911 = vpop.f32.mrb[0].mxu0
      %v912 = vadd.f32 %v765, %v911
      %v913 = vpop.f32.mrb[0].mxu0
      %v914 = vadd.f32 %v770, %v913
      %v915 = vpop.f32.mrb[0].mxu0
      %v916 = vadd.f32 %v770, %v915
      %917 = vmatprep.mubr.bf16.mxu0 %v846
      %918 = vmatmul.mubr.bf16.gmra.mrb[0].mxu0 %v845
      %v919 = vpop.f32.mrb[0].mxu0
      %v920 = vadd.f32 %v775, %v919
      %v921 = vpop.f32.mrb[0].mxu0
      %v922 = vadd.f32 %v775, %v921
      %v923 = vpop.f32.mrb[0].mxu0
      %v924 = vadd.f32 %v780, %v923
      %v925 = vpop.f32.mrb[0].mxu0
      %v926 = vadd.f32 %v780, %v925
      %927 = vmatprep.mubr.bf16.mxu0 %v849
      %928 = vmatmul.mubr.bf16.gmra.mrb[0].mxu0 %v848
      %v929 = vpop.f32.mrb[0].mxu0
      %v930 = vadd.f32 %v785, %v929
      %v931 = vpop.f32.mrb[0].mxu0
      %v932 = vadd.f32 %v785, %v931
      %v933 = vpop.f32.mrb[0].mxu0
      %v934 = vadd.f32 %v790, %v933
      %v935 = vpop.f32.mrb[0].mxu0
      %v936 = vadd.f32 %v790, %v935
      %937 = vmatprep.mubr.bf16.mxu0 %v852
      %938 = vmatmul.mubr.bf16.gmra.mrb[0].mxu0 %v851
      %v939 = vpop.f32.mrb[0].mxu0
      %v940 = vadd.f32 %v795, %v939
      %v941 = vpop.f32.mrb[0].mxu0
      %v942 = vadd.f32 %v795, %v941
      %v943 = vpop.f32.mrb[0].mxu0
      %v944 = vadd.f32 %v800, %v943
      %v945 = vpop.f32.mrb[0].mxu0
      %v946 = vadd.f32 %v800, %v945
      %947 = vdwg.mxu0
      %948 = vmatprep.subr.bf16.mxu0 %v751
      %949 = vmatpush1.bf16.msra.mxu0 %v750
      %950 = vmatprep.subr.bf16.mxu0 %v753
      %951 = vmatpush1.bf16.msra.mxu0 %v752
      %952 = vmatprep.subr.bf16.mxu0 0
      %953 = vmatpush1.bf16.msra.mxu0 0
      %954 = vmatprep.subr.bf16.mxu0 0
      %955 = vmatpush1.bf16.msra.mxu0 0
      %956 = vmatprep.subr.bf16.mxu0 0
      %957 = vmatpush1.bf16.msra.mxu0 0
      %958 = vmatprep.subr.bf16.mxu0 0
      %959 = vmatpush1.bf16.msra.mxu0 0
      %960 = vmatprep.subr.bf16.mxu0 0
      %961 = vmatpush1.bf16.msra.mxu0 0
      %962 = vmatprep.subr.bf16.mxu0 0
      %963 = vmatpush1.bf16.msra.mxu0 0
      %964 = vmatprep.subr.bf16.mxu0 0
      %965 = vmatpush1.bf16.msra.mxu0 0
      %966 = vmatprep.subr.bf16.mxu0 0
      %967 = vmatpush1.bf16.msra.mxu0 0
      %968 = vmatprep.subr.bf16.mxu0 0
      %969 = vmatpush1.bf16.msra.mxu0 0
      %970 = vmatprep.subr.bf16.mxu0 0
      %971 = vmatpush1.bf16.msra.mxu0 0
      %972 = vmatprep.subr.bf16.mxu0 0
      %973 = vmatpush1.bf16.msra.mxu0 0
      %974 = vmatprep.subr.bf16.mxu0 0
      %975 = vmatpush1.bf16.msra.mxu0 0
      %976 = vmatprep.subr.bf16.mxu0 0
      %977 = vmatpush1.bf16.msra.mxu0 0
      %978 = vmatprep.subr.bf16.mxu0 0
      %979 = vmatpush1.bf16.msra.mxu0 0
      %980 = vmatprep.mubr.bf16.mxu0 0
      %981 = vmatmul.mubr.bf16.gmra.mrb[0].mxu0 %v864
      %v982 = vpop.f32.mrb[0].mxu0
      %v983 = vadd.f32 %v910, %v982
      %v984 = vpop.f32.mrb[0].mxu0
      %v985 = vadd.f32 %v912, %v984
      %v986 = vpop.f32.mrb[0].mxu0
      %v987 = vadd.f32 %v914, %v986
      %v988 = vpop.f32.mrb[0].mxu0
      %v989 = vadd.f32 %v916, %v988
      %990 = vmatprep.mubr.bf16.mxu0 0
      %991 = vmatmul.mubr.bf16.gmra.mrb[0].mxu0 %v867
      %v992 = vpop.f32.mrb[0].mxu0
      %v993 = vadd.f32 %v920, %v992
      %v994 = vpop.f32.mrb[0].mxu0
      %v995 = vadd.f32 %v922, %v994
      %v996 = vpop.f32.mrb[0].mxu0
      %v997 = vadd.f32 %v924, %v996
      %v998 = vpop.f32.mrb[0].mxu0
      %v999 = vadd.f32 %v926, %v998
      %1000 = vmatprep.mubr.bf16.mxu0 0
      %1001 = vmatmul.mubr.bf16.gmra.mrb[0].mxu0 %v870
      %v1002 = vpop.f32.mrb[0].mxu0
      %v1003 = vadd.f32 %v930, %v1002
      %v1004 = vpop.f32.mrb[0].mxu0
      %v1005 = vadd.f32 %v932, %v1004
      %v1006 = vpop.f32.mrb[0].mxu0
      %v1007 = vadd.f32 %v934, %v1006
      %v1008 = vpop.f32.mrb[0].mxu0
      %v1009 = vadd.f32 %v936, %v1008
      %1010 = vmatprep.mubr.bf16.mxu0 0
      %1011 = vmatmul.mubr.bf16.gmra.mrb[0].mxu0 %v873
      %v1012 = vpop.f32.mrb[0].mxu0
      %v1013 = vadd.f32 %v940, %v1012
      %v1014 = vpop.f32.mrb[0].mxu0
      %v1015 = vadd.f32 %v942, %v1014
      %v1016 = vpop.f32.mrb[0].mxu0
      %v1017 = vadd.f32 %v944, %v1016
      %v1018 = vpop.f32.mrb[0].mxu0
      %v1019 = vadd.f32 %v946, %v1018
      %1020 = vdwg.mxu0
      %v1021 = vmax.f32 %v983, 0.0
      %v1022 = vmax.f32 %v985, 0.0
      %v1023 = vmax.f32 %v987, 0.0
      %v1024 = vmax.f32 %v989, 0.0
      %v1025 = vmax.f32 %v993, 0.0
      %v1026 = vmax.f32 %v995, 0.0
      %v1027 = vmax.f32 %v997, 0.0
      %v1028 = vmax.f32 %v999, 0.0
      %v1029 = vmax.f32 %v1003, 0.0
      %v1030 = vmax.f32 %v1005, 0.0
      %v1031 = vmax.f32 %v1007, 0.0
      %v1032 = vmax.f32 %v1009, 0.0
      %v1033 = vmax.f32 %v1013, 0.0
      %v1034 = vmax.f32 %v1015, 0.0
      %v1035 = vmax.f32 %v1017, 0.0
      %v1036 = vmax.f32 %v1019, 0.0
      %1037 = vrot.lane.b32.xlu0 %v1021, 17
      %v1038 = vpop.permute.xlu0 %1037
      %1039 = vrot.lane.b32.xlu0 %v1023, 17
      %v1040 = vpop.permute.xlu0 %1039
      %1041 = vrot.lane.b32.xlu0 %v1025, 17
      %v1042 = vpop.permute.xlu0 %1041
      %1043 = vrot.lane.b32.xlu0 %v1027, 17
      %v1044 = vpop.permute.xlu0 %1043
      %1045 = vrot.lane.b32.xlu0 %v1029, 17
      %v1046 = vpop.permute.xlu0 %1045
      %1047 = vrot.lane.b32.xlu0 %v1031, 17
      %v1048 = vpop.permute.xlu0 %1047
      %1049 = vrot.lane.b32.xlu0 %v1033, 17
      %v1050 = vpop.permute.xlu0 %1049
      %1051 = vrot.lane.b32.xlu0 %v1035, 17
      %v1052 = vpop.permute.xlu0 %1051
      %1053 = vrot.lane.b32.xlu0 %v1022, 17
      %v1054 = vpop.permute.xlu0 %1053
      %1055 = vrot.lane.b32.xlu0 %v1024, 17
      %v1056 = vpop.permute.xlu0 %1055
      %1057 = vrot.lane.b32.xlu0 %v1026, 17
      %v1058 = vpop.permute.xlu0 %1057
      %1059 = vrot.lane.b32.xlu0 %v1028, 17
      %v1060 = vpop.permute.xlu0 %1059
      %1061 = vrot.lane.b32.xlu0 %v1030, 17
      %v1062 = vpop.permute.xlu0 %1061
      %1063 = vrot.lane.b32.xlu0 %v1032, 17
      %v1064 = vpop.permute.xlu0 %1063
      %1065 = vrot.lane.b32.xlu0 %v1034, 17
      %v1066 = vpop.permute.xlu0 %1065
      %1067 = vrot.lane.b32.xlu0 %v1036, 17
      %v1068 = vpop.permute.xlu0 %1067
      %v1069 = vsel %vm279, %v1038, %v1054
      %v1070 = vsel %vm279, %v1040, %v1056
      %v1071 = vsel %vm279, %v1042, %v1058
      %v1072 = vsel %vm279, %v1044, %v1060
      %v1073 = vsel %vm279, %v1046, %v1062
      %v1074 = vsel %vm279, %v1048, %v1064
      %v1075 = vsel %vm279, %v1050, %v1066
      %v1076 = vsel %vm279, %v1052, %v1068
      %v1077 = vsel %vm279, %v1054, %v1038
      %v1078 = vsel %vm279, %v1056, %v1040
      %v1079 = vsel %vm279, %v1058, %v1042
      %v1080 = vsel %vm279, %v1060, %v1044
      %v1081 = vsel %vm279, %v1062, %v1046
      %v1082 = vsel %vm279, %v1064, %v1048
      %v1083 = vsel %vm279, %v1066, %v1050
      %v1084 = vsel %vm279, %v1068, %v1052
      %v1085 = vld [vmem:[%s1] ss:$8 sm:$0x3]
      %v1087 = vlaneseq
      %v1088 = vshrl.u32 %v1087, 7
      %v1089 = vsub.s32 0, %v1088
      %v1090 = vrot.slane %v1085, %v1089
      %v1091 = vlaneseq
      %v1092 = vshrl.u32 %v1091, 7
      %v1093 = vsub.s32 1, %v1092
      %v1094 = vrot.slane %v1085, %v1093
      %v1097 = vmul.f32 %v1077, %v1090
      %v1098 = vmul.f32 %v1069, %v1094
      %v1099 = vmul.f32 %v1078, %v1090
      %v1100 = vmul.f32 %v1070, %v1094
      %v1101 = vmul.f32 %v1079, %v1090
      %v1102 = vmul.f32 %v1071, %v1094
      %v1103 = vmul.f32 %v1080, %v1090
      %v1104 = vmul.f32 %v1072, %v1094
      %v1105 = vmul.f32 %v1081, %v1090
      %v1106 = vmul.f32 %v1073, %v1094
      %v1107 = vmul.f32 %v1082, %v1090
      %v1108 = vmul.f32 %v1074, %v1094
      %v1109 = vmul.f32 %v1083, %v1090
      %v1110 = vmul.f32 %v1075, %v1094
      %v1111 = vmul.f32 %v1084, %v1090
      %v1112 = vmul.f32 %v1076, %v1094
      %v1113 = vpack.c.bf16 %v1099, %v1097
      %v1114 = vpack.c.bf16 %v1100, %v1098
      %v1115 = vpack.c.bf16 %v1103, %v1101
      %v1116 = vpack.c.bf16 %v1104, %v1102
      %v1117 = vpack.c.bf16 %v1107, %v1105
      %v1118 = vpack.c.bf16 %v1108, %v1106
      %v1119 = vpack.c.bf16 %v1111, %v1109
      %v1120 = vpack.c.bf16 %v1112, %v1110
      %1121 = vst [vmem:[#allocation2] sm:$0xff] %v1113
      %1122 = vst [vmem:[#allocation2 + $0x8] sm:$0xff] %v1114
      %1123 = vst [vmem:[#allocation2 + $0x10] sm:$0xff] %v1115
      %1124 = vst [vmem:[#allocation2 + $0x18] sm:$0xff] %v1116
      %1125 = vst [vmem:[#allocation2 + $0x20] sm:$0xff] %v1117
      %1126 = vst [vmem:[#allocation2 + $0x28] sm:$0xff] %v1118
      %1127 = vst [vmem:[#allocation2 + $0x30] sm:$0xff] %v1119
      %1128 = vst [vmem:[#allocation2 + $0x38] sm:$0xff] %v1120
      %1129 = vrot.lane.b32.xlu0 %v1021, 16
      %v1130 = vpop.permute.xlu0 %1129
      %1131 = vrot.lane.b32.xlu0 %v1023, 16
      %v1132 = vpop.permute.xlu0 %1131
      %1133 = vrot.lane.b32.xlu0 %v1025, 16
      %v1134 = vpop.permute.xlu0 %1133
      %1135 = vrot.lane.b32.xlu0 %v1027, 16
      %v1136 = vpop.permute.xlu0 %1135
      %1137 = vrot.lane.b32.xlu0 %v1029, 16
      %v1138 = vpop.permute.xlu0 %1137
      %1139 = vrot.lane.b32.xlu0 %v1031, 16
      %v1140 = vpop.permute.xlu0 %1139
      %1141 = vrot.lane.b32.xlu0 %v1033, 16
      %v1142 = vpop.permute.xlu0 %1141
      %1143 = vrot.lane.b32.xlu0 %v1035, 16
      %v1144 = vpop.permute.xlu0 %1143
      %1145 = vrot.lane.b32.xlu0 %v1022, 16
      %v1146 = vpop.permute.xlu0 %1145
      %1147 = vrot.lane.b32.xlu0 %v1024, 16
      %v1148 = vpop.permute.xlu0 %1147
      %1149 = vrot.lane.b32.xlu0 %v1026, 16
      %v1150 = vpop.permute.xlu0 %1149
      %1151 = vrot.lane.b32.xlu0 %v1028, 16
      %v1152 = vpop.permute.xlu0 %1151
      %1153 = vrot.lane.b32.xlu0 %v1030, 16
      %v1154 = vpop.permute.xlu0 %1153
      %1155 = vrot.lane.b32.xlu0 %v1032, 16
      %v1156 = vpop.permute.xlu0 %1155
      %1157 = vrot.lane.b32.xlu0 %v1034, 16
      %v1158 = vpop.permute.xlu0 %1157
      %1159 = vrot.lane.b32.xlu0 %v1036, 16
      %v1160 = vpop.permute.xlu0 %1159
      %v1161 = vsel %vm332, %v1130, %v1146
      %v1162 = vsel %vm332, %v1132, %v1148
      %v1163 = vsel %vm332, %v1134, %v1150
      %v1164 = vsel %vm332, %v1136, %v1152
      %v1165 = vsel %vm332, %v1138, %v1154
      %v1166 = vsel %vm332, %v1140, %v1156
      %v1167 = vsel %vm332, %v1142, %v1158
      %v1168 = vsel %vm332, %v1144, %v1160
      %v1169 = vsel %vm332, %v1146, %v1130
      %v1170 = vsel %vm332, %v1148, %v1132
      %v1171 = vsel %vm332, %v1150, %v1134
      %v1172 = vsel %vm332, %v1152, %v1136
      %v1173 = vsel %vm332, %v1154, %v1138
      %v1174 = vsel %vm332, %v1156, %v1140
      %v1175 = vsel %vm332, %v1158, %v1142
      %v1176 = vsel %vm332, %v1160, %v1144
      %v1177 = vld [vmem:[%s341] ss:$8 sm:$0x3]
      %v1179 = vlaneseq
      %v1180 = vshrl.u32 %v1179, 7
      %v1181 = vsub.s32 0, %v1180
      %v1182 = vrot.slane %v1177, %v1181
      %v1183 = vlaneseq
      %v1184 = vshrl.u32 %v1183, 7
      %v1185 = vsub.s32 1, %v1184
      %v1186 = vrot.slane %v1177, %v1185
      %v1189 = vmul.f32 %v1169, %v1182
      %v1190 = vmul.f32 %v1161, %v1186
      %v1191 = vmul.f32 %v1170, %v1182
      %v1192 = vmul.f32 %v1162, %v1186
      %v1193 = vmul.f32 %v1171, %v1182
      %v1194 = vmul.f32 %v1163, %v1186
      %v1195 = vmul.f32 %v1172, %v1182
      %v1196 = vmul.f32 %v1164, %v1186
      %v1197 = vmul.f32 %v1173, %v1182
      %v1198 = vmul.f32 %v1165, %v1186
      %v1199 = vmul.f32 %v1174, %v1182
      %v1200 = vmul.f32 %v1166, %v1186
      %v1201 = vmul.f32 %v1175, %v1182
      %v1202 = vmul.f32 %v1167, %v1186
      %v1203 = vmul.f32 %v1176, %v1182
      %v1204 = vmul.f32 %v1168, %v1186
      %v1205 = vpack.c.bf16 %v1191, %v1189
      %v1206 = vpack.c.bf16 %v1192, %v1190
      %v1207 = vpack.c.bf16 %v1195, %v1193
      %v1208 = vpack.c.bf16 %v1196, %v1194
      %v1209 = vpack.c.bf16 %v1199, %v1197
      %v1210 = vpack.c.bf16 %v1200, %v1198
      %v1211 = vpack.c.bf16 %v1203, %v1201
      %v1212 = vpack.c.bf16 %v1204, %v1202
      %1213 = vst [vmem:[#allocation2 + $0x40] sm:$0xff] %v1205
      %1214 = vst [vmem:[#allocation2 + $0x48] sm:$0xff] %v1206
      %1215 = vst [vmem:[#allocation2 + $0x50] sm:$0xff] %v1207
      %1216 = vst [vmem:[#allocation2 + $0x58] sm:$0xff] %v1208
      %1217 = vst [vmem:[#allocation2 + $0x60] sm:$0xff] %v1209
      %1218 = vst [vmem:[#allocation2 + $0x68] sm:$0xff] %v1210
      %1219 = vst [vmem:[#allocation2 + $0x70] sm:$0xff] %v1211
      %1220 = vst [vmem:[#allocation2 + $0x78] sm:$0xff] %v1212
      %1221 = vrot.lane.b32.xlu0 %v1021, 15
      %v1222 = vpop.permute.xlu0 %1221
      %1223 = vrot.lane.b32.xlu0 %v1023, 15
      %v1224 = vpop.permute.xlu0 %1223
      %1225 = vrot.lane.b32.xlu0 %v1025, 15
      %v1226 = vpop.permute.xlu0 %1225
      %1227 = vrot.lane.b32.xlu0 %v1027, 15
      %v1228 = vpop.permute.xlu0 %1227
      %1229 = vrot.lane.b32.xlu0 %v1029, 15
      %v1230 = vpop.permute.xlu0 %1229
      %1231 = vrot.lane.b32.xlu0 %v1031, 15
      %v1232 = vpop.permute.xlu0 %1231
      %1233 = vrot.lane.b32.xlu0 %v1033, 15
      %v1234 = vpop.permute.xlu0 %1233
      %1235 = vrot.lane.b32.xlu0 %v1035, 15
      %v1236 = vpop.permute.xlu0 %1235
      %1237 = vrot.lane.b32.xlu0 %v1022, 15
      %v1238 = vpop.permute.xlu0 %1237
      %1239 = vrot.lane.b32.xlu0 %v1024, 15
      %v1240 = vpop.permute.xlu0 %1239
      %1241 = vrot.lane.b32.xlu0 %v1026, 15
      %v1242 = vpop.permute.xlu0 %1241
      %1243 = vrot.lane.b32.xlu0 %v1028, 15
      %v1244 = vpop.permute.xlu0 %1243
      %1245 = vrot.lane.b32.xlu0 %v1030, 15
      %v1246 = vpop.permute.xlu0 %1245
      %1247 = vrot.lane.b32.xlu0 %v1032, 15
      %v1248 = vpop.permute.xlu0 %1247
      %1249 = vrot.lane.b32.xlu0 %v1034, 15
      %v1250 = vpop.permute.xlu0 %1249
      %1251 = vrot.lane.b32.xlu0 %v1036, 15
      %v1252 = vpop.permute.xlu0 %1251
      %v1253 = vsel %vm386, %v1222, %v1238
      %v1254 = vsel %vm386, %v1224, %v1240
      %v1255 = vsel %vm386, %v1226, %v1242
      %v1256 = vsel %vm386, %v1228, %v1244
      %v1257 = vsel %vm386, %v1230, %v1246
      %v1258 = vsel %vm386, %v1232, %v1248
      %v1259 = vsel %vm386, %v1234, %v1250
      %v1260 = vsel %vm386, %v1236, %v1252
      %v1261 = vsel %vm386, %v1238, %v1222
      %v1262 = vsel %vm386, %v1240, %v1224
      %v1263 = vsel %vm386, %v1242, %v1226
      %v1264 = vsel %vm386, %v1244, %v1228
      %v1265 = vsel %vm386, %v1246, %v1230
      %v1266 = vsel %vm386, %v1248, %v1232
      %v1267 = vsel %vm386, %v1250, %v1234
      %v1268 = vsel %vm386, %v1252, %v1236
      %v1269 = vld [vmem:[%s395] ss:$8 sm:$0x3]
      %v1271 = vlaneseq
      %v1272 = vshrl.u32 %v1271, 7
      %v1273 = vsub.s32 0, %v1272
      %v1274 = vrot.slane %v1269, %v1273
      %v1275 = vlaneseq
      %v1276 = vshrl.u32 %v1275, 7
      %v1277 = vsub.s32 1, %v1276
      %v1278 = vrot.slane %v1269, %v1277
      %v1281 = vmul.f32 %v1261, %v1274
      %v1282 = vmul.f32 %v1253, %v1278
      %v1283 = vmul.f32 %v1262, %v1274
      %v1284 = vmul.f32 %v1254, %v1278
      %v1285 = vmul.f32 %v1263, %v1274
      %v1286 = vmul.f32 %v1255, %v1278
      %v1287 = vmul.f32 %v1264, %v1274
      %v1288 = vmul.f32 %v1256, %v1278
      %v1289 = vmul.f32 %v1265, %v1274
      %v1290 = vmul.f32 %v1257, %v1278
      %v1291 = vmul.f32 %v1266, %v1274
      %v1292 = vmul.f32 %v1258, %v1278
      %v1293 = vmul.f32 %v1267, %v1274
      %v1294 = vmul.f32 %v1259, %v1278
      %v1295 = vmul.f32 %v1268, %v1274
      %v1296 = vmul.f32 %v1260, %v1278
      %v1297 = vpack.c.bf16 %v1283, %v1281
      %v1298 = vpack.c.bf16 %v1284, %v1282
      %v1299 = vpack.c.bf16 %v1287, %v1285
      %v1300 = vpack.c.bf16 %v1288, %v1286
      %v1301 = vpack.c.bf16 %v1291, %v1289
      %v1302 = vpack.c.bf16 %v1292, %v1290
      %v1303 = vpack.c.bf16 %v1295, %v1293
      %v1304 = vpack.c.bf16 %v1296, %v1294
      %1305 = vst [vmem:[#allocation2 + $0x80] sm:$0xff] %v1297
      %1306 = vst [vmem:[#allocation2 + $0x88] sm:$0xff] %v1298
      %1307 = vst [vmem:[#allocation2 + $0x90] sm:$0xff] %v1299
      %1308 = vst [vmem:[#allocation2 + $0x98] sm:$0xff] %v1300
      %1309 = vst [vmem:[#allocation2 + $0xa0] sm:$0xff] %v1301
      %1310 = vst [vmem:[#allocation2 + $0xa8] sm:$0xff] %v1302
      %1311 = vst [vmem:[#allocation2 + $0xb0] sm:$0xff] %v1303
      %1312 = vst [vmem:[#allocation2 + $0xb8] sm:$0xff] %v1304
      %1313 = vrot.lane.b32.xlu0 %v1021, 1
      %v1314 = vpop.permute.xlu0 %1313
      %1315 = vrot.lane.b32.xlu0 %v1023, 1
      %v1316 = vpop.permute.xlu0 %1315
      %1317 = vrot.lane.b32.xlu0 %v1025, 1
      %v1318 = vpop.permute.xlu0 %1317
      %1319 = vrot.lane.b32.xlu0 %v1027, 1
      %v1320 = vpop.permute.xlu0 %1319
      %1321 = vrot.lane.b32.xlu0 %v1029, 1
      %v1322 = vpop.permute.xlu0 %1321
      %1323 = vrot.lane.b32.xlu0 %v1031, 1
      %v1324 = vpop.permute.xlu0 %1323
      %1325 = vrot.lane.b32.xlu0 %v1033, 1
      %v1326 = vpop.permute.xlu0 %1325
      %1327 = vrot.lane.b32.xlu0 %v1035, 1
      %v1328 = vpop.permute.xlu0 %1327
      %1329 = vrot.lane.b32.xlu0 %v1022, 1
      %v1330 = vpop.permute.xlu0 %1329
      %1331 = vrot.lane.b32.xlu0 %v1024, 1
      %v1332 = vpop.permute.xlu0 %1331
      %1333 = vrot.lane.b32.xlu0 %v1026, 1
      %v1334 = vpop.permute.xlu0 %1333
      %1335 = vrot.lane.b32.xlu0 %v1028, 1
      %v1336 = vpop.permute.xlu0 %1335
      %1337 = vrot.lane.b32.xlu0 %v1030, 1
      %v1338 = vpop.permute.xlu0 %1337
      %1339 = vrot.lane.b32.xlu0 %v1032, 1
      %v1340 = vpop.permute.xlu0 %1339
      %1341 = vrot.lane.b32.xlu0 %v1034, 1
      %v1342 = vpop.permute.xlu0 %1341
      %1343 = vrot.lane.b32.xlu0 %v1036, 1
      %v1344 = vpop.permute.xlu0 %1343
      %v1345 = vsel %vm440, %v1314, %v1330
      %v1346 = vsel %vm440, %v1316, %v1332
      %v1347 = vsel %vm440, %v1318, %v1334
      %v1348 = vsel %vm440, %v1320, %v1336
      %v1349 = vsel %vm440, %v1322, %v1338
      %v1350 = vsel %vm440, %v1324, %v1340
      %v1351 = vsel %vm440, %v1326, %v1342
      %v1352 = vsel %vm440, %v1328, %v1344
      %v1353 = vsel %vm440, %v1330, %v1314
      %v1354 = vsel %vm440, %v1332, %v1316
      %v1355 = vsel %vm440, %v1334, %v1318
      %v1356 = vsel %vm440, %v1336, %v1320
      %v1357 = vsel %vm440, %v1338, %v1322
      %v1358 = vsel %vm440, %v1340, %v1324
      %v1359 = vsel %vm440, %v1342, %v1326
      %v1360 = vsel %vm440, %v1344, %v1328
      %v1361 = vld [vmem:[%s449] ss:$8 sm:$0x3]
      %v1363 = vlaneseq
      %v1364 = vshrl.u32 %v1363, 7
      %v1365 = vsub.s32 0, %v1364
      %v1366 = vrot.slane %v1361, %v1365
      %v1367 = vlaneseq
      %v1368 = vshrl.u32 %v1367, 7
      %v1369 = vsub.s32 1, %v1368
      %v1370 = vrot.slane %v1361, %v1369
      %v1373 = vmul.f32 %v1353, %v1366
      %v1374 = vmul.f32 %v1345, %v1370
      %v1375 = vmul.f32 %v1354, %v1366
      %v1376 = vmul.f32 %v1346, %v1370
      %v1377 = vmul.f32 %v1355, %v1366
      %v1378 = vmul.f32 %v1347, %v1370
      %v1379 = vmul.f32 %v1356, %v1366
      %v1380 = vmul.f32 %v1348, %v1370
      %v1381 = vmul.f32 %v1357, %v1366
      %v1382 = vmul.f32 %v1349, %v1370
      %v1383 = vmul.f32 %v1358, %v1366
      %v1384 = vmul.f32 %v1350, %v1370
      %v1385 = vmul.f32 %v1359, %v1366
      %v1386 = vmul.f32 %v1351, %v1370
      %v1387 = vmul.f32 %v1360, %v1366
      %v1388 = vmul.f32 %v1352, %v1370
      %v1389 = vpack.c.bf16 %v1375, %v1373
      %v1390 = vpack.c.bf16 %v1376, %v1374
      %v1391 = vpack.c.bf16 %v1379, %v1377
      %v1392 = vpack.c.bf16 %v1380, %v1378
      %v1393 = vpack.c.bf16 %v1383, %v1381
      %v1394 = vpack.c.bf16 %v1384, %v1382
      %v1395 = vpack.c.bf16 %v1387, %v1385
      %v1396 = vpack.c.bf16 %v1388, %v1386
      %1397 = vst [vmem:[#allocation2 + $0xc0] sm:$0xff] %v1389
      %1398 = vst [vmem:[#allocation2 + $0xc8] sm:$0xff] %v1390
      %1399 = vst [vmem:[#allocation2 + $0xd0] sm:$0xff] %v1391
      %1400 = vst [vmem:[#allocation2 + $0xd8] sm:$0xff] %v1392
      %1401 = vst [vmem:[#allocation2 + $0xe0] sm:$0xff] %v1393
      %1402 = vst [vmem:[#allocation2 + $0xe8] sm:$0xff] %v1394
      %1403 = vst [vmem:[#allocation2 + $0xf0] sm:$0xff] %v1395
      %1404 = vst [vmem:[#allocation2 + $0xf8] sm:$0xff] %v1396
      %v1405 = vpack.c.bf16 %v1023, %v1021
      %v1406 = vpack.c.bf16 %v1024, %v1022
      %v1407 = vpack.c.bf16 %v1027, %v1025
      %v1408 = vpack.c.bf16 %v1028, %v1026
      %v1409 = vpack.c.bf16 %v1031, %v1029
      %v1410 = vpack.c.bf16 %v1032, %v1030
      %v1411 = vpack.c.bf16 %v1035, %v1033
      %v1412 = vpack.c.bf16 %v1036, %v1034
      %1413 = vst [vmem:[#allocation2 + $0x100] sm:$0xff] %v1405
      %1414 = vst [vmem:[#allocation2 + $0x108] sm:$0xff] %v1406
      %1415 = vst [vmem:[#allocation2 + $0x110] sm:$0xff] %v1407
      %1416 = vst [vmem:[#allocation2 + $0x118] sm:$0xff] %v1408
      %1417 = vst [vmem:[#allocation2 + $0x120] sm:$0xff] %v1409
      %1418 = vst [vmem:[#allocation2 + $0x128] sm:$0xff] %v1410
      %1419 = vst [vmem:[#allocation2 + $0x130] sm:$0xff] %v1411
      %1420 = vst [vmem:[#allocation2 + $0x138] sm:$0xff] %v1412
      %1421 = vrot.lane.b32.xlu0 %v1021, 127
      %v1422 = vpop.permute.xlu0 %1421
      %1423 = vrot.lane.b32.xlu0 %v1023, 127
      %v1424 = vpop.permute.xlu0 %1423
      %1425 = vrot.lane.b32.xlu0 %v1025, 127
      %v1426 = vpop.permute.xlu0 %1425
      %1427 = vrot.lane.b32.xlu0 %v1027, 127
      %v1428 = vpop.permute.xlu0 %1427
      %1429 = vrot.lane.b32.xlu0 %v1029, 127
      %v1430 = vpop.permute.xlu0 %1429
      %1431 = vrot.lane.b32.xlu0 %v1031, 127
      %v1432 = vpop.permute.xlu0 %1431
      %1433 = vrot.lane.b32.xlu0 %v1033, 127
      %v1434 = vpop.permute.xlu0 %1433
      %1435 = vrot.lane.b32.xlu0 %v1035, 127
      %v1436 = vpop.permute.xlu0 %1435
      %1437 = vrot.lane.b32.xlu0 %v1022, 127
      %v1438 = vpop.permute.xlu0 %1437
      %1439 = vrot.lane.b32.xlu0 %v1024, 127
      %v1440 = vpop.permute.xlu0 %1439
      %1441 = vrot.lane.b32.xlu0 %v1026, 127
      %v1442 = vpop.permute.xlu0 %1441
      %1443 = vrot.lane.b32.xlu0 %v1028, 127
      %v1444 = vpop.permute.xlu0 %1443
      %1445 = vrot.lane.b32.xlu0 %v1030, 127
      %v1446 = vpop.permute.xlu0 %1445
      %1447 = vrot.lane.b32.xlu0 %v1032, 127
      %v1448 = vpop.permute.xlu0 %1447
      %1449 = vrot.lane.b32.xlu0 %v1034, 127
      %v1450 = vpop.permute.xlu0 %1449
      %1451 = vrot.lane.b32.xlu0 %v1036, 127
      %v1452 = vpop.permute.xlu0 %1451
      %v1453 = vsel %vm502, %v1422, %v1438
      %v1454 = vsel %vm502, %v1424, %v1440
      %v1455 = vsel %vm502, %v1426, %v1442
      %v1456 = vsel %vm502, %v1428, %v1444
      %v1457 = vsel %vm502, %v1430, %v1446
      %v1458 = vsel %vm502, %v1432, %v1448
      %v1459 = vsel %vm502, %v1434, %v1450
      %v1460 = vsel %vm502, %v1436, %v1452
      %v1461 = vsel %vm502, %v1438, %v1422
      %v1462 = vsel %vm502, %v1440, %v1424
      %v1463 = vsel %vm502, %v1442, %v1426
      %v1464 = vsel %vm502, %v1444, %v1428
      %v1465 = vsel %vm502, %v1446, %v1430
      %v1466 = vsel %vm502, %v1448, %v1432
      %v1467 = vsel %vm502, %v1450, %v1434
      %v1468 = vsel %vm502, %v1452, %v1436
      %v1469 = vld [vmem:[%s511] ss:$8 sm:$0x3]
      %v1471 = vlaneseq
      %v1472 = vshrl.u32 %v1471, 7
      %v1473 = vsub.s32 0, %v1472
      %v1474 = vrot.slane %v1469, %v1473
      %v1475 = vlaneseq
      %v1476 = vshrl.u32 %v1475, 7
      %v1477 = vsub.s32 1, %v1476
      %v1478 = vrot.slane %v1469, %v1477
      %v1481 = vmul.f32 %v1453, %v1474
      %v1482 = vmul.f32 %v1461, %v1478
      %v1483 = vmul.f32 %v1454, %v1474
      %v1484 = vmul.f32 %v1462, %v1478
      %v1485 = vmul.f32 %v1455, %v1474
      %v1486 = vmul.f32 %v1463, %v1478
      %v1487 = vmul.f32 %v1456, %v1474
      %v1488 = vmul.f32 %v1464, %v1478
      %v1489 = vmul.f32 %v1457, %v1474
      %v1490 = vmul.f32 %v1465, %v1478
      %v1491 = vmul.f32 %v1458, %v1474
      %v1492 = vmul.f32 %v1466, %v1478
      %v1493 = vmul.f32 %v1459, %v1474
      %v1494 = vmul.f32 %v1467, %v1478
      %v1495 = vmul.f32 %v1460, %v1474
      %v1496 = vmul.f32 %v1468, %v1478
      %v1497 = vpack.c.bf16 %v1483, %v1481
      %v1498 = vpack.c.bf16 %v1484, %v1482
      %v1499 = vpack.c.bf16 %v1487, %v1485
      %v1500 = vpack.c.bf16 %v1488, %v1486
      %v1501 = vpack.c.bf16 %v1491, %v1489
      %v1502 = vpack.c.bf16 %v1492, %v1490
      %v1503 = vpack.c.bf16 %v1495, %v1493
      %v1504 = vpack.c.bf16 %v1496, %v1494
      %1505 = vst [vmem:[#allocation2 + $0x140] sm:$0xff] %v1497
      %1506 = vst [vmem:[#allocation2 + $0x148] sm:$0xff] %v1498
      %1507 = vst [vmem:[#allocation2 + $0x150] sm:$0xff] %v1499
      %1508 = vst [vmem:[#allocation2 + $0x158] sm:$0xff] %v1500
      %1509 = vst [vmem:[#allocation2 + $0x160] sm:$0xff] %v1501
      %1510 = vst [vmem:[#allocation2 + $0x168] sm:$0xff] %v1502
      %1511 = vst [vmem:[#allocation2 + $0x170] sm:$0xff] %v1503
      %1512 = vst [vmem:[#allocation2 + $0x178] sm:$0xff] %v1504
      %1513 = vrot.lane.b32.xlu0 %v1021, 113
      %v1514 = vpop.permute.xlu0 %1513
      %1515 = vrot.lane.b32.xlu0 %v1023, 113
      %v1516 = vpop.permute.xlu0 %1515
      %1517 = vrot.lane.b32.xlu0 %v1025, 113
      %v1518 = vpop.permute.xlu0 %1517
      %1519 = vrot.lane.b32.xlu0 %v1027, 113
      %v1520 = vpop.permute.xlu0 %1519
      %1521 = vrot.lane.b32.xlu0 %v1029, 113
      %v1522 = vpop.permute.xlu0 %1521
      %1523 = vrot.lane.b32.xlu0 %v1031, 113
      %v1524 = vpop.permute.xlu0 %1523
      %1525 = vrot.lane.b32.xlu0 %v1033, 113
      %v1526 = vpop.permute.xlu0 %1525
      %1527 = vrot.lane.b32.xlu0 %v1035, 113
      %v1528 = vpop.permute.xlu0 %1527
      %1529 = vrot.lane.b32.xlu0 %v1022, 113
      %v1530 = vpop.permute.xlu0 %1529
      %1531 = vrot.lane.b32.xlu0 %v1024, 113
      %v1532 = vpop.permute.xlu0 %1531
      %1533 = vrot.lane.b32.xlu0 %v1026, 113
      %v1534 = vpop.permute.xlu0 %1533
      %1535 = vrot.lane.b32.xlu0 %v1028, 113
      %v1536 = vpop.permute.xlu0 %1535
      %1537 = vrot.lane.b32.xlu0 %v1030, 113
      %v1538 = vpop.permute.xlu0 %1537
      %1539 = vrot.lane.b32.xlu0 %v1032, 113
      %v1540 = vpop.permute.xlu0 %1539
      %1541 = vrot.lane.b32.xlu0 %v1034, 113
      %v1542 = vpop.permute.xlu0 %1541
      %1543 = vrot.lane.b32.xlu0 %v1036, 113
      %v1544 = vpop.permute.xlu0 %1543
      %v1545 = vsel %vm556, %v1514, %v1530
      %v1546 = vsel %vm556, %v1516, %v1532
      %v1547 = vsel %vm556, %v1518, %v1534
      %v1548 = vsel %vm556, %v1520, %v1536
      %v1549 = vsel %vm556, %v1522, %v1538
      %v1550 = vsel %vm556, %v1524, %v1540
      %v1551 = vsel %vm556, %v1526, %v1542
      %v1552 = vsel %vm556, %v1528, %v1544
      %v1553 = vsel %vm556, %v1530, %v1514
      %v1554 = vsel %vm556, %v1532, %v1516
      %v1555 = vsel %vm556, %v1534, %v1518
      %v1556 = vsel %vm556, %v1536, %v1520
      %v1557 = vsel %vm556, %v1538, %v1522
      %v1558 = vsel %vm556, %v1540, %v1524
      %v1559 = vsel %vm556, %v1542, %v1526
      %v1560 = vsel %vm556, %v1544, %v1528
      %v1561 = vld [vmem:[%s565] ss:$8 sm:$0x3]
      %v1563 = vlaneseq
      %v1564 = vshrl.u32 %v1563, 7
      %v1565 = vsub.s32 0, %v1564
      %v1566 = vrot.slane %v1561, %v1565
      %v1567 = vlaneseq
      %v1568 = vshrl.u32 %v1567, 7
      %v1569 = vsub.s32 1, %v1568
      %v1570 = vrot.slane %v1561, %v1569
      %v1573 = vmul.f32 %v1545, %v1566
      %v1574 = vmul.f32 %v1553, %v1570
      %v1575 = vmul.f32 %v1546, %v1566
      %v1576 = vmul.f32 %v1554, %v1570
      %v1577 = vmul.f32 %v1547, %v1566
      %v1578 = vmul.f32 %v1555, %v1570
      %v1579 = vmul.f32 %v1548, %v1566
      %v1580 = vmul.f32 %v1556, %v1570
      %v1581 = vmul.f32 %v1549, %v1566
      %v1582 = vmul.f32 %v1557, %v1570
      %v1583 = vmul.f32 %v1550, %v1566
      %v1584 = vmul.f32 %v1558, %v1570
      %v1585 = vmul.f32 %v1551, %v1566
      %v1586 = vmul.f32 %v1559, %v1570
      %v1587 = vmul.f32 %v1552, %v1566
      %v1588 = vmul.f32 %v1560, %v1570
      %v1589 = vpack.c.bf16 %v1575, %v1573
      %v1590 = vpack.c.bf16 %v1576, %v1574
      %v1591 = vpack.c.bf16 %v1579, %v1577
      %v1592 = vpack.c.bf16 %v1580, %v1578
      %v1593 = vpack.c.bf16 %v1583, %v1581
      %v1594 = vpack.c.bf16 %v1584, %v1582
      %v1595 = vpack.c.bf16 %v1587, %v1585
      %v1596 = vpack.c.bf16 %v1588, %v1586
      %1597 = vst [vmem:[#allocation2 + $0x180] sm:$0xff] %v1589
      %1598 = vst [vmem:[#allocation2 + $0x188] sm:$0xff] %v1590
      %1599 = vst [vmem:[#allocation2 + $0x190] sm:$0xff] %v1591
      %1600 = vst [vmem:[#allocation2 + $0x198] sm:$0xff] %v1592
      %1601 = vst [vmem:[#allocation2 + $0x1a0] sm:$0xff] %v1593
      %1602 = vst [vmem:[#allocation2 + $0x1a8] sm:$0xff] %v1594
      %1603 = vst [vmem:[#allocation2 + $0x1b0] sm:$0xff] %v1595
      %1604 = vst [vmem:[#allocation2 + $0x1b8] sm:$0xff] %v1596
      %1605 = vrot.lane.b32.xlu0 %v1021, 112
      %v1606 = vpop.permute.xlu0 %1605
      %1607 = vrot.lane.b32.xlu0 %v1023, 112
      %v1608 = vpop.permute.xlu0 %1607
      %1609 = vrot.lane.b32.xlu0 %v1025, 112
      %v1610 = vpop.permute.xlu0 %1609
      %1611 = vrot.lane.b32.xlu0 %v1027, 112
      %v1612 = vpop.permute.xlu0 %1611
      %1613 = vrot.lane.b32.xlu0 %v1029, 112
      %v1614 = vpop.permute.xlu0 %1613
      %1615 = vrot.lane.b32.xlu0 %v1031, 112
      %v1616 = vpop.permute.xlu0 %1615
      %1617 = vrot.lane.b32.xlu0 %v1033, 112
      %v1618 = vpop.permute.xlu0 %1617
      %1619 = vrot.lane.b32.xlu0 %v1035, 112
      %v1620 = vpop.permute.xlu0 %1619
      %1621 = vrot.lane.b32.xlu0 %v1022, 112
      %v1622 = vpop.permute.xlu0 %1621
      %1623 = vrot.lane.b32.xlu0 %v1024, 112
      %v1624 = vpop.permute.xlu0 %1623
      %1625 = vrot.lane.b32.xlu0 %v1026, 112
      %v1626 = vpop.permute.xlu0 %1625
      %1627 = vrot.lane.b32.xlu0 %v1028, 112
      %v1628 = vpop.permute.xlu0 %1627
      %1629 = vrot.lane.b32.xlu0 %v1030, 112
      %v1630 = vpop.permute.xlu0 %1629
      %1631 = vrot.lane.b32.xlu0 %v1032, 112
      %v1632 = vpop.permute.xlu0 %1631
      %1633 = vrot.lane.b32.xlu0 %v1034, 112
      %v1634 = vpop.permute.xlu0 %1633
      %1635 = vrot.lane.b32.xlu0 %v1036, 112
      %v1636 = vpop.permute.xlu0 %1635
      %v1637 = vsel %vm610, %v1606, %v1622
      %v1638 = vsel %vm610, %v1608, %v1624
      %v1639 = vsel %vm610, %v1610, %v1626
      %v1640 = vsel %vm610, %v1612, %v1628
      %v1641 = vsel %vm610, %v1614, %v1630
      %v1642 = vsel %vm610, %v1616, %v1632
      %v1643 = vsel %vm610, %v1618, %v1634
      %v1644 = vsel %vm610, %v1620, %v1636
      %v1645 = vsel %vm610, %v1622, %v1606
      %v1646 = vsel %vm610, %v1624, %v1608
      %v1647 = vsel %vm610, %v1626, %v1610
      %v1648 = vsel %vm610, %v1628, %v1612
      %v1649 = vsel %vm610, %v1630, %v1614
      %v1650 = vsel %vm610, %v1632, %v1616
      %v1651 = vsel %vm610, %v1634, %v1618
      %v1652 = vsel %vm610, %v1636, %v1620
      %v1653 = vld [vmem:[%s619] ss:$8 sm:$0x3]
      %v1655 = vlaneseq
      %v1656 = vshrl.u32 %v1655, 7
      %v1657 = vsub.s32 0, %v1656
      %v1658 = vrot.slane %v1653, %v1657
      %v1659 = vlaneseq
      %v1660 = vshrl.u32 %v1659, 7
      %v1661 = vsub.s32 1, %v1660
      %v1662 = vrot.slane %v1653, %v1661
      %v1665 = vmul.f32 %v1637, %v1658
      %v1666 = vmul.f32 %v1645, %v1662
      %v1667 = vmul.f32 %v1638, %v1658
      %v1668 = vmul.f32 %v1646, %v1662
      %v1669 = vmul.f32 %v1639, %v1658
      %v1670 = vmul.f32 %v1647, %v1662
      %v1671 = vmul.f32 %v1640, %v1658
      %v1672 = vmul.f32 %v1648, %v1662
      %v1673 = vmul.f32 %v1641, %v1658
      %v1674 = vmul.f32 %v1649, %v1662
      %v1675 = vmul.f32 %v1642, %v1658
      %v1676 = vmul.f32 %v1650, %v1662
      %v1677 = vmul.f32 %v1643, %v1658
      %v1678 = vmul.f32 %v1651, %v1662
      %v1679 = vmul.f32 %v1644, %v1658
      %v1680 = vmul.f32 %v1652, %v1662
      %v1681 = vpack.c.bf16 %v1667, %v1665
      %v1682 = vpack.c.bf16 %v1668, %v1666
      %v1683 = vpack.c.bf16 %v1671, %v1669
      %v1684 = vpack.c.bf16 %v1672, %v1670
      %v1685 = vpack.c.bf16 %v1675, %v1673
      %v1686 = vpack.c.bf16 %v1676, %v1674
      %v1687 = vpack.c.bf16 %v1679, %v1677
      %v1688 = vpack.c.bf16 %v1680, %v1678
      %1689 = vst [vmem:[#allocation2 + $0x1c0] sm:$0xff] %v1681
      %1690 = vst [vmem:[#allocation2 + $0x1c8] sm:$0xff] %v1682
      %1691 = vst [vmem:[#allocation2 + $0x1d0] sm:$0xff] %v1683
      %1692 = vst [vmem:[#allocation2 + $0x1d8] sm:$0xff] %v1684
      %1693 = vst [vmem:[#allocation2 + $0x1e0] sm:$0xff] %v1685
      %1694 = vst [vmem:[#allocation2 + $0x1e8] sm:$0xff] %v1686
      %1695 = vst [vmem:[#allocation2 + $0x1f0] sm:$0xff] %v1687
      %1696 = vst [vmem:[#allocation2 + $0x1f8] sm:$0xff] %v1688
      %1697 = vrot.lane.b32.xlu0 %v1021, 111
      %v1698 = vpop.permute.xlu0 %1697
      %1699 = vrot.lane.b32.xlu0 %v1023, 111
      %v1700 = vpop.permute.xlu0 %1699
      %1701 = vrot.lane.b32.xlu0 %v1025, 111
      %v1702 = vpop.permute.xlu0 %1701
      %1703 = vrot.lane.b32.xlu0 %v1027, 111
      %v1704 = vpop.permute.xlu0 %1703
      %1705 = vrot.lane.b32.xlu0 %v1029, 111
      %v1706 = vpop.permute.xlu0 %1705
      %1707 = vrot.lane.b32.xlu0 %v1031, 111
      %v1708 = vpop.permute.xlu0 %1707
      %1709 = vrot.lane.b32.xlu0 %v1033, 111
      %v1710 = vpop.permute.xlu0 %1709
      %1711 = vrot.lane.b32.xlu0 %v1035, 111
      %v1712 = vpop.permute.xlu0 %1711
      %1713 = vrot.lane.b32.xlu0 %v1022, 111
      %v1714 = vpop.permute.xlu0 %1713
      %1715 = vrot.lane.b32.xlu0 %v1024, 111
      %v1716 = vpop.permute.xlu0 %1715
      %1717 = vrot.lane.b32.xlu0 %v1026, 111
      %v1718 = vpop.permute.xlu0 %1717
      %1719 = vrot.lane.b32.xlu0 %v1028, 111
      %v1720 = vpop.permute.xlu0 %1719
      %1721 = vrot.lane.b32.xlu0 %v1030, 111
      %v1722 = vpop.permute.xlu0 %1721
      %1723 = vrot.lane.b32.xlu0 %v1032, 111
      %v1724 = vpop.permute.xlu0 %1723
      %1725 = vrot.lane.b32.xlu0 %v1034, 111
      %v1726 = vpop.permute.xlu0 %1725
      %1727 = vrot.lane.b32.xlu0 %v1036, 111
      %v1728 = vpop.permute.xlu0 %1727
      %v1729 = vsel %vm664, %v1698, %v1714
      %v1730 = vsel %vm664, %v1700, %v1716
      %v1731 = vsel %vm664, %v1702, %v1718
      %v1732 = vsel %vm664, %v1704, %v1720
      %v1733 = vsel %vm664, %v1706, %v1722
      %v1734 = vsel %vm664, %v1708, %v1724
      %v1735 = vsel %vm664, %v1710, %v1726
      %v1736 = vsel %vm664, %v1712, %v1728
      %v1737 = vsel %vm664, %v1714, %v1698
      %v1738 = vsel %vm664, %v1716, %v1700
      %v1739 = vsel %vm664, %v1718, %v1702
      %v1740 = vsel %vm664, %v1720, %v1704
      %v1741 = vsel %vm664, %v1722, %v1706
      %v1742 = vsel %vm664, %v1724, %v1708
      %v1743 = vsel %vm664, %v1726, %v1710
      %v1744 = vsel %vm664, %v1728, %v1712
      %v1745 = vld [vmem:[%s673] ss:$8 sm:$0x3]
      %v1747 = vlaneseq
      %v1748 = vshrl.u32 %v1747, 7
      %v1749 = vsub.s32 0, %v1748
      %v1750 = vrot.slane %v1745, %v1749
      %v1751 = vlaneseq
      %v1752 = vshrl.u32 %v1751, 7
      %v1753 = vsub.s32 1, %v1752
      %v1754 = vrot.slane %v1745, %v1753
      %v1757 = vmul.f32 %v1729, %v1750
      %v1758 = vmul.f32 %v1737, %v1754
      %v1759 = vmul.f32 %v1730, %v1750
      %v1760 = vmul.f32 %v1738, %v1754
      %v1761 = vmul.f32 %v1731, %v1750
      %v1762 = vmul.f32 %v1739, %v1754
      %v1763 = vmul.f32 %v1732, %v1750
      %v1764 = vmul.f32 %v1740, %v1754
      %v1765 = vmul.f32 %v1733, %v1750
      %v1766 = vmul.f32 %v1741, %v1754
      %v1767 = vmul.f32 %v1734, %v1750
      %v1768 = vmul.f32 %v1742, %v1754
      %v1769 = vmul.f32 %v1735, %v1750
      %v1770 = vmul.f32 %v1743, %v1754
      %v1771 = vmul.f32 %v1736, %v1750
      %v1772 = vmul.f32 %v1744, %v1754
      %v1773 = vpack.c.bf16 %v1759, %v1757
      %v1774 = vpack.c.bf16 %v1760, %v1758
      %v1775 = vpack.c.bf16 %v1763, %v1761
      %v1776 = vpack.c.bf16 %v1764, %v1762
      %v1777 = vpack.c.bf16 %v1767, %v1765
      %v1778 = vpack.c.bf16 %v1768, %v1766
      %v1779 = vpack.c.bf16 %v1771, %v1769
      %v1780 = vpack.c.bf16 %v1772, %v1770
      %1781 = vst [vmem:[#allocation2 + $0x200] sm:$0xff] %v1773
      %1782 = vst [vmem:[#allocation2 + $0x208] sm:$0xff] %v1774
      %1783 = vst [vmem:[#allocation2 + $0x210] sm:$0xff] %v1775
      %1784 = vst [vmem:[#allocation2 + $0x218] sm:$0xff] %v1776
      %1785 = vst [vmem:[#allocation2 + $0x220] sm:$0xff] %v1777
      %1786 = vst [vmem:[#allocation2 + $0x228] sm:$0xff] %v1778
      %1787 = vst [vmem:[#allocation2 + $0x230] sm:$0xff] %v1779
      %1788 = vst [vmem:[#allocation2 + $0x238] sm:$0xff] %v1780
      %v1789 = vld [vmem:[%s4] sm:$0xff]
      %v1790 = vld [vmem:[%s4 + $0x8] sm:$0xff]
      %v1791 = vld [vmem:[%s4 + $0x10] sm:$0xf]
      %v1792 = vld [vmem:[%s4 + $0x14] sm:$0xff]
      %v1793 = vld [vmem:[%s4 + $0x1c] sm:$0xff]
      %v1794 = vld [vmem:[%s4 + $0x24] sm:$0xf]
      %v1795 = vld [vmem:[%s4 + $0x28] sm:$0xff]
      %v1796 = vld [vmem:[%s4 + $0x30] sm:$0xff]
      %v1797 = vld [vmem:[%s4 + $0x38] sm:$0xf]
      %v1798 = vld [vmem:[%s4 + $0x3c] sm:$0xff]
      %v1799 = vld [vmem:[%s4 + $0x44] sm:$0xff]
      %v1800 = vld [vmem:[%s4 + $0x4c] sm:$0xf]
      %v1801 = vld [vmem:[%s4 + $0x50] sm:$0xff]
      %v1802 = vld [vmem:[%s4 + $0x58] sm:$0xff]
      %v1803 = vld [vmem:[%s4 + $0x60] sm:$0xf]
      %v1804 = vld [vmem:[%s4 + $0x64] sm:$0xff]
      %v1805 = vld [vmem:[%s4 + $0x6c] sm:$0xff]
      %v1806 = vld [vmem:[%s4 + $0x74] sm:$0xf]
      %v1807 = vld [vmem:[%s4 + $0x78] sm:$0xff]
      %v1808 = vld [vmem:[%s4 + $0x80] sm:$0xff]
      %v1809 = vld [vmem:[%s4 + $0x88] sm:$0xf]
      %v1810 = vld [vmem:[%s4 + $0x8c] sm:$0xff]
      %v1811 = vld [vmem:[%s4 + $0x94] sm:$0xff]
      %v1812 = vld [vmem:[%s4 + $0x9c] sm:$0xf]
      %v1813 = vld [vmem:[#allocation2] sm:$0xff]
      %v1814 = vld [vmem:[#allocation2 + $0x8] sm:$0xff]
      %v1815 = vld [vmem:[#allocation2 + $0x10] sm:$0xff]
      %v1816 = vld [vmem:[#allocation2 + $0x18] sm:$0xff]
      %v1817 = vld [vmem:[#allocation2 + $0x20] sm:$0xff]
      %v1818 = vld [vmem:[#allocation2 + $0x28] sm:$0xff]
      %v1819 = vld [vmem:[#allocation2 + $0x30] sm:$0xff]
      %v1820 = vld [vmem:[#allocation2 + $0x38] sm:$0xff]
      %v1821 = vld [vmem:[#allocation2 + $0x40] sm:$0xff]
      %v1822 = vld [vmem:[#allocation2 + $0x48] sm:$0xff]
      %v1823 = vld [vmem:[#allocation2 + $0x50] sm:$0xff]
      %v1824 = vld [vmem:[#allocation2 + $0x58] sm:$0xff]
      %v1825 = vld [vmem:[#allocation2 + $0x60] sm:$0xff]
      %v1826 = vld [vmem:[#allocation2 + $0x68] sm:$0xff]
      %v1827 = vld [vmem:[#allocation2 + $0x70] sm:$0xff]
      %v1828 = vld [vmem:[#allocation2 + $0x78] sm:$0xff]
      %v1829 = vld [vmem:[#allocation2 + $0x80] sm:$0xff]
      %v1830 = vld [vmem:[#allocation2 + $0x88] sm:$0xff]
      %v1831 = vld [vmem:[#allocation2 + $0x90] sm:$0xff]
      %v1832 = vld [vmem:[#allocation2 + $0x98] sm:$0xff]
      %v1833 = vld [vmem:[#allocation2 + $0xa0] sm:$0xff]
      %v1834 = vld [vmem:[#allocation2 + $0xa8] sm:$0xff]
      %v1835 = vld [vmem:[#allocation2 + $0xb0] sm:$0xff]
      %v1836 = vld [vmem:[#allocation2 + $0xb8] sm:$0xff]
      %v1837 = vld [vmem:[#allocation2 + $0xc0] sm:$0xff]
      %v1838 = vld [vmem:[#allocation2 + $0xc8] sm:$0xff]
      %v1839 = vld [vmem:[#allocation2 + $0xd0] sm:$0xff]
      %v1840 = vld [vmem:[#allocation2 + $0xd8] sm:$0xff]
      %v1841 = vld [vmem:[#allocation2 + $0xe0] sm:$0xff]
      %v1842 = vld [vmem:[#allocation2 + $0xe8] sm:$0xff]
      %v1843 = vld [vmem:[#allocation2 + $0xf0] sm:$0xff]
      %v1844 = vld [vmem:[#allocation2 + $0xf8] sm:$0xff]
      %v1845 = vld [vmem:[#allocation2 + $0x100] sm:$0xff]
      %v1846 = vld [vmem:[#allocation2 + $0x108] sm:$0xff]
      %v1847 = vld [vmem:[#allocation2 + $0x110] sm:$0xff]
      %v1848 = vld [vmem:[#allocation2 + $0x118] sm:$0xff]
      %v1849 = vld [vmem:[#allocation2 + $0x120] sm:$0xff]
      %v1850 = vld [vmem:[#allocation2 + $0x128] sm:$0xff]
      %v1851 = vld [vmem:[#allocation2 + $0x130] sm:$0xff]
      %v1852 = vld [vmem:[#allocation2 + $0x138] sm:$0xff]
      %v1853 = vld [vmem:[#allocation2 + $0x140] sm:$0xff]
      %v1854 = vld [vmem:[#allocation2 + $0x148] sm:$0xff]
      %v1855 = vld [vmem:[#allocation2 + $0x150] sm:$0xff]
      %v1856 = vld [vmem:[#allocation2 + $0x158] sm:$0xff]
      %v1857 = vld [vmem:[#allocation2 + $0x160] sm:$0xff]
      %v1858 = vld [vmem:[#allocation2 + $0x168] sm:$0xff]
      %v1859 = vld [vmem:[#allocation2 + $0x170] sm:$0xff]
      %v1860 = vld [vmem:[#allocation2 + $0x178] sm:$0xff]
      %v1861 = vld [vmem:[#allocation2 + $0x180] sm:$0xff]
      %v1862 = vld [vmem:[#allocation2 + $0x188] sm:$0xff]
      %v1863 = vld [vmem:[#allocation2 + $0x190] sm:$0xff]
      %v1864 = vld [vmem:[#allocation2 + $0x198] sm:$0xff]
      %v1865 = vld [vmem:[#allocation2 + $0x1a0] sm:$0xff]
      %v1866 = vld [vmem:[#allocation2 + $0x1a8] sm:$0xff]
      %v1867 = vld [vmem:[#allocation2 + $0x1b0] sm:$0xff]
      %v1868 = vld [vmem:[#allocation2 + $0x1b8] sm:$0xff]
      %v1869 = vld [vmem:[#allocation2 + $0x1c0] sm:$0xff]
      %v1870 = vld [vmem:[#allocation2 + $0x1c8] sm:$0xff]
      %v1871 = vld [vmem:[#allocation2 + $0x1d0] sm:$0xff]
      %v1872 = vld [vmem:[#allocation2 + $0x1d8] sm:$0xff]
      %v1873 = vld [vmem:[#allocation2 + $0x1e0] sm:$0xff]
      %v1874 = vld [vmem:[#allocation2 + $0x1e8] sm:$0xff]
      %v1875 = vld [vmem:[#allocation2 + $0x1f0] sm:$0xff]
      %v1876 = vld [vmem:[#allocation2 + $0x1f8] sm:$0xff]
      %v1877 = vld [vmem:[#allocation2 + $0x200] sm:$0xff]
      %v1878 = vld [vmem:[#allocation2 + $0x208] sm:$0xff]
      %v1879 = vld [vmem:[#allocation2 + $0x210] sm:$0xff]
      %v1880 = vld [vmem:[#allocation2 + $0x218] sm:$0xff]
      %v1881 = vld [vmem:[#allocation2 + $0x220] sm:$0xff]
      %v1882 = vld [vmem:[#allocation2 + $0x228] sm:$0xff]
      %v1883 = vld [vmem:[#allocation2 + $0x230] sm:$0xff]
      %v1884 = vld [vmem:[#allocation2 + $0x238] sm:$0xff]
      %v1885 = vld [vmem:[%s2] sm:$0xff]
      %v1886 = vld [vmem:[%s2 + $0x8] sm:$0xff]
      %v1887 = vld [vmem:[%s2 + $0x10] sm:$0xff]
      %v1888 = vld [vmem:[%s2 + $0x18] sm:$0xff]
      %v1889 = vld [vmem:[%s2 + $0x20] sm:$0xff]
      %v1890 = vld [vmem:[%s2 + $0x28] sm:$0xff]
      %v1891 = vld [vmem:[%s2 + $0x30] sm:$0xff]
      %v1892 = vld [vmem:[%s2 + $0x38] sm:$0xff]
      %1894 = vset.pattern.permute.xlu0 1
      %1895 = vperm.xlu0 %1894, %v1885
      %v1896 = vpop.permute.xlu0 %1895
      %1899 = vset.pattern.permute.xlu0 1
      %1900 = vperm.xlu0 %1899, %v1886
      %v1901 = vpop.permute.xlu0 %1900
      %1904 = vset.pattern.permute.xlu0 1
      %1905 = vperm.xlu0 %1904, %v1887
      %v1906 = vpop.permute.xlu0 %1905
      %1909 = vset.pattern.permute.xlu0 1
      %1910 = vperm.xlu0 %1909, %v1888
      %v1911 = vpop.permute.xlu0 %1910
      %1914 = vset.pattern.permute.xlu0 1
      %1915 = vperm.xlu0 %1914, %v1889
      %v1916 = vpop.permute.xlu0 %1915
      %1919 = vset.pattern.permute.xlu0 1
      %1920 = vperm.xlu0 %1919, %v1890
      %v1921 = vpop.permute.xlu0 %1920
      %1924 = vset.pattern.permute.xlu0 1
      %1925 = vperm.xlu0 %1924, %v1891
      %v1926 = vpop.permute.xlu0 %1925
      %1929 = vset.pattern.permute.xlu0 1
      %1930 = vperm.xlu0 %1929, %v1892
      %v1931 = vpop.permute.xlu0 %1930
      %v1957 = vunpack.c.l.b16 %v1789
      %v1958 = vunpack.c.h.b16 %v1789
      %v1959 = vunpack.c.l.b16 %v1790
      %v1960 = vunpack.c.h.b16 %v1790
      %v1961 = vunpack.c.l.b16 %v1791
      %v1962 = vunpack.c.l.b16 %v1792
      %v1963 = vunpack.c.h.b16 %v1792
      %v1964 = vunpack.c.l.b16 %v1793
      %v1965 = vunpack.c.h.b16 %v1793
      %v1966 = vunpack.c.l.b16 %v1794
      %v1967 = vunpack.c.l.b16 %v1795
      %v1968 = vunpack.c.h.b16 %v1795
      %v1969 = vunpack.c.l.b16 %v1796
      %v1970 = vunpack.c.h.b16 %v1796
      %v1971 = vunpack.c.l.b16 %v1797
      %v1972 = vunpack.c.l.b16 %v1798
      %v1973 = vunpack.c.h.b16 %v1798
      %v1974 = vunpack.c.l.b16 %v1799
      %v1975 = vunpack.c.h.b16 %v1799
      %v1976 = vunpack.c.l.b16 %v1800
      %v1977 = vunpack.c.l.b16 %v1801
      %v1978 = vunpack.c.h.b16 %v1801
      %v1979 = vunpack.c.l.b16 %v1802
      %v1980 = vunpack.c.h.b16 %v1802
      %v1981 = vunpack.c.l.b16 %v1803
      %v1982 = vunpack.c.l.b16 %v1804
      %v1983 = vunpack.c.h.b16 %v1804
      %v1984 = vunpack.c.l.b16 %v1805
      %v1985 = vunpack.c.h.b16 %v1805
      %v1986 = vunpack.c.l.b16 %v1806
      %v1987 = vunpack.c.l.b16 %v1807
      %v1988 = vunpack.c.h.b16 %v1807
      %v1989 = vunpack.c.l.b16 %v1808
      %v1990 = vunpack.c.h.b16 %v1808
      %v1991 = vunpack.c.l.b16 %v1809
      %v1992 = vunpack.c.l.b16 %v1810
      %v1993 = vunpack.c.h.b16 %v1810
      %v1994 = vunpack.c.l.b16 %v1811
      %v1995 = vunpack.c.h.b16 %v1811
      %v1996 = vunpack.c.l.b16 %v1812
      %v1997 = vpack.c.b16 %v1962, %v1957
      %v1998 = vpack.c.b16 %v1963, %v1958
      %v1999 = vpack.c.b16 %v1964, %v1959
      %v2000 = vpack.c.b16 %v1965, %v1960
      %v2001 = vpack.c.b16 %v1966, %v1961
      %v2002 = vpack.c.b16 %v1972, %v1967
      %v2003 = vpack.c.b16 %v1973, %v1968
      %v2004 = vpack.c.b16 %v1974, %v1969
      %v2005 = vpack.c.b16 %v1975, %v1970
      %v2006 = vpack.c.b16 %v1976, %v1971
      %v2007 = vpack.c.b16 %v1982, %v1977
      %v2008 = vpack.c.b16 %v1983, %v1978
      %v2009 = vpack.c.b16 %v1984, %v1979
      %v2010 = vpack.c.b16 %v1985, %v1980
      %v2011 = vpack.c.b16 %v1986, %v1981
      %v2012 = vpack.c.b16 %v1992, %v1987
      %v2013 = vpack.c.b16 %v1993, %v1988
      %v2014 = vpack.c.b16 %v1994, %v1989
      %v2015 = vpack.c.b16 %v1995, %v1990
      %v2016 = vpack.c.b16 %v1996, %v1991
      %vm2033 = vcmask 523264
      %v2035 = vsel %vm2033, %v2001, 0
      %v2038 = vsel %vm2033, %v2006, 0
      %v2041 = vsel %vm2033, %v2011, 0
      %v2044 = vsel %vm2033, %v2016, 0
      %2046 = vmatprep.subr.bf16.mxu0 %v1814
      %2047 = vmatpush1.bf16.msra.mxu0 %v1813
      %2048 = vmatprep.subr.bf16.mxu0 %v1816
      %2049 = vmatpush1.bf16.msra.mxu0 %v1815
      %2050 = vmatprep.subr.bf16.mxu0 %v1818
      %2051 = vmatpush1.bf16.msra.mxu0 %v1817
      %2052 = vmatprep.subr.bf16.mxu0 %v1820
      %2053 = vmatpush1.bf16.msra.mxu0 %v1819
      %2054 = vmatprep.subr.bf16.mxu0 %v1822
      %2055 = vmatpush1.bf16.msra.mxu0 %v1821
      %2056 = vmatprep.subr.bf16.mxu0 %v1824
      %2057 = vmatpush1.bf16.msra.mxu0 %v1823
      %2058 = vmatprep.subr.bf16.mxu0 %v1826
      %2059 = vmatpush1.bf16.msra.mxu0 %v1825
      %2060 = vmatprep.subr.bf16.mxu0 %v1828
      %2061 = vmatpush1.bf16.msra.mxu0 %v1827
      %2062 = vmatprep.subr.bf16.mxu0 %v1830
      %2063 = vmatpush1.bf16.msra.mxu0 %v1829
      %2064 = vmatprep.subr.bf16.mxu0 %v1832
      %2065 = vmatpush1.bf16.msra.mxu0 %v1831
      %2066 = vmatprep.subr.bf16.mxu0 %v1834
      %2067 = vmatpush1.bf16.msra.mxu0 %v1833
      %2068 = vmatprep.subr.bf16.mxu0 %v1836
      %2069 = vmatpush1.bf16.msra.mxu0 %v1835
      %2070 = vmatprep.subr.bf16.mxu0 %v1838
      %2071 = vmatpush1.bf16.msra.mxu0 %v1837
      %2072 = vmatprep.subr.bf16.mxu0 %v1840
      %2073 = vmatpush1.bf16.msra.mxu0 %v1839
      %2074 = vmatprep.subr.bf16.mxu0 %v1842
      %2075 = vmatpush1.bf16.msra.mxu0 %v1841
      %2076 = vmatprep.subr.bf16.mxu0 %v1844
      %2077 = vmatpush1.bf16.msra.mxu0 %v1843
      %2078 = vmatprep.mubr.bf16.mxu0 %v1998
      %2079 = vmatmul.mubr.bf16.gmra.mrb[0].mxu0 %v1997
      %v2080 = vpop.f32.mrb[0].mxu0
      %v2081 = vadd.f32 %v1896, %v2080
      %v2082 = vpop.f32.mrb[0].mxu0
      %v2083 = vadd.f32 %v1896, %v2082
      %v2084 = vpop.f32.mrb[0].mxu0
      %v2085 = vadd.f32 %v1901, %v2084
      %v2086 = vpop.f32.mrb[0].mxu0
      %v2087 = vadd.f32 %v1901, %v2086
      %2088 = vmatprep.mubr.bf16.mxu0 %v2003
      %2089 = vmatmul.mubr.bf16.gmra.mrb[0].mxu0 %v2002
      %v2090 = vpop.f32.mrb[0].mxu0
      %v2091 = vadd.f32 %v1906, %v2090
      %v2092 = vpop.f32.mrb[0].mxu0
      %v2093 = vadd.f32 %v1906, %v2092
      %v2094 = vpop.f32.mrb[0].mxu0
      %v2095 = vadd.f32 %v1911, %v2094
      %v2096 = vpop.f32.mrb[0].mxu0
      %v2097 = vadd.f32 %v1911, %v2096
      %2098 = vmatprep.mubr.bf16.mxu0 %v2008
      %2099 = vmatmul.mubr.bf16.gmra.mrb[0].mxu0 %v2007
      %v2100 = vpop.f32.mrb[0].mxu0
      %v2101 = vadd.f32 %v1916, %v2100
      %v2102 = vpop.f32.mrb[0].mxu0
      %v2103 = vadd.f32 %v1916, %v2102
      %v2104 = vpop.f32.mrb[0].mxu0
      %v2105 = vadd.f32 %v1921, %v2104
      %v2106 = vpop.f32.mrb[0].mxu0
      %v2107 = vadd.f32 %v1921, %v2106
      %2108 = vmatprep.mubr.bf16.mxu0 %v2013
      %2109 = vmatmul.mubr.bf16.gmra.mrb[0].mxu0 %v2012
      %v2110 = vpop.f32.mrb[0].mxu0
      %v2111 = vadd.f32 %v1926, %v2110
      %v2112 = vpop.f32.mrb[0].mxu0
      %v2113 = vadd.f32 %v1926, %v2112
      %v2114 = vpop.f32.mrb[0].mxu0
      %v2115 = vadd.f32 %v1931, %v2114
      %v2116 = vpop.f32.mrb[0].mxu0
      %v2117 = vadd.f32 %v1931, %v2116
      %2118 = vdwg.mxu0
      %2119 = vmatprep.subr.bf16.mxu0 %v1846
      %2120 = vmatpush1.bf16.msra.mxu0 %v1845
      %2121 = vmatprep.subr.bf16.mxu0 %v1848
      %2122 = vmatpush1.bf16.msra.mxu0 %v1847
      %2123 = vmatprep.subr.bf16.mxu0 %v1850
      %2124 = vmatpush1.bf16.msra.mxu0 %v1849
      %2125 = vmatprep.subr.bf16.mxu0 %v1852
      %2126 = vmatpush1.bf16.msra.mxu0 %v1851
      %2127 = vmatprep.subr.bf16.mxu0 %v1854
      %2128 = vmatpush1.bf16.msra.mxu0 %v1853
      %2129 = vmatprep.subr.bf16.mxu0 %v1856
      %2130 = vmatpush1.bf16.msra.mxu0 %v1855
      %2131 = vmatprep.subr.bf16.mxu0 %v1858
      %2132 = vmatpush1.bf16.msra.mxu0 %v1857
      %2133 = vmatprep.subr.bf16.mxu0 %v1860
      %2134 = vmatpush1.bf16.msra.mxu0 %v1859
      %2135 = vmatprep.subr.bf16.mxu0 %v1862
      %2136 = vmatpush1.bf16.msra.mxu0 %v1861
      %2137 = vmatprep.subr.bf16.mxu0 %v1864
      %2138 = vmatpush1.bf16.msra.mxu0 %v1863
      %2139 = vmatprep.subr.bf16.mxu0 %v1866
      %2140 = vmatpush1.bf16.msra.mxu0 %v1865
      %2141 = vmatprep.subr.bf16.mxu0 %v1868
      %2142 = vmatpush1.bf16.msra.mxu0 %v1867
      %2143 = vmatprep.subr.bf16.mxu0 %v1870
      %2144 = vmatpush1.bf16.msra.mxu0 %v1869
      %2145 = vmatprep.subr.bf16.mxu0 %v1872
      %2146 = vmatpush1.bf16.msra.mxu0 %v1871
      %2147 = vmatprep.subr.bf16.mxu0 %v1874
      %2148 = vmatpush1.bf16.msra.mxu0 %v1873
      %2149 = vmatprep.subr.bf16.mxu0 %v1876
      %2150 = vmatpush1.bf16.msra.mxu0 %v1875
      %2151 = vmatprep.mubr.bf16.mxu0 %v2000
      %2152 = vmatmul.mubr.bf16.gmra.mrb[0].mxu0 %v1999
      %v2153 = vpop.f32.mrb[0].mxu0
      %v2154 = vadd.f32 %v2081, %v2153
      %v2155 = vpop.f32.mrb[0].mxu0
      %v2156 = vadd.f32 %v2083, %v2155
      %v2157 = vpop.f32.mrb[0].mxu0
      %v2158 = vadd.f32 %v2085, %v2157
      %v2159 = vpop.f32.mrb[0].mxu0
      %v2160 = vadd.f32 %v2087, %v2159
      %2161 = vmatprep.mubr.bf16.mxu0 %v2005
      %2162 = vmatmul.mubr.bf16.gmra.mrb[0].mxu0 %v2004
      %v2163 = vpop.f32.mrb[0].mxu0
      %v2164 = vadd.f32 %v2091, %v2163
      %v2165 = vpop.f32.mrb[0].mxu0
      %v2166 = vadd.f32 %v2093, %v2165
      %v2167 = vpop.f32.mrb[0].mxu0
      %v2168 = vadd.f32 %v2095, %v2167
      %v2169 = vpop.f32.mrb[0].mxu0
      %v2170 = vadd.f32 %v2097, %v2169
      %2171 = vmatprep.mubr.bf16.mxu0 %v2010
      %2172 = vmatmul.mubr.bf16.gmra.mrb[0].mxu0 %v2009
      %v2173 = vpop.f32.mrb[0].mxu0
      %v2174 = vadd.f32 %v2101, %v2173
      %v2175 = vpop.f32.mrb[0].mxu0
      %v2176 = vadd.f32 %v2103, %v2175
      %v2177 = vpop.f32.mrb[0].mxu0
      %v2178 = vadd.f32 %v2105, %v2177
      %v2179 = vpop.f32.mrb[0].mxu0
      %v2180 = vadd.f32 %v2107, %v2179
      %2181 = vmatprep.mubr.bf16.mxu0 %v2015
      %2182 = vmatmul.mubr.bf16.gmra.mrb[0].mxu0 %v2014
      %v2183 = vpop.f32.mrb[0].mxu0
      %v2184 = vadd.f32 %v2111, %v2183
      %v2185 = vpop.f32.mrb[0].mxu0
      %v2186 = vadd.f32 %v2113, %v2185
      %v2187 = vpop.f32.mrb[0].mxu0
      %v2188 = vadd.f32 %v2115, %v2187
      %v2189 = vpop.f32.mrb[0].mxu0
      %v2190 = vadd.f32 %v2117, %v2189
      %2191 = vdwg.mxu0
      %2192 = vmatprep.subr.bf16.mxu0 %v1878
      %2193 = vmatpush1.bf16.msra.mxu0 %v1877
      %2194 = vmatprep.subr.bf16.mxu0 %v1880
      %2195 = vmatpush1.bf16.msra.mxu0 %v1879
      %2196 = vmatprep.subr.bf16.mxu0 %v1882
      %2197 = vmatpush1.bf16.msra.mxu0 %v1881
      %2198 = vmatprep.subr.bf16.mxu0 %v1884
      %2199 = vmatpush1.bf16.msra.mxu0 %v1883
      %2200 = vmatprep.subr.bf16.mxu0 0
      %2201 = vmatpush1.bf16.msra.mxu0 0
      %2202 = vmatprep.subr.bf16.mxu0 0
      %2203 = vmatpush1.bf16.msra.mxu0 0
      %2204 = vmatprep.subr.bf16.mxu0 0
      %2205 = vmatpush1.bf16.msra.mxu0 0
      %2206 = vmatprep.subr.bf16.mxu0 0
      %2207 = vmatpush1.bf16.msra.mxu0 0
      %2208 = vmatprep.subr.bf16.mxu0 0
      %2209 = vmatpush1.bf16.msra.mxu0 0
      %2210 = vmatprep.subr.bf16.mxu0 0
      %2211 = vmatpush1.bf16.msra.mxu0 0
      %2212 = vmatprep.subr.bf16.mxu0 0
      %2213 = vmatpush1.bf16.msra.mxu0 0
      %2214 = vmatprep.subr.bf16.mxu0 0
      %2215 = vmatpush1.bf16.msra.mxu0 0
      %2216 = vmatprep.subr.bf16.mxu0 0
      %2217 = vmatpush1.bf16.msra.mxu0 0
      %2218 = vmatprep.subr.bf16.mxu0 0
      %2219 = vmatpush1.bf16.msra.mxu0 0
      %2220 = vmatprep.subr.bf16.mxu0 0
      %2221 = vmatpush1.bf16.msra.mxu0 0
      %2222 = vmatprep.subr.bf16.mxu0 0
      %2223 = vmatpush1.bf16.msra.mxu0 0
      %2224 = vmatprep.mubr.bf16.mxu0 0
      %2225 = vmatmul.mubr.bf16.gmra.mrb[0].mxu0 %v2035
      %v2226 = vpop.f32.mrb[0].mxu0
      %v2227 = vadd.f32 %v2154, %v2226
      %v2228 = vpop.f32.mrb[0].mxu0
      %v2229 = vadd.f32 %v2156, %v2228
      %v2230 = vpop.f32.mrb[0].mxu0
      %v2231 = vadd.f32 %v2158, %v2230
      %v2232 = vpop.f32.mrb[0].mxu0
      %v2233 = vadd.f32 %v2160, %v2232
      %2234 = vmatprep.mubr.bf16.mxu0 0
      %2235 = vmatmul.mubr.bf16.gmra.mrb[0].mxu0 %v2038
      %v2236 = vpop.f32.mrb[0].mxu0
      %v2237 = vadd.f32 %v2164, %v2236
      %v2238 = vpop.f32.mrb[0].mxu0
      %v2239 = vadd.f32 %v2166, %v2238
      %v2240 = vpop.f32.mrb[0].mxu0
      %v2241 = vadd.f32 %v2168, %v2240
      %v2242 = vpop.f32.mrb[0].mxu0
      %v2243 = vadd.f32 %v2170, %v2242
      %2244 = vmatprep.mubr.bf16.mxu0 0
      %2245 = vmatmul.mubr.bf16.gmra.mrb[0].mxu0 %v2041
      %v2246 = vpop.f32.mrb[0].mxu0
      %v2247 = vadd.f32 %v2174, %v2246
      %v2248 = vpop.f32.mrb[0].mxu0
      %v2249 = vadd.f32 %v2176, %v2248
      %v2250 = vpop.f32.mrb[0].mxu0
      %v2251 = vadd.f32 %v2178, %v2250
      %v2252 = vpop.f32.mrb[0].mxu0
      %v2253 = vadd.f32 %v2180, %v2252
      %2254 = vmatprep.mubr.bf16.mxu0 0
      %2255 = vmatmul.mubr.bf16.gmra.mrb[0].mxu0 %v2044
      %v2256 = vpop.f32.mrb[0].mxu0
      %v2257 = vadd.f32 %v2184, %v2256
      %v2258 = vpop.f32.mrb[0].mxu0
      %v2259 = vadd.f32 %v2186, %v2258
      %v2260 = vpop.f32.mrb[0].mxu0
      %v2261 = vadd.f32 %v2188, %v2260
      %v2262 = vpop.f32.mrb[0].mxu0
      %v2263 = vadd.f32 %v2190, %v2262
      %2264 = vdwg.mxu0
      %v2265 = vmax.f32 %v2227, 0.0
      %v2266 = vmax.f32 %v2229, 0.0
      %v2267 = vmax.f32 %v2231, 0.0
      %v2268 = vmax.f32 %v2233, 0.0
      %v2269 = vmax.f32 %v2237, 0.0
      %v2270 = vmax.f32 %v2239, 0.0
      %v2271 = vmax.f32 %v2241, 0.0
      %v2272 = vmax.f32 %v2243, 0.0
      %v2273 = vmax.f32 %v2247, 0.0
      %v2274 = vmax.f32 %v2249, 0.0
      %v2275 = vmax.f32 %v2251, 0.0
      %v2276 = vmax.f32 %v2253, 0.0
      %v2277 = vmax.f32 %v2257, 0.0
      %v2278 = vmax.f32 %v2259, 0.0
      %v2279 = vmax.f32 %v2261, 0.0
      %v2280 = vmax.f32 %v2263, 0.0
      %2281 = vrot.lane.b32.xlu0 %v2265, 17
      %v2282 = vpop.permute.xlu0 %2281
      %2283 = vrot.lane.b32.xlu0 %v2267, 17
      %v2284 = vpop.permute.xlu0 %2283
      %2285 = vrot.lane.b32.xlu0 %v2269, 17
      %v2286 = vpop.permute.xlu0 %2285
      %2287 = vrot.lane.b32.xlu0 %v2271, 17
      %v2288 = vpop.permute.xlu0 %2287
      %2289 = vrot.lane.b32.xlu0 %v2273, 17
      %v2290 = vpop.permute.xlu0 %2289
      %2291 = vrot.lane.b32.xlu0 %v2275, 17
      %v2292 = vpop.permute.xlu0 %2291
      %2293 = vrot.lane.b32.xlu0 %v2277, 17
      %v2294 = vpop.permute.xlu0 %2293
      %2295 = vrot.lane.b32.xlu0 %v2279, 17
      %v2296 = vpop.permute.xlu0 %2295
      %2297 = vrot.lane.b32.xlu0 %v2266, 17
      %v2298 = vpop.permute.xlu0 %2297
      %2299 = vrot.lane.b32.xlu0 %v2268, 17
      %v2300 = vpop.permute.xlu0 %2299
      %2301 = vrot.lane.b32.xlu0 %v2270, 17
      %v2302 = vpop.permute.xlu0 %2301
      %2303 = vrot.lane.b32.xlu0 %v2272, 17
      %v2304 = vpop.permute.xlu0 %2303
      %2305 = vrot.lane.b32.xlu0 %v2274, 17
      %v2306 = vpop.permute.xlu0 %2305
      %2307 = vrot.lane.b32.xlu0 %v2276, 17
      %v2308 = vpop.permute.xlu0 %2307
      %2309 = vrot.lane.b32.xlu0 %v2278, 17
      %v2310 = vpop.permute.xlu0 %2309
      %2311 = vrot.lane.b32.xlu0 %v2280, 17
      %v2312 = vpop.permute.xlu0 %2311
      %v2313 = vsel %vm279, %v2282, %v2298
      %v2314 = vsel %vm279, %v2284, %v2300
      %v2315 = vsel %vm279, %v2286, %v2302
      %v2316 = vsel %vm279, %v2288, %v2304
      %v2317 = vsel %vm279, %v2290, %v2306
      %v2318 = vsel %vm279, %v2292, %v2308
      %v2319 = vsel %vm279, %v2294, %v2310
      %v2320 = vsel %vm279, %v2296, %v2312
      %v2321 = vsel %vm279, %v2298, %v2282
      %v2322 = vsel %vm279, %v2300, %v2284
      %v2323 = vsel %vm279, %v2302, %v2286
      %v2324 = vsel %vm279, %v2304, %v2288
      %v2325 = vsel %vm279, %v2306, %v2290
      %v2326 = vsel %vm279, %v2308, %v2292
      %v2327 = vsel %vm279, %v2310, %v2294
      %v2328 = vsel %vm279, %v2312, %v2296
      %v2329 = vld [vmem:[%s1] ss:$8 sm:$0x3]
      %v2331 = vlaneseq
      %v2332 = vshrl.u32 %v2331, 7
      %v2333 = vsub.s32 0, %v2332
      %v2334 = vrot.slane %v2329, %v2333
      %v2335 = vlaneseq
      %v2336 = vshrl.u32 %v2335, 7
      %v2337 = vsub.s32 1, %v2336
      %v2338 = vrot.slane %v2329, %v2337
      %v2341 = vmul.f32 %v2321, %v2334
      %v2342 = vmul.f32 %v2313, %v2338
      %v2343 = vmul.f32 %v2322, %v2334
      %v2344 = vmul.f32 %v2314, %v2338
      %v2345 = vmul.f32 %v2323, %v2334
      %v2346 = vmul.f32 %v2315, %v2338
      %v2347 = vmul.f32 %v2324, %v2334
      %v2348 = vmul.f32 %v2316, %v2338
      %v2349 = vmul.f32 %v2325, %v2334
      %v2350 = vmul.f32 %v2317, %v2338
      %v2351 = vmul.f32 %v2326, %v2334
      %v2352 = vmul.f32 %v2318, %v2338
      %v2353 = vmul.f32 %v2327, %v2334
      %v2354 = vmul.f32 %v2319, %v2338
      %v2355 = vmul.f32 %v2328, %v2334
      %v2356 = vmul.f32 %v2320, %v2338
      %v2357 = vpack.c.bf16 %v2343, %v2341
      %v2358 = vpack.c.bf16 %v2344, %v2342
      %v2359 = vpack.c.bf16 %v2347, %v2345
      %v2360 = vpack.c.bf16 %v2348, %v2346
      %v2361 = vpack.c.bf16 %v2351, %v2349
      %v2362 = vpack.c.bf16 %v2352, %v2350
      %v2363 = vpack.c.bf16 %v2355, %v2353
      %v2364 = vpack.c.bf16 %v2356, %v2354
      %2365 = vst [vmem:[#allocation2] sm:$0xff] %v2357
      %2366 = vst [vmem:[#allocation2 + $0x8] sm:$0xff] %v2358
      %2367 = vst [vmem:[#allocation2 + $0x10] sm:$0xff] %v2359
      %2368 = vst [vmem:[#allocation2 + $0x18] sm:$0xff] %v2360
      %2369 = vst [vmem:[#allocation2 + $0x20] sm:$0xff] %v2361
      %2370 = vst [vmem:[#allocation2 + $0x28] sm:$0xff] %v2362
      %2371 = vst [vmem:[#allocation2 + $0x30] sm:$0xff] %v2363
      %2372 = vst [vmem:[#allocation2 + $0x38] sm:$0xff] %v2364
      %2373 = vrot.lane.b32.xlu0 %v2265, 16
      %v2374 = vpop.permute.xlu0 %2373
      %2375 = vrot.lane.b32.xlu0 %v2267, 16
      %v2376 = vpop.permute.xlu0 %2375
      %2377 = vrot.lane.b32.xlu0 %v2269, 16
      %v2378 = vpop.permute.xlu0 %2377
      %2379 = vrot.lane.b32.xlu0 %v2271, 16
      %v2380 = vpop.permute.xlu0 %2379
      %2381 = vrot.lane.b32.xlu0 %v2273, 16
      %v2382 = vpop.permute.xlu0 %2381
      %2383 = vrot.lane.b32.xlu0 %v2275, 16
      %v2384 = vpop.permute.xlu0 %2383
      %2385 = vrot.lane.b32.xlu0 %v2277, 16
      %v2386 = vpop.permute.xlu0 %2385
      %2387 = vrot.lane.b32.xlu0 %v2279, 16
      %v2388 = vpop.permute.xlu0 %2387
      %2389 = vrot.lane.b32.xlu0 %v2266, 16
      %v2390 = vpop.permute.xlu0 %2389
      %2391 = vrot.lane.b32.xlu0 %v2268, 16
      %v2392 = vpop.permute.xlu0 %2391
      %2393 = vrot.lane.b32.xlu0 %v2270, 16
      %v2394 = vpop.permute.xlu0 %2393
      %2395 = vrot.lane.b32.xlu0 %v2272, 16
      %v2396 = vpop.permute.xlu0 %2395
      %2397 = vrot.lane.b32.xlu0 %v2274, 16
      %v2398 = vpop.permute.xlu0 %2397
      %2399 = vrot.lane.b32.xlu0 %v2276, 16
      %v2400 = vpop.permute.xlu0 %2399
      %2401 = vrot.lane.b32.xlu0 %v2278, 16
      %v2402 = vpop.permute.xlu0 %2401
      %2403 = vrot.lane.b32.xlu0 %v2280, 16
      %v2404 = vpop.permute.xlu0 %2403
      %v2405 = vsel %vm332, %v2374, %v2390
      %v2406 = vsel %vm332, %v2376, %v2392
      %v2407 = vsel %vm332, %v2378, %v2394
      %v2408 = vsel %vm332, %v2380, %v2396
      %v2409 = vsel %vm332, %v2382, %v2398
      %v2410 = vsel %vm332, %v2384, %v2400
      %v2411 = vsel %vm332, %v2386, %v2402
      %v2412 = vsel %vm332, %v2388, %v2404
      %v2413 = vsel %vm332, %v2390, %v2374
      %v2414 = vsel %vm332, %v2392, %v2376
      %v2415 = vsel %vm332, %v2394, %v2378
      %v2416 = vsel %vm332, %v2396, %v2380
      %v2417 = vsel %vm332, %v2398, %v2382
      %v2418 = vsel %vm332, %v2400, %v2384
      %v2419 = vsel %vm332, %v2402, %v2386
      %v2420 = vsel %vm332, %v2404, %v2388
      %v2421 = vld [vmem:[%s341] ss:$8 sm:$0x3]
      %v2423 = vlaneseq
      %v2424 = vshrl.u32 %v2423, 7
      %v2425 = vsub.s32 0, %v2424
      %v2426 = vrot.slane %v2421, %v2425
      %v2427 = vlaneseq
      %v2428 = vshrl.u32 %v2427, 7
      %v2429 = vsub.s32 1, %v2428
      %v2430 = vrot.slane %v2421, %v2429
      %v2433 = vmul.f32 %v2413, %v2426
      %v2434 = vmul.f32 %v2405, %v2430
      %v2435 = vmul.f32 %v2414, %v2426
      %v2436 = vmul.f32 %v2406, %v2430
      %v2437 = vmul.f32 %v2415, %v2426
      %v2438 = vmul.f32 %v2407, %v2430
      %v2439 = vmul.f32 %v2416, %v2426
      %v2440 = vmul.f32 %v2408, %v2430
      %v2441 = vmul.f32 %v2417, %v2426
      %v2442 = vmul.f32 %v2409, %v2430
      %v2443 = vmul.f32 %v2418, %v2426
      %v2444 = vmul.f32 %v2410, %v2430
      %v2445 = vmul.f32 %v2419, %v2426
      %v2446 = vmul.f32 %v2411, %v2430
      %v2447 = vmul.f32 %v2420, %v2426
      %v2448 = vmul.f32 %v2412, %v2430
      %v2449 = vpack.c.bf16 %v2435, %v2433
      %v2450 = vpack.c.bf16 %v2436, %v2434
      %v2451 = vpack.c.bf16 %v2439, %v2437
      %v2452 = vpack.c.bf16 %v2440, %v2438
      %v2453 = vpack.c.bf16 %v2443, %v2441
      %v2454 = vpack.c.bf16 %v2444, %v2442
      %v2455 = vpack.c.bf16 %v2447, %v2445
      %v2456 = vpack.c.bf16 %v2448, %v2446
      %2457 = vst [vmem:[#allocation2 + $0x40] sm:$0xff] %v2449
      %2458 = vst [vmem:[#allocation2 + $0x48] sm:$0xff] %v2450
      %2459 = vst [vmem:[#allocation2 + $0x50] sm:$0xff] %v2451
      %2460 = vst [vmem:[#allocation2 + $0x58] sm:$0xff] %v2452
      %2461 = vst [vmem:[#allocation2 + $0x60] sm:$0xff] %v2453
      %2462 = vst [vmem:[#allocation2 + $0x68] sm:$0xff] %v2454
      %2463 = vst [vmem:[#allocation2 + $0x70] sm:$0xff] %v2455
      %2464 = vst [vmem:[#allocation2 + $0x78] sm:$0xff] %v2456
      %2465 = vrot.lane.b32.xlu0 %v2265, 15
      %v2466 = vpop.permute.xlu0 %2465
      %2467 = vrot.lane.b32.xlu0 %v2267, 15
      %v2468 = vpop.permute.xlu0 %2467
      %2469 = vrot.lane.b32.xlu0 %v2269, 15
      %v2470 = vpop.permute.xlu0 %2469
      %2471 = vrot.lane.b32.xlu0 %v2271, 15
      %v2472 = vpop.permute.xlu0 %2471
      %2473 = vrot.lane.b32.xlu0 %v2273, 15
      %v2474 = vpop.permute.xlu0 %2473
      %2475 = vrot.lane.b32.xlu0 %v2275, 15
      %v2476 = vpop.permute.xlu0 %2475
      %2477 = vrot.lane.b32.xlu0 %v2277, 15
      %v2478 = vpop.permute.xlu0 %2477
      %2479 = vrot.lane.b32.xlu0 %v2279, 15
      %v2480 = vpop.permute.xlu0 %2479
      %2481 = vrot.lane.b32.xlu0 %v2266, 15
      %v2482 = vpop.permute.xlu0 %2481
      %2483 = vrot.lane.b32.xlu0 %v2268, 15
      %v2484 = vpop.permute.xlu0 %2483
      %2485 = vrot.lane.b32.xlu0 %v2270, 15
      %v2486 = vpop.permute.xlu0 %2485
      %2487 = vrot.lane.b32.xlu0 %v2272, 15
      %v2488 = vpop.permute.xlu0 %2487
      %2489 = vrot.lane.b32.xlu0 %v2274, 15
      %v2490 = vpop.permute.xlu0 %2489
      %2491 = vrot.lane.b32.xlu0 %v2276, 15
      %v2492 = vpop.permute.xlu0 %2491
      %2493 = vrot.lane.b32.xlu0 %v2278, 15
      %v2494 = vpop.permute.xlu0 %2493
      %2495 = vrot.lane.b32.xlu0 %v2280, 15
      %v2496 = vpop.permute.xlu0 %2495
      %v2497 = vsel %vm386, %v2466, %v2482
      %v2498 = vsel %vm386, %v2468, %v2484
      %v2499 = vsel %vm386, %v2470, %v2486
      %v2500 = vsel %vm386, %v2472, %v2488
      %v2501 = vsel %vm386, %v2474, %v2490
      %v2502 = vsel %vm386, %v2476, %v2492
      %v2503 = vsel %vm386, %v2478, %v2494
      %v2504 = vsel %vm386, %v2480, %v2496
      %v2505 = vsel %vm386, %v2482, %v2466
      %v2506 = vsel %vm386, %v2484, %v2468
      %v2507 = vsel %vm386, %v2486, %v2470
      %v2508 = vsel %vm386, %v2488, %v2472
      %v2509 = vsel %vm386, %v2490, %v2474
      %v2510 = vsel %vm386, %v2492, %v2476
      %v2511 = vsel %vm386, %v2494, %v2478
      %v2512 = vsel %vm386, %v2496, %v2480
      %v2513 = vld [vmem:[%s395] ss:$8 sm:$0x3]
      %v2515 = vlaneseq
      %v2516 = vshrl.u32 %v2515, 7
      %v2517 = vsub.s32 0, %v2516
      %v2518 = vrot.slane %v2513, %v2517
      %v2519 = vlaneseq
      %v2520 = vshrl.u32 %v2519, 7
      %v2521 = vsub.s32 1, %v2520
      %v2522 = vrot.slane %v2513, %v2521
      %v2525 = vmul.f32 %v2505, %v2518
      %v2526 = vmul.f32 %v2497, %v2522
      %v2527 = vmul.f32 %v2506, %v2518
      %v2528 = vmul.f32 %v2498, %v2522
      %v2529 = vmul.f32 %v2507, %v2518
      %v2530 = vmul.f32 %v2499, %v2522
      %v2531 = vmul.f32 %v2508, %v2518
      %v2532 = vmul.f32 %v2500, %v2522
      %v2533 = vmul.f32 %v2509, %v2518
      %v2534 = vmul.f32 %v2501, %v2522
      %v2535 = vmul.f32 %v2510, %v2518
      %v2536 = vmul.f32 %v2502, %v2522
      %v2537 = vmul.f32 %v2511, %v2518
      %v2538 = vmul.f32 %v2503, %v2522
      %v2539 = vmul.f32 %v2512, %v2518
      %v2540 = vmul.f32 %v2504, %v2522
      %v2541 = vpack.c.bf16 %v2527, %v2525
      %v2542 = vpack.c.bf16 %v2528, %v2526
      %v2543 = vpack.c.bf16 %v2531, %v2529
      %v2544 = vpack.c.bf16 %v2532, %v2530
      %v2545 = vpack.c.bf16 %v2535, %v2533
      %v2546 = vpack.c.bf16 %v2536, %v2534
      %v2547 = vpack.c.bf16 %v2539, %v2537
      %v2548 = vpack.c.bf16 %v2540, %v2538
      %2549 = vst [vmem:[#allocation2 + $0x80] sm:$0xff] %v2541
      %2550 = vst [vmem:[#allocation2 + $0x88] sm:$0xff] %v2542
      %2551 = vst [vmem:[#allocation2 + $0x90] sm:$0xff] %v2543
      %2552 = vst [vmem:[#allocation2 + $0x98] sm:$0xff] %v2544
      %2553 = vst [vmem:[#allocation2 + $0xa0] sm:$0xff] %v2545
      %2554 = vst [vmem:[#allocation2 + $0xa8] sm:$0xff] %v2546
      %2555 = vst [vmem:[#allocation2 + $0xb0] sm:$0xff] %v2547
      %2556 = vst [vmem:[#allocation2 + $0xb8] sm:$0xff] %v2548
      %2557 = vrot.lane.b32.xlu0 %v2265, 1
      %v2558 = vpop.permute.xlu0 %2557
      %2559 = vrot.lane.b32.xlu0 %v2267, 1
      %v2560 = vpop.permute.xlu0 %2559
      %2561 = vrot.lane.b32.xlu0 %v2269, 1
      %v2562 = vpop.permute.xlu0 %2561
      %2563 = vrot.lane.b32.xlu0 %v2271, 1
      %v2564 = vpop.permute.xlu0 %2563
      %2565 = vrot.lane.b32.xlu0 %v2273, 1
      %v2566 = vpop.permute.xlu0 %2565
      %2567 = vrot.lane.b32.xlu0 %v2275, 1
      %v2568 = vpop.permute.xlu0 %2567
      %2569 = vrot.lane.b32.xlu0 %v2277, 1
      %v2570 = vpop.permute.xlu0 %2569
      %2571 = vrot.lane.b32.xlu0 %v2279, 1
      %v2572 = vpop.permute.xlu0 %2571
      %2573 = vrot.lane.b32.xlu0 %v2266, 1
      %v2574 = vpop.permute.xlu0 %2573
      %2575 = vrot.lane.b32.xlu0 %v2268, 1
      %v2576 = vpop.permute.xlu0 %2575
      %2577 = vrot.lane.b32.xlu0 %v2270, 1
      %v2578 = vpop.permute.xlu0 %2577
      %2579 = vrot.lane.b32.xlu0 %v2272, 1
      %v2580 = vpop.permute.xlu0 %2579
      %2581 = vrot.lane.b32.xlu0 %v2274, 1
      %v2582 = vpop.permute.xlu0 %2581
      %2583 = vrot.lane.b32.xlu0 %v2276, 1
      %v2584 = vpop.permute.xlu0 %2583
      %2585 = vrot.lane.b32.xlu0 %v2278, 1
      %v2586 = vpop.permute.xlu0 %2585
      %2587 = vrot.lane.b32.xlu0 %v2280, 1
      %v2588 = vpop.permute.xlu0 %2587
      %v2589 = vsel %vm440, %v2558, %v2574
      %v2590 = vsel %vm440, %v2560, %v2576
      %v2591 = vsel %vm440, %v2562, %v2578
      %v2592 = vsel %vm440, %v2564, %v2580
      %v2593 = vsel %vm440, %v2566, %v2582
      %v2594 = vsel %vm440, %v2568, %v2584
      %v2595 = vsel %vm440, %v2570, %v2586
      %v2596 = vsel %vm440, %v2572, %v2588
      %v2597 = vsel %vm440, %v2574, %v2558
      %v2598 = vsel %vm440, %v2576, %v2560
      %v2599 = vsel %vm440, %v2578, %v2562
      %v2600 = vsel %vm440, %v2580, %v2564
      %v2601 = vsel %vm440, %v2582, %v2566
      %v2602 = vsel %vm440, %v2584, %v2568
      %v2603 = vsel %vm440, %v2586, %v2570
      %v2604 = vsel %vm440, %v2588, %v2572
      %v2605 = vld [vmem:[%s449] ss:$8 sm:$0x3]
      %v2607 = vlaneseq
      %v2608 = vshrl.u32 %v2607, 7
      %v2609 = vsub.s32 0, %v2608
      %v2610 = vrot.slane %v2605, %v2609
      %v2611 = vlaneseq
      %v2612 = vshrl.u32 %v2611, 7
      %v2613 = vsub.s32 1, %v2612
      %v2614 = vrot.slane %v2605, %v2613
      %v2617 = vmul.f32 %v2597, %v2610
      %v2618 = vmul.f32 %v2589, %v2614
      %v2619 = vmul.f32 %v2598, %v2610
      %v2620 = vmul.f32 %v2590, %v2614
      %v2621 = vmul.f32 %v2599, %v2610
      %v2622 = vmul.f32 %v2591, %v2614
      %v2623 = vmul.f32 %v2600, %v2610
      %v2624 = vmul.f32 %v2592, %v2614
      %v2625 = vmul.f32 %v2601, %v2610
      %v2626 = vmul.f32 %v2593, %v2614
      %v2627 = vmul.f32 %v2602, %v2610
      %v2628 = vmul.f32 %v2594, %v2614
      %v2629 = vmul.f32 %v2603, %v2610
      %v2630 = vmul.f32 %v2595, %v2614
      %v2631 = vmul.f32 %v2604, %v2610
      %v2632 = vmul.f32 %v2596, %v2614
      %v2633 = vpack.c.bf16 %v2619, %v2617
      %v2634 = vpack.c.bf16 %v2620, %v2618
      %v2635 = vpack.c.bf16 %v2623, %v2621
      %v2636 = vpack.c.bf16 %v2624, %v2622
      %v2637 = vpack.c.bf16 %v2627, %v2625
      %v2638 = vpack.c.bf16 %v2628, %v2626
      %v2639 = vpack.c.bf16 %v2631, %v2629
      %v2640 = vpack.c.bf16 %v2632, %v2630
      %2641 = vst [vmem:[#allocation2 + $0xc0] sm:$0xff] %v2633
      %2642 = vst [vmem:[#allocation2 + $0xc8] sm:$0xff] %v2634
      %2643 = vst [vmem:[#allocation2 + $0xd0] sm:$0xff] %v2635
      %2644 = vst [vmem:[#allocation2 + $0xd8] sm:$0xff] %v2636
      %2645 = vst [vmem:[#allocation2 + $0xe0] sm:$0xff] %v2637
      %2646 = vst [vmem:[#allocation2 + $0xe8] sm:$0xff] %v2638
      %2647 = vst [vmem:[#allocation2 + $0xf0] sm:$0xff] %v2639
      %2648 = vst [vmem:[#allocation2 + $0xf8] sm:$0xff] %v2640
      %v2649 = vpack.c.bf16 %v2267, %v2265
      %v2650 = vpack.c.bf16 %v2268, %v2266
      %v2651 = vpack.c.bf16 %v2271, %v2269
      %v2652 = vpack.c.bf16 %v2272, %v2270
      %v2653 = vpack.c.bf16 %v2275, %v2273
      %v2654 = vpack.c.bf16 %v2276, %v2274
      %v2655 = vpack.c.bf16 %v2279, %v2277
      %v2656 = vpack.c.bf16 %v2280, %v2278
      %2657 = vst [vmem:[#allocation2 + $0x100] sm:$0xff] %v2649
      %2658 = vst [vmem:[#allocation2 + $0x108] sm:$0xff] %v2650
      %2659 = vst [vmem:[#allocation2 + $0x110] sm:$0xff] %v2651
      %2660 = vst [vmem:[#allocation2 + $0x118] sm:$0xff] %v2652
      %2661 = vst [vmem:[#allocation2 + $0x120] sm:$0xff] %v2653
      %2662 = vst [vmem:[#allocation2 + $0x128] sm:$0xff] %v2654
      %2663 = vst [vmem:[#allocation2 + $0x130] sm:$0xff] %v2655
      %2664 = vst [vmem:[#allocation2 + $0x138] sm:$0xff] %v2656
      %2665 = vrot.lane.b32.xlu0 %v2265, 127
      %v2666 = vpop.permute.xlu0 %2665
      %2667 = vrot.lane.b32.xlu0 %v2267, 127
      %v2668 = vpop.permute.xlu0 %2667
      %2669 = vrot.lane.b32.xlu0 %v2269, 127
      %v2670 = vpop.permute.xlu0 %2669
      %2671 = vrot.lane.b32.xlu0 %v2271, 127
      %v2672 = vpop.permute.xlu0 %2671
      %2673 = vrot.lane.b32.xlu0 %v2273, 127
      %v2674 = vpop.permute.xlu0 %2673
      %2675 = vrot.lane.b32.xlu0 %v2275, 127
      %v2676 = vpop.permute.xlu0 %2675
      %2677 = vrot.lane.b32.xlu0 %v2277, 127
      %v2678 = vpop.permute.xlu0 %2677
      %2679 = vrot.lane.b32.xlu0 %v2279, 127
      %v2680 = vpop.permute.xlu0 %2679
      %2681 = vrot.lane.b32.xlu0 %v2266, 127
      %v2682 = vpop.permute.xlu0 %2681
      %2683 = vrot.lane.b32.xlu0 %v2268, 127
      %v2684 = vpop.permute.xlu0 %2683
      %2685 = vrot.lane.b32.xlu0 %v2270, 127
      %v2686 = vpop.permute.xlu0 %2685
      %2687 = vrot.lane.b32.xlu0 %v2272, 127
      %v2688 = vpop.permute.xlu0 %2687
      %2689 = vrot.lane.b32.xlu0 %v2274, 127
      %v2690 = vpop.permute.xlu0 %2689
      %2691 = vrot.lane.b32.xlu0 %v2276, 127
      %v2692 = vpop.permute.xlu0 %2691
      %2693 = vrot.lane.b32.xlu0 %v2278, 127
      %v2694 = vpop.permute.xlu0 %2693
      %2695 = vrot.lane.b32.xlu0 %v2280, 127
      %v2696 = vpop.permute.xlu0 %2695
      %v2697 = vsel %vm502, %v2666, %v2682
      %v2698 = vsel %vm502, %v2668, %v2684
      %v2699 = vsel %vm502, %v2670, %v2686
      %v2700 = vsel %vm502, %v2672, %v2688
      %v2701 = vsel %vm502, %v2674, %v2690
      %v2702 = vsel %vm502, %v2676, %v2692
      %v2703 = vsel %vm502, %v2678, %v2694
      %v2704 = vsel %vm502, %v2680, %v2696
      %v2705 = vsel %vm502, %v2682, %v2666
      %v2706 = vsel %vm502, %v2684, %v2668
      %v2707 = vsel %vm502, %v2686, %v2670
      %v2708 = vsel %vm502, %v2688, %v2672
      %v2709 = vsel %vm502, %v2690, %v2674
      %v2710 = vsel %vm502, %v2692, %v2676
      %v2711 = vsel %vm502, %v2694, %v2678
      %v2712 = vsel %vm502, %v2696, %v2680
      %v2713 = vld [vmem:[%s511] ss:$8 sm:$0x3]
      %v2715 = vlaneseq
      %v2716 = vshrl.u32 %v2715, 7
      %v2717 = vsub.s32 0, %v2716
      %v2718 = vrot.slane %v2713, %v2717
      %v2719 = vlaneseq
      %v2720 = vshrl.u32 %v2719, 7
      %v2721 = vsub.s32 1, %v2720
      %v2722 = vrot.slane %v2713, %v2721
      %v2725 = vmul.f32 %v2697, %v2718
      %v2726 = vmul.f32 %v2705, %v2722
      %v2727 = vmul.f32 %v2698, %v2718
      %v2728 = vmul.f32 %v2706, %v2722
      %v2729 = vmul.f32 %v2699, %v2718
      %v2730 = vmul.f32 %v2707, %v2722
      %v2731 = vmul.f32 %v2700, %v2718
      %v2732 = vmul.f32 %v2708, %v2722
      %v2733 = vmul.f32 %v2701, %v2718
      %v2734 = vmul.f32 %v2709, %v2722
      %v2735 = vmul.f32 %v2702, %v2718
      %v2736 = vmul.f32 %v2710, %v2722
      %v2737 = vmul.f32 %v2703, %v2718
      %v2738 = vmul.f32 %v2711, %v2722
      %v2739 = vmul.f32 %v2704, %v2718
      %v2740 = vmul.f32 %v2712, %v2722
      %v2741 = vpack.c.bf16 %v2727, %v2725
      %v2742 = vpack.c.bf16 %v2728, %v2726
      %v2743 = vpack.c.bf16 %v2731, %v2729
      %v2744 = vpack.c.bf16 %v2732, %v2730
      %v2745 = vpack.c.bf16 %v2735, %v2733
      %v2746 = vpack.c.bf16 %v2736, %v2734
      %v2747 = vpack.c.bf16 %v2739, %v2737
      %v2748 = vpack.c.bf16 %v2740, %v2738
      %2749 = vst [vmem:[#allocation2 + $0x140] sm:$0xff] %v2741
      %2750 = vst [vmem:[#allocation2 + $0x148] sm:$0xff] %v2742
      %2751 = vst [vmem:[#allocation2 + $0x150] sm:$0xff] %v2743
      %2752 = vst [vmem:[#allocation2 + $0x158] sm:$0xff] %v2744
      %2753 = vst [vmem:[#allocation2 + $0x160] sm:$0xff] %v2745
      %2754 = vst [vmem:[#allocation2 + $0x168] sm:$0xff] %v2746
      %2755 = vst [vmem:[#allocation2 + $0x170] sm:$0xff] %v2747
      %2756 = vst [vmem:[#allocation2 + $0x178] sm:$0xff] %v2748
      %2757 = vrot.lane.b32.xlu0 %v2265, 113
      %v2758 = vpop.permute.xlu0 %2757
      %2759 = vrot.lane.b32.xlu0 %v2267, 113
      %v2760 = vpop.permute.xlu0 %2759
      %2761 = vrot.lane.b32.xlu0 %v2269, 113
      %v2762 = vpop.permute.xlu0 %2761
      %2763 = vrot.lane.b32.xlu0 %v2271, 113
      %v2764 = vpop.permute.xlu0 %2763
      %2765 = vrot.lane.b32.xlu0 %v2273, 113
      %v2766 = vpop.permute.xlu0 %2765
      %2767 = vrot.lane.b32.xlu0 %v2275, 113
      %v2768 = vpop.permute.xlu0 %2767
      %2769 = vrot.lane.b32.xlu0 %v2277, 113
      %v2770 = vpop.permute.xlu0 %2769
      %2771 = vrot.lane.b32.xlu0 %v2279, 113
      %v2772 = vpop.permute.xlu0 %2771
      %2773 = vrot.lane.b32.xlu0 %v2266, 113
      %v2774 = vpop.permute.xlu0 %2773
      %2775 = vrot.lane.b32.xlu0 %v2268, 113
      %v2776 = vpop.permute.xlu0 %2775
      %2777 = vrot.lane.b32.xlu0 %v2270, 113
      %v2778 = vpop.permute.xlu0 %2777
      %2779 = vrot.lane.b32.xlu0 %v2272, 113
      %v2780 = vpop.permute.xlu0 %2779
      %2781 = vrot.lane.b32.xlu0 %v2274, 113
      %v2782 = vpop.permute.xlu0 %2781
      %2783 = vrot.lane.b32.xlu0 %v2276, 113
      %v2784 = vpop.permute.xlu0 %2783
      %2785 = vrot.lane.b32.xlu0 %v2278, 113
      %v2786 = vpop.permute.xlu0 %2785
      %2787 = vrot.lane.b32.xlu0 %v2280, 113
      %v2788 = vpop.permute.xlu0 %2787
      %v2789 = vsel %vm556, %v2758, %v2774
      %v2790 = vsel %vm556, %v2760, %v2776
      %v2791 = vsel %vm556, %v2762, %v2778
      %v2792 = vsel %vm556, %v2764, %v2780
      %v2793 = vsel %vm556, %v2766, %v2782
      %v2794 = vsel %vm556, %v2768, %v2784
      %v2795 = vsel %vm556, %v2770, %v2786
      %v2796 = vsel %vm556, %v2772, %v2788
      %v2797 = vsel %vm556, %v2774, %v2758
      %v2798 = vsel %vm556, %v2776, %v2760
      %v2799 = vsel %vm556, %v2778, %v2762
      %v2800 = vsel %vm556, %v2780, %v2764
      %v2801 = vsel %vm556, %v2782, %v2766
      %v2802 = vsel %vm556, %v2784, %v2768
      %v2803 = vsel %vm556, %v2786, %v2770
      %v2804 = vsel %vm556, %v2788, %v2772
      %v2805 = vld [vmem:[%s565] ss:$8 sm:$0x3]
      %v2807 = vlaneseq
      %v2808 = vshrl.u32 %v2807, 7
      %v2809 = vsub.s32 0, %v2808
      %v2810 = vrot.slane %v2805, %v2809
      %v2811 = vlaneseq
      %v2812 = vshrl.u32 %v2811, 7
      %v2813 = vsub.s32 1, %v2812
      %v2814 = vrot.slane %v2805, %v2813
      %v2817 = vmul.f32 %v2789, %v2810
      %v2818 = vmul.f32 %v2797, %v2814
      %v2819 = vmul.f32 %v2790, %v2810
      %v2820 = vmul.f32 %v2798, %v2814
      %v2821 = vmul.f32 %v2791, %v2810
      %v2822 = vmul.f32 %v2799, %v2814
      %v2823 = vmul.f32 %v2792, %v2810
      %v2824 = vmul.f32 %v2800, %v2814
      %v2825 = vmul.f32 %v2793, %v2810
      %v2826 = vmul.f32 %v2801, %v2814
      %v2827 = vmul.f32 %v2794, %v2810
      %v2828 = vmul.f32 %v2802, %v2814
      %v2829 = vmul.f32 %v2795, %v2810
      %v2830 = vmul.f32 %v2803, %v2814
      %v2831 = vmul.f32 %v2796, %v2810
      %v2832 = vmul.f32 %v2804, %v2814
      %v2833 = vpack.c.bf16 %v2819, %v2817
      %v2834 = vpack.c.bf16 %v2820, %v2818
      %v2835 = vpack.c.bf16 %v2823, %v2821
      %v2836 = vpack.c.bf16 %v2824, %v2822
      %v2837 = vpack.c.bf16 %v2827, %v2825
      %v2838 = vpack.c.bf16 %v2828, %v2826
      %v2839 = vpack.c.bf16 %v2831, %v2829
      %v2840 = vpack.c.bf16 %v2832, %v2830
      %2841 = vst [vmem:[#allocation2 + $0x180] sm:$0xff] %v2833
      %2842 = vst [vmem:[#allocation2 + $0x188] sm:$0xff] %v2834
      %2843 = vst [vmem:[#allocation2 + $0x190] sm:$0xff] %v2835
      %2844 = vst [vmem:[#allocation2 + $0x198] sm:$0xff] %v2836
      %2845 = vst [vmem:[#allocation2 + $0x1a0] sm:$0xff] %v2837
      %2846 = vst [vmem:[#allocation2 + $0x1a8] sm:$0xff] %v2838
      %2847 = vst [vmem:[#allocation2 + $0x1b0] sm:$0xff] %v2839
      %2848 = vst [vmem:[#allocation2 + $0x1b8] sm:$0xff] %v2840
      %2849 = vrot.lane.b32.xlu0 %v2265, 112
      %v2850 = vpop.permute.xlu0 %2849
      %2851 = vrot.lane.b32.xlu0 %v2267, 112
      %v2852 = vpop.permute.xlu0 %2851
      %2853 = vrot.lane.b32.xlu0 %v2269, 112
      %v2854 = vpop.permute.xlu0 %2853
      %2855 = vrot.lane.b32.xlu0 %v2271, 112
      %v2856 = vpop.permute.xlu0 %2855
      %2857 = vrot.lane.b32.xlu0 %v2273, 112
      %v2858 = vpop.permute.xlu0 %2857
      %2859 = vrot.lane.b32.xlu0 %v2275, 112
      %v2860 = vpop.permute.xlu0 %2859
      %2861 = vrot.lane.b32.xlu0 %v2277, 112
      %v2862 = vpop.permute.xlu0 %2861
      %2863 = vrot.lane.b32.xlu0 %v2279, 112
      %v2864 = vpop.permute.xlu0 %2863
      %2865 = vrot.lane.b32.xlu0 %v2266, 112
      %v2866 = vpop.permute.xlu0 %2865
      %2867 = vrot.lane.b32.xlu0 %v2268, 112
      %v2868 = vpop.permute.xlu0 %2867
      %2869 = vrot.lane.b32.xlu0 %v2270, 112
      %v2870 = vpop.permute.xlu0 %2869
      %2871 = vrot.lane.b32.xlu0 %v2272, 112
      %v2872 = vpop.permute.xlu0 %2871
      %2873 = vrot.lane.b32.xlu0 %v2274, 112
      %v2874 = vpop.permute.xlu0 %2873
      %2875 = vrot.lane.b32.xlu0 %v2276, 112
      %v2876 = vpop.permute.xlu0 %2875
      %2877 = vrot.lane.b32.xlu0 %v2278, 112
      %v2878 = vpop.permute.xlu0 %2877
      %2879 = vrot.lane.b32.xlu0 %v2280, 112
      %v2880 = vpop.permute.xlu0 %2879
      %v2881 = vsel %vm610, %v2850, %v2866
      %v2882 = vsel %vm610, %v2852, %v2868
      %v2883 = vsel %vm610, %v2854, %v2870
      %v2884 = vsel %vm610, %v2856, %v2872
      %v2885 = vsel %vm610, %v2858, %v2874
      %v2886 = vsel %vm610, %v2860, %v2876
      %v2887 = vsel %vm610, %v2862, %v2878
      %v2888 = vsel %vm610, %v2864, %v2880
      %v2889 = vsel %vm610, %v2866, %v2850
      %v2890 = vsel %vm610, %v2868, %v2852
      %v2891 = vsel %vm610, %v2870, %v2854
      %v2892 = vsel %vm610, %v2872, %v2856
      %v2893 = vsel %vm610, %v2874, %v2858
      %v2894 = vsel %vm610, %v2876, %v2860
      %v2895 = vsel %vm610, %v2878, %v2862
      %v2896 = vsel %vm610, %v2880, %v2864
      %v2897 = vld [vmem:[%s619] ss:$8 sm:$0x3]
      %v2899 = vlaneseq
      %v2900 = vshrl.u32 %v2899, 7
      %v2901 = vsub.s32 0, %v2900
      %v2902 = vrot.slane %v2897, %v2901
      %v2903 = vlaneseq
      %v2904 = vshrl.u32 %v2903, 7
      %v2905 = vsub.s32 1, %v2904
      %v2906 = vrot.slane %v2897, %v2905
      %v2909 = vmul.f32 %v2881, %v2902
      %v2910 = vmul.f32 %v2889, %v2906
      %v2911 = vmul.f32 %v2882, %v2902
      %v2912 = vmul.f32 %v2890, %v2906
      %v2913 = vmul.f32 %v2883, %v2902
      %v2914 = vmul.f32 %v2891, %v2906
      %v2915 = vmul.f32 %v2884, %v2902
      %v2916 = vmul.f32 %v2892, %v2906
      %v2917 = vmul.f32 %v2885, %v2902
      %v2918 = vmul.f32 %v2893, %v2906
      %v2919 = vmul.f32 %v2886, %v2902
      %v2920 = vmul.f32 %v2894, %v2906
      %v2921 = vmul.f32 %v2887, %v2902
      %v2922 = vmul.f32 %v2895, %v2906
      %v2923 = vmul.f32 %v2888, %v2902
      %v2924 = vmul.f32 %v2896, %v2906
      %v2925 = vpack.c.bf16 %v2911, %v2909
      %v2926 = vpack.c.bf16 %v2912, %v2910
      %v2927 = vpack.c.bf16 %v2915, %v2913
      %v2928 = vpack.c.bf16 %v2916, %v2914
      %v2929 = vpack.c.bf16 %v2919, %v2917
      %v2930 = vpack.c.bf16 %v2920, %v2918
      %v2931 = vpack.c.bf16 %v2923, %v2921
      %v2932 = vpack.c.bf16 %v2924, %v2922
      %2933 = vst [vmem:[#allocation2 + $0x1c0] sm:$0xff] %v2925
      %2934 = vst [vmem:[#allocation2 + $0x1c8] sm:$0xff] %v2926
      %2935 = vst [vmem:[#allocation2 + $0x1d0] sm:$0xff] %v2927
      %2936 = vst [vmem:[#allocation2 + $0x1d8] sm:$0xff] %v2928
      %2937 = vst [vmem:[#allocation2 + $0x1e0] sm:$0xff] %v2929
      %2938 = vst [vmem:[#allocation2 + $0x1e8] sm:$0xff] %v2930
      %2939 = vst [vmem:[#allocation2 + $0x1f0] sm:$0xff] %v2931
      %2940 = vst [vmem:[#allocation2 + $0x1f8] sm:$0xff] %v2932
      %2941 = vrot.lane.b32.xlu0 %v2265, 111
      %v2942 = vpop.permute.xlu0 %2941
      %2943 = vrot.lane.b32.xlu0 %v2267, 111
      %v2944 = vpop.permute.xlu0 %2943
      %2945 = vrot.lane.b32.xlu0 %v2269, 111
      %v2946 = vpop.permute.xlu0 %2945
      %2947 = vrot.lane.b32.xlu0 %v2271, 111
      %v2948 = vpop.permute.xlu0 %2947
      %2949 = vrot.lane.b32.xlu0 %v2273, 111
      %v2950 = vpop.permute.xlu0 %2949
      %2951 = vrot.lane.b32.xlu0 %v2275, 111
      %v2952 = vpop.permute.xlu0 %2951
      %2953 = vrot.lane.b32.xlu0 %v2277, 111
      %v2954 = vpop.permute.xlu0 %2953
      %2955 = vrot.lane.b32.xlu0 %v2279, 111
      %v2956 = vpop.permute.xlu0 %2955
      %2957 = vrot.lane.b32.xlu0 %v2266, 111
      %v2958 = vpop.permute.xlu0 %2957
      %2959 = vrot.lane.b32.xlu0 %v2268, 111
      %v2960 = vpop.permute.xlu0 %2959
      %2961 = vrot.lane.b32.xlu0 %v2270, 111
      %v2962 = vpop.permute.xlu0 %2961
      %2963 = vrot.lane.b32.xlu0 %v2272, 111
      %v2964 = vpop.permute.xlu0 %2963
      %2965 = vrot.lane.b32.xlu0 %v2274, 111
      %v2966 = vpop.permute.xlu0 %2965
      %2967 = vrot.lane.b32.xlu0 %v2276, 111
      %v2968 = vpop.permute.xlu0 %2967
      %2969 = vrot.lane.b32.xlu0 %v2278, 111
      %v2970 = vpop.permute.xlu0 %2969
      %2971 = vrot.lane.b32.xlu0 %v2280, 111
      %v2972 = vpop.permute.xlu0 %2971
      %v2973 = vsel %vm664, %v2942, %v2958
      %v2974 = vsel %vm664, %v2944, %v2960
      %v2975 = vsel %vm664, %v2946, %v2962
      %v2976 = vsel %vm664, %v2948, %v2964
      %v2977 = vsel %vm664, %v2950, %v2966
      %v2978 = vsel %vm664, %v2952, %v2968
      %v2979 = vsel %vm664, %v2954, %v2970
      %v2980 = vsel %vm664, %v2956, %v2972
      %v2981 = vsel %vm664, %v2958, %v2942
      %v2982 = vsel %vm664, %v2960, %v2944
      %v2983 = vsel %vm664, %v2962, %v2946
      %v2984 = vsel %vm664, %v2964, %v2948
      %v2985 = vsel %vm664, %v2966, %v2950
      %v2986 = vsel %vm664, %v2968, %v2952
      %v2987 = vsel %vm664, %v2970, %v2954
      %v2988 = vsel %vm664, %v2972, %v2956
      %v2989 = vld [vmem:[%s673] ss:$8 sm:$0x3]
      %v2991 = vlaneseq
      %v2992 = vshrl.u32 %v2991, 7
      %v2993 = vsub.s32 0, %v2992
      %v2994 = vrot.slane %v2989, %v2993
      %v2995 = vlaneseq
      %v2996 = vshrl.u32 %v2995, 7
      %v2997 = vsub.s32 1, %v2996
      %v2998 = vrot.slane %v2989, %v2997
      %v3001 = vmul.f32 %v2973, %v2994
      %v3002 = vmul.f32 %v2981, %v2998
      %v3003 = vmul.f32 %v2974, %v2994
      %v3004 = vmul.f32 %v2982, %v2998
      %v3005 = vmul.f32 %v2975, %v2994
      %v3006 = vmul.f32 %v2983, %v2998
      %v3007 = vmul.f32 %v2976, %v2994
      %v3008 = vmul.f32 %v2984, %v2998
      %v3009 = vmul.f32 %v2977, %v2994
      %v3010 = vmul.f32 %v2985, %v2998
      %v3011 = vmul.f32 %v2978, %v2994
      %v3012 = vmul.f32 %v2986, %v2998
      %v3013 = vmul.f32 %v2979, %v2994
      %v3014 = vmul.f32 %v2987, %v2998
      %v3015 = vmul.f32 %v2980, %v2994
      %v3016 = vmul.f32 %v2988, %v2998
      %v3017 = vpack.c.bf16 %v3003, %v3001
      %v3018 = vpack.c.bf16 %v3004, %v3002
      %v3019 = vpack.c.bf16 %v3007, %v3005
      %v3020 = vpack.c.bf16 %v3008, %v3006
      %v3021 = vpack.c.bf16 %v3011, %v3009
      %v3022 = vpack.c.bf16 %v3012, %v3010
      %v3023 = vpack.c.bf16 %v3015, %v3013
      %v3024 = vpack.c.bf16 %v3016, %v3014
      %3025 = vst [vmem:[#allocation2 + $0x200] sm:$0xff] %v3017
      %3026 = vst [vmem:[#allocation2 + $0x208] sm:$0xff] %v3018
      %3027 = vst [vmem:[#allocation2 + $0x210] sm:$0xff] %v3019
      %3028 = vst [vmem:[#allocation2 + $0x218] sm:$0xff] %v3020
      %3029 = vst [vmem:[#allocation2 + $0x220] sm:$0xff] %v3021
      %3030 = vst [vmem:[#allocation2 + $0x228] sm:$0xff] %v3022
      %3031 = vst [vmem:[#allocation2 + $0x230] sm:$0xff] %v3023
      %3032 = vst [vmem:[#allocation2 + $0x238] sm:$0xff] %v3024
      %v3033 = vld [vmem:[%s5] sm:$0xff]
      %v3034 = vld [vmem:[%s5 + $0x8] sm:$0xff]
      %v3035 = vld [vmem:[%s5 + $0x10] sm:$0xf]
      %v3036 = vld [vmem:[%s5 + $0x14] sm:$0xff]
      %v3037 = vld [vmem:[%s5 + $0x1c] sm:$0xff]
      %v3038 = vld [vmem:[%s5 + $0x24] sm:$0xf]
      %v3039 = vld [vmem:[%s5 + $0x28] sm:$0xff]
      %v3040 = vld [vmem:[%s5 + $0x30] sm:$0xff]
      %v3041 = vld [vmem:[%s5 + $0x38] sm:$0xf]
      %v3042 = vld [vmem:[%s5 + $0x3c] sm:$0xff]
      %v3043 = vld [vmem:[%s5 + $0x44] sm:$0xff]
      %v3044 = vld [vmem:[%s5 + $0x4c] sm:$0xf]
      %v3045 = vld [vmem:[%s5 + $0x50] sm:$0xff]
      %v3046 = vld [vmem:[%s5 + $0x58] sm:$0xff]
      %v3047 = vld [vmem:[%s5 + $0x60] sm:$0xf]
      %v3048 = vld [vmem:[%s5 + $0x64] sm:$0xff]
      %v3049 = vld [vmem:[%s5 + $0x6c] sm:$0xff]
      %v3050 = vld [vmem:[%s5 + $0x74] sm:$0xf]
      %v3051 = vld [vmem:[%s5 + $0x78] sm:$0xff]
      %v3052 = vld [vmem:[%s5 + $0x80] sm:$0xff]
      %v3053 = vld [vmem:[%s5 + $0x88] sm:$0xf]
      %v3054 = vld [vmem:[%s5 + $0x8c] sm:$0xff]
      %v3055 = vld [vmem:[%s5 + $0x94] sm:$0xff]
      %v3056 = vld [vmem:[%s5 + $0x9c] sm:$0xf]
      %v3057 = vld [vmem:[#allocation2] sm:$0xff]
      %v3058 = vld [vmem:[#allocation2 + $0x8] sm:$0xff]
      %v3059 = vld [vmem:[#allocation2 + $0x10] sm:$0xff]
      %v3060 = vld [vmem:[#allocation2 + $0x18] sm:$0xff]
      %v3061 = vld [vmem:[#allocation2 + $0x20] sm:$0xff]
      %v3062 = vld [vmem:[#allocation2 + $0x28] sm:$0xff]
      %v3063 = vld [vmem:[#allocation2 + $0x30] sm:$0xff]
      %v3064 = vld [vmem:[#allocation2 + $0x38] sm:$0xff]
      %v3065 = vld [vmem:[#allocation2 + $0x40] sm:$0xff]
      %v3066 = vld [vmem:[#allocation2 + $0x48] sm:$0xff]
      %v3067 = vld [vmem:[#allocation2 + $0x50] sm:$0xff]
      %v3068 = vld [vmem:[#allocation2 + $0x58] sm:$0xff]
      %v3069 = vld [vmem:[#allocation2 + $0x60] sm:$0xff]
      %v3070 = vld [vmem:[#allocation2 + $0x68] sm:$0xff]
      %v3071 = vld [vmem:[#allocation2 + $0x70] sm:$0xff]
      %v3072 = vld [vmem:[#allocation2 + $0x78] sm:$0xff]
      %v3073 = vld [vmem:[#allocation2 + $0x80] sm:$0xff]
      %v3074 = vld [vmem:[#allocation2 + $0x88] sm:$0xff]
      %v3075 = vld [vmem:[#allocation2 + $0x90] sm:$0xff]
      %v3076 = vld [vmem:[#allocation2 + $0x98] sm:$0xff]
      %v3077 = vld [vmem:[#allocation2 + $0xa0] sm:$0xff]
      %v3078 = vld [vmem:[#allocation2 + $0xa8] sm:$0xff]
      %v3079 = vld [vmem:[#allocation2 + $0xb0] sm:$0xff]
      %v3080 = vld [vmem:[#allocation2 + $0xb8] sm:$0xff]
      %v3081 = vld [vmem:[#allocation2 + $0xc0] sm:$0xff]
      %v3082 = vld [vmem:[#allocation2 + $0xc8] sm:$0xff]
      %v3083 = vld [vmem:[#allocation2 + $0xd0] sm:$0xff]
      %v3084 = vld [vmem:[#allocation2 + $0xd8] sm:$0xff]
      %v3085 = vld [vmem:[#allocation2 + $0xe0] sm:$0xff]
      %v3086 = vld [vmem:[#allocation2 + $0xe8] sm:$0xff]
      %v3087 = vld [vmem:[#allocation2 + $0xf0] sm:$0xff]
      %v3088 = vld [vmem:[#allocation2 + $0xf8] sm:$0xff]
      %v3089 = vld [vmem:[#allocation2 + $0x100] sm:$0xff]
      %v3090 = vld [vmem:[#allocation2 + $0x108] sm:$0xff]
      %v3091 = vld [vmem:[#allocation2 + $0x110] sm:$0xff]
      %v3092 = vld [vmem:[#allocation2 + $0x118] sm:$0xff]
      %v3093 = vld [vmem:[#allocation2 + $0x120] sm:$0xff]
      %v3094 = vld [vmem:[#allocation2 + $0x128] sm:$0xff]
      %v3095 = vld [vmem:[#allocation2 + $0x130] sm:$0xff]
      %v3096 = vld [vmem:[#allocation2 + $0x138] sm:$0xff]
      %v3097 = vld [vmem:[#allocation2 + $0x140] sm:$0xff]
      %v3098 = vld [vmem:[#allocation2 + $0x148] sm:$0xff]
      %v3099 = vld [vmem:[#allocation2 + $0x150] sm:$0xff]
      %v3100 = vld [vmem:[#allocation2 + $0x158] sm:$0xff]
      %v3101 = vld [vmem:[#allocation2 + $0x160] sm:$0xff]
      %v3102 = vld [vmem:[#allocation2 + $0x168] sm:$0xff]
      %v3103 = vld [vmem:[#allocation2 + $0x170] sm:$0xff]
      %v3104 = vld [vmem:[#allocation2 + $0x178] sm:$0xff]
      %v3105 = vld [vmem:[#allocation2 + $0x180] sm:$0xff]
      %v3106 = vld [vmem:[#allocation2 + $0x188] sm:$0xff]
      %v3107 = vld [vmem:[#allocation2 + $0x190] sm:$0xff]
      %v3108 = vld [vmem:[#allocation2 + $0x198] sm:$0xff]
      %v3109 = vld [vmem:[#allocation2 + $0x1a0] sm:$0xff]
      %v3110 = vld [vmem:[#allocation2 + $0x1a8] sm:$0xff]
      %v3111 = vld [vmem:[#allocation2 + $0x1b0] sm:$0xff]
      %v3112 = vld [vmem:[#allocation2 + $0x1b8] sm:$0xff]
      %v3113 = vld [vmem:[#allocation2 + $0x1c0] sm:$0xff]
      %v3114 = vld [vmem:[#allocation2 + $0x1c8] sm:$0xff]
      %v3115 = vld [vmem:[#allocation2 + $0x1d0] sm:$0xff]
      %v3116 = vld [vmem:[#allocation2 + $0x1d8] sm:$0xff]
      %v3117 = vld [vmem:[#allocation2 + $0x1e0] sm:$0xff]
      %v3118 = vld [vmem:[#allocation2 + $0x1e8] sm:$0xff]
      %v3119 = vld [vmem:[#allocation2 + $0x1f0] sm:$0xff]
      %v3120 = vld [vmem:[#allocation2 + $0x1f8] sm:$0xff]
      %v3121 = vld [vmem:[#allocation2 + $0x200] sm:$0xff]
      %v3122 = vld [vmem:[#allocation2 + $0x208] sm:$0xff]
      %v3123 = vld [vmem:[#allocation2 + $0x210] sm:$0xff]
      %v3124 = vld [vmem:[#allocation2 + $0x218] sm:$0xff]
      %v3125 = vld [vmem:[#allocation2 + $0x220] sm:$0xff]
      %v3126 = vld [vmem:[#allocation2 + $0x228] sm:$0xff]
      %v3127 = vld [vmem:[#allocation2 + $0x230] sm:$0xff]
      %v3128 = vld [vmem:[#allocation2 + $0x238] sm:$0xff]
      %v3129 = vld [vmem:[%s2] sm:$0xff]
      %v3130 = vld [vmem:[%s2 + $0x8] sm:$0xff]
      %v3131 = vld [vmem:[%s2 + $0x10] sm:$0xff]
      %v3132 = vld [vmem:[%s2 + $0x18] sm:$0xff]
      %v3133 = vld [vmem:[%s2 + $0x20] sm:$0xff]
      %v3134 = vld [vmem:[%s2 + $0x28] sm:$0xff]
      %v3135 = vld [vmem:[%s2 + $0x30] sm:$0xff]
      %v3136 = vld [vmem:[%s2 + $0x38] sm:$0xff]
      %3138 = vset.pattern.permute.xlu0 2
      %3139 = vperm.xlu0 %3138, %v3129
      %v3140 = vpop.permute.xlu0 %3139
      %3143 = vset.pattern.permute.xlu0 2
      %3144 = vperm.xlu0 %3143, %v3130
      %v3145 = vpop.permute.xlu0 %3144
      %3148 = vset.pattern.permute.xlu0 2
      %3149 = vperm.xlu0 %3148, %v3131
      %v3150 = vpop.permute.xlu0 %3149
      %3153 = vset.pattern.permute.xlu0 2
      %3154 = vperm.xlu0 %3153, %v3132
      %v3155 = vpop.permute.xlu0 %3154
      %3158 = vset.pattern.permute.xlu0 2
      %3159 = vperm.xlu0 %3158, %v3133
      %v3160 = vpop.permute.xlu0 %3159
      %3163 = vset.pattern.permute.xlu0 2
      %3164 = vperm.xlu0 %3163, %v3134
      %v3165 = vpop.permute.xlu0 %3164
      %3168 = vset.pattern.permute.xlu0 2
      %3169 = vperm.xlu0 %3168, %v3135
      %v3170 = vpop.permute.xlu0 %3169
      %3173 = vset.pattern.permute.xlu0 2
      %3174 = vperm.xlu0 %3173, %v3136
      %v3175 = vpop.permute.xlu0 %3174
      %v3201 = vunpack.c.l.b16 %v3033
      %v3202 = vunpack.c.h.b16 %v3033
      %v3203 = vunpack.c.l.b16 %v3034
      %v3204 = vunpack.c.h.b16 %v3034
      %v3205 = vunpack.c.l.b16 %v3035
      %v3206 = vunpack.c.l.b16 %v3036
      %v3207 = vunpack.c.h.b16 %v3036
      %v3208 = vunpack.c.l.b16 %v3037
      %v3209 = vunpack.c.h.b16 %v3037
      %v3210 = vunpack.c.l.b16 %v3038
      %v3211 = vunpack.c.l.b16 %v3039
      %v3212 = vunpack.c.h.b16 %v3039
      %v3213 = vunpack.c.l.b16 %v3040
      %v3214 = vunpack.c.h.b16 %v3040
      %v3215 = vunpack.c.l.b16 %v3041
      %v3216 = vunpack.c.l.b16 %v3042
      %v3217 = vunpack.c.h.b16 %v3042
      %v3218 = vunpack.c.l.b16 %v3043
      %v3219 = vunpack.c.h.b16 %v3043
      %v3220 = vunpack.c.l.b16 %v3044
      %v3221 = vunpack.c.l.b16 %v3045
      %v3222 = vunpack.c.h.b16 %v3045
      %v3223 = vunpack.c.l.b16 %v3046
      %v3224 = vunpack.c.h.b16 %v3046
      %v3225 = vunpack.c.l.b16 %v3047
      %v3226 = vunpack.c.l.b16 %v3048
      %v3227 = vunpack.c.h.b16 %v3048
      %v3228 = vunpack.c.l.b16 %v3049
      %v3229 = vunpack.c.h.b16 %v3049
      %v3230 = vunpack.c.l.b16 %v3050
      %v3231 = vunpack.c.l.b16 %v3051
      %v3232 = vunpack.c.h.b16 %v3051
      %v3233 = vunpack.c.l.b16 %v3052
      %v3234 = vunpack.c.h.b16 %v3052
      %v3235 = vunpack.c.l.b16 %v3053
      %v3236 = vunpack.c.l.b16 %v3054
      %v3237 = vunpack.c.h.b16 %v3054
      %v3238 = vunpack.c.l.b16 %v3055
      %v3239 = vunpack.c.h.b16 %v3055
      %v3240 = vunpack.c.l.b16 %v3056
      %v3241 = vpack.c.b16 %v3206, %v3201
      %v3242 = vpack.c.b16 %v3207, %v3202
      %v3243 = vpack.c.b16 %v3208, %v3203
      %v3244 = vpack.c.b16 %v3209, %v3204
      %v3245 = vpack.c.b16 %v3210, %v3205
      %v3246 = vpack.c.b16 %v3216, %v3211
      %v3247 = vpack.c.b16 %v3217, %v3212
      %v3248 = vpack.c.b16 %v3218, %v3213
      %v3249 = vpack.c.b16 %v3219, %v3214
      %v3250 = vpack.c.b16 %v3220, %v3215
      %v3251 = vpack.c.b16 %v3226, %v3221
      %v3252 = vpack.c.b16 %v3227, %v3222
      %v3253 = vpack.c.b16 %v3228, %v3223
      %v3254 = vpack.c.b16 %v3229, %v3224
      %v3255 = vpack.c.b16 %v3230, %v3225
      %v3256 = vpack.c.b16 %v3236, %v3231
      %v3257 = vpack.c.b16 %v3237, %v3232
      %v3258 = vpack.c.b16 %v3238, %v3233
      %v3259 = vpack.c.b16 %v3239, %v3234
      %v3260 = vpack.c.b16 %v3240, %v3235
      %v3278 = vsel %vm2033, %v3245, 0
      %v3281 = vsel %vm2033, %v3250, 0
      %v3284 = vsel %vm2033, %v3255, 0
      %v3287 = vsel %vm2033, %v3260, 0
      %3289 = vmatprep.subr.bf16.mxu0 %v3058
      %3290 = vmatpush1.bf16.msra.mxu0 %v3057
      %3291 = vmatprep.subr.bf16.mxu0 %v3060
      %3292 = vmatpush1.bf16.msra.mxu0 %v3059
      %3293 = vmatprep.subr.bf16.mxu0 %v3062
      %3294 = vmatpush1.bf16.msra.mxu0 %v3061
      %3295 = vmatprep.subr.bf16.mxu0 %v3064
      %3296 = vmatpush1.bf16.msra.mxu0 %v3063
      %3297 = vmatprep.subr.bf16.mxu0 %v3066
      %3298 = vmatpush1.bf16.msra.mxu0 %v3065
      %3299 = vmatprep.subr.bf16.mxu0 %v3068
      %3300 = vmatpush1.bf16.msra.mxu0 %v3067
      %3301 = vmatprep.subr.bf16.mxu0 %v3070
      %3302 = vmatpush1.bf16.msra.mxu0 %v3069
      %3303 = vmatprep.subr.bf16.mxu0 %v3072
      %3304 = vmatpush1.bf16.msra.mxu0 %v3071
      %3305 = vmatprep.subr.bf16.mxu0 %v3074
      %3306 = vmatpush1.bf16.msra.mxu0 %v3073
      %3307 = vmatprep.subr.bf16.mxu0 %v3076
      %3308 = vmatpush1.bf16.msra.mxu0 %v3075
      %3309 = vmatprep.subr.bf16.mxu0 %v3078
      %3310 = vmatpush1.bf16.msra.mxu0 %v3077
      %3311 = vmatprep.subr.bf16.mxu0 %v3080
      %3312 = vmatpush1.bf16.msra.mxu0 %v3079
      %3313 = vmatprep.subr.bf16.mxu0 %v3082
      %3314 = vmatpush1.bf16.msra.mxu0 %v3081
      %3315 = vmatprep.subr.bf16.mxu0 %v3084
      %3316 = vmatpush1.bf16.msra.mxu0 %v3083
      %3317 = vmatprep.subr.bf16.mxu0 %v3086
      %3318 = vmatpush1.bf16.msra.mxu0 %v3085
      %3319 = vmatprep.subr.bf16.mxu0 %v3088
      %3320 = vmatpush1.bf16.msra.mxu0 %v3087
      %3321 = vmatprep.mubr.bf16.mxu0 %v3242
      %3322 = vmatmul.mubr.bf16.gmra.mrb[0].mxu0 %v3241
      %v3323 = vpop.f32.mrb[0].mxu0
      %v3324 = vadd.f32 %v3140, %v3323
      %v3325 = vpop.f32.mrb[0].mxu0
      %v3326 = vadd.f32 %v3140, %v3325
      %v3327 = vpop.f32.mrb[0].mxu0
      %v3328 = vadd.f32 %v3145, %v3327
      %v3329 = vpop.f32.mrb[0].mxu0
      %v3330 = vadd.f32 %v3145, %v3329
      %3331 = vmatprep.mubr.bf16.mxu0 %v3247
      %3332 = vmatmul.mubr.bf16.gmra.mrb[0].mxu0 %v3246
      %v3333 = vpop.f32.mrb[0].mxu0
      %v3334 = vadd.f32 %v3150, %v3333
      %v3335 = vpop.f32.mrb[0].mxu0
      %v3336 = vadd.f32 %v3150, %v3335
      %v3337 = vpop.f32.mrb[0].mxu0
      %v3338 = vadd.f32 %v3155, %v3337
      %v3339 = vpop.f32.mrb[0].mxu0
      %v3340 = vadd.f32 %v3155, %v3339
      %3341 = vmatprep.mubr.bf16.mxu0 %v3252
      %3342 = vmatmul.mubr.bf16.gmra.mrb[0].mxu0 %v3251
      %v3343 = vpop.f32.mrb[0].mxu0
      %v3344 = vadd.f32 %v3160, %v3343
      %v3345 = vpop.f32.mrb[0].mxu0
      %v3346 = vadd.f32 %v3160, %v3345
      %v3347 = vpop.f32.mrb[0].mxu0
      %v3348 = vadd.f32 %v3165, %v3347
      %v3349 = vpop.f32.mrb[0].mxu0
      %v3350 = vadd.f32 %v3165, %v3349
      %3351 = vmatprep.mubr.bf16.mxu0 %v3257
      %3352 = vmatmul.mubr.bf16.gmra.mrb[0].mxu0 %v3256
      %v3353 = vpop.f32.mrb[0].mxu0
      %v3354 = vadd.f32 %v3170, %v3353
      %v3355 = vpop.f32.mrb[0].mxu0
      %v3356 = vadd.f32 %v3170, %v3355
      %v3357 = vpop.f32.mrb[0].mxu0
      %v3358 = vadd.f32 %v3175, %v3357
      %v3359 = vpop.f32.mrb[0].mxu0
      %v3360 = vadd.f32 %v3175, %v3359
      %3361 = vdwg.mxu0
      %3362 = vmatprep.subr.bf16.mxu0 %v3090
      %3363 = vmatpush1.bf16.msra.mxu0 %v3089
      %3364 = vmatprep.subr.bf16.mxu0 %v3092
      %3365 = vmatpush1.bf16.msra.mxu0 %v3091
      %3366 = vmatprep.subr.bf16.mxu0 %v3094
      %3367 = vmatpush1.bf16.msra.mxu0 %v3093
      %3368 = vmatprep.subr.bf16.mxu0 %v3096
      %3369 = vmatpush1.bf16.msra.mxu0 %v3095
      %3370 = vmatprep.subr.bf16.mxu0 %v3098
      %3371 = vmatpush1.bf16.msra.mxu0 %v3097
      %3372 = vmatprep.subr.bf16.mxu0 %v3100
      %3373 = vmatpush1.bf16.msra.mxu0 %v3099
      %3374 = vmatprep.subr.bf16.mxu0 %v3102
      %3375 = vmatpush1.bf16.msra.mxu0 %v3101
      %3376 = vmatprep.subr.bf16.mxu0 %v3104
      %3377 = vmatpush1.bf16.msra.mxu0 %v3103
      %3378 = vmatprep.subr.bf16.mxu0 %v3106
      %3379 = vmatpush1.bf16.msra.mxu0 %v3105
      %3380 = vmatprep.subr.bf16.mxu0 %v3108
      %3381 = vmatpush1.bf16.msra.mxu0 %v3107
      %3382 = vmatprep.subr.bf16.mxu0 %v3110
      %3383 = vmatpush1.bf16.msra.mxu0 %v3109
      %3384 = vmatprep.subr.bf16.mxu0 %v3112
      %3385 = vmatpush1.bf16.msra.mxu0 %v3111
      %3386 = vmatprep.subr.bf16.mxu0 %v3114
      %3387 = vmatpush1.bf16.msra.mxu0 %v3113
      %3388 = vmatprep.subr.bf16.mxu0 %v3116
      %3389 = vmatpush1.bf16.msra.mxu0 %v3115
      %3390 = vmatprep.subr.bf16.mxu0 %v3118
      %3391 = vmatpush1.bf16.msra.mxu0 %v3117
      %3392 = vmatprep.subr.bf16.mxu0 %v3120
      %3393 = vmatpush1.bf16.msra.mxu0 %v3119
      %3394 = vmatprep.mubr.bf16.mxu0 %v3244
      %3395 = vmatmul.mubr.bf16.gmra.mrb[0].mxu0 %v3243
      %v3396 = vpop.f32.mrb[0].mxu0
      %v3397 = vadd.f32 %v3324, %v3396
      %v3398 = vpop.f32.mrb[0].mxu0
      %v3399 = vadd.f32 %v3326, %v3398
      %v3400 = vpop.f32.mrb[0].mxu0
      %v3401 = vadd.f32 %v3328, %v3400
      %v3402 = vpop.f32.mrb[0].mxu0
      %v3403 = vadd.f32 %v3330, %v3402
      %3404 = vmatprep.mubr.bf16.mxu0 %v3249
      %3405 = vmatmul.mubr.bf16.gmra.mrb[0].mxu0 %v3248
      %v3406 = vpop.f32.mrb[0].mxu0
      %v3407 = vadd.f32 %v3334, %v3406
      %v3408 = vpop.f32.mrb[0].mxu0
      %v3409 = vadd.f32 %v3336, %v3408
      %v3410 = vpop.f32.mrb[0].mxu0
      %v3411 = vadd.f32 %v3338, %v3410
      %v3412 = vpop.f32.mrb[0].mxu0
      %v3413 = vadd.f32 %v3340, %v3412
      %3414 = vmatprep.mubr.bf16.mxu0 %v3254
      %3415 = vmatmul.mubr.bf16.gmra.mrb[0].mxu0 %v3253
      %v3416 = vpop.f32.mrb[0].mxu0
      %v3417 = vadd.f32 %v3344, %v3416
      %v3418 = vpop.f32.mrb[0].mxu0
      %v3419 = vadd.f32 %v3346, %v3418
      %v3420 = vpop.f32.mrb[0].mxu0
      %v3421 = vadd.f32 %v3348, %v3420
      %v3422 = vpop.f32.mrb[0].mxu0
      %v3423 = vadd.f32 %v3350, %v3422
      %3424 = vmatprep.mubr.bf16.mxu0 %v3259
      %3425 = vmatmul.mubr.bf16.gmra.mrb[0].mxu0 %v3258
      %v3426 = vpop.f32.mrb[0].mxu0
      %v3427 = vadd.f32 %v3354, %v3426
      %v3428 = vpop.f32.mrb[0].mxu0
      %v3429 = vadd.f32 %v3356, %v3428
      %v3430 = vpop.f32.mrb[0].mxu0
      %v3431 = vadd.f32 %v3358, %v3430
      %v3432 = vpop.f32.mrb[0].mxu0
      %v3433 = vadd.f32 %v3360, %v3432
      %3434 = vdwg.mxu0
      %3435 = vmatprep.subr.bf16.mxu0 %v3122
      %3436 = vmatpush1.bf16.msra.mxu0 %v3121
      %3437 = vmatprep.subr.bf16.mxu0 %v3124
      %3438 = vmatpush1.bf16.msra.mxu0 %v3123
      %3439 = vmatprep.subr.bf16.mxu0 %v3126
      %3440 = vmatpush1.bf16.msra.mxu0 %v3125
      %3441 = vmatprep.subr.bf16.mxu0 %v3128
      %3442 = vmatpush1.bf16.msra.mxu0 %v3127
      %3443 = vmatprep.subr.bf16.mxu0 0
      %3444 = vmatpush1.bf16.msra.mxu0 0
      %3445 = vmatprep.subr.bf16.mxu0 0
      %3446 = vmatpush1.bf16.msra.mxu0 0
      %3447 = vmatprep.subr.bf16.mxu0 0
      %3448 = vmatpush1.bf16.msra.mxu0 0
      %3449 = vmatprep.subr.bf16.mxu0 0
      %3450 = vmatpush1.bf16.msra.mxu0 0
      %3451 = vmatprep.subr.bf16.mxu0 0
      %3452 = vmatpush1.bf16.msra.mxu0 0
      %3453 = vmatprep.subr.bf16.mxu0 0
      %3454 = vmatpush1.bf16.msra.mxu0 0
      %3455 = vmatprep.subr.bf16.mxu0 0
      %3456 = vmatpush1.bf16.msra.mxu0 0
      %3457 = vmatprep.subr.bf16.mxu0 0
      %3458 = vmatpush1.bf16.msra.mxu0 0
      %3459 = vmatprep.subr.bf16.mxu0 0
      %3460 = vmatpush1.bf16.msra.mxu0 0
      %3461 = vmatprep.subr.bf16.mxu0 0
      %3462 = vmatpush1.bf16.msra.mxu0 0
      %3463 = vmatprep.subr.bf16.mxu0 0
      %3464 = vmatpush1.bf16.msra.mxu0 0
      %3465 = vmatprep.subr.bf16.mxu0 0
      %3466 = vmatpush1.bf16.msra.mxu0 0
      %3467 = vmatprep.mubr.bf16.mxu0 0
      %3468 = vmatmul.mubr.bf16.gmra.mrb[0].mxu0 %v3278
      %v3469 = vpop.f32.mrb[0].mxu0
      %v3470 = vadd.f32 %v3397, %v3469
      %v3471 = vpop.f32.mrb[0].mxu0
      %v3472 = vadd.f32 %v3399, %v3471
      %v3473 = vpop.f32.mrb[0].mxu0
      %v3474 = vadd.f32 %v3401, %v3473
      %v3475 = vpop.f32.mrb[0].mxu0
      %v3476 = vadd.f32 %v3403, %v3475
      %3477 = vmatprep.mubr.bf16.mxu0 0
      %3478 = vmatmul.mubr.bf16.gmra.mrb[0].mxu0 %v3281
      %v3479 = vpop.f32.mrb[0].mxu0
      %v3480 = vadd.f32 %v3407, %v3479
      %v3481 = vpop.f32.mrb[0].mxu0
      %v3482 = vadd.f32 %v3409, %v3481
      %v3483 = vpop.f32.mrb[0].mxu0
      %v3484 = vadd.f32 %v3411, %v3483
      %v3485 = vpop.f32.mrb[0].mxu0
      %v3486 = vadd.f32 %v3413, %v3485
      %3487 = vmatprep.mubr.bf16.mxu0 0
      %3488 = vmatmul.mubr.bf16.gmra.mrb[0].mxu0 %v3284
      %v3489 = vpop.f32.mrb[0].mxu0
      %v3490 = vadd.f32 %v3417, %v3489
      %v3491 = vpop.f32.mrb[0].mxu0
      %v3492 = vadd.f32 %v3419, %v3491
      %v3493 = vpop.f32.mrb[0].mxu0
      %v3494 = vadd.f32 %v3421, %v3493
      %v3495 = vpop.f32.mrb[0].mxu0
      %v3496 = vadd.f32 %v3423, %v3495
      %3497 = vmatprep.mubr.bf16.mxu0 0
      %3498 = vmatmul.mubr.bf16.gmra.mrb[0].mxu0 %v3287
      %v3499 = vpop.f32.mrb[0].mxu0
      %v3500 = vadd.f32 %v3427, %v3499
      %v3501 = vpop.f32.mrb[0].mxu0
      %v3502 = vadd.f32 %v3429, %v3501
      %v3503 = vpop.f32.mrb[0].mxu0
      %v3504 = vadd.f32 %v3431, %v3503
      %v3505 = vpop.f32.mrb[0].mxu0
      %v3506 = vadd.f32 %v3433, %v3505
      %3507 = vdwg.mxu0
      %v3508 = vmax.f32 %v3470, 0.0
      %v3509 = vmax.f32 %v3472, 0.0
      %v3510 = vmax.f32 %v3474, 0.0
      %v3511 = vmax.f32 %v3476, 0.0
      %v3512 = vmax.f32 %v3480, 0.0
      %v3513 = vmax.f32 %v3482, 0.0
      %v3514 = vmax.f32 %v3484, 0.0
      %v3515 = vmax.f32 %v3486, 0.0
      %v3516 = vmax.f32 %v3490, 0.0
      %v3517 = vmax.f32 %v3492, 0.0
      %v3518 = vmax.f32 %v3494, 0.0
      %v3519 = vmax.f32 %v3496, 0.0
      %v3520 = vmax.f32 %v3500, 0.0
      %v3521 = vmax.f32 %v3502, 0.0
      %v3522 = vmax.f32 %v3504, 0.0
      %v3523 = vmax.f32 %v3506, 0.0
      %3524 = vst [vmem:[%s251] sm:$0xff] %v3508
      %3525 = vst [vmem:[%s251 + $0x8] sm:$0xff] %v3509
      %3526 = vst [vmem:[%s251 + $0x10] sm:$0xff] %v3510
      %3527 = vst [vmem:[%s251 + $0x18] sm:$0xff] %v3511
      %3528 = vst [vmem:[%s251 + $0x20] sm:$0xff] %v3512
      %3529 = vst [vmem:[%s251 + $0x28] sm:$0xff] %v3513
      %3530 = vst [vmem:[%s251 + $0x30] sm:$0xff] %v3514
      %3531 = vst [vmem:[%s251 + $0x38] sm:$0xff] %v3515
      %3532 = vst [vmem:[%s251 + $0x40] sm:$0xff] %v3516
      %3533 = vst [vmem:[%s251 + $0x48] sm:$0xff] %v3517
      %3534 = vst [vmem:[%s251 + $0x50] sm:$0xff] %v3518
      %3535 = vst [vmem:[%s251 + $0x58] sm:$0xff] %v3519
      %3536 = vst [vmem:[%s251 + $0x60] sm:$0xff] %v3520
      %3537 = vst [vmem:[%s251 + $0x68] sm:$0xff] %v3521
      %3538 = vst [vmem:[%s251 + $0x70] sm:$0xff] %v3522
      %3539 = vst [vmem:[%s251 + $0x78] sm:$0xff] %v3523
      %p3540 = scmp.lt.s32.totalorder %s17, 1
      %s3541 = scalar_select %p3540, %s17, 1
      %s3542 = smul.addr %s3541, 16
      %s3543 = smul.addr %s3542, 8
      %s3544 = scalar_lea.vmem %s6, %s3543
      // Predicated region
      $region45: #{encoder_forward.3} parent=43 // pred_check
        %p3545 = pneg %p166
      $region46: #{encoder_forward.3} parent=43 // pred_check_branch
        %3547 = sbr.rel (%p3545) target = $region48
      $region47: #{encoder_forward.3} parent=43 // pred_region
        _
      $region48: #{encoder_forward.3} parent=43 // pred_fallthru
        _
    $region44: #{encoder_forward.3} parent=5 // pred_fallthru
      _
    %p3548 = scmp.le.s32.totalorder 2, %s12
    // Predicated region
    $region49: #{encoder_forward.3} parent=5 // pred_check
      %p3549 = pneg %p3548
    $region50: #{encoder_forward.3} parent=5 // pred_check_branch
      %3551 = sbr.rel (%p3549) target = $region52
    $region51: #{encoder_forward.3} parent=5 // pred_region
      %s3552 = ssub.s32 %s12, 2
      // Predicated region
      $region53: #{encoder_forward.3} parent=51 // pred_check
        %p3553 = pneg %p172
      $region54: #{encoder_forward.3} parent=51 // pred_check_branch
        %3555 = sbr.rel (%p3553) target = $region56
      $region55: #{encoder_forward.3} parent=51 // pred_region
        %p3556 = scmp.lt.s32.totalorder %s18, 1
        %s3557 = scalar_select %p3556, %s18, 1
        %s3558 = smul.addr %s3557, 16
        %s3559 = smul.addr %s3558, 8
        %s3560 = scalar_lea.vmem %s6, %s3559
      $region56: #{encoder_forward.3} parent=51 // pred_fallthru
        _
    $region52: #{encoder_forward.3} parent=5 // pred_fallthru
      _
  $region6: #{encoder_forward.3} parent=0 // loop_footer
    %s16 = sadd.s32 1, %s12
  $region7: #{encoder_forward.3} parent=0 // loop_footer_branch
    %11 = sbr.rel target = $region3
  $region8: #{encoder_forward.3} parent=0 // loop_exit
    _

// kernel: encoder_forward.2
$region0: #{encoder_forward.2}
  #allocation0 [shape = 'u32[]', space=smem, size = 0x4, offset = 0x4, fixed_abs, tag = 'smem constant byte address 0x4 - core index']
  #allocation1 [shape = 'u32[144,128]{1,0:T(1,128)}', space=vmem, size = 0x12000, scoped, tag = 'internal scratch']
  #allocation2 [shape = 'bf16[288,1024]{1,0:T(16,128)(2,1)}', space=vmem, size = 0x90000, scoped, tag = 'scratch operand']
  %s0 = inlined_call_operand.vmem [shape: f32[2,4,1024], index: 0, kind: input, shape index: {}]
  %s1 = inlined_call_operand.vmem [shape: f32[9,1024], index: 1, kind: input, shape index: {}]
  %s2 = inlined_call_operand.vmem [shape: f32[32,3], index: 2, kind: input, shape index: {}]
  %s3 = inlined_call_operand.vmem [shape: bf16[32,36], index: 3, kind: input, shape index: {}]
  %s4 = inlined_call_operand.vmem [shape: bf16[32,288], index: 4, kind: input, shape index: {}]
  %s5 = inlined_call_operand.vmem [shape: bf16[32,288], index: 5, kind: input, shape index: {}]
  %s6 = inlined_call_operand.vmem [shape: f32[2,32,1024], index: 6, kind: output, shape index: {}]
  %s7 = sld [smem:[#allocation0]]
  $region57: #{encoder_forward.2} parent=0
    _
  %s9 = ssub.s32 1, %s7
  %s10 = scalar_select 0, %s9, %s7
  loop: start=0, step=1, limit=4
  $region2: #{encoder_forward.2} parent=0 // loop_pre_header
    _
  $region3: #{encoder_forward.2} parent=0 // loop_header
    %s12 = sphi 0, %s16
    %p13 = scmp.ge.s32.totalorder %s12, 4
    %s22 = sphi 0, %s24
    %s25 = sphi 0, %s22
    %s26 = sphi 0, %s25
    %s42 = sphi 0, %s26
    %s46 = sphi 0, %s46
    %s48 = sphi 0, %s46
    %s49 = sphi 0, %s48
    %s63 = sphi 0, %s49
    %s67 = sphi 0, %s67
    %s69 = sphi 0, %s67
    %s70 = sphi 0, %s69
    %s84 = sphi 0, %s70
    %s88 = sphi 0, %s88
    %s90 = sphi 0, %s88
    %s91 = sphi 0, %s90
    %s105 = sphi 0, %s91
    %s109 = sphi 0, %s109
    %s111 = sphi 0, %s109
    %s112 = sphi 0, %s111
    %s126 = sphi 0, %s112
    %s130 = sphi 0, %s130
    %s132 = sphi 0, %s130
    %s133 = sphi 0, %s132
    %s147 = sphi 0, %s133
    %s153 = sphi 0, %s155
    %s156 = sphi 0, %s153
    %s157 = sphi 0, %s156
    %s173 = sphi 0, %s157
  $region4: #{encoder_forward.2} parent=0 // loop_header_branch
    %15 = sbr.rel (%p13) target = $region8
  $region5: #{encoder_forward.2} parent=0 // loop_body
    %s17 = ssub.s32 %s12, 1
    %s18 = ssub.s32 %s12, 2
    %s19 = sadd.s32 %s12, 1
    %s20 = ssub.s32 %s12, %s19
    %p21 = scmp.eq.s32.totalorder %s20, 0
    %s23 = sadd.s32 %s22, 1
    %s24 = scalar_select %p21, %s22, %s23
    %p27 = pneg %p21
    %p28 = scmp.eq.s32.totalorder %s12, 1
    %p29 = por %p27, %p28
    %p30 = scmp.ne.s32.totalorder %s22, %s25
    %p31 = scmp.eq.s32.totalorder %s12, 0
    %p32 = por %p30, %p31
    %p33 = scmp.ne.s32.totalorder %s22, %s25
    %p34 = scmp.eq.s32.totalorder %s17, 1
    %p35 = por %p33, %p34
    %p36 = scmp.ne.s32.totalorder %s25, %s26
    %p37 = scmp.eq.s32.totalorder %s17, 0
    %p38 = por %p36, %p37
    %p39 = scmp.ne.s32.totalorder %s25, %s26
    %p40 = scmp.eq.s32.totalorder %s18, 1
    %p41 = por %p39, %p40
    %p43 = scmp.ne.s32.totalorder %s26, %s42
    %p44 = scmp.eq.s32.totalorder %s18, 0
    %p45 = por %p43, %p44
    %s47 = sadd.s32 %s46, 1
    %p50 = scmp.eq.s32.totalorder %s12, 1
    %p51 = scmp.ne.s32.totalorder %s46, %s48
    %p52 = scmp.eq.s32.totalorder %s12, 0
    %p53 = por %p51, %p52
    %p54 = scmp.ne.s32.totalorder %s46, %s48
    %p55 = scmp.eq.s32.totalorder %s17, 1
    %p56 = por %p54, %p55
    %p57 = scmp.ne.s32.totalorder %s48, %s49
    %p58 = scmp.eq.s32.totalorder %s17, 0
    %p59 = por %p57, %p58
    %p60 = scmp.ne.s32.totalorder %s48, %s49
    %p61 = scmp.eq.s32.totalorder %s18, 1
    %p62 = por %p60, %p61
    %p64 = scmp.ne.s32.totalorder %s49, %s63
    %p65 = scmp.eq.s32.totalorder %s18, 0
    %p66 = por %p64, %p65
    %s68 = sadd.s32 %s67, 1
    %p71 = scmp.eq.s32.totalorder %s12, 1
    %p72 = scmp.ne.s32.totalorder %s67, %s69
    %p73 = scmp.eq.s32.totalorder %s12, 0
    %p74 = por %p72, %p73
    %p75 = scmp.ne.s32.totalorder %s67, %s69
    %p76 = scmp.eq.s32.totalorder %s17, 1
    %p77 = por %p75, %p76
    %p78 = scmp.ne.s32.totalorder %s69, %s70
    %p79 = scmp.eq.s32.totalorder %s17, 0
    %p80 = por %p78, %p79
    %p81 = scmp.ne.s32.totalorder %s69, %s70
    %p82 = scmp.eq.s32.totalorder %s18, 1
    %p83 = por %p81, %p82
    %p85 = scmp.ne.s32.totalorder %s70, %s84
    %p86 = scmp.eq.s32.totalorder %s18, 0
    %p87 = por %p85, %p86
    %s89 = sadd.s32 %s88, 1
    %p92 = scmp.eq.s32.totalorder %s12, 1
    %p93 = scmp.ne.s32.totalorder %s88, %s90
    %p94 = scmp.eq.s32.totalorder %s12, 0
    %p95 = por %p93, %p94
    %p96 = scmp.ne.s32.totalorder %s88, %s90
    %p97 = scmp.eq.s32.totalorder %s17, 1
    %p98 = por %p96, %p97
    %p99 = scmp.ne.s32.totalorder %s90, %s91
    %p100 = scmp.eq.s32.totalorder %s17, 0
    %p101 = por %p99, %p100
    %p102 = scmp.ne.s32.totalorder %s90, %s91
    %p103 = scmp.eq.s32.totalorder %s18, 1
    %p104 = por %p102, %p103
    %p106 = scmp.ne.s32.totalorder %s91, %s105
    %p107 = scmp.eq.s32.totalorder %s18, 0
    %p108 = por %p106, %p107
    %s110 = sadd.s32 %s109, 1
    %p113 = scmp.eq.s32.totalorder %s12, 1
    %p114 = scmp.ne.s32.totalorder %s109, %s111
    %p115 = scmp.eq.s32.totalorder %s12, 0
    %p116 = por %p114, %p115
    %p117 = scmp.ne.s32.totalorder %s109, %s111
    %p118 = scmp.eq.s32.totalorder %s17, 1
    %p119 = por %p117, %p118
    %p120 = scmp.ne.s32.totalorder %s111, %s112
    %p121 = scmp.eq.s32.totalorder %s17, 0
    %p122 = por %p120, %p121
    %p123 = scmp.ne.s32.totalorder %s111, %s112
    %p124 = scmp.eq.s32.totalorder %s18, 1
    %p125 = por %p123, %p124
    %p127 = scmp.ne.s32.totalorder %s112, %s126
    %p128 = scmp.eq.s32.totalorder %s18, 0
    %p129 = por %p127, %p128
    %s131 = sadd.s32 %s130, 1
    %p134 = scmp.eq.s32.totalorder %s12, 1
    %p135 = scmp.ne.s32.totalorder %s130, %s132
    %p136 = scmp.eq.s32.totalorder %s12, 0
    %p137 = por %p135, %p136
    %p138 = scmp.ne.s32.totalorder %s130, %s132
    %p139 = scmp.eq.s32.totalorder %s17, 1
    %p140 = por %p138, %p139
    %p141 = scmp.ne.s32.totalorder %s132, %s133
    %p142 = scmp.eq.s32.totalorder %s17, 0
    %p143 = por %p141, %p142
    %p144 = scmp.ne.s32.totalorder %s132, %s133
    %p145 = scmp.eq.s32.totalorder %s18, 1
    %p146 = por %p144, %p145
    %p148 = scmp.ne.s32.totalorder %s133, %s147
    %p149 = scmp.eq.s32.totalorder %s18, 0
    %p150 = por %p148, %p149
    %s151 = ssub.s32 %s12, %s19
    %p152 = scmp.eq.s32.totalorder %s151, 0
    %s154 = sadd.s32 %s153, 1
    %s155 = scalar_select %p152, %s153, %s154
    %p158 = pneg %p152
    %p159 = scmp.eq.s32.totalorder %s12, 1
    %p160 = por %p158, %p159
    %p161 = scmp.ne.s32.totalorder %s153, %s156
    %p162 = scmp.eq.s32.totalorder %s12, 0
    %p163 = por %p161, %p162
    %p164 = scmp.ne.s32.totalorder %s153, %s156
    %p165 = scmp.eq.s32.totalorder %s17, 1
    %p166 = por %p164, %p165
    %p167 = scmp.ne.s32.totalorder %s156, %s157
    %p168 = scmp.eq.s32.totalorder %s17, 0
    %p169 = por %p167, %p168
    %p170 = scmp.ne.s32.totalorder %s156, %s157
    %p171 = scmp.eq.s32.totalorder %s18, 1
    %p172 = por %p170, %p171
    %p174 = scmp.ne.s32.totalorder %s157, %s173
    %p175 = scmp.eq.s32.totalorder %s18, 0
    %p176 = por %p174, %p175
    %p177 = scmp.le.s32.totalorder 1, %s12
    %p178 = scmp.lt.s32.totalorder %s12, 3
    %p179 = pnand %p177, %p178
    %p180 = pneg %p179
    // Predicated region
    $region9: #{encoder_forward.2} parent=5 // pred_check
      _
    $region10: #{encoder_forward.2} parent=5 // pred_check_branch
      %182 = sbr.rel (%p179) target = $region12
    $region11: #{encoder_forward.2} parent=5 // pred_region
      %s183 = ssub.s32 %s12, 1
      // Predicated region
      $region13: #{encoder_forward.2} parent=11 // pred_check
        %p184 = pneg %p59
      $region14: #{encoder_forward.2} parent=11 // pred_check_branch
        %186 = sbr.rel (%p184) target = $region16
      $region15: #{encoder_forward.2} parent=11 // pred_region
        _
      $region16: #{encoder_forward.2} parent=11 // pred_fallthru
        _
      // Predicated region
      $region17: #{encoder_forward.2} parent=11 // pred_check
        %p187 = pneg %p80
      $region18: #{encoder_forward.2} parent=11 // pred_check_branch
        %189 = sbr.rel (%p187) target = $region20
      $region19: #{encoder_forward.2} parent=11 // pred_region
        _
      $region20: #{encoder_forward.2} parent=11 // pred_fallthru
        _
      // Predicated region
      $region21: #{encoder_forward.2} parent=11 // pred_check
        %p190 = pneg %p101
      $region22: #{encoder_forward.2} parent=11 // pred_check_branch
        %192 = sbr.rel (%p190) target = $region24
      $region23: #{encoder_forward.2} parent=11 // pred_region
        _
      $region24: #{encoder_forward.2} parent=11 // pred_fallthru
        _
      // Predicated region
      $region25: #{encoder_forward.2} parent=11 // pred_check
        %p193 = pneg %p122
      $region26: #{encoder_forward.2} parent=11 // pred_check_branch
        %195 = sbr.rel (%p193) target = $region28
      $region27: #{encoder_forward.2} parent=11 // pred_region
        _
      $region28: #{encoder_forward.2} parent=11 // pred_fallthru
        _
      // Predicated region
      $region29: #{encoder_forward.2} parent=11 // pred_check
        %p196 = pneg %p143
      $region30: #{encoder_forward.2} parent=11 // pred_check_branch
        %198 = sbr.rel (%p196) target = $region32
      $region31: #{encoder_forward.2} parent=11 // pred_region
        _
      $region32: #{encoder_forward.2} parent=11 // pred_fallthru
        _
    $region12: #{encoder_forward.2} parent=5 // pred_fallthru
      _
    %p199 = scmp.lt.s32.totalorder %s12, 2
    // Predicated region
    $region33: #{encoder_forward.2} parent=5 // pred_check
      %p200 = pneg %p199
    $region34: #{encoder_forward.2} parent=5 // pred_check_branch
      %202 = sbr.rel (%p200) target = $region36
    $region35: #{encoder_forward.2} parent=5 // pred_region
      // Predicated region
      $region37: #{encoder_forward.2} parent=35 // pred_check
        %p203 = pneg %p32
      $region38: #{encoder_forward.2} parent=35 // pred_check_branch
        %205 = sbr.rel (%p203) target = $region40
      $region39: #{encoder_forward.2} parent=35 // pred_region
        %p206 = scmp.lt.s32.totalorder %s12, 1
        %s207 = scalar_select %p206, %s12, 1
        %s208 = smul.addr %s207, 8
        %s209 = smul.addr %s208, 4
        %s210 = scalar_lea.vmem %s0, %s209
      $region40: #{encoder_forward.2} parent=35 // pred_fallthru
        _
    $region36: #{encoder_forward.2} parent=5 // pred_fallthru
      _
    %p211 = scmp.le.s32.totalorder 1, %s12
    %p212 = scmp.lt.s32.totalorder %s12, 3
    %p213 = pnand %p211, %p212
    %p214 = pneg %p213
    // Predicated region
    $region41: #{encoder_forward.2} parent=5 // pred_check
      _
    $region42: #{encoder_forward.2} parent=5 // pred_check_branch
      %216 = sbr.rel (%p213) target = $region44
    $region43: #{encoder_forward.2} parent=5 // pred_region
      %s217 = ssub.s32 %s12, 1
      %p218 = scmp.lt.s32.totalorder %s17, 1
      %s219 = scalar_select %p218, %s17, 1
      %s220 = smul.addr %s219, 8
      %s221 = smul.addr %s220, 4
      %s222 = scalar_lea.vmem %s0, %s221
      %p223 = pneg %p38
      %p224 = pneg %p35
      %p225 = pneg %p59
      %p226 = pneg %p56
      %p227 = pneg %p80
      %p228 = pneg %p77
      %p229 = pneg %p101
      %p230 = pneg %p98
      %p231 = pneg %p122
      %p232 = pneg %p119
      %p233 = pneg %p143
      %p234 = pneg %p140
      %p235 = pneg %p169
      %p236 = pneg %p166
      %p237 = scmp.lt.s32.totalorder %s17, 1
      %s238 = scalar_select %p237, %s17, 1
      %s239 = smul.addr %s238, 32
      %s240 = smul.addr %s239, 8
      %s241 = scalar_lea.vmem %s6, %s240
      %p242 = scmp.lt.s32.totalorder %s17, 1
      %s243 = scalar_select %p242, %s17, 1
      %s244 = smul.addr %s243, 8
      %s245 = smul.addr %s244, 4
      %s246 = scalar_lea.vmem %s0, %s245
      %p247 = scmp.lt.s32.totalorder %s17, 1
      %s248 = scalar_select %p247, %s17, 1
      %s249 = smul.addr %s248, 32
      %s250 = smul.addr %s249, 8
      %s251 = scalar_lea.vmem %s6, %s250
      %v253 = vld [vmem:[%s246] sm:$0xff]
      %v254 = vld [vmem:[%s246 + $0x8] sm:$0xff]
      %v255 = vld [vmem:[%s246 + $0x10] sm:$0xff]
      %v256 = vld [vmem:[%s246 + $0x18] sm:$0xff]
      %v261 = vcombine.high %v253, %v253
      %v262 = vcombine.high %v254, %v254
      %v263 = vcombine.high %v255, %v255
      %v264 = vcombine.high %v256, %v256
      %269 = vrot.lane.b32.xlu0 %v253, 33
      %v270 = vpop.permute.xlu0 %269
      %271 = vrot.lane.b32.xlu0 %v261, 33
      %v272 = vpop.permute.xlu0 %271
      %273 = vrot.lane.b32.xlu0 %v254, 33
      %v274 = vpop.permute.xlu0 %273
      %275 = vrot.lane.b32.xlu0 %v262, 33
      %v276 = vpop.permute.xlu0 %275
      %277 = vrot.lane.b32.xlu0 %v255, 33
      %v278 = vpop.permute.xlu0 %277
      %279 = vrot.lane.b32.xlu0 %v263, 33
      %v280 = vpop.permute.xlu0 %279
      %281 = vrot.lane.b32.xlu0 %v256, 33
      %v282 = vpop.permute.xlu0 %281
      %283 = vrot.lane.b32.xlu0 %v264, 33
      %v284 = vpop.permute.xlu0 %283
      %v285 = vlaneseq
      %v286 = vand.u32 %v285, 127
      %vm287 = vcmp.lt.s32.totalorder %v286, 33
      %v288 = vsel %vm287, %v282, %v284
      %v289 = vsel %vm287, %v280, %v282
      %v290 = vsel %vm287, %v278, %v280
      %v291 = vsel %vm287, %v276, %v278
      %v292 = vsel %vm287, %v274, %v276
      %v293 = vsel %vm287, %v272, %v274
      %v294 = vsel %vm287, %v270, %v272
      %v295 = vsel %vm287, %v284, %v270
      %v296 = vld [vmem:[%s1] ss:$8 sm:$0xf]
      %v297 = vld [vmem:[%s1] ss:$8 sm:$0xf0]
      %v298 = vor.u32 %v296, %v297
      %v300 = vlaneseq
      %v301 = vshrl.u32 %v300, 7
      %v302 = vsub.s32 0, %v301
      %v303 = vrot.slane %v298, %v302
      %v304 = vlaneseq
      %v305 = vshrl.u32 %v304, 7
      %v306 = vsub.s32 1, %v305
      %v307 = vrot.slane %v298, %v306
      %v308 = vlaneseq
      %v309 = vshrl.u32 %v308, 7
      %v310 = vsub.s32 2, %v309
      %v311 = vrot.slane %v298, %v310
      %v312 = vlaneseq
      %v313 = vshrl.u32 %v312, 7
      %v314 = vsub.s32 3, %v313
      %v315 = vrot.slane %v298, %v314
      %v316 = vlaneseq
      %v317 = vshrl.u32 %v316, 7
      %v318 = vsub.s32 4, %v317
      %v319 = vrot.slane %v298, %v318
      %v320 = vlaneseq
      %v321 = vshrl.u32 %v320, 7
      %v322 = vsub.s32 5, %v321
      %v323 = vrot.slane %v298, %v322
      %v324 = vlaneseq
      %v325 = vshrl.u32 %v324, 7
      %v326 = vsub.s32 6, %v325
      %v327 = vrot.slane %v298, %v326
      %v328 = vlaneseq
      %v329 = vshrl.u32 %v328, 7
      %v330 = vsub.s32 7, %v329
      %v331 = vrot.slane %v298, %v330
      %v340 = vmul.f32 %v295, %v303
      %v341 = vmul.f32 %v294, %v307
      %v342 = vmul.f32 %v293, %v311
      %v343 = vmul.f32 %v292, %v315
      %v344 = vmul.f32 %v291, %v319
      %v345 = vmul.f32 %v290, %v323
      %v346 = vmul.f32 %v289, %v327
      %v347 = vmul.f32 %v288, %v331
      %v348 = vpack.c.bf16 %v340, %v340
      %v349 = vpack.c.bf16 %v341, %v341
      %v350 = vpack.c.bf16 %v342, %v342
      %v351 = vpack.c.bf16 %v343, %v343
      %v352 = vpack.c.bf16 %v344, %v344
      %v353 = vpack.c.bf16 %v345, %v345
      %v354 = vpack.c.bf16 %v346, %v346
      %v355 = vpack.c.bf16 %v347, %v347
      %356 = vst [vmem:[#allocation2] sm:$0x3] %v348
      %357 = vst [vmem:[#allocation2 + $0x8] sm:$0x3] %v349
      %358 = vst [vmem:[#allocation2 + $0x10] sm:$0x3] %v350
      %359 = vst [vmem:[#allocation2 + $0x18] sm:$0x3] %v351
      %360 = vst [vmem:[#allocation2 + $0x20] sm:$0x3] %v352
      %361 = vst [vmem:[#allocation2 + $0x28] sm:$0x3] %v353
      %362 = vst [vmem:[#allocation2 + $0x30] sm:$0x3] %v354
      %363 = vst [vmem:[#allocation2 + $0x38] sm:$0x3] %v355
      %364 = vrot.lane.b32.xlu0 %v253, 32
      %v365 = vpop.permute.xlu0 %364
      %366 = vrot.lane.b32.xlu0 %v261, 32
      %v367 = vpop.permute.xlu0 %366
      %368 = vrot.lane.b32.xlu0 %v254, 32
      %v369 = vpop.permute.xlu0 %368
      %370 = vrot.lane.b32.xlu0 %v262, 32
      %v371 = vpop.permute.xlu0 %370
      %372 = vrot.lane.b32.xlu0 %v255, 32
      %v373 = vpop.permute.xlu0 %372
      %374 = vrot.lane.b32.xlu0 %v263, 32
      %v375 = vpop.permute.xlu0 %374
      %376 = vrot.lane.b32.xlu0 %v256, 32
      %v377 = vpop.permute.xlu0 %376
      %378 = vrot.lane.b32.xlu0 %v264, 32
      %v379 = vpop.permute.xlu0 %378
      %vm380 = vcmp.lt.s32.totalorder %v286, 32
      %v381 = vsel %vm380, %v377, %v379
      %v382 = vsel %vm380, %v375, %v377
      %v383 = vsel %vm380, %v373, %v375
      %v384 = vsel %vm380, %v371, %v373
      %v385 = vsel %vm380, %v369, %v371
      %v386 = vsel %vm380, %v367, %v369
      %v387 = vsel %vm380, %v365, %v367
      %v388 = vsel %vm380, %v379, %v365
      %s389 = scalar_lea.vmem %s1, 1
      %v390 = vld [vmem:[%s389] ss:$8 sm:$0xf]
      %v391 = vld [vmem:[%s389] ss:$8 sm:$0xf0]
      %v392 = vor.u32 %v390, %v391
      %v394 = vlaneseq
      %v395 = vshrl.u32 %v394, 7
      %v396 = vsub.s32 0, %v395
      %v397 = vrot.slane %v392, %v396
      %v398 = vlaneseq
      %v399 = vshrl.u32 %v398, 7
      %v400 = vsub.s32 1, %v399
      %v401 = vrot.slane %v392, %v400
      %v402 = vlaneseq
      %v403 = vshrl.u32 %v402, 7
      %v404 = vsub.s32 2, %v403
      %v405 = vrot.slane %v392, %v404
      %v406 = vlaneseq
      %v407 = vshrl.u32 %v406, 7
      %v408 = vsub.s32 3, %v407
      %v409 = vrot.slane %v392, %v408
      %v410 = vlaneseq
      %v411 = vshrl.u32 %v410, 7
      %v412 = vsub.s32 4, %v411
      %v413 = vrot.slane %v392, %v412
      %v414 = vlaneseq
      %v415 = vshrl.u32 %v414, 7
      %v416 = vsub.s32 5, %v415
      %v417 = vrot.slane %v392, %v416
      %v418 = vlaneseq
      %v419 = vshrl.u32 %v418, 7
      %v420 = vsub.s32 6, %v419
      %v421 = vrot.slane %v392, %v420
      %v422 = vlaneseq
      %v423 = vshrl.u32 %v422, 7
      %v424 = vsub.s32 7, %v423
      %v425 = vrot.slane %v392, %v424
      %v434 = vmul.f32 %v388, %v397
      %v435 = vmul.f32 %v387, %v401
      %v436 = vmul.f32 %v386, %v405
      %v437 = vmul.f32 %v385, %v409
      %v438 = vmul.f32 %v384, %v413
      %v439 = vmul.f32 %v383, %v417
      %v440 = vmul.f32 %v382, %v421
      %v441 = vmul.f32 %v381, %v425
      %v442 = vpack.c.bf16 %v434, %v434
      %v443 = vpack.c.bf16 %v435, %v435
      %v444 = vpack.c.bf16 %v436, %v436
      %v445 = vpack.c.bf16 %v437, %v437
      %v446 = vpack.c.bf16 %v438, %v438
      %v447 = vpack.c.bf16 %v439, %v439
      %v448 = vpack.c.bf16 %v440, %v440
      %v449 = vpack.c.bf16 %v441, %v441
      %v458 = vrot.slane %v442, 6
      %v459 = vrot.slane %v443, 6
      %v460 = vrot.slane %v444, 6
      %v461 = vrot.slane %v445, 6
      %v462 = vrot.slane %v446, 6
      %v463 = vrot.slane %v447, 6
      %v464 = vrot.slane %v448, 6
      %v465 = vrot.slane %v449, 6
      %474 = vst [vmem:[#allocation2] sm:$0xc] %v458
      %475 = vst [vmem:[#allocation2 + $0x8] sm:$0xc] %v459
      %476 = vst [vmem:[#allocation2 + $0x10] sm:$0xc] %v460
      %477 = vst [vmem:[#allocation2 + $0x18] sm:$0xc] %v461
      %478 = vst [vmem:[#allocation2 + $0x20] sm:$0xc] %v462
      %479 = vst [vmem:[#allocation2 + $0x28] sm:$0xc] %v463
      %480 = vst [vmem:[#allocation2 + $0x30] sm:$0xc] %v464
      %481 = vst [vmem:[#allocation2 + $0x38] sm:$0xc] %v465
      %482 = vrot.lane.b32.xlu0 %v253, 31
      %v483 = vpop.permute.xlu0 %482
      %484 = vrot.lane.b32.xlu0 %v261, 31
      %v485 = vpop.permute.xlu0 %484
      %486 = vrot.lane.b32.xlu0 %v254, 31
      %v487 = vpop.permute.xlu0 %486
      %488 = vrot.lane.b32.xlu0 %v262, 31
      %v489 = vpop.permute.xlu0 %488
      %490 = vrot.lane.b32.xlu0 %v255, 31
      %v491 = vpop.permute.xlu0 %490
      %492 = vrot.lane.b32.xlu0 %v263, 31
      %v493 = vpop.permute.xlu0 %492
      %494 = vrot.lane.b32.xlu0 %v256, 31
      %v495 = vpop.permute.xlu0 %494
      %496 = vrot.lane.b32.xlu0 %v264, 31
      %v497 = vpop.permute.xlu0 %496
      %vm498 = vcmp.lt.s32.totalorder %v286, 31
      %v499 = vsel %vm498, %v495, %v497
      %v500 = vsel %vm498, %v493, %v495
      %v501 = vsel %vm498, %v491, %v493
      %v502 = vsel %vm498, %v489, %v491
      %v503 = vsel %vm498, %v487, %v489
      %v504 = vsel %vm498, %v485, %v487
      %v505 = vsel %vm498, %v483, %v485
      %v506 = vsel %vm498, %v497, %v483
      %s507 = scalar_lea.vmem %s1, 2
      %v508 = vld [vmem:[%s507] ss:$8 sm:$0xf]
      %v509 = vld [vmem:[%s507] ss:$8 sm:$0xf0]
      %v510 = vor.u32 %v508, %v509
      %v512 = vlaneseq
      %v513 = vshrl.u32 %v512, 7
      %v514 = vsub.s32 0, %v513
      %v515 = vrot.slane %v510, %v514
      %v516 = vlaneseq
      %v517 = vshrl.u32 %v516, 7
      %v518 = vsub.s32 1, %v517
      %v519 = vrot.slane %v510, %v518
      %v520 = vlaneseq
      %v521 = vshrl.u32 %v520, 7
      %v522 = vsub.s32 2, %v521
      %v523 = vrot.slane %v510, %v522
      %v524 = vlaneseq
      %v525 = vshrl.u32 %v524, 7
      %v526 = vsub.s32 3, %v525
      %v527 = vrot.slane %v510, %v526
      %v528 = vlaneseq
      %v529 = vshrl.u32 %v528, 7
      %v530 = vsub.s32 4, %v529
      %v531 = vrot.slane %v510, %v530
      %v532 = vlaneseq
      %v533 = vshrl.u32 %v532, 7
      %v534 = vsub.s32 5, %v533
      %v535 = vrot.slane %v510, %v534
      %v536 = vlaneseq
      %v537 = vshrl.u32 %v536, 7
      %v538 = vsub.s32 6, %v537
      %v539 = vrot.slane %v510, %v538
      %v540 = vlaneseq
      %v541 = vshrl.u32 %v540, 7
      %v542 = vsub.s32 7, %v541
      %v543 = vrot.slane %v510, %v542
      %v552 = vmul.f32 %v506, %v515
      %v553 = vmul.f32 %v505, %v519
      %v554 = vmul.f32 %v504, %v523
      %v555 = vmul.f32 %v503, %v527
      %v556 = vmul.f32 %v502, %v531
      %v557 = vmul.f32 %v501, %v535
      %v558 = vmul.f32 %v500, %v539
      %v559 = vmul.f32 %v499, %v543
      %v560 = vpack.c.bf16 %v552, %v552
      %v561 = vpack.c.bf16 %v553, %v553
      %v562 = vpack.c.bf16 %v554, %v554
      %v563 = vpack.c.bf16 %v555, %v555
      %v564 = vpack.c.bf16 %v556, %v556
      %v565 = vpack.c.bf16 %v557, %v557
      %v566 = vpack.c.bf16 %v558, %v558
      %v567 = vpack.c.bf16 %v559, %v559
      %v576 = vrot.slane %v560, 4
      %v577 = vrot.slane %v561, 4
      %v578 = vrot.slane %v562, 4
      %v579 = vrot.slane %v563, 4
      %v580 = vrot.slane %v564, 4
      %v581 = vrot.slane %v565, 4
      %v582 = vrot.slane %v566, 4
      %v583 = vrot.slane %v567, 4
      %592 = vst [vmem:[#allocation2] sm:$0x30] %v576
      %593 = vst [vmem:[#allocation2 + $0x8] sm:$0x30] %v577
      %594 = vst [vmem:[#allocation2 + $0x10] sm:$0x30] %v578
      %595 = vst [vmem:[#allocation2 + $0x18] sm:$0x30] %v579
      %596 = vst [vmem:[#allocation2 + $0x20] sm:$0x30] %v580
      %597 = vst [vmem:[#allocation2 + $0x28] sm:$0x30] %v581
      %598 = vst [vmem:[#allocation2 + $0x30] sm:$0x30] %v582
      %599 = vst [vmem:[#allocation2 + $0x38] sm:$0x30] %v583
      %600 = vrot.lane.b32.xlu0 %v253, 1
      %v601 = vpop.permute.xlu0 %600
      %602 = vrot.lane.b32.xlu0 %v261, 1
      %v603 = vpop.permute.xlu0 %602
      %604 = vrot.lane.b32.xlu0 %v254, 1
      %v605 = vpop.permute.xlu0 %604
      %606 = vrot.lane.b32.xlu0 %v262, 1
      %v607 = vpop.permute.xlu0 %606
      %608 = vrot.lane.b32.xlu0 %v255, 1
      %v609 = vpop.permute.xlu0 %608
      %610 = vrot.lane.b32.xlu0 %v263, 1
      %v611 = vpop.permute.xlu0 %610
      %612 = vrot.lane.b32.xlu0 %v256, 1
      %v613 = vpop.permute.xlu0 %612
      %614 = vrot.lane.b32.xlu0 %v264, 1
      %v615 = vpop.permute.xlu0 %614
      %vm616 = vcmp.lt.s32.totalorder %v286, 1
      %v617 = vsel %vm616, %v613, %v615
      %v618 = vsel %vm616, %v611, %v613
      %v619 = vsel %vm616, %v609, %v611
      %v620 = vsel %vm616, %v607, %v609
      %v621 = vsel %vm616, %v605, %v607
      %v622 = vsel %vm616, %v603, %v605
      %v623 = vsel %vm616, %v601, %v603
      %v624 = vsel %vm616, %v615, %v601
      %s625 = scalar_lea.vmem %s1, 3
      %v626 = vld [vmem:[%s625] ss:$8 sm:$0xf]
      %v627 = vld [vmem:[%s625] ss:$8 sm:$0xf0]
      %v628 = vor.u32 %v626, %v627
      %v630 = vlaneseq
      %v631 = vshrl.u32 %v630, 7
      %v632 = vsub.s32 0, %v631
      %v633 = vrot.slane %v628, %v632
      %v634 = vlaneseq
      %v635 = vshrl.u32 %v634, 7
      %v636 = vsub.s32 1, %v635
      %v637 = vrot.slane %v628, %v636
      %v638 = vlaneseq
      %v639 = vshrl.u32 %v638, 7
      %v640 = vsub.s32 2, %v639
      %v641 = vrot.slane %v628, %v640
      %v642 = vlaneseq
      %v643 = vshrl.u32 %v642, 7
      %v644 = vsub.s32 3, %v643
      %v645 = vrot.slane %v628, %v644
      %v646 = vlaneseq
      %v647 = vshrl.u32 %v646, 7
      %v648 = vsub.s32 4, %v647
      %v649 = vrot.slane %v628, %v648
      %v650 = vlaneseq
      %v651 = vshrl.u32 %v650, 7
      %v652 = vsub.s32 5, %v651
      %v653 = vrot.slane %v628, %v652
      %v654 = vlaneseq
      %v655 = vshrl.u32 %v654, 7
      %v656 = vsub.s32 6, %v655
      %v657 = vrot.slane %v628, %v656
      %v658 = vlaneseq
      %v659 = vshrl.u32 %v658, 7
      %v660 = vsub.s32 7, %v659
      %v661 = vrot.slane %v628, %v660
      %v670 = vmul.f32 %v624, %v633
      %v671 = vmul.f32 %v623, %v637
      %v672 = vmul.f32 %v622, %v641
      %v673 = vmul.f32 %v621, %v645
      %v674 = vmul.f32 %v620, %v649
      %v675 = vmul.f32 %v619, %v653
      %v676 = vmul.f32 %v618, %v657
      %v677 = vmul.f32 %v617, %v661
      %v678 = vpack.c.bf16 %v670, %v670
      %v679 = vpack.c.bf16 %v671, %v671
      %v680 = vpack.c.bf16 %v672, %v672
      %v681 = vpack.c.bf16 %v673, %v673
      %v682 = vpack.c.bf16 %v674, %v674
      %v683 = vpack.c.bf16 %v675, %v675
      %v684 = vpack.c.bf16 %v676, %v676
      %v685 = vpack.c.bf16 %v677, %v677
      %v694 = vrot.slane %v678, 2
      %v695 = vrot.slane %v679, 2
      %v696 = vrot.slane %v680, 2
      %v697 = vrot.slane %v681, 2
      %v698 = vrot.slane %v682, 2
      %v699 = vrot.slane %v683, 2
      %v700 = vrot.slane %v684, 2
      %v701 = vrot.slane %v685, 2
      %710 = vst [vmem:[#allocation2] sm:$0xc0] %v694
      %711 = vst [vmem:[#allocation2 + $0x8] sm:$0xc0] %v695
      %712 = vst [vmem:[#allocation2 + $0x10] sm:$0xc0] %v696
      %713 = vst [vmem:[#allocation2 + $0x18] sm:$0xc0] %v697
      %714 = vst [vmem:[#allocation2 + $0x20] sm:$0xc0] %v698
      %715 = vst [vmem:[#allocation2 + $0x28] sm:$0xc0] %v699
      %716 = vst [vmem:[#allocation2 + $0x30] sm:$0xc0] %v700
      %717 = vst [vmem:[#allocation2 + $0x38] sm:$0xc0] %v701
      %v718 = vpack.c.bf16 %v253, %v253
      %v719 = vpack.c.bf16 %v261, %v261
      %v720 = vpack.c.bf16 %v254, %v254
      %v721 = vpack.c.bf16 %v262, %v262
      %v722 = vpack.c.bf16 %v255, %v255
      %v723 = vpack.c.bf16 %v263, %v263
      %v724 = vpack.c.bf16 %v256, %v256
      %v725 = vpack.c.bf16 %v264, %v264
      %726 = vst [vmem:[#allocation2 + $0x40] sm:$0x3] %v718
      %727 = vst [vmem:[#allocation2 + $0x48] sm:$0x3] %v719
      %728 = vst [vmem:[#allocation2 + $0x50] sm:$0x3] %v720
      %729 = vst [vmem:[#allocation2 + $0x58] sm:$0x3] %v721
      %730 = vst [vmem:[#allocation2 + $0x60] sm:$0x3] %v722
      %731 = vst [vmem:[#allocation2 + $0x68] sm:$0x3] %v723
      %732 = vst [vmem:[#allocation2 + $0x70] sm:$0x3] %v724
      %733 = vst [vmem:[#allocation2 + $0x78] sm:$0x3] %v725
      %734 = vrot.lane.b32.xlu0 %v253, 127
      %v735 = vpop.permute.xlu0 %734
      %736 = vrot.lane.b32.xlu0 %v261, 127
      %v737 = vpop.permute.xlu0 %736
      %738 = vrot.lane.b32.xlu0 %v254, 127
      %v739 = vpop.permute.xlu0 %738
      %740 = vrot.lane.b32.xlu0 %v262, 127
      %v741 = vpop.permute.xlu0 %740
      %742 = vrot.lane.b32.xlu0 %v255, 127
      %v743 = vpop.permute.xlu0 %742
      %744 = vrot.lane.b32.xlu0 %v263, 127
      %v745 = vpop.permute.xlu0 %744
      %746 = vrot.lane.b32.xlu0 %v256, 127
      %v747 = vpop.permute.xlu0 %746
      %748 = vrot.lane.b32.xlu0 %v264, 127
      %v749 = vpop.permute.xlu0 %748
      %vm750 = vcmp.lt.s32.totalorder %v286, 127
      %v751 = vsel %vm750, %v747, %v749
      %v752 = vsel %vm750, %v745, %v747
      %v753 = vsel %vm750, %v743, %v745
      %v754 = vsel %vm750, %v741, %v743
      %v755 = vsel %vm750, %v739, %v741
      %v756 = vsel %vm750, %v737, %v739
      %v757 = vsel %vm750, %v735, %v737
      %v758 = vsel %vm750, %v749, %v735
      %s759 = scalar_lea.vmem %s1, 5
      %v760 = vld [vmem:[%s759] ss:$8 sm:$0xf]
      %v761 = vld [vmem:[%s759] ss:$8 sm:$0xf0]
      %v762 = vor.u32 %v760, %v761
      %v764 = vlaneseq
      %v765 = vshrl.u32 %v764, 7
      %v766 = vsub.s32 0, %v765
      %v767 = vrot.slane %v762, %v766
      %v768 = vlaneseq
      %v769 = vshrl.u32 %v768, 7
      %v770 = vsub.s32 1, %v769
      %v771 = vrot.slane %v762, %v770
      %v772 = vlaneseq
      %v773 = vshrl.u32 %v772, 7
      %v774 = vsub.s32 2, %v773
      %v775 = vrot.slane %v762, %v774
      %v776 = vlaneseq
      %v777 = vshrl.u32 %v776, 7
      %v778 = vsub.s32 3, %v777
      %v779 = vrot.slane %v762, %v778
      %v780 = vlaneseq
      %v781 = vshrl.u32 %v780, 7
      %v782 = vsub.s32 4, %v781
      %v783 = vrot.slane %v762, %v782
      %v784 = vlaneseq
      %v785 = vshrl.u32 %v784, 7
      %v786 = vsub.s32 5, %v785
      %v787 = vrot.slane %v762, %v786
      %v788 = vlaneseq
      %v789 = vshrl.u32 %v788, 7
      %v790 = vsub.s32 6, %v789
      %v791 = vrot.slane %v762, %v790
      %v792 = vlaneseq
      %v793 = vshrl.u32 %v792, 7
      %v794 = vsub.s32 7, %v793
      %v795 = vrot.slane %v762, %v794
      %v804 = vmul.f32 %v757, %v767
      %v805 = vmul.f32 %v756, %v771
      %v806 = vmul.f32 %v755, %v775
      %v807 = vmul.f32 %v754, %v779
      %v808 = vmul.f32 %v753, %v783
      %v809 = vmul.f32 %v752, %v787
      %v810 = vmul.f32 %v751, %v791
      %v811 = vmul.f32 %v758, %v795
      %v812 = vpack.c.bf16 %v804, %v804
      %v813 = vpack.c.bf16 %v805, %v805
      %v814 = vpack.c.bf16 %v806, %v806
      %v815 = vpack.c.bf16 %v807, %v807
      %v816 = vpack.c.bf16 %v808, %v808
      %v817 = vpack.c.bf16 %v809, %v809
      %v818 = vpack.c.bf16 %v810, %v810
      %v819 = vpack.c.bf16 %v811, %v811
      %v828 = vrot.slane %v812, 6
      %v829 = vrot.slane %v813, 6
      %v830 = vrot.slane %v814, 6
      %v831 = vrot.slane %v815, 6
      %v832 = vrot.slane %v816, 6
      %v833 = vrot.slane %v817, 6
      %v834 = vrot.slane %v818, 6
      %v835 = vrot.slane %v819, 6
      %844 = vst [vmem:[#allocation2 + $0x40] sm:$0xc] %v828
      %845 = vst [vmem:[#allocation2 + $0x48] sm:$0xc] %v829
      %846 = vst [vmem:[#allocation2 + $0x50] sm:$0xc] %v830
      %847 = vst [vmem:[#allocation2 + $0x58] sm:$0xc] %v831
      %848 = vst [vmem:[#allocation2 + $0x60] sm:$0xc] %v832
      %849 = vst [vmem:[#allocation2 + $0x68] sm:$0xc] %v833
      %850 = vst [vmem:[#allocation2 + $0x70] sm:$0xc] %v834
      %851 = vst [vmem:[#allocation2 + $0x78] sm:$0xc] %v835
      %852 = vrot.lane.b32.xlu0 %v253, 97
      %v853 = vpop.permute.xlu0 %852
      %854 = vrot.lane.b32.xlu0 %v261, 97
      %v855 = vpop.permute.xlu0 %854
      %856 = vrot.lane.b32.xlu0 %v254, 97
      %v857 = vpop.permute.xlu0 %856
      %858 = vrot.lane.b32.xlu0 %v262, 97
      %v859 = vpop.permute.xlu0 %858
      %860 = vrot.lane.b32.xlu0 %v255, 97
      %v861 = vpop.permute.xlu0 %860
      %862 = vrot.lane.b32.xlu0 %v263, 97
      %v863 = vpop.permute.xlu0 %862
      %864 = vrot.lane.b32.xlu0 %v256, 97
      %v865 = vpop.permute.xlu0 %864
      %866 = vrot.lane.b32.xlu0 %v264, 97
      %v867 = vpop.permute.xlu0 %866
      %vm868 = vcmp.lt.s32.totalorder %v286, 97
      %v869 = vsel %vm868, %v865, %v867
      %v870 = vsel %vm868, %v863, %v865
      %v871 = vsel %vm868, %v861, %v863
      %v872 = vsel %vm868, %v859, %v861
      %v873 = vsel %vm868, %v857, %v859
      %v874 = vsel %vm868, %v855, %v857
      %v875 = vsel %vm868, %v853, %v855
      %v876 = vsel %vm868, %v867, %v853
      %s877 = scalar_lea.vmem %s1, 6
      %v878 = vld [vmem:[%s877] ss:$8 sm:$0xf]
      %v879 = vld [vmem:[%s877] ss:$8 sm:$0xf0]
      %v880 = vor.u32 %v878, %v879
      %v882 = vlaneseq
      %v883 = vshrl.u32 %v882, 7
      %v884 = vsub.s32 0, %v883
      %v885 = vrot.slane %v880, %v884
      %v886 = vlaneseq
      %v887 = vshrl.u32 %v886, 7
      %v888 = vsub.s32 1, %v887
      %v889 = vrot.slane %v880, %v888
      %v890 = vlaneseq
      %v891 = vshrl.u32 %v890, 7
      %v892 = vsub.s32 2, %v891
      %v893 = vrot.slane %v880, %v892
      %v894 = vlaneseq
      %v895 = vshrl.u32 %v894, 7
      %v896 = vsub.s32 3, %v895
      %v897 = vrot.slane %v880, %v896
      %v898 = vlaneseq
      %v899 = vshrl.u32 %v898, 7
      %v900 = vsub.s32 4, %v899
      %v901 = vrot.slane %v880, %v900
      %v902 = vlaneseq
      %v903 = vshrl.u32 %v902, 7
      %v904 = vsub.s32 5, %v903
      %v905 = vrot.slane %v880, %v904
      %v906 = vlaneseq
      %v907 = vshrl.u32 %v906, 7
      %v908 = vsub.s32 6, %v907
      %v909 = vrot.slane %v880, %v908
      %v910 = vlaneseq
      %v911 = vshrl.u32 %v910, 7
      %v912 = vsub.s32 7, %v911
      %v913 = vrot.slane %v880, %v912
      %v922 = vmul.f32 %v875, %v885
      %v923 = vmul.f32 %v874, %v889
      %v924 = vmul.f32 %v873, %v893
      %v925 = vmul.f32 %v872, %v897
      %v926 = vmul.f32 %v871, %v901
      %v927 = vmul.f32 %v870, %v905
      %v928 = vmul.f32 %v869, %v909
      %v929 = vmul.f32 %v876, %v913
      %v930 = vpack.c.bf16 %v922, %v922
      %v931 = vpack.c.bf16 %v923, %v923
      %v932 = vpack.c.bf16 %v924, %v924
      %v933 = vpack.c.bf16 %v925, %v925
      %v934 = vpack.c.bf16 %v926, %v926
      %v935 = vpack.c.bf16 %v927, %v927
      %v936 = vpack.c.bf16 %v928, %v928
      %v937 = vpack.c.bf16 %v929, %v929
      %v946 = vrot.slane %v930, 4
      %v947 = vrot.slane %v931, 4
      %v948 = vrot.slane %v932, 4
      %v949 = vrot.slane %v933, 4
      %v950 = vrot.slane %v934, 4
      %v951 = vrot.slane %v935, 4
      %v952 = vrot.slane %v936, 4
      %v953 = vrot.slane %v937, 4
      %962 = vst [vmem:[#allocation2 + $0x40] sm:$0x30] %v946
      %963 = vst [vmem:[#allocation2 + $0x48] sm:$0x30] %v947
      %964 = vst [vmem:[#allocation2 + $0x50] sm:$0x30] %v948
      %965 = vst [vmem:[#allocation2 + $0x58] sm:$0x30] %v949
      %966 = vst [vmem:[#allocation2 + $0x60] sm:$0x30] %v950
      %967 = vst [vmem:[#allocation2 + $0x68] sm:$0x30] %v951
      %968 = vst [vmem:[#allocation2 + $0x70] sm:$0x30] %v952
      %969 = vst [vmem:[#allocation2 + $0x78] sm:$0x30] %v953
      %970 = vrot.lane.b32.xlu0 %v253, 96
      %v971 = vpop.permute.xlu0 %970
      %972 = vrot.lane.b32.xlu0 %v261, 96
      %v973 = vpop.permute.xlu0 %972
      %974 = vrot.lane.b32.xlu0 %v254, 96
      %v975 = vpop.permute.xlu0 %974
      %976 = vrot.lane.b32.xlu0 %v262, 96
      %v977 = vpop.permute.xlu0 %976
      %978 = vrot.lane.b32.xlu0 %v255, 96
      %v979 = vpop.permute.xlu0 %978
      %980 = vrot.lane.b32.xlu0 %v263, 96
      %v981 = vpop.permute.xlu0 %980
      %982 = vrot.lane.b32.xlu0 %v256, 96
      %v983 = vpop.permute.xlu0 %982
      %984 = vrot.lane.b32.xlu0 %v264, 96
      %v985 = vpop.permute.xlu0 %984
      %vm986 = vcmp.lt.s32.totalorder %v286, 96
      %v987 = vsel %vm986, %v983, %v985
      %v988 = vsel %vm986, %v981, %v983
      %v989 = vsel %vm986, %v979, %v981
      %v990 = vsel %vm986, %v977, %v979
      %v991 = vsel %vm986, %v975, %v977
      %v992 = vsel %vm986, %v973, %v975
      %v993 = vsel %vm986, %v971, %v973
      %v994 = vsel %vm986, %v985, %v971
      %s995 = scalar_lea.vmem %s1, 7
      %v996 = vld [vmem:[%s995] ss:$8 sm:$0xf]
      %v997 = vld [vmem:[%s995] ss:$8 sm:$0xf0]
      %v998 = vor.u32 %v996, %v997
      %v1000 = vlaneseq
      %v1001 = vshrl.u32 %v1000, 7
      %v1002 = vsub.s32 0, %v1001
      %v1003 = vrot.slane %v998, %v1002
      %v1004 = vlaneseq
      %v1005 = vshrl.u32 %v1004, 7
      %v1006 = vsub.s32 1, %v1005
      %v1007 = vrot.slane %v998, %v1006
      %v1008 = vlaneseq
      %v1009 = vshrl.u32 %v1008, 7
      %v1010 = vsub.s32 2, %v1009
      %v1011 = vrot.slane %v998, %v1010
      %v1012 = vlaneseq
      %v1013 = vshrl.u32 %v1012, 7
      %v1014 = vsub.s32 3, %v1013
      %v1015 = vrot.slane %v998, %v1014
      %v1016 = vlaneseq
      %v1017 = vshrl.u32 %v1016, 7
      %v1018 = vsub.s32 4, %v1017
      %v1019 = vrot.slane %v998, %v1018
      %v1020 = vlaneseq
      %v1021 = vshrl.u32 %v1020, 7
      %v1022 = vsub.s32 5, %v1021
      %v1023 = vrot.slane %v998, %v1022
      %v1024 = vlaneseq
      %v1025 = vshrl.u32 %v1024, 7
      %v1026 = vsub.s32 6, %v1025
      %v1027 = vrot.slane %v998, %v1026
      %v1028 = vlaneseq
      %v1029 = vshrl.u32 %v1028, 7
      %v1030 = vsub.s32 7, %v1029
      %v1031 = vrot.slane %v998, %v1030
      %v1040 = vmul.f32 %v993, %v1003
      %v1041 = vmul.f32 %v992, %v1007
      %v1042 = vmul.f32 %v991, %v1011
      %v1043 = vmul.f32 %v990, %v1015
      %v1044 = vmul.f32 %v989, %v1019
      %v1045 = vmul.f32 %v988, %v1023
      %v1046 = vmul.f32 %v987, %v1027
      %v1047 = vmul.f32 %v994, %v1031
      %v1048 = vpack.c.bf16 %v1040, %v1040
      %v1049 = vpack.c.bf16 %v1041, %v1041
      %v1050 = vpack.c.bf16 %v1042, %v1042
      %v1051 = vpack.c.bf16 %v1043, %v1043
      %v1052 = vpack.c.bf16 %v1044, %v1044
      %v1053 = vpack.c.bf16 %v1045, %v1045
      %v1054 = vpack.c.bf16 %v1046, %v1046
      %v1055 = vpack.c.bf16 %v1047, %v1047
      %v1064 = vrot.slane %v1048, 2
      %v1065 = vrot.slane %v1049, 2
      %v1066 = vrot.slane %v1050, 2
      %v1067 = vrot.slane %v1051, 2
      %v1068 = vrot.slane %v1052, 2
      %v1069 = vrot.slane %v1053, 2
      %v1070 = vrot.slane %v1054, 2
      %v1071 = vrot.slane %v1055, 2
      %1080 = vst [vmem:[#allocation2 + $0x40] sm:$0xc0] %v1064
      %1081 = vst [vmem:[#allocation2 + $0x48] sm:$0xc0] %v1065
      %1082 = vst [vmem:[#allocation2 + $0x50] sm:$0xc0] %v1066
      %1083 = vst [vmem:[#allocation2 + $0x58] sm:$0xc0] %v1067
      %1084 = vst [vmem:[#allocation2 + $0x60] sm:$0xc0] %v1068
      %1085 = vst [vmem:[#allocation2 + $0x68] sm:$0xc0] %v1069
      %1086 = vst [vmem:[#allocation2 + $0x70] sm:$0xc0] %v1070
      %1087 = vst [vmem:[#allocation2 + $0x78] sm:$0xc0] %v1071
      %1088 = vrot.lane.b32.xlu0 %v253, 95
      %v1089 = vpop.permute.xlu0 %1088
      %1090 = vrot.lane.b32.xlu0 %v261, 95
      %v1091 = vpop.permute.xlu0 %1090
      %1092 = vrot.lane.b32.xlu0 %v254, 95
      %v1093 = vpop.permute.xlu0 %1092
      %1094 = vrot.lane.b32.xlu0 %v262, 95
      %v1095 = vpop.permute.xlu0 %1094
      %1096 = vrot.lane.b32.xlu0 %v255, 95
      %v1097 = vpop.permute.xlu0 %1096
      %1098 = vrot.lane.b32.xlu0 %v263, 95
      %v1099 = vpop.permute.xlu0 %1098
      %1100 = vrot.lane.b32.xlu0 %v256, 95
      %v1101 = vpop.permute.xlu0 %1100
      %1102 = vrot.lane.b32.xlu0 %v264, 95
      %v1103 = vpop.permute.xlu0 %1102
      %vm1104 = vcmp.lt.s32.totalorder %v286, 95
      %v1105 = vsel %vm1104, %v1101, %v1103
      %v1106 = vsel %vm1104, %v1099, %v1101
      %v1107 = vsel %vm1104, %v1097, %v1099
      %v1108 = vsel %vm1104, %v1095, %v1097
      %v1109 = vsel %vm1104, %v1093, %v1095
      %v1110 = vsel %vm1104, %v1091, %v1093
      %v1111 = vsel %vm1104, %v1089, %v1091
      %v1112 = vsel %vm1104, %v1103, %v1089
      %s1113 = scalar_lea.vmem %s1, 64
      %v1114 = vld [vmem:[%s1113] ss:$8 sm:$0xf]
      %v1115 = vld [vmem:[%s1113] ss:$8 sm:$0xf0]
      %v1116 = vor.u32 %v1114, %v1115
      %v1118 = vlaneseq
      %v1119 = vshrl.u32 %v1118, 7
      %v1120 = vsub.s32 0, %v1119
      %v1121 = vrot.slane %v1116, %v1120
      %v1122 = vlaneseq
      %v1123 = vshrl.u32 %v1122, 7
      %v1124 = vsub.s32 1, %v1123
      %v1125 = vrot.slane %v1116, %v1124
      %v1126 = vlaneseq
      %v1127 = vshrl.u32 %v1126, 7
      %v1128 = vsub.s32 2, %v1127
      %v1129 = vrot.slane %v1116, %v1128
      %v1130 = vlaneseq
      %v1131 = vshrl.u32 %v1130, 7
      %v1132 = vsub.s32 3, %v1131
      %v1133 = vrot.slane %v1116, %v1132
      %v1134 = vlaneseq
      %v1135 = vshrl.u32 %v1134, 7
      %v1136 = vsub.s32 4, %v1135
      %v1137 = vrot.slane %v1116, %v1136
      %v1138 = vlaneseq
      %v1139 = vshrl.u32 %v1138, 7
      %v1140 = vsub.s32 5, %v1139
      %v1141 = vrot.slane %v1116, %v1140
      %v1142 = vlaneseq
      %v1143 = vshrl.u32 %v1142, 7
      %v1144 = vsub.s32 6, %v1143
      %v1145 = vrot.slane %v1116, %v1144
      %v1146 = vlaneseq
      %v1147 = vshrl.u32 %v1146, 7
      %v1148 = vsub.s32 7, %v1147
      %v1149 = vrot.slane %v1116, %v1148
      %v1158 = vmul.f32 %v1111, %v1121
      %v1159 = vmul.f32 %v1110, %v1125
      %v1160 = vmul.f32 %v1109, %v1129
      %v1161 = vmul.f32 %v1108, %v1133
      %v1162 = vmul.f32 %v1107, %v1137
      %v1163 = vmul.f32 %v1106, %v1141
      %v1164 = vmul.f32 %v1105, %v1145
      %v1165 = vmul.f32 %v1112, %v1149
      %v1166 = vpack.c.bf16 %v1158, %v1158
      %v1167 = vpack.c.bf16 %v1159, %v1159
      %v1168 = vpack.c.bf16 %v1160, %v1160
      %v1169 = vpack.c.bf16 %v1161, %v1161
      %v1170 = vpack.c.bf16 %v1162, %v1162
      %v1171 = vpack.c.bf16 %v1163, %v1163
      %v1172 = vpack.c.bf16 %v1164, %v1164
      %v1173 = vpack.c.bf16 %v1165, %v1165
      %1174 = vst [vmem:[#allocation2 + $0x80] sm:$0x3] %v1166
      %1175 = vst [vmem:[#allocation2 + $0x88] sm:$0x3] %v1167
      %1176 = vst [vmem:[#allocation2 + $0x90] sm:$0x3] %v1168
      %1177 = vst [vmem:[#allocation2 + $0x98] sm:$0x3] %v1169
      %1178 = vst [vmem:[#allocation2 + $0xa0] sm:$0x3] %v1170
      %1179 = vst [vmem:[#allocation2 + $0xa8] sm:$0x3] %v1171
      %1180 = vst [vmem:[#allocation2 + $0xb0] sm:$0x3] %v1172
      %1181 = vst [vmem:[#allocation2 + $0xb8] sm:$0x3] %v1173
      %v1182 = vld [vmem:[%s3] sm:$0xf]
      %v1183 = vld [vmem:[%s3 + $0x4] sm:$0xf]
      %v1184 = vld [vmem:[%s3 + $0x8] sm:$0xf]
      %v1185 = vld [vmem:[%s3 + $0xc] sm:$0xf]
      %v1186 = vld [vmem:[#allocation2] sm:$0xff]
      %v1187 = vld [vmem:[#allocation2 + $0x8] sm:$0xff]
      %v1188 = vld [vmem:[#allocation2 + $0x10] sm:$0xff]
      %v1189 = vld [vmem:[#allocation2 + $0x18] sm:$0xff]
      %v1190 = vld [vmem:[#allocation2 + $0x20] sm:$0xff]
      %v1191 = vld [vmem:[#allocation2 + $0x28] sm:$0xff]
      %v1192 = vld [vmem:[#allocation2 + $0x30] sm:$0xff]
      %v1193 = vld [vmem:[#allocation2 + $0x38] sm:$0xff]
      %v1194 = vld [vmem:[#allocation2 + $0x40] sm:$0xff]
      %v1195 = vld [vmem:[#allocation2 + $0x48] sm:$0xff]
      %v1196 = vld [vmem:[#allocation2 + $0x50] sm:$0xff]
      %v1197 = vld [vmem:[#allocation2 + $0x58] sm:$0xff]
      %v1198 = vld [vmem:[#allocation2 + $0x60] sm:$0xff]
      %v1199 = vld [vmem:[#allocation2 + $0x68] sm:$0xff]
      %v1200 = vld [vmem:[#allocation2 + $0x70] sm:$0xff]
      %v1201 = vld [vmem:[#allocation2 + $0x78] sm:$0xff]
      %v1202 = vld [vmem:[#allocation2 + $0x80] sm:$0x3]
      %v1203 = vld [vmem:[#allocation2 + $0x88] sm:$0x3]
      %v1204 = vld [vmem:[#allocation2 + $0x90] sm:$0x3]
      %v1205 = vld [vmem:[#allocation2 + $0x98] sm:$0x3]
      %v1206 = vld [vmem:[#allocation2 + $0xa0] sm:$0x3]
      %v1207 = vld [vmem:[#allocation2 + $0xa8] sm:$0x3]
      %v1208 = vld [vmem:[#allocation2 + $0xb0] sm:$0x3]
      %v1209 = vld [vmem:[#allocation2 + $0xb8] sm:$0x3]
      %v1210 = vld [vmem:[%s2] sm:$0xff]
      %v1211 = vld [vmem:[%s2 + $0x8] sm:$0xff]
      %v1212 = vld [vmem:[%s2 + $0x10] sm:$0xff]
      %v1213 = vld [vmem:[%s2 + $0x18] sm:$0xff]
      %1215 = vset.pattern.permute.xlu0 0
      %1216 = vperm.xlu0 %1215, %v1210
      %v1217 = vpop.permute.xlu0 %1216
      %1220 = vset.pattern.permute.xlu0 0
      %1221 = vperm.xlu0 %1220, %v1211
      %v1222 = vpop.permute.xlu0 %1221
      %1225 = vset.pattern.permute.xlu0 0
      %1226 = vperm.xlu0 %1225, %v1212
      %v1227 = vpop.permute.xlu0 %1226
      %1230 = vset.pattern.permute.xlu0 0
      %1231 = vperm.xlu0 %1230, %v1213
      %v1232 = vpop.permute.xlu0 %1231
      %v1238 = vunpack.c.l.b16 %v1182
      %v1239 = vunpack.c.l.b16 %v1183
      %v1240 = vunpack.c.l.b16 %v1184
      %v1241 = vunpack.c.l.b16 %v1185
      %v1242 = vpack.c.b16 %v1239, %v1238
      %v1243 = vpack.c.b16 %v1241, %v1240
      %vm1244 = vcmask 293888
      %v1246 = vsel %vm1244, %v1242, 0
      %v1249 = vsel %vm1244, %v1243, 0
      %vm1251 = vcmask 1041408
      %v1253 = vsel %vm1251, %v1202, 0
      %v1256 = vsel %vm1251, %v1203, 0
      %v1259 = vsel %vm1251, %v1204, 0
      %v1262 = vsel %vm1251, %v1205, 0
      %v1265 = vsel %vm1251, %v1206, 0
      %v1268 = vsel %vm1251, %v1207, 0
      %v1271 = vsel %vm1251, %v1208, 0
      %v1274 = vsel %vm1251, %v1209, 0
      %1276 = vmatprep.subr.bf16.mxu0 %v1187
      %1277 = vmatpush1.bf16.msra.mxu0 %v1186
      %1278 = vmatprep.subr.bf16.mxu0 %v1195
      %1279 = vmatpush1.bf16.msra.mxu0 %v1194
      %1280 = vmatprep.subr.bf16.mxu0 %v1256
      %1281 = vmatpush1.bf16.msra.mxu0 %v1253
      %1282 = vmatprep.subr.bf16.mxu0 0
      %1283 = vmatpush1.bf16.msra.mxu0 0
      %1284 = vmatprep.subr.bf16.mxu0 0
      %1285 = vmatpush1.bf16.msra.mxu0 0
      %1286 = vmatprep.subr.bf16.mxu0 0
      %1287 = vmatpush1.bf16.msra.mxu0 0
      %1288 = vmatprep.subr.bf16.mxu0 0
      %1289 = vmatpush1.bf16.msra.mxu0 0
      %1290 = vmatprep.subr.bf16.mxu0 0
      %1291 = vmatpush1.bf16.msra.mxu0 0
      %1292 = vmatprep.subr.bf16.mxu0 0
      %1293 = vmatpush1.bf16.msra.mxu0 0
      %1294 = vmatprep.subr.bf16.mxu0 0
      %1295 = vmatpush1.bf16.msra.mxu0 0
      %1296 = vmatprep.subr.bf16.mxu0 0
      %1297 = vmatpush1.bf16.msra.mxu0 0
      %1298 = vmatprep.subr.bf16.mxu0 0
      %1299 = vmatpush1.bf16.msra.mxu0 0
      %1300 = vmatprep.subr.bf16.mxu0 0
      %1301 = vmatpush1.bf16.msra.mxu0 0
      %1302 = vmatprep.subr.bf16.mxu0 0
      %1303 = vmatpush1.bf16.msra.mxu0 0
      %1304 = vmatprep.subr.bf16.mxu0 0
      %1305 = vmatpush1.bf16.msra.mxu0 0
      %1306 = vmatprep.subr.bf16.mxu0 0
      %1307 = vmatpush1.bf16.msra.mxu0 0
      %1308 = vmatprep.mubr.bf16.mxu0 0
      %1309 = vmatmul.mubr.bf16.gmra.mrb[0].mxu0 %v1246
      %v1310 = vpop.f32.mrb[0].mxu0
      %v1311 = vadd.f32 %v1217, %v1310
      %v1312 = vpop.f32.mrb[0].mxu0
      %v1313 = vadd.f32 %v1217, %v1312
      %v1314 = vpop.f32.mrb[0].mxu0
      %v1315 = vadd.f32 %v1222, %v1314
      %v1316 = vpop.f32.mrb[0].mxu0
      %v1317 = vadd.f32 %v1222, %v1316
      %1318 = vmatprep.mubr.bf16.mxu0 0
      %1319 = vmatmul.mubr.bf16.gmra.mrb[0].mxu0 %v1249
      %v1320 = vpop.f32.mrb[0].mxu0
      %v1321 = vadd.f32 %v1227, %v1320
      %v1322 = vpop.f32.mrb[0].mxu0
      %v1323 = vadd.f32 %v1227, %v1322
      %v1324 = vpop.f32.mrb[0].mxu0
      %v1325 = vadd.f32 %v1232, %v1324
      %v1326 = vpop.f32.mrb[0].mxu0
      %v1327 = vadd.f32 %v1232, %v1326
      %1328 = vdwg.mxu0
      %1329 = vmatprep.subr.bf16.mxu0 %v1189
      %1330 = vmatpush1.bf16.msra.mxu0 %v1188
      %1331 = vmatprep.subr.bf16.mxu0 %v1197
      %1332 = vmatpush1.bf16.msra.mxu0 %v1196
      %1333 = vmatprep.subr.bf16.mxu0 %v1262
      %1334 = vmatpush1.bf16.msra.mxu0 %v1259
      %1335 = vmatprep.subr.bf16.mxu0 0
      %1336 = vmatpush1.bf16.msra.mxu0 0
      %1337 = vmatprep.subr.bf16.mxu0 0
      %1338 = vmatpush1.bf16.msra.mxu0 0
      %1339 = vmatprep.subr.bf16.mxu0 0
      %1340 = vmatpush1.bf16.msra.mxu0 0
      %1341 = vmatprep.subr.bf16.mxu0 0
      %1342 = vmatpush1.bf16.msra.mxu0 0
      %1343 = vmatprep.subr.bf16.mxu0 0
      %1344 = vmatpush1.bf16.msra.mxu0 0
      %1345 = vmatprep.subr.bf16.mxu0 0
      %1346 = vmatpush1.bf16.msra.mxu0 0
      %1347 = vmatprep.subr.bf16.mxu0 0
      %1348 = vmatpush1.bf16.msra.mxu0 0
      %1349 = vmatprep.subr.bf16.mxu0 0
      %1350 = vmatpush1.bf16.msra.mxu0 0
      %1351 = vmatprep.subr.bf16.mxu0 0
      %1352 = vmatpush1.bf16.msra.mxu0 0
      %1353 = vmatprep.subr.bf16.mxu0 0
      %1354 = vmatpush1.bf16.msra.mxu0 0
      %1355 = vmatprep.subr.bf16.mxu0 0
      %1356 = vmatpush1.bf16.msra.mxu0 0
      %1357 = vmatprep.subr.bf16.mxu0 0
      %1358 = vmatpush1.bf16.msra.mxu0 0
      %1359 = vmatprep.subr.bf16.mxu0 0
      %1360 = vmatpush1.bf16.msra.mxu0 0
      %1361 = vmatprep.mubr.bf16.mxu0 0
      %1362 = vmatmul.mubr.bf16.gmra.mrb[0].mxu0 %v1246
      %v1363 = vpop.f32.mrb[0].mxu0
      %v1364 = vadd.f32 %v1217, %v1363
      %v1365 = vpop.f32.mrb[0].mxu0
      %v1366 = vadd.f32 %v1217, %v1365
      %v1367 = vpop.f32.mrb[0].mxu0
      %v1368 = vadd.f32 %v1222, %v1367
      %v1369 = vpop.f32.mrb[0].mxu0
      %v1370 = vadd.f32 %v1222, %v1369
      %1371 = vmatprep.mubr.bf16.mxu0 0
      %1372 = vmatmul.mubr.bf16.gmra.mrb[0].mxu0 %v1249
      %v1373 = vpop.f32.mrb[0].mxu0
      %v1374 = vadd.f32 %v1227, %v1373
      %v1375 = vpop.f32.mrb[0].mxu0
      %v1376 = vadd.f32 %v1227, %v1375
      %v1377 = vpop.f32.mrb[0].mxu0
      %v1378 = vadd.f32 %v1232, %v1377
      %v1379 = vpop.f32.mrb[0].mxu0
      %v1380 = vadd.f32 %v1232, %v1379
      %1381 = vdwg.mxu0
      %1382 = vmatprep.subr.bf16.mxu0 %v1191
      %1383 = vmatpush1.bf16.msra.mxu0 %v1190
      %1384 = vmatprep.subr.bf16.mxu0 %v1199
      %1385 = vmatpush1.bf16.msra.mxu0 %v1198
      %1386 = vmatprep.subr.bf16.mxu0 %v1268
      %1387 = vmatpush1.bf16.msra.mxu0 %v1265
      %1388 = vmatprep.subr.bf16.mxu0 0
      %1389 = vmatpush1.bf16.msra.mxu0 0
      %1390 = vmatprep.subr.bf16.mxu0 0
      %1391 = vmatpush1.bf16.msra.mxu0 0
      %1392 = vmatprep.subr.bf16.mxu0 0
      %1393 = vmatpush1.bf16.msra.mxu0 0
      %1394 = vmatprep.subr.bf16.mxu0 0
      %1395 = vmatpush1.bf16.msra.mxu0 0
      %1396 = vmatprep.subr.bf16.mxu0 0
      %1397 = vmatpush1.bf16.msra.mxu0 0
      %1398 = vmatprep.subr.bf16.mxu0 0
      %1399 = vmatpush1.bf16.msra.mxu0 0
      %1400 = vmatprep.subr.bf16.mxu0 0
      %1401 = vmatpush1.bf16.msra.mxu0 0
      %1402 = vmatprep.subr.bf16.mxu0 0
      %1403 = vmatpush1.bf16.msra.mxu0 0
      %1404 = vmatprep.subr.bf16.mxu0 0
      %1405 = vmatpush1.bf16.msra.mxu0 0
      %1406 = vmatprep.subr.bf16.mxu0 0
      %1407 = vmatpush1.bf16.msra.mxu0 0
      %1408 = vmatprep.subr.bf16.mxu0 0
      %1409 = vmatpush1.bf16.msra.mxu0 0
      %1410 = vmatprep.subr.bf16.mxu0 0
      %1411 = vmatpush1.bf16.msra.mxu0 0
      %1412 = vmatprep.subr.bf16.mxu0 0
      %1413 = vmatpush1.bf16.msra.mxu0 0
      %1414 = vmatprep.mubr.bf16.mxu0 0
      %1415 = vmatmul.mubr.bf16.gmra.mrb[0].mxu0 %v1246
      %v1416 = vpop.f32.mrb[0].mxu0
      %v1417 = vadd.f32 %v1217, %v1416
      %v1418 = vpop.f32.mrb[0].mxu0
      %v1419 = vadd.f32 %v1217, %v1418
      %v1420 = vpop.f32.mrb[0].mxu0
      %v1421 = vadd.f32 %v1222, %v1420
      %v1422 = vpop.f32.mrb[0].mxu0
      %v1423 = vadd.f32 %v1222, %v1422
      %1424 = vmatprep.mubr.bf16.mxu0 0
      %1425 = vmatmul.mubr.bf16.gmra.mrb[0].mxu0 %v1249
      %v1426 = vpop.f32.mrb[0].mxu0
      %v1427 = vadd.f32 %v1227, %v1426
      %v1428 = vpop.f32.mrb[0].mxu0
      %v1429 = vadd.f32 %v1227, %v1428
      %v1430 = vpop.f32.mrb[0].mxu0
      %v1431 = vadd.f32 %v1232, %v1430
      %v1432 = vpop.f32.mrb[0].mxu0
      %v1433 = vadd.f32 %v1232, %v1432
      %1434 = vdwg.mxu0
      %1435 = vmatprep.subr.bf16.mxu0 %v1193
      %1436 = vmatpush1.bf16.msra.mxu0 %v1192
      %1437 = vmatprep.subr.bf16.mxu0 %v1201
      %1438 = vmatpush1.bf16.msra.mxu0 %v1200
      %1439 = vmatprep.subr.bf16.mxu0 %v1274
      %1440 = vmatpush1.bf16.msra.mxu0 %v1271
      %1441 = vmatprep.subr.bf16.mxu0 0
      %1442 = vmatpush1.bf16.msra.mxu0 0
      %1443 = vmatprep.subr.bf16.mxu0 0
      %1444 = vmatpush1.bf16.msra.mxu0 0
      %1445 = vmatprep.subr.bf16.mxu0 0
      %1446 = vmatpush1.bf16.msra.mxu0 0
      %1447 = vmatprep.subr.bf16.mxu0 0
      %1448 = vmatpush1.bf16.msra.mxu0 0
      %1449 = vmatprep.subr.bf16.mxu0 0
      %1450 = vmatpush1.bf16.msra.mxu0 0
      %1451 = vmatprep.subr.bf16.mxu0 0
      %1452 = vmatpush1.bf16.msra.mxu0 0
      %1453 = vmatprep.subr.bf16.mxu0 0
      %1454 = vmatpush1.bf16.msra.mxu0 0
      %1455 = vmatprep.subr.bf16.mxu0 0
      %1456 = vmatpush1.bf16.msra.mxu0 0
      %1457 = vmatprep.subr.bf16.mxu0 0
      %1458 = vmatpush1.bf16.msra.mxu0 0
      %1459 = vmatprep.subr.bf16.mxu0 0
      %1460 = vmatpush1.bf16.msra.mxu0 0
      %1461 = vmatprep.subr.bf16.mxu0 0
      %1462 = vmatpush1.bf16.msra.mxu0 0
      %1463 = vmatprep.subr.bf16.mxu0 0
      %1464 = vmatpush1.bf16.msra.mxu0 0
      %1465 = vmatprep.subr.bf16.mxu0 0
      %1466 = vmatpush1.bf16.msra.mxu0 0
      %1467 = vmatprep.mubr.bf16.mxu0 0
      %1468 = vmatmul.mubr.bf16.gmra.mrb[0].mxu0 %v1246
      %v1469 = vpop.f32.mrb[0].mxu0
      %v1470 = vadd.f32 %v1217, %v1469
      %v1471 = vpop.f32.mrb[0].mxu0
      %v1472 = vadd.f32 %v1217, %v1471
      %v1473 = vpop.f32.mrb[0].mxu0
      %v1474 = vadd.f32 %v1222, %v1473
      %v1475 = vpop.f32.mrb[0].mxu0
      %v1476 = vadd.f32 %v1222, %v1475
      %1477 = vmatprep.mubr.bf16.mxu0 0
      %1478 = vmatmul.mubr.bf16.gmra.mrb[0].mxu0 %v1249
      %v1479 = vpop.f32.mrb[0].mxu0
      %v1480 = vadd.f32 %v1227, %v1479
      %v1481 = vpop.f32.mrb[0].mxu0
      %v1482 = vadd.f32 %v1227, %v1481
      %v1483 = vpop.f32.mrb[0].mxu0
      %v1484 = vadd.f32 %v1232, %v1483
      %v1485 = vpop.f32.mrb[0].mxu0
      %v1486 = vadd.f32 %v1232, %v1485
      %1487 = vdwg.mxu0
      %v1488 = vmax.f32 %v1311, 0.0
      %v1489 = vmax.f32 %v1313, 0.0
      %v1490 = vmax.f32 %v1364, 0.0
      %v1491 = vmax.f32 %v1366, 0.0
      %v1492 = vmax.f32 %v1417, 0.0
      %v1493 = vmax.f32 %v1419, 0.0
      %v1494 = vmax.f32 %v1470, 0.0
      %v1495 = vmax.f32 %v1472, 0.0
      %v1496 = vmax.f32 %v1315, 0.0
      %v1497 = vmax.f32 %v1317, 0.0
      %v1498 = vmax.f32 %v1368, 0.0
      %v1499 = vmax.f32 %v1370, 0.0
      %v1500 = vmax.f32 %v1421, 0.0
      %v1501 = vmax.f32 %v1423, 0.0
      %v1502 = vmax.f32 %v1474, 0.0
      %v1503 = vmax.f32 %v1476, 0.0
      %v1504 = vmax.f32 %v1321, 0.0
      %v1505 = vmax.f32 %v1323, 0.0
      %v1506 = vmax.f32 %v1374, 0.0
      %v1507 = vmax.f32 %v1376, 0.0
      %v1508 = vmax.f32 %v1427, 0.0
      %v1509 = vmax.f32 %v1429, 0.0
      %v1510 = vmax.f32 %v1480, 0.0
      %v1511 = vmax.f32 %v1482, 0.0
      %v1512 = vmax.f32 %v1325, 0.0
      %v1513 = vmax.f32 %v1327, 0.0
      %v1514 = vmax.f32 %v1378, 0.0
      %v1515 = vmax.f32 %v1380, 0.0
      %v1516 = vmax.f32 %v1431, 0.0
      %v1517 = vmax.f32 %v1433, 0.0
      %v1518 = vmax.f32 %v1484, 0.0
      %v1519 = vmax.f32 %v1486, 0.0
      %1520 = vrot.lane.b32.xlu0 %v1488, 33
      %v1521 = vpop.permute.xlu0 %1520
      %1522 = vrot.lane.b32.xlu0 %v1496, 33
      %v1523 = vpop.permute.xlu0 %1522
      %1524 = vrot.lane.b32.xlu0 %v1504, 33
      %v1525 = vpop.permute.xlu0 %1524
      %1526 = vrot.lane.b32.xlu0 %v1512, 33
      %v1527 = vpop.permute.xlu0 %1526
      %1528 = vrot.lane.b32.xlu0 %v1489, 33
      %v1529 = vpop.permute.xlu0 %1528
      %1530 = vrot.lane.b32.xlu0 %v1497, 33
      %v1531 = vpop.permute.xlu0 %1530
      %1532 = vrot.lane.b32.xlu0 %v1505, 33
      %v1533 = vpop.permute.xlu0 %1532
      %1534 = vrot.lane.b32.xlu0 %v1513, 33
      %v1535 = vpop.permute.xlu0 %1534
      %1536 = vrot.lane.b32.xlu0 %v1490, 33
      %v1537 = vpop.permute.xlu0 %1536
      %1538 = vrot.lane.b32.xlu0 %v1498, 33
      %v1539 = vpop.permute.xlu0 %1538
      %1540 = vrot.lane.b32.xlu0 %v1506, 33
      %v1541 = vpop.permute.xlu0 %1540
      %1542 = vrot.lane.b32.xlu0 %v1514, 33
      %v1543 = vpop.permute.xlu0 %1542
      %1544 = vrot.lane.b32.xlu0 %v1491, 33
      %v1545 = vpop.permute.xlu0 %1544
      %1546 = vrot.lane.b32.xlu0 %v1499, 33
      %v1547 = vpop.permute.xlu0 %1546
      %1548 = vrot.lane.b32.xlu0 %v1507, 33
      %v1549 = vpop.permute.xlu0 %1548
      %1550 = vrot.lane.b32.xlu0 %v1515, 33
      %v1551 = vpop.permute.xlu0 %1550
      %1552 = vrot.lane.b32.xlu0 %v1492, 33
      %v1553 = vpop.permute.xlu0 %1552
      %1554 = vrot.lane.b32.xlu0 %v1500, 33
      %v1555 = vpop.permute.xlu0 %1554
      %1556 = vrot.lane.b32.xlu0 %v1508, 33
      %v1557 = vpop.permute.xlu0 %1556
      %1558 = vrot.lane.b32.xlu0 %v1516, 33
      %v1559 = vpop.permute.xlu0 %1558
      %1560 = vrot.lane.b32.xlu0 %v1493, 33
      %v1561 = vpop.permute.xlu0 %1560
      %1562 = vrot.lane.b32.xlu0 %v1501, 33
      %v1563 = vpop.permute.xlu0 %1562
      %1564 = vrot.lane.b32.xlu0 %v1509, 33
      %v1565 = vpop.permute.xlu0 %1564
      %1566 = vrot.lane.b32.xlu0 %v1517, 33
      %v1567 = vpop.permute.xlu0 %1566
      %1568 = vrot.lane.b32.xlu0 %v1494, 33
      %v1569 = vpop.permute.xlu0 %1568
      %1570 = vrot.lane.b32.xlu0 %v1502, 33
      %v1571 = vpop.permute.xlu0 %1570
      %1572 = vrot.lane.b32.xlu0 %v1510, 33
      %v1573 = vpop.permute.xlu0 %1572
      %1574 = vrot.lane.b32.xlu0 %v1518, 33
      %v1575 = vpop.permute.xlu0 %1574
      %1576 = vrot.lane.b32.xlu0 %v1495, 33
      %v1577 = vpop.permute.xlu0 %1576
      %1578 = vrot.lane.b32.xlu0 %v1503, 33
      %v1579 = vpop.permute.xlu0 %1578
      %1580 = vrot.lane.b32.xlu0 %v1511, 33
      %v1581 = vpop.permute.xlu0 %1580
      %1582 = vrot.lane.b32.xlu0 %v1519, 33
      %v1583 = vpop.permute.xlu0 %1582
      %v1584 = vsel %vm287, %v1569, %v1577
      %v1585 = vsel %vm287, %v1571, %v1579
      %v1586 = vsel %vm287, %v1573, %v1581
      %v1587 = vsel %vm287, %v1575, %v1583
      %v1588 = vsel %vm287, %v1561, %v1569
      %v1589 = vsel %vm287, %v1563, %v1571
      %v1590 = vsel %vm287, %v1565, %v1573
      %v1591 = vsel %vm287, %v1567, %v1575
      %v1592 = vsel %vm287, %v1553, %v1561
      %v1593 = vsel %vm287, %v1555, %v1563
      %v1594 = vsel %vm287, %v1557, %v1565
      %v1595 = vsel %vm287, %v1559, %v1567
      %v1596 = vsel %vm287, %v1545, %v1553
      %v1597 = vsel %vm287, %v1547, %v1555
      %v1598 = vsel %vm287, %v1549, %v1557
      %v1599 = vsel %vm287, %v1551, %v1559
      %v1600 = vsel %vm287, %v1537, %v1545
      %v1601 = vsel %vm287, %v1539, %v1547
      %v1602 = vsel %vm287, %v1541, %v1549
      %v1603 = vsel %vm287, %v1543, %v1551
      %v1604 = vsel %vm287, %v1529, %v1537
      %v1605 = vsel %vm287, %v1531, %v1539
      %v1606 = vsel %vm287, %v1533, %v1541
      %v1607 = vsel %vm287, %v1535, %v1543
      %v1608 = vsel %vm287, %v1521, %v1529
      %v1609 = vsel %vm287, %v1523, %v1531
      %v1610 = vsel %vm287, %v1525, %v1533
      %v1611 = vsel %vm287, %v1527, %v1535
      %v1612 = vsel %vm287, %v1577, %v1521
      %v1613 = vsel %vm287, %v1579, %v1523
      %v1614 = vsel %vm287, %v1581, %v1525
      %v1615 = vsel %vm287, %v1583, %v1527
      %v1616 = vld [vmem:[%s1] ss:$8 sm:$0xf]
      %v1617 = vld [vmem:[%s1] ss:$8 sm:$0xf0]
      %v1618 = vor.u32 %v1616, %v1617
      %v1620 = vlaneseq
      %v1621 = vshrl.u32 %v1620, 7
      %v1622 = vsub.s32 0, %v1621
      %v1623 = vrot.slane %v1618, %v1622
      %v1624 = vlaneseq
      %v1625 = vshrl.u32 %v1624, 7
      %v1626 = vsub.s32 1, %v1625
      %v1627 = vrot.slane %v1618, %v1626
      %v1628 = vlaneseq
      %v1629 = vshrl.u32 %v1628, 7
      %v1630 = vsub.s32 2, %v1629
      %v1631 = vrot.slane %v1618, %v1630
      %v1632 = vlaneseq
      %v1633 = vshrl.u32 %v1632, 7
      %v1634 = vsub.s32 3, %v1633
      %v1635 = vrot.slane %v1618, %v1634
      %v1636 = vlaneseq
      %v1637 = vshrl.u32 %v1636, 7
      %v1638 = vsub.s32 4, %v1637
      %v1639 = vrot.slane %v1618, %v1638
      %v1640 = vlaneseq
      %v1641 = vshrl.u32 %v1640, 7
      %v1642 = vsub.s32 5, %v1641
      %v1643 = vrot.slane %v1618, %v1642
      %v1644 = vlaneseq
      %v1645 = vshrl.u32 %v1644, 7
      %v1646 = vsub.s32 6, %v1645
      %v1647 = vrot.slane %v1618, %v1646
      %v1648 = vlaneseq
      %v1649 = vshrl.u32 %v1648, 7
      %v1650 = vsub.s32 7, %v1649
      %v1651 = vrot.slane %v1618, %v1650
      %v1660 = vmul.f32 %v1612, %v1623
      %v1661 = vmul.f32 %v1608, %v1627
      %v1662 = vmul.f32 %v1604, %v1631
      %v1663 = vmul.f32 %v1600, %v1635
      %v1664 = vmul.f32 %v1596, %v1639
      %v1665 = vmul.f32 %v1592, %v1643
      %v1666 = vmul.f32 %v1588, %v1647
      %v1667 = vmul.f32 %v1584, %v1651
      %v1668 = vmul.f32 %v1613, %v1623
      %v1669 = vmul.f32 %v1609, %v1627
      %v1670 = vmul.f32 %v1605, %v1631
      %v1671 = vmul.f32 %v1601, %v1635
      %v1672 = vmul.f32 %v1597, %v1639
      %v1673 = vmul.f32 %v1593, %v1643
      %v1674 = vmul.f32 %v1589, %v1647
      %v1675 = vmul.f32 %v1585, %v1651
      %v1676 = vmul.f32 %v1614, %v1623
      %v1677 = vmul.f32 %v1610, %v1627
      %v1678 = vmul.f32 %v1606, %v1631
      %v1679 = vmul.f32 %v1602, %v1635
      %v1680 = vmul.f32 %v1598, %v1639
      %v1681 = vmul.f32 %v1594, %v1643
      %v1682 = vmul.f32 %v1590, %v1647
      %v1683 = vmul.f32 %v1586, %v1651
      %v1684 = vmul.f32 %v1615, %v1623
      %v1685 = vmul.f32 %v1611, %v1627
      %v1686 = vmul.f32 %v1607, %v1631
      %v1687 = vmul.f32 %v1603, %v1635
      %v1688 = vmul.f32 %v1599, %v1639
      %v1689 = vmul.f32 %v1595, %v1643
      %v1690 = vmul.f32 %v1591, %v1647
      %v1691 = vmul.f32 %v1587, %v1651
      %v1692 = vpack.c.bf16 %v1668, %v1660
      %v1693 = vpack.c.bf16 %v1669, %v1661
      %v1694 = vpack.c.bf16 %v1670, %v1662
      %v1695 = vpack.c.bf16 %v1671, %v1663
      %v1696 = vpack.c.bf16 %v1672, %v1664
      %v1697 = vpack.c.bf16 %v1673, %v1665
      %v1698 = vpack.c.bf16 %v1674, %v1666
      %v1699 = vpack.c.bf16 %v1675, %v1667
      %v1700 = vpack.c.bf16 %v1684, %v1676
      %v1701 = vpack.c.bf16 %v1685, %v1677
      %v1702 = vpack.c.bf16 %v1686, %v1678
      %v1703 = vpack.c.bf16 %v1687, %v1679
      %v1704 = vpack.c.bf16 %v1688, %v1680
      %v1705 = vpack.c.bf16 %v1689, %v1681
      %v1706 = vpack.c.bf16 %v1690, %v1682
      %v1707 = vpack.c.bf16 %v1691, %v1683
      %1708 = vst [vmem:[#allocation2] sm:$0xff] %v1692
      %1709 = vst [vmem:[#allocation2 + $0x8] sm:$0xff] %v1693
      %1710 = vst [vmem:[#allocation2 + $0x10] sm:$0xff] %v1694
      %1711 = vst [vmem:[#allocation2 + $0x18] sm:$0xff] %v1695
      %1712 = vst [vmem:[#allocation2 + $0x20] sm:$0xff] %v1696
      %1713 = vst [vmem:[#allocation2 + $0x28] sm:$0xff] %v1697
      %1714 = vst [vmem:[#allocation2 + $0x30] sm:$0xff] %v1698
      %1715 = vst [vmem:[#allocation2 + $0x38] sm:$0xff] %v1699
      %1716 = vst [vmem:[#allocation2 + $0x40] sm:$0xff] %v1700
      %1717 = vst [vmem:[#allocation2 + $0x48] sm:$0xff] %v1701
      %1718 = vst [vmem:[#allocation2 + $0x50] sm:$0xff] %v1702
      %1719 = vst [vmem:[#allocation2 + $0x58] sm:$0xff] %v1703
      %1720 = vst [vmem:[#allocation2 + $0x60] sm:$0xff] %v1704
      %1721 = vst [vmem:[#allocation2 + $0x68] sm:$0xff] %v1705
      %1722 = vst [vmem:[#allocation2 + $0x70] sm:$0xff] %v1706
      %1723 = vst [vmem:[#allocation2 + $0x78] sm:$0xff] %v1707
      %1724 = vrot.lane.b32.xlu0 %v1488, 32
      %v1725 = vpop.permute.xlu0 %1724
      %1726 = vrot.lane.b32.xlu0 %v1496, 32
      %v1727 = vpop.permute.xlu0 %1726
      %1728 = vrot.lane.b32.xlu0 %v1504, 32
      %v1729 = vpop.permute.xlu0 %1728
      %1730 = vrot.lane.b32.xlu0 %v1512, 32
      %v1731 = vpop.permute.xlu0 %1730
      %1732 = vrot.lane.b32.xlu0 %v1489, 32
      %v1733 = vpop.permute.xlu0 %1732
      %1734 = vrot.lane.b32.xlu0 %v1497, 32
      %v1735 = vpop.permute.xlu0 %1734
      %1736 = vrot.lane.b32.xlu0 %v1505, 32
      %v1737 = vpop.permute.xlu0 %1736
      %1738 = vrot.lane.b32.xlu0 %v1513, 32
      %v1739 = vpop.permute.xlu0 %1738
      %1740 = vrot.lane.b32.xlu0 %v1490, 32
      %v1741 = vpop.permute.xlu0 %1740
      %1742 = vrot.lane.b32.xlu0 %v1498, 32
      %v1743 = vpop.permute.xlu0 %1742
      %1744 = vrot.lane.b32.xlu0 %v1506, 32
      %v1745 = vpop.permute.xlu0 %1744
      %1746 = vrot.lane.b32.xlu0 %v1514, 32
      %v1747 = vpop.permute.xlu0 %1746
      %1748 = vrot.lane.b32.xlu0 %v1491, 32
      %v1749 = vpop.permute.xlu0 %1748
      %1750 = vrot.lane.b32.xlu0 %v1499, 32
      %v1751 = vpop.permute.xlu0 %1750
      %1752 = vrot.lane.b32.xlu0 %v1507, 32
      %v1753 = vpop.permute.xlu0 %1752
      %1754 = vrot.lane.b32.xlu0 %v1515, 32
      %v1755 = vpop.permute.xlu0 %1754
      %1756 = vrot.lane.b32.xlu0 %v1492, 32
      %v1757 = vpop.permute.xlu0 %1756
      %1758 = vrot.lane.b32.xlu0 %v1500, 32
      %v1759 = vpop.permute.xlu0 %1758
      %1760 = vrot.lane.b32.xlu0 %v1508, 32
      %v1761 = vpop.permute.xlu0 %1760
      %1762 = vrot.lane.b32.xlu0 %v1516, 32
      %v1763 = vpop.permute.xlu0 %1762
      %1764 = vrot.lane.b32.xlu0 %v1493, 32
      %v1765 = vpop.permute.xlu0 %1764
      %1766 = vrot.lane.b32.xlu0 %v1501, 32
      %v1767 = vpop.permute.xlu0 %1766
      %1768 = vrot.lane.b32.xlu0 %v1509, 32
      %v1769 = vpop.permute.xlu0 %1768
      %1770 = vrot.lane.b32.xlu0 %v1517, 32
      %v1771 = vpop.permute.xlu0 %1770
      %1772 = vrot.lane.b32.xlu0 %v1494, 32
      %v1773 = vpop.permute.xlu0 %1772
      %1774 = vrot.lane.b32.xlu0 %v1502, 32
      %v1775 = vpop.permute.xlu0 %1774
      %1776 = vrot.lane.b32.xlu0 %v1510, 32
      %v1777 = vpop.permute.xlu0 %1776
      %1778 = vrot.lane.b32.xlu0 %v1518, 32
      %v1779 = vpop.permute.xlu0 %1778
      %1780 = vrot.lane.b32.xlu0 %v1495, 32
      %v1781 = vpop.permute.xlu0 %1780
      %1782 = vrot.lane.b32.xlu0 %v1503, 32
      %v1783 = vpop.permute.xlu0 %1782
      %1784 = vrot.lane.b32.xlu0 %v1511, 32
      %v1785 = vpop.permute.xlu0 %1784
      %1786 = vrot.lane.b32.xlu0 %v1519, 32
      %v1787 = vpop.permute.xlu0 %1786
      %v1788 = vsel %vm380, %v1773, %v1781
      %v1789 = vsel %vm380, %v1775, %v1783
      %v1790 = vsel %vm380, %v1777, %v1785
      %v1791 = vsel %vm380, %v1779, %v1787
      %v1792 = vsel %vm380, %v1765, %v1773
      %v1793 = vsel %vm380, %v1767, %v1775
      %v1794 = vsel %vm380, %v1769, %v1777
      %v1795 = vsel %vm380, %v1771, %v1779
      %v1796 = vsel %vm380, %v1757, %v1765
      %v1797 = vsel %vm380, %v1759, %v1767
      %v1798 = vsel %vm380, %v1761, %v1769
      %v1799 = vsel %vm380, %v1763, %v1771
      %v1800 = vsel %vm380, %v1749, %v1757
      %v1801 = vsel %vm380, %v1751, %v1759
      %v1802 = vsel %vm380, %v1753, %v1761
      %v1803 = vsel %vm380, %v1755, %v1763
      %v1804 = vsel %vm380, %v1741, %v1749
      %v1805 = vsel %vm380, %v1743, %v1751
      %v1806 = vsel %vm380, %v1745, %v1753
      %v1807 = vsel %vm380, %v1747, %v1755
      %v1808 = vsel %vm380, %v1733, %v1741
      %v1809 = vsel %vm380, %v1735, %v1743
      %v1810 = vsel %vm380, %v1737, %v1745
      %v1811 = vsel %vm380, %v1739, %v1747
      %v1812 = vsel %vm380, %v1725, %v1733
      %v1813 = vsel %vm380, %v1727, %v1735
      %v1814 = vsel %vm380, %v1729, %v1737
      %v1815 = vsel %vm380, %v1731, %v1739
      %v1816 = vsel %vm380, %v1781, %v1725
      %v1817 = vsel %vm380, %v1783, %v1727
      %v1818 = vsel %vm380, %v1785, %v1729
      %v1819 = vsel %vm380, %v1787, %v1731
      %v1820 = vld [vmem:[%s389] ss:$8 sm:$0xf]
      %v1821 = vld [vmem:[%s389] ss:$8 sm:$0xf0]
      %v1822 = vor.u32 %v1820, %v1821
      %v1824 = vlaneseq
      %v1825 = vshrl.u32 %v1824, 7
      %v1826 = vsub.s32 0, %v1825
      %v1827 = vrot.slane %v1822, %v1826
      %v1828 = vlaneseq
      %v1829 = vshrl.u32 %v1828, 7
      %v1830 = vsub.s32 1, %v1829
      %v1831 = vrot.slane %v1822, %v1830
      %v1832 = vlaneseq
      %v1833 = vshrl.u32 %v1832, 7
      %v1834 = vsub.s32 2, %v1833
      %v1835 = vrot.slane %v1822, %v1834
      %v1836 = vlaneseq
      %v1837 = vshrl.u32 %v1836, 7
      %v1838 = vsub.s32 3, %v1837
      %v1839 = vrot.slane %v1822, %v1838
      %v1840 = vlaneseq
      %v1841 = vshrl.u32 %v1840, 7
      %v1842 = vsub.s32 4, %v1841
      %v1843 = vrot.slane %v1822, %v1842
      %v1844 = vlaneseq
      %v1845 = vshrl.u32 %v1844, 7
      %v1846 = vsub.s32 5, %v1845
      %v1847 = vrot.slane %v1822, %v1846
      %v1848 = vlaneseq
      %v1849 = vshrl.u32 %v1848, 7
      %v1850 = vsub.s32 6, %v1849
      %v1851 = vrot.slane %v1822, %v1850
      %v1852 = vlaneseq
      %v1853 = vshrl.u32 %v1852, 7
      %v1854 = vsub.s32 7, %v1853
      %v1855 = vrot.slane %v1822, %v1854
      %v1864 = vmul.f32 %v1816, %v1827
      %v1865 = vmul.f32 %v1812, %v1831
      %v1866 = vmul.f32 %v1808, %v1835
      %v1867 = vmul.f32 %v1804, %v1839
      %v1868 = vmul.f32 %v1800, %v1843
      %v1869 = vmul.f32 %v1796, %v1847
      %v1870 = vmul.f32 %v1792, %v1851
      %v1871 = vmul.f32 %v1788, %v1855
      %v1872 = vmul.f32 %v1817, %v1827
      %v1873 = vmul.f32 %v1813, %v1831
      %v1874 = vmul.f32 %v1809, %v1835
      %v1875 = vmul.f32 %v1805, %v1839
      %v1876 = vmul.f32 %v1801, %v1843
      %v1877 = vmul.f32 %v1797, %v1847
      %v1878 = vmul.f32 %v1793, %v1851
      %v1879 = vmul.f32 %v1789, %v1855
      %v1880 = vmul.f32 %v1818, %v1827
      %v1881 = vmul.f32 %v1814, %v1831
      %v1882 = vmul.f32 %v1810, %v1835
      %v1883 = vmul.f32 %v1806, %v1839
      %v1884 = vmul.f32 %v1802, %v1843
      %v1885 = vmul.f32 %v1798, %v1847
      %v1886 = vmul.f32 %v1794, %v1851
      %v1887 = vmul.f32 %v1790, %v1855
      %v1888 = vmul.f32 %v1819, %v1827
      %v1889 = vmul.f32 %v1815, %v1831
      %v1890 = vmul.f32 %v1811, %v1835
      %v1891 = vmul.f32 %v1807, %v1839
      %v1892 = vmul.f32 %v1803, %v1843
      %v1893 = vmul.f32 %v1799, %v1847
      %v1894 = vmul.f32 %v1795, %v1851
      %v1895 = vmul.f32 %v1791, %v1855
      %v1896 = vpack.c.bf16 %v1872, %v1864
      %v1897 = vpack.c.bf16 %v1873, %v1865
      %v1898 = vpack.c.bf16 %v1874, %v1866
      %v1899 = vpack.c.bf16 %v1875, %v1867
      %v1900 = vpack.c.bf16 %v1876, %v1868
      %v1901 = vpack.c.bf16 %v1877, %v1869
      %v1902 = vpack.c.bf16 %v1878, %v1870
      %v1903 = vpack.c.bf16 %v1879, %v1871
      %v1904 = vpack.c.bf16 %v1888, %v1880
      %v1905 = vpack.c.bf16 %v1889, %v1881
      %v1906 = vpack.c.bf16 %v1890, %v1882
      %v1907 = vpack.c.bf16 %v1891, %v1883
      %v1908 = vpack.c.bf16 %v1892, %v1884
      %v1909 = vpack.c.bf16 %v1893, %v1885
      %v1910 = vpack.c.bf16 %v1894, %v1886
      %v1911 = vpack.c.bf16 %v1895, %v1887
      %1912 = vst [vmem:[#allocation2 + $0x80] sm:$0xff] %v1896
      %1913 = vst [vmem:[#allocation2 + $0x88] sm:$0xff] %v1897
      %1914 = vst [vmem:[#allocation2 + $0x90] sm:$0xff] %v1898
      %1915 = vst [vmem:[#allocation2 + $0x98] sm:$0xff] %v1899
      %1916 = vst [vmem:[#allocation2 + $0xa0] sm:$0xff] %v1900
      %1917 = vst [vmem:[#allocation2 + $0xa8] sm:$0xff] %v1901
      %1918 = vst [vmem:[#allocation2 + $0xb0] sm:$0xff] %v1902
      %1919 = vst [vmem:[#allocation2 + $0xb8] sm:$0xff] %v1903
      %1920 = vst [vmem:[#allocation2 + $0xc0] sm:$0xff] %v1904
      %1921 = vst [vmem:[#allocation2 + $0xc8] sm:$0xff] %v1905
      %1922 = vst [vmem:[#allocation2 + $0xd0] sm:$0xff] %v1906
      %1923 = vst [vmem:[#allocation2 + $0xd8] sm:$0xff] %v1907
      %1924 = vst [vmem:[#allocation2 + $0xe0] sm:$0xff] %v1908
      %1925 = vst [vmem:[#allocation2 + $0xe8] sm:$0xff] %v1909
      %1926 = vst [vmem:[#allocation2 + $0xf0] sm:$0xff] %v1910
      %1927 = vst [vmem:[#allocation2 + $0xf8] sm:$0xff] %v1911
      %1928 = vrot.lane.b32.xlu0 %v1488, 31
      %v1929 = vpop.permute.xlu0 %1928
      %1930 = vrot.lane.b32.xlu0 %v1496, 31
      %v1931 = vpop.permute.xlu0 %1930
      %1932 = vrot.lane.b32.xlu0 %v1504, 31
      %v1933 = vpop.permute.xlu0 %1932
      %1934 = vrot.lane.b32.xlu0 %v1512, 31
      %v1935 = vpop.permute.xlu0 %1934
      %1936 = vrot.lane.b32.xlu0 %v1489, 31
      %v1937 = vpop.permute.xlu0 %1936
      %1938 = vrot.lane.b32.xlu0 %v1497, 31
      %v1939 = vpop.permute.xlu0 %1938
      %1940 = vrot.lane.b32.xlu0 %v1505, 31
      %v1941 = vpop.permute.xlu0 %1940
      %1942 = vrot.lane.b32.xlu0 %v1513, 31
      %v1943 = vpop.permute.xlu0 %1942
      %1944 = vrot.lane.b32.xlu0 %v1490, 31
      %v1945 = vpop.permute.xlu0 %1944
      %1946 = vrot.lane.b32.xlu0 %v1498, 31
      %v1947 = vpop.permute.xlu0 %1946
      %1948 = vrot.lane.b32.xlu0 %v1506, 31
      %v1949 = vpop.permute.xlu0 %1948
      %1950 = vrot.lane.b32.xlu0 %v1514, 31
      %v1951 = vpop.permute.xlu0 %1950
      %1952 = vrot.lane.b32.xlu0 %v1491, 31
      %v1953 = vpop.permute.xlu0 %1952
      %1954 = vrot.lane.b32.xlu0 %v1499, 31
      %v1955 = vpop.permute.xlu0 %1954
      %1956 = vrot.lane.b32.xlu0 %v1507, 31
      %v1957 = vpop.permute.xlu0 %1956
      %1958 = vrot.lane.b32.xlu0 %v1515, 31
      %v1959 = vpop.permute.xlu0 %1958
      %1960 = vrot.lane.b32.xlu0 %v1492, 31
      %v1961 = vpop.permute.xlu0 %1960
      %1962 = vrot.lane.b32.xlu0 %v1500, 31
      %v1963 = vpop.permute.xlu0 %1962
      %1964 = vrot.lane.b32.xlu0 %v1508, 31
      %v1965 = vpop.permute.xlu0 %1964
      %1966 = vrot.lane.b32.xlu0 %v1516, 31
      %v1967 = vpop.permute.xlu0 %1966
      %1968 = vrot.lane.b32.xlu0 %v1493, 31
      %v1969 = vpop.permute.xlu0 %1968
      %1970 = vrot.lane.b32.xlu0 %v1501, 31
      %v1971 = vpop.permute.xlu0 %1970
      %1972 = vrot.lane.b32.xlu0 %v1509, 31
      %v1973 = vpop.permute.xlu0 %1972
      %1974 = vrot.lane.b32.xlu0 %v1517, 31
      %v1975 = vpop.permute.xlu0 %1974
      %1976 = vrot.lane.b32.xlu0 %v1494, 31
      %v1977 = vpop.permute.xlu0 %1976
      %1978 = vrot.lane.b32.xlu0 %v1502, 31
      %v1979 = vpop.permute.xlu0 %1978
      %1980 = vrot.lane.b32.xlu0 %v1510, 31
      %v1981 = vpop.permute.xlu0 %1980
      %1982 = vrot.lane.b32.xlu0 %v1518, 31
      %v1983 = vpop.permute.xlu0 %1982
      %1984 = vrot.lane.b32.xlu0 %v1495, 31
      %v1985 = vpop.permute.xlu0 %1984
      %1986 = vrot.lane.b32.xlu0 %v1503, 31
      %v1987 = vpop.permute.xlu0 %1986
      %1988 = vrot.lane.b32.xlu0 %v1511, 31
      %v1989 = vpop.permute.xlu0 %1988
      %1990 = vrot.lane.b32.xlu0 %v1519, 31
      %v1991 = vpop.permute.xlu0 %1990
      %v1992 = vsel %vm498, %v1977, %v1985
      %v1993 = vsel %vm498, %v1979, %v1987
      %v1994 = vsel %vm498, %v1981, %v1989
      %v1995 = vsel %vm498, %v1983, %v1991
      %v1996 = vsel %vm498, %v1969, %v1977
      %v1997 = vsel %vm498, %v1971, %v1979
      %v1998 = vsel %vm498, %v1973, %v1981
      %v1999 = vsel %vm498, %v1975, %v1983
      %v2000 = vsel %vm498, %v1961, %v1969
      %v2001 = vsel %vm498, %v1963, %v1971
      %v2002 = vsel %vm498, %v1965, %v1973
      %v2003 = vsel %vm498, %v1967, %v1975
      %v2004 = vsel %vm498, %v1953, %v1961
      %v2005 = vsel %vm498, %v1955, %v1963
      %v2006 = vsel %vm498, %v1957, %v1965
      %v2007 = vsel %vm498, %v1959, %v1967
      %v2008 = vsel %vm498, %v1945, %v1953
      %v2009 = vsel %vm498, %v1947, %v1955
      %v2010 = vsel %vm498, %v1949, %v1957
      %v2011 = vsel %vm498, %v1951, %v1959
      %v2012 = vsel %vm498, %v1937, %v1945
      %v2013 = vsel %vm498, %v1939, %v1947
      %v2014 = vsel %vm498, %v1941, %v1949
      %v2015 = vsel %vm498, %v1943, %v1951
      %v2016 = vsel %vm498, %v1929, %v1937
      %v2017 = vsel %vm498, %v1931, %v1939
      %v2018 = vsel %vm498, %v1933, %v1941
      %v2019 = vsel %vm498, %v1935, %v1943
      %v2020 = vsel %vm498, %v1985, %v1929
      %v2021 = vsel %vm498, %v1987, %v1931
      %v2022 = vsel %vm498, %v1989, %v1933
      %v2023 = vsel %vm498, %v1991, %v1935
      %v2024 = vld [vmem:[%s507] ss:$8 sm:$0xf]
      %v2025 = vld [vmem:[%s507] ss:$8 sm:$0xf0]
      %v2026 = vor.u32 %v2024, %v2025
      %v2028 = vlaneseq
      %v2029 = vshrl.u32 %v2028, 7
      %v2030 = vsub.s32 0, %v2029
      %v2031 = vrot.slane %v2026, %v2030
      %v2032 = vlaneseq
      %v2033 = vshrl.u32 %v2032, 7
      %v2034 = vsub.s32 1, %v2033
      %v2035 = vrot.slane %v2026, %v2034
      %v2036 = vlaneseq
      %v2037 = vshrl.u32 %v2036, 7
      %v2038 = vsub.s32 2, %v2037
      %v2039 = vrot.slane %v2026, %v2038
      %v2040 = vlaneseq
      %v2041 = vshrl.u32 %v2040, 7
      %v2042 = vsub.s32 3, %v2041
      %v2043 = vrot.slane %v2026, %v2042
      %v2044 = vlaneseq
      %v2045 = vshrl.u32 %v2044, 7
      %v2046 = vsub.s32 4, %v2045
      %v2047 = vrot.slane %v2026, %v2046
      %v2048 = vlaneseq
      %v2049 = vshrl.u32 %v2048, 7
      %v2050 = vsub.s32 5, %v2049
      %v2051 = vrot.slane %v2026, %v2050
      %v2052 = vlaneseq
      %v2053 = vshrl.u32 %v2052, 7
      %v2054 = vsub.s32 6, %v2053
      %v2055 = vrot.slane %v2026, %v2054
      %v2056 = vlaneseq
      %v2057 = vshrl.u32 %v2056, 7
      %v2058 = vsub.s32 7, %v2057
      %v2059 = vrot.slane %v2026, %v2058
      %v2068 = vmul.f32 %v2020, %v2031
      %v2069 = vmul.f32 %v2016, %v2035
      %v2070 = vmul.f32 %v2012, %v2039
      %v2071 = vmul.f32 %v2008, %v2043
      %v2072 = vmul.f32 %v2004, %v2047
      %v2073 = vmul.f32 %v2000, %v2051
      %v2074 = vmul.f32 %v1996, %v2055
      %v2075 = vmul.f32 %v1992, %v2059
      %v2076 = vmul.f32 %v2021, %v2031
      %v2077 = vmul.f32 %v2017, %v2035
      %v2078 = vmul.f32 %v2013, %v2039
      %v2079 = vmul.f32 %v2009, %v2043
      %v2080 = vmul.f32 %v2005, %v2047
      %v2081 = vmul.f32 %v2001, %v2051
      %v2082 = vmul.f32 %v1997, %v2055
      %v2083 = vmul.f32 %v1993, %v2059
      %v2084 = vmul.f32 %v2022, %v2031
      %v2085 = vmul.f32 %v2018, %v2035
      %v2086 = vmul.f32 %v2014, %v2039
      %v2087 = vmul.f32 %v2010, %v2043
      %v2088 = vmul.f32 %v2006, %v2047
      %v2089 = vmul.f32 %v2002, %v2051
      %v2090 = vmul.f32 %v1998, %v2055
      %v2091 = vmul.f32 %v1994, %v2059
      %v2092 = vmul.f32 %v2023, %v2031
      %v2093 = vmul.f32 %v2019, %v2035
      %v2094 = vmul.f32 %v2015, %v2039
      %v2095 = vmul.f32 %v2011, %v2043
      %v2096 = vmul.f32 %v2007, %v2047
      %v2097 = vmul.f32 %v2003, %v2051
      %v2098 = vmul.f32 %v1999, %v2055
      %v2099 = vmul.f32 %v1995, %v2059
      %v2100 = vpack.c.bf16 %v2076, %v2068
      %v2101 = vpack.c.bf16 %v2077, %v2069
      %v2102 = vpack.c.bf16 %v2078, %v2070
      %v2103 = vpack.c.bf16 %v2079, %v2071
      %v2104 = vpack.c.bf16 %v2080, %v2072
      %v2105 = vpack.c.bf16 %v2081, %v2073
      %v2106 = vpack.c.bf16 %v2082, %v2074
      %v2107 = vpack.c.bf16 %v2083, %v2075
      %v2108 = vpack.c.bf16 %v2092, %v2084
      %v2109 = vpack.c.bf16 %v2093, %v2085
      %v2110 = vpack.c.bf16 %v2094, %v2086
      %v2111 = vpack.c.bf16 %v2095, %v2087
      %v2112 = vpack.c.bf16 %v2096, %v2088
      %v2113 = vpack.c.bf16 %v2097, %v2089
      %v2114 = vpack.c.bf16 %v2098, %v2090
      %v2115 = vpack.c.bf16 %v2099, %v2091
      %2116 = vst [vmem:[#allocation2 + $0x100] sm:$0xff] %v2100
      %2117 = vst [vmem:[#allocation2 + $0x108] sm:$0xff] %v2101
      %2118 = vst [vmem:[#allocation2 + $0x110] sm:$0xff] %v2102
      %2119 = vst [vmem:[#allocation2 + $0x118] sm:$0xff] %v2103
      %2120 = vst [vmem:[#allocation2 + $0x120] sm:$0xff] %v2104
      %2121 = vst [vmem:[#allocation2 + $0x128] sm:$0xff] %v2105
      %2122 = vst [vmem:[#allocation2 + $0x130] sm:$0xff] %v2106
      %2123 = vst [vmem:[#allocation2 + $0x138] sm:$0xff] %v2107
      %2124 = vst [vmem:[#allocation2 + $0x140] sm:$0xff] %v2108
      %2125 = vst [vmem:[#allocation2 + $0x148] sm:$0xff] %v2109
      %2126 = vst [vmem:[#allocation2 + $0x150] sm:$0xff] %v2110
      %2127 = vst [vmem:[#allocation2 + $0x158] sm:$0xff] %v2111
      %2128 = vst [vmem:[#allocation2 + $0x160] sm:$0xff] %v2112
      %2129 = vst [vmem:[#allocation2 + $0x168] sm:$0xff] %v2113
      %2130 = vst [vmem:[#allocation2 + $0x170] sm:$0xff] %v2114
      %2131 = vst [vmem:[#allocation2 + $0x178] sm:$0xff] %v2115
      %2132 = vrot.lane.b32.xlu0 %v1488, 1
      %v2133 = vpop.permute.xlu0 %2132
      %2134 = vrot.lane.b32.xlu0 %v1496, 1
      %v2135 = vpop.permute.xlu0 %2134
      %2136 = vrot.lane.b32.xlu0 %v1504, 1
      %v2137 = vpop.permute.xlu0 %2136
      %2138 = vrot.lane.b32.xlu0 %v1512, 1
      %v2139 = vpop.permute.xlu0 %2138
      %2140 = vrot.lane.b32.xlu0 %v1489, 1
      %v2141 = vpop.permute.xlu0 %2140
      %2142 = vrot.lane.b32.xlu0 %v1497, 1
      %v2143 = vpop.permute.xlu0 %2142
      %2144 = vrot.lane.b32.xlu0 %v1505, 1
      %v2145 = vpop.permute.xlu0 %2144
      %2146 = vrot.lane.b32.xlu0 %v1513, 1
      %v2147 = vpop.permute.xlu0 %2146
      %2148 = vrot.lane.b32.xlu0 %v1490, 1
      %v2149 = vpop.permute.xlu0 %2148
      %2150 = vrot.lane.b32.xlu0 %v1498, 1
      %v2151 = vpop.permute.xlu0 %2150
      %2152 = vrot.lane.b32.xlu0 %v1506, 1
      %v2153 = vpop.permute.xlu0 %2152
      %2154 = vrot.lane.b32.xlu0 %v1514, 1
      %v2155 = vpop.permute.xlu0 %2154
      %2156 = vrot.lane.b32.xlu0 %v1491, 1
      %v2157 = vpop.permute.xlu0 %2156
      %2158 = vrot.lane.b32.xlu0 %v1499, 1
      %v2159 = vpop.permute.xlu0 %2158
      %2160 = vrot.lane.b32.xlu0 %v1507, 1
      %v2161 = vpop.permute.xlu0 %2160
      %2162 = vrot.lane.b32.xlu0 %v1515, 1
      %v2163 = vpop.permute.xlu0 %2162
      %2164 = vrot.lane.b32.xlu0 %v1492, 1
      %v2165 = vpop.permute.xlu0 %2164
      %2166 = vrot.lane.b32.xlu0 %v1500, 1
      %v2167 = vpop.permute.xlu0 %2166
      %2168 = vrot.lane.b32.xlu0 %v1508, 1
      %v2169 = vpop.permute.xlu0 %2168
      %2170 = vrot.lane.b32.xlu0 %v1516, 1
      %v2171 = vpop.permute.xlu0 %2170
      %2172 = vrot.lane.b32.xlu0 %v1493, 1
      %v2173 = vpop.permute.xlu0 %2172
      %2174 = vrot.lane.b32.xlu0 %v1501, 1
      %v2175 = vpop.permute.xlu0 %2174
      %2176 = vrot.lane.b32.xlu0 %v1509, 1
      %v2177 = vpop.permute.xlu0 %2176
      %2178 = vrot.lane.b32.xlu0 %v1517, 1
      %v2179 = vpop.permute.xlu0 %2178
      %2180 = vrot.lane.b32.xlu0 %v1494, 1
      %v2181 = vpop.permute.xlu0 %2180
      %2182 = vrot.lane.b32.xlu0 %v1502, 1
      %v2183 = vpop.permute.xlu0 %2182
      %2184 = vrot.lane.b32.xlu0 %v1510, 1
      %v2185 = vpop.permute.xlu0 %2184
      %2186 = vrot.lane.b32.xlu0 %v1518, 1
      %v2187 = vpop.permute.xlu0 %2186
      %2188 = vrot.lane.b32.xlu0 %v1495, 1
      %v2189 = vpop.permute.xlu0 %2188
      %2190 = vrot.lane.b32.xlu0 %v1503, 1
      %v2191 = vpop.permute.xlu0 %2190
      %2192 = vrot.lane.b32.xlu0 %v1511, 1
      %v2193 = vpop.permute.xlu0 %2192
      %2194 = vrot.lane.b32.xlu0 %v1519, 1
      %v2195 = vpop.permute.xlu0 %2194
      %v2196 = vsel %vm616, %v2181, %v2189
      %v2197 = vsel %vm616, %v2183, %v2191
      %v2198 = vsel %vm616, %v2185, %v2193
      %v2199 = vsel %vm616, %v2187, %v2195
      %v2200 = vsel %vm616, %v2173, %v2181
      %v2201 = vsel %vm616, %v2175, %v2183
      %v2202 = vsel %vm616, %v2177, %v2185
      %v2203 = vsel %vm616, %v2179, %v2187
      %v2204 = vsel %vm616, %v2165, %v2173
      %v2205 = vsel %vm616, %v2167, %v2175
      %v2206 = vsel %vm616, %v2169, %v2177
      %v2207 = vsel %vm616, %v2171, %v2179
      %v2208 = vsel %vm616, %v2157, %v2165
      %v2209 = vsel %vm616, %v2159, %v2167
      %v2210 = vsel %vm616, %v2161, %v2169
      %v2211 = vsel %vm616, %v2163, %v2171
      %v2212 = vsel %vm616, %v2149, %v2157
      %v2213 = vsel %vm616, %v2151, %v2159
      %v2214 = vsel %vm616, %v2153, %v2161
      %v2215 = vsel %vm616, %v2155, %v2163
      %v2216 = vsel %vm616, %v2141, %v2149
      %v2217 = vsel %vm616, %v2143, %v2151
      %v2218 = vsel %vm616, %v2145, %v2153
      %v2219 = vsel %vm616, %v2147, %v2155
      %v2220 = vsel %vm616, %v2133, %v2141
      %v2221 = vsel %vm616, %v2135, %v2143
      %v2222 = vsel %vm616, %v2137, %v2145
      %v2223 = vsel %vm616, %v2139, %v2147
      %v2224 = vsel %vm616, %v2189, %v2133
      %v2225 = vsel %vm616, %v2191, %v2135
      %v2226 = vsel %vm616, %v2193, %v2137
      %v2227 = vsel %vm616, %v2195, %v2139
      %v2228 = vld [vmem:[%s625] ss:$8 sm:$0xf]
      %v2229 = vld [vmem:[%s625] ss:$8 sm:$0xf0]
      %v2230 = vor.u32 %v2228, %v2229
      %v2232 = vlaneseq
      %v2233 = vshrl.u32 %v2232, 7
      %v2234 = vsub.s32 0, %v2233
      %v2235 = vrot.slane %v2230, %v2234
      %v2236 = vlaneseq
      %v2237 = vshrl.u32 %v2236, 7
      %v2238 = vsub.s32 1, %v2237
      %v2239 = vrot.slane %v2230, %v2238
      %v2240 = vlaneseq
      %v2241 = vshrl.u32 %v2240, 7
      %v2242 = vsub.s32 2, %v2241
      %v2243 = vrot.slane %v2230, %v2242
      %v2244 = vlaneseq
      %v2245 = vshrl.u32 %v2244, 7
      %v2246 = vsub.s32 3, %v2245
      %v2247 = vrot.slane %v2230, %v2246
      %v2248 = vlaneseq
      %v2249 = vshrl.u32 %v2248, 7
      %v2250 = vsub.s32 4, %v2249
      %v2251 = vrot.slane %v2230, %v2250
      %v2252 = vlaneseq
      %v2253 = vshrl.u32 %v2252, 7
      %v2254 = vsub.s32 5, %v2253
      %v2255 = vrot.slane %v2230, %v2254
      %v2256 = vlaneseq
      %v2257 = vshrl.u32 %v2256, 7
      %v2258 = vsub.s32 6, %v2257
      %v2259 = vrot.slane %v2230, %v2258
      %v2260 = vlaneseq
      %v2261 = vshrl.u32 %v2260, 7
      %v2262 = vsub.s32 7, %v2261
      %v2263 = vrot.slane %v2230, %v2262
      %v2272 = vmul.f32 %v2224, %v2235
      %v2273 = vmul.f32 %v2220, %v2239
      %v2274 = vmul.f32 %v2216, %v2243
      %v2275 = vmul.f32 %v2212, %v2247
      %v2276 = vmul.f32 %v2208, %v2251
      %v2277 = vmul.f32 %v2204, %v2255
      %v2278 = vmul.f32 %v2200, %v2259
      %v2279 = vmul.f32 %v2196, %v2263
      %v2280 = vmul.f32 %v2225, %v2235
      %v2281 = vmul.f32 %v2221, %v2239
      %v2282 = vmul.f32 %v2217, %v2243
      %v2283 = vmul.f32 %v2213, %v2247
      %v2284 = vmul.f32 %v2209, %v2251
      %v2285 = vmul.f32 %v2205, %v2255
      %v2286 = vmul.f32 %v2201, %v2259
      %v2287 = vmul.f32 %v2197, %v2263
      %v2288 = vmul.f32 %v2226, %v2235
      %v2289 = vmul.f32 %v2222, %v2239
      %v2290 = vmul.f32 %v2218, %v2243
      %v2291 = vmul.f32 %v2214, %v2247
      %v2292 = vmul.f32 %v2210, %v2251
      %v2293 = vmul.f32 %v2206, %v2255
      %v2294 = vmul.f32 %v2202, %v2259
      %v2295 = vmul.f32 %v2198, %v2263
      %v2296 = vmul.f32 %v2227, %v2235
      %v2297 = vmul.f32 %v2223, %v2239
      %v2298 = vmul.f32 %v2219, %v2243
      %v2299 = vmul.f32 %v2215, %v2247
      %v2300 = vmul.f32 %v2211, %v2251
      %v2301 = vmul.f32 %v2207, %v2255
      %v2302 = vmul.f32 %v2203, %v2259
      %v2303 = vmul.f32 %v2199, %v2263
      %v2304 = vpack.c.bf16 %v2280, %v2272
      %v2305 = vpack.c.bf16 %v2281, %v2273
      %v2306 = vpack.c.bf16 %v2282, %v2274
      %v2307 = vpack.c.bf16 %v2283, %v2275
      %v2308 = vpack.c.bf16 %v2284, %v2276
      %v2309 = vpack.c.bf16 %v2285, %v2277
      %v2310 = vpack.c.bf16 %v2286, %v2278
      %v2311 = vpack.c.bf16 %v2287, %v2279
      %v2312 = vpack.c.bf16 %v2296, %v2288
      %v2313 = vpack.c.bf16 %v2297, %v2289
      %v2314 = vpack.c.bf16 %v2298, %v2290
      %v2315 = vpack.c.bf16 %v2299, %v2291
      %v2316 = vpack.c.bf16 %v2300, %v2292
      %v2317 = vpack.c.bf16 %v2301, %v2293
      %v2318 = vpack.c.bf16 %v2302, %v2294
      %v2319 = vpack.c.bf16 %v2303, %v2295
      %2320 = vst [vmem:[#allocation2 + $0x180] sm:$0xff] %v2304
      %2321 = vst [vmem:[#allocation2 + $0x188] sm:$0xff] %v2305
      %2322 = vst [vmem:[#allocation2 + $0x190] sm:$0xff] %v2306
      %2323 = vst [vmem:[#allocation2 + $0x198] sm:$0xff] %v2307
      %2324 = vst [vmem:[#allocation2 + $0x1a0] sm:$0xff] %v2308
      %2325 = vst [vmem:[#allocation2 + $0x1a8] sm:$0xff] %v2309
      %2326 = vst [vmem:[#allocation2 + $0x1b0] sm:$0xff] %v2310
      %2327 = vst [vmem:[#allocation2 + $0x1b8] sm:$0xff] %v2311
      %2328 = vst [vmem:[#allocation2 + $0x1c0] sm:$0xff] %v2312
      %2329 = vst [vmem:[#allocation2 + $0x1c8] sm:$0xff] %v2313
      %2330 = vst [vmem:[#allocation2 + $0x1d0] sm:$0xff] %v2314
      %2331 = vst [vmem:[#allocation2 + $0x1d8] sm:$0xff] %v2315
      %2332 = vst [vmem:[#allocation2 + $0x1e0] sm:$0xff] %v2316
      %2333 = vst [vmem:[#allocation2 + $0x1e8] sm:$0xff] %v2317
      %2334 = vst [vmem:[#allocation2 + $0x1f0] sm:$0xff] %v2318
      %2335 = vst [vmem:[#allocation2 + $0x1f8] sm:$0xff] %v2319
      %v2336 = vpack.c.bf16 %v1496, %v1488
      %v2337 = vpack.c.bf16 %v1497, %v1489
      %v2338 = vpack.c.bf16 %v1498, %v1490
      %v2339 = vpack.c.bf16 %v1499, %v1491
      %v2340 = vpack.c.bf16 %v1500, %v1492
      %v2341 = vpack.c.bf16 %v1501, %v1493
      %v2342 = vpack.c.bf16 %v1502, %v1494
      %v2343 = vpack.c.bf16 %v1503, %v1495
      %v2344 = vpack.c.bf16 %v1512, %v1504
      %v2345 = vpack.c.bf16 %v1513, %v1505
      %v2346 = vpack.c.bf16 %v1514, %v1506
      %v2347 = vpack.c.bf16 %v1515, %v1507
      %v2348 = vpack.c.bf16 %v1516, %v1508
      %v2349 = vpack.c.bf16 %v1517, %v1509
      %v2350 = vpack.c.bf16 %v1518, %v1510
      %v2351 = vpack.c.bf16 %v1519, %v1511
      %2352 = vst [vmem:[#allocation2 + $0x200] sm:$0xff] %v2336
      %2353 = vst [vmem:[#allocation2 + $0x208] sm:$0xff] %v2337
      %2354 = vst [vmem:[#allocation2 + $0x210] sm:$0xff] %v2338
      %2355 = vst [vmem:[#allocation2 + $0x218] sm:$0xff] %v2339
      %2356 = vst [vmem:[#allocation2 + $0x220] sm:$0xff] %v2340
      %2357 = vst [vmem:[#allocation2 + $0x228] sm:$0xff] %v2341
      %2358 = vst [vmem:[#allocation2 + $0x230] sm:$0xff] %v2342
      %2359 = vst [vmem:[#allocation2 + $0x238] sm:$0xff] %v2343
      %2360 = vst [vmem:[#allocation2 + $0x240] sm:$0xff] %v2344
      %2361 = vst [vmem:[#allocation2 + $0x248] sm:$0xff] %v2345
      %2362 = vst [vmem:[#allocation2 + $0x250] sm:$0xff] %v2346
      %2363 = vst [vmem:[#allocation2 + $0x258] sm:$0xff] %v2347
      %2364 = vst [vmem:[#allocation2 + $0x260] sm:$0xff] %v2348
      %2365 = vst [vmem:[#allocation2 + $0x268] sm:$0xff] %v2349
      %2366 = vst [vmem:[#allocation2 + $0x270] sm:$0xff] %v2350
      %2367 = vst [vmem:[#allocation2 + $0x278] sm:$0xff] %v2351
      %2368 = vrot.lane.b32.xlu0 %v1488, 127
      %v2369 = vpop.permute.xlu0 %2368
      %2370 = vrot.lane.b32.xlu0 %v1496, 127
      %v2371 = vpop.permute.xlu0 %2370
      %2372 = vrot.lane.b32.xlu0 %v1504, 127
      %v2373 = vpop.permute.xlu0 %2372
      %2374 = vrot.lane.b32.xlu0 %v1512, 127
      %v2375 = vpop.permute.xlu0 %2374
      %2376 = vrot.lane.b32.xlu0 %v1489, 127
      %v2377 = vpop.permute.xlu0 %2376
      %2378 = vrot.lane.b32.xlu0 %v1497, 127
      %v2379 = vpop.permute.xlu0 %2378
      %2380 = vrot.lane.b32.xlu0 %v1505, 127
      %v2381 = vpop.permute.xlu0 %2380
      %2382 = vrot.lane.b32.xlu0 %v1513, 127
      %v2383 = vpop.permute.xlu0 %2382
      %2384 = vrot.lane.b32.xlu0 %v1490, 127
      %v2385 = vpop.permute.xlu0 %2384
      %2386 = vrot.lane.b32.xlu0 %v1498, 127
      %v2387 = vpop.permute.xlu0 %2386
      %2388 = vrot.lane.b32.xlu0 %v1506, 127
      %v2389 = vpop.permute.xlu0 %2388
      %2390 = vrot.lane.b32.xlu0 %v1514, 127
      %v2391 = vpop.permute.xlu0 %2390
      %2392 = vrot.lane.b32.xlu0 %v1491, 127
      %v2393 = vpop.permute.xlu0 %2392
      %2394 = vrot.lane.b32.xlu0 %v1499, 127
      %v2395 = vpop.permute.xlu0 %2394
      %2396 = vrot.lane.b32.xlu0 %v1507, 127
      %v2397 = vpop.permute.xlu0 %2396
      %2398 = vrot.lane.b32.xlu0 %v1515, 127
      %v2399 = vpop.permute.xlu0 %2398
      %2400 = vrot.lane.b32.xlu0 %v1492, 127
      %v2401 = vpop.permute.xlu0 %2400
      %2402 = vrot.lane.b32.xlu0 %v1500, 127
      %v2403 = vpop.permute.xlu0 %2402
      %2404 = vrot.lane.b32.xlu0 %v1508, 127
      %v2405 = vpop.permute.xlu0 %2404
      %2406 = vrot.lane.b32.xlu0 %v1516, 127
      %v2407 = vpop.permute.xlu0 %2406
      %2408 = vrot.lane.b32.xlu0 %v1493, 127
      %v2409 = vpop.permute.xlu0 %2408
      %2410 = vrot.lane.b32.xlu0 %v1501, 127
      %v2411 = vpop.permute.xlu0 %2410
      %2412 = vrot.lane.b32.xlu0 %v1509, 127
      %v2413 = vpop.permute.xlu0 %2412
      %2414 = vrot.lane.b32.xlu0 %v1517, 127
      %v2415 = vpop.permute.xlu0 %2414
      %2416 = vrot.lane.b32.xlu0 %v1494, 127
      %v2417 = vpop.permute.xlu0 %2416
      %2418 = vrot.lane.b32.xlu0 %v1502, 127
      %v2419 = vpop.permute.xlu0 %2418
      %2420 = vrot.lane.b32.xlu0 %v1510, 127
      %v2421 = vpop.permute.xlu0 %2420
      %2422 = vrot.lane.b32.xlu0 %v1518, 127
      %v2423 = vpop.permute.xlu0 %2422
      %2424 = vrot.lane.b32.xlu0 %v1495, 127
      %v2425 = vpop.permute.xlu0 %2424
      %2426 = vrot.lane.b32.xlu0 %v1503, 127
      %v2427 = vpop.permute.xlu0 %2426
      %2428 = vrot.lane.b32.xlu0 %v1511, 127
      %v2429 = vpop.permute.xlu0 %2428
      %2430 = vrot.lane.b32.xlu0 %v1519, 127
      %v2431 = vpop.permute.xlu0 %2430
      %v2432 = vsel %vm750, %v2417, %v2425
      %v2433 = vsel %vm750, %v2419, %v2427
      %v2434 = vsel %vm750, %v2421, %v2429
      %v2435 = vsel %vm750, %v2423, %v2431
      %v2436 = vsel %vm750, %v2409, %v2417
      %v2437 = vsel %vm750, %v2411, %v2419
      %v2438 = vsel %vm750, %v2413, %v2421
      %v2439 = vsel %vm750, %v2415, %v2423
      %v2440 = vsel %vm750, %v2401, %v2409
      %v2441 = vsel %vm750, %v2403, %v2411
      %v2442 = vsel %vm750, %v2405, %v2413
      %v2443 = vsel %vm750, %v2407, %v2415
      %v2444 = vsel %vm750, %v2393, %v2401
      %v2445 = vsel %vm750, %v2395, %v2403
      %v2446 = vsel %vm750, %v2397, %v2405
      %v2447 = vsel %vm750, %v2399, %v2407
      %v2448 = vsel %vm750, %v2385, %v2393
      %v2449 = vsel %vm750, %v2387, %v2395
      %v2450 = vsel %vm750, %v2389, %v2397
      %v2451 = vsel %vm750, %v2391, %v2399
      %v2452 = vsel %vm750, %v2377, %v2385
      %v2453 = vsel %vm750, %v2379, %v2387
      %v2454 = vsel %vm750, %v2381, %v2389
      %v2455 = vsel %vm750, %v2383, %v2391
      %v2456 = vsel %vm750, %v2369, %v2377
      %v2457 = vsel %vm750, %v2371, %v2379
      %v2458 = vsel %vm750, %v2373, %v2381
      %v2459 = vsel %vm750, %v2375, %v2383
      %v2460 = vsel %vm750, %v2425, %v2369
      %v2461 = vsel %vm750, %v2427, %v2371
      %v2462 = vsel %vm750, %v2429, %v2373
      %v2463 = vsel %vm750, %v2431, %v2375
      %v2464 = vld [vmem:[%s759] ss:$8 sm:$0xf]
      %v2465 = vld [vmem:[%s759] ss:$8 sm:$0xf0]
      %v2466 = vor.u32 %v2464, %v2465
      %v2468 = vlaneseq
      %v2469 = vshrl.u32 %v2468, 7
      %v2470 = vsub.s32 0, %v2469
      %v2471 = vrot.slane %v2466, %v2470
      %v2472 = vlaneseq
      %v2473 = vshrl.u32 %v2472, 7
      %v2474 = vsub.s32 1, %v2473
      %v2475 = vrot.slane %v2466, %v2474
      %v2476 = vlaneseq
      %v2477 = vshrl.u32 %v2476, 7
      %v2478 = vsub.s32 2, %v2477
      %v2479 = vrot.slane %v2466, %v2478
      %v2480 = vlaneseq
      %v2481 = vshrl.u32 %v2480, 7
      %v2482 = vsub.s32 3, %v2481
      %v2483 = vrot.slane %v2466, %v2482
      %v2484 = vlaneseq
      %v2485 = vshrl.u32 %v2484, 7
      %v2486 = vsub.s32 4, %v2485
      %v2487 = vrot.slane %v2466, %v2486
      %v2488 = vlaneseq
      %v2489 = vshrl.u32 %v2488, 7
      %v2490 = vsub.s32 5, %v2489
      %v2491 = vrot.slane %v2466, %v2490
      %v2492 = vlaneseq
      %v2493 = vshrl.u32 %v2492, 7
      %v2494 = vsub.s32 6, %v2493
      %v2495 = vrot.slane %v2466, %v2494
      %v2496 = vlaneseq
      %v2497 = vshrl.u32 %v2496, 7
      %v2498 = vsub.s32 7, %v2497
      %v2499 = vrot.slane %v2466, %v2498
      %v2508 = vmul.f32 %v2456, %v2471
      %v2509 = vmul.f32 %v2452, %v2475
      %v2510 = vmul.f32 %v2448, %v2479
      %v2511 = vmul.f32 %v2444, %v2483
      %v2512 = vmul.f32 %v2440, %v2487
      %v2513 = vmul.f32 %v2436, %v2491
      %v2514 = vmul.f32 %v2432, %v2495
      %v2515 = vmul.f32 %v2460, %v2499
      %v2516 = vmul.f32 %v2457, %v2471
      %v2517 = vmul.f32 %v2453, %v2475
      %v2518 = vmul.f32 %v2449, %v2479
      %v2519 = vmul.f32 %v2445, %v2483
      %v2520 = vmul.f32 %v2441, %v2487
      %v2521 = vmul.f32 %v2437, %v2491
      %v2522 = vmul.f32 %v2433, %v2495
      %v2523 = vmul.f32 %v2461, %v2499
      %v2524 = vmul.f32 %v2458, %v2471
      %v2525 = vmul.f32 %v2454, %v2475
      %v2526 = vmul.f32 %v2450, %v2479
      %v2527 = vmul.f32 %v2446, %v2483
      %v2528 = vmul.f32 %v2442, %v2487
      %v2529 = vmul.f32 %v2438, %v2491
      %v2530 = vmul.f32 %v2434, %v2495
      %v2531 = vmul.f32 %v2462, %v2499
      %v2532 = vmul.f32 %v2459, %v2471
      %v2533 = vmul.f32 %v2455, %v2475
      %v2534 = vmul.f32 %v2451, %v2479
      %v2535 = vmul.f32 %v2447, %v2483
      %v2536 = vmul.f32 %v2443, %v2487
      %v2537 = vmul.f32 %v2439, %v2491
      %v2538 = vmul.f32 %v2435, %v2495
      %v2539 = vmul.f32 %v2463, %v2499
      %v2540 = vpack.c.bf16 %v2516, %v2508
      %v2541 = vpack.c.bf16 %v2517, %v2509
      %v2542 = vpack.c.bf16 %v2518, %v2510
      %v2543 = vpack.c.bf16 %v2519, %v2511
      %v2544 = vpack.c.bf16 %v2520, %v2512
      %v2545 = vpack.c.bf16 %v2521, %v2513
      %v2546 = vpack.c.bf16 %v2522, %v2514
      %v2547 = vpack.c.bf16 %v2523, %v2515
      %v2548 = vpack.c.bf16 %v2532, %v2524
      %v2549 = vpack.c.bf16 %v2533, %v2525
      %v2550 = vpack.c.bf16 %v2534, %v2526
      %v2551 = vpack.c.bf16 %v2535, %v2527
      %v2552 = vpack.c.bf16 %v2536, %v2528
      %v2553 = vpack.c.bf16 %v2537, %v2529
      %v2554 = vpack.c.bf16 %v2538, %v2530
      %v2555 = vpack.c.bf16 %v2539, %v2531
      %2556 = vst [vmem:[#allocation2 + $0x280] sm:$0xff] %v2540
      %2557 = vst [vmem:[#allocation2 + $0x288] sm:$0xff] %v2541
      %2558 = vst [vmem:[#allocation2 + $0x290] sm:$0xff] %v2542
      %2559 = vst [vmem:[#allocation2 + $0x298] sm:$0xff] %v2543
      %2560 = vst [vmem:[#allocation2 + $0x2a0] sm:$0xff] %v2544
      %2561 = vst [vmem:[#allocation2 + $0x2a8] sm:$0xff] %v2545
      %2562 = vst [vmem:[#allocation2 + $0x2b0] sm:$0xff] %v2546
      %2563 = vst [vmem:[#allocation2 + $0x2b8] sm:$0xff] %v2547
      %2564 = vst [vmem:[#allocation2 + $0x2c0] sm:$0xff] %v2548
      %2565 = vst [vmem:[#allocation2 + $0x2c8] sm:$0xff] %v2549
      %2566 = vst [vmem:[#allocation2 + $0x2d0] sm:$0xff] %v2550
      %2567 = vst [vmem:[#allocation2 + $0x2d8] sm:$0xff] %v2551
      %2568 = vst [vmem:[#allocation2 + $0x2e0] sm:$0xff] %v2552
      %2569 = vst [vmem:[#allocation2 + $0x2e8] sm:$0xff] %v2553
      %2570 = vst [vmem:[#allocation2 + $0x2f0] sm:$0xff] %v2554
      %2571 = vst [vmem:[#allocation2 + $0x2f8] sm:$0xff] %v2555
      %2572 = vrot.lane.b32.xlu0 %v1488, 97
      %v2573 = vpop.permute.xlu0 %2572
      %2574 = vrot.lane.b32.xlu0 %v1496, 97
      %v2575 = vpop.permute.xlu0 %2574
      %2576 = vrot.lane.b32.xlu0 %v1504, 97
      %v2577 = vpop.permute.xlu0 %2576
      %2578 = vrot.lane.b32.xlu0 %v1512, 97
      %v2579 = vpop.permute.xlu0 %2578
      %2580 = vrot.lane.b32.xlu0 %v1489, 97
      %v2581 = vpop.permute.xlu0 %2580
      %2582 = vrot.lane.b32.xlu0 %v1497, 97
      %v2583 = vpop.permute.xlu0 %2582
      %2584 = vrot.lane.b32.xlu0 %v1505, 97
      %v2585 = vpop.permute.xlu0 %2584
      %2586 = vrot.lane.b32.xlu0 %v1513, 97
      %v2587 = vpop.permute.xlu0 %2586
      %2588 = vrot.lane.b32.xlu0 %v1490, 97
      %v2589 = vpop.permute.xlu0 %2588
      %2590 = vrot.lane.b32.xlu0 %v1498, 97
      %v2591 = vpop.permute.xlu0 %2590
      %2592 = vrot.lane.b32.xlu0 %v1506, 97
      %v2593 = vpop.permute.xlu0 %2592
      %2594 = vrot.lane.b32.xlu0 %v1514, 97
      %v2595 = vpop.permute.xlu0 %2594
      %2596 = vrot.lane.b32.xlu0 %v1491, 97
      %v2597 = vpop.permute.xlu0 %2596
      %2598 = vrot.lane.b32.xlu0 %v1499, 97
      %v2599 = vpop.permute.xlu0 %2598
      %2600 = vrot.lane.b32.xlu0 %v1507, 97
      %v2601 = vpop.permute.xlu0 %2600
      %2602 = vrot.lane.b32.xlu0 %v1515, 97
      %v2603 = vpop.permute.xlu0 %2602
      %2604 = vrot.lane.b32.xlu0 %v1492, 97
      %v2605 = vpop.permute.xlu0 %2604
      %2606 = vrot.lane.b32.xlu0 %v1500, 97
      %v2607 = vpop.permute.xlu0 %2606
      %2608 = vrot.lane.b32.xlu0 %v1508, 97
      %v2609 = vpop.permute.xlu0 %2608
      %2610 = vrot.lane.b32.xlu0 %v1516, 97
      %v2611 = vpop.permute.xlu0 %2610
      %2612 = vrot.lane.b32.xlu0 %v1493, 97
      %v2613 = vpop.permute.xlu0 %2612
      %2614 = vrot.lane.b32.xlu0 %v1501, 97
      %v2615 = vpop.permute.xlu0 %2614
      %2616 = vrot.lane.b32.xlu0 %v1509, 97
      %v2617 = vpop.permute.xlu0 %2616
      %2618 = vrot.lane.b32.xlu0 %v1517, 97
      %v2619 = vpop.permute.xlu0 %2618
      %2620 = vrot.lane.b32.xlu0 %v1494, 97
      %v2621 = vpop.permute.xlu0 %2620
      %2622 = vrot.lane.b32.xlu0 %v1502, 97
      %v2623 = vpop.permute.xlu0 %2622
      %2624 = vrot.lane.b32.xlu0 %v1510, 97
      %v2625 = vpop.permute.xlu0 %2624
      %2626 = vrot.lane.b32.xlu0 %v1518, 97
      %v2627 = vpop.permute.xlu0 %2626
      %2628 = vrot.lane.b32.xlu0 %v1495, 97
      %v2629 = vpop.permute.xlu0 %2628
      %2630 = vrot.lane.b32.xlu0 %v1503, 97
      %v2631 = vpop.permute.xlu0 %2630
      %2632 = vrot.lane.b32.xlu0 %v1511, 97
      %v2633 = vpop.permute.xlu0 %2632
      %2634 = vrot.lane.b32.xlu0 %v1519, 97
      %v2635 = vpop.permute.xlu0 %2634
      %v2636 = vsel %vm868, %v2621, %v2629
      %v2637 = vsel %vm868, %v2623, %v2631
      %v2638 = vsel %vm868, %v2625, %v2633
      %v2639 = vsel %vm868, %v2627, %v2635
      %v2640 = vsel %vm868, %v2613, %v2621
      %v2641 = vsel %vm868, %v2615, %v2623
      %v2642 = vsel %vm868, %v2617, %v2625
      %v2643 = vsel %vm868, %v2619, %v2627
      %v2644 = vsel %vm868, %v2605, %v2613
      %v2645 = vsel %vm868, %v2607, %v2615
      %v2646 = vsel %vm868, %v2609, %v2617
      %v2647 = vsel %vm868, %v2611, %v2619
      %v2648 = vsel %vm868, %v2597, %v2605
      %v2649 = vsel %vm868, %v2599, %v2607
      %v2650 = vsel %vm868, %v2601, %v2609
      %v2651 = vsel %vm868, %v2603, %v2611
      %v2652 = vsel %vm868, %v2589, %v2597
      %v2653 = vsel %vm868, %v2591, %v2599
      %v2654 = vsel %vm868, %v2593, %v2601
      %v2655 = vsel %vm868, %v2595, %v2603
      %v2656 = vsel %vm868, %v2581, %v2589
      %v2657 = vsel %vm868, %v2583, %v2591
      %v2658 = vsel %vm868, %v2585, %v2593
      %v2659 = vsel %vm868, %v2587, %v2595
      %v2660 = vsel %vm868, %v2573, %v2581
      %v2661 = vsel %vm868, %v2575, %v2583
      %v2662 = vsel %vm868, %v2577, %v2585
      %v2663 = vsel %vm868, %v2579, %v2587
      %v2664 = vsel %vm868, %v2629, %v2573
      %v2665 = vsel %vm868, %v2631, %v2575
      %v2666 = vsel %vm868, %v2633, %v2577
      %v2667 = vsel %vm868, %v2635, %v2579
      %v2668 = vld [vmem:[%s877] ss:$8 sm:$0xf]
      %v2669 = vld [vmem:[%s877] ss:$8 sm:$0xf0]
      %v2670 = vor.u32 %v2668, %v2669
      %v2672 = vlaneseq
      %v2673 = vshrl.u32 %v2672, 7
      %v2674 = vsub.s32 0, %v2673
      %v2675 = vrot.slane %v2670, %v2674
      %v2676 = vlaneseq
      %v2677 = vshrl.u32 %v2676, 7
      %v2678 = vsub.s32 1, %v2677
      %v2679 = vrot.slane %v2670, %v2678
      %v2680 = vlaneseq
      %v2681 = vshrl.u32 %v2680, 7
      %v2682 = vsub.s32 2, %v2681
      %v2683 = vrot.slane %v2670, %v2682
      %v2684 = vlaneseq
      %v2685 = vshrl.u32 %v2684, 7
      %v2686 = vsub.s32 3, %v2685
      %v2687 = vrot.slane %v2670, %v2686
      %v2688 = vlaneseq
      %v2689 = vshrl.u32 %v2688, 7
      %v2690 = vsub.s32 4, %v2689
      %v2691 = vrot.slane %v2670, %v2690
      %v2692 = vlaneseq
      %v2693 = vshrl.u32 %v2692, 7
      %v2694 = vsub.s32 5, %v2693
      %v2695 = vrot.slane %v2670, %v2694
      %v2696 = vlaneseq
      %v2697 = vshrl.u32 %v2696, 7
      %v2698 = vsub.s32 6, %v2697
      %v2699 = vrot.slane %v2670, %v2698
      %v2700 = vlaneseq
      %v2701 = vshrl.u32 %v2700, 7
      %v2702 = vsub.s32 7, %v2701
      %v2703 = vrot.slane %v2670, %v2702
      %v2712 = vmul.f32 %v2660, %v2675
      %v2713 = vmul.f32 %v2656, %v2679
      %v2714 = vmul.f32 %v2652, %v2683
      %v2715 = vmul.f32 %v2648, %v2687
      %v2716 = vmul.f32 %v2644, %v2691
      %v2717 = vmul.f32 %v2640, %v2695
      %v2718 = vmul.f32 %v2636, %v2699
      %v2719 = vmul.f32 %v2664, %v2703
      %v2720 = vmul.f32 %v2661, %v2675
      %v2721 = vmul.f32 %v2657, %v2679
      %v2722 = vmul.f32 %v2653, %v2683
      %v2723 = vmul.f32 %v2649, %v2687
      %v2724 = vmul.f32 %v2645, %v2691
      %v2725 = vmul.f32 %v2641, %v2695
      %v2726 = vmul.f32 %v2637, %v2699
      %v2727 = vmul.f32 %v2665, %v2703
      %v2728 = vmul.f32 %v2662, %v2675
      %v2729 = vmul.f32 %v2658, %v2679
      %v2730 = vmul.f32 %v2654, %v2683
      %v2731 = vmul.f32 %v2650, %v2687
      %v2732 = vmul.f32 %v2646, %v2691
      %v2733 = vmul.f32 %v2642, %v2695
      %v2734 = vmul.f32 %v2638, %v2699
      %v2735 = vmul.f32 %v2666, %v2703
      %v2736 = vmul.f32 %v2663, %v2675
      %v2737 = vmul.f32 %v2659, %v2679
      %v2738 = vmul.f32 %v2655, %v2683
      %v2739 = vmul.f32 %v2651, %v2687
      %v2740 = vmul.f32 %v2647, %v2691
      %v2741 = vmul.f32 %v2643, %v2695
      %v2742 = vmul.f32 %v2639, %v2699
      %v2743 = vmul.f32 %v2667, %v2703
      %v2744 = vpack.c.bf16 %v2720, %v2712
      %v2745 = vpack.c.bf16 %v2721, %v2713
      %v2746 = vpack.c.bf16 %v2722, %v2714
      %v2747 = vpack.c.bf16 %v2723, %v2715
      %v2748 = vpack.c.bf16 %v2724, %v2716
      %v2749 = vpack.c.bf16 %v2725, %v2717
      %v2750 = vpack.c.bf16 %v2726, %v2718
      %v2751 = vpack.c.bf16 %v2727, %v2719
      %v2752 = vpack.c.bf16 %v2736, %v2728
      %v2753 = vpack.c.bf16 %v2737, %v2729
      %v2754 = vpack.c.bf16 %v2738, %v2730
      %v2755 = vpack.c.bf16 %v2739, %v2731
      %v2756 = vpack.c.bf16 %v2740, %v2732
      %v2757 = vpack.c.bf16 %v2741, %v2733
      %v2758 = vpack.c.bf16 %v2742, %v2734
      %v2759 = vpack.c.bf16 %v2743, %v2735
      %2760 = vst [vmem:[#allocation2 + $0x300] sm:$0xff] %v2744
      %2761 = vst [vmem:[#allocation2 + $0x308] sm:$0xff] %v2745
      %2762 = vst [vmem:[#allocation2 + $0x310] sm:$0xff] %v2746
      %2763 = vst [vmem:[#allocation2 + $0x318] sm:$0xff] %v2747
      %2764 = vst [vmem:[#allocation2 + $0x320] sm:$0xff] %v2748
      %2765 = vst [vmem:[#allocation2 + $0x328] sm:$0xff] %v2749
      %2766 = vst [vmem:[#allocation2 + $0x330] sm:$0xff] %v2750
      %2767 = vst [vmem:[#allocation2 + $0x338] sm:$0xff] %v2751
      %2768 = vst [vmem:[#allocation2 + $0x340] sm:$0xff] %v2752
      %2769 = vst [vmem:[#allocation2 + $0x348] sm:$0xff] %v2753
      %2770 = vst [vmem:[#allocation2 + $0x350] sm:$0xff] %v2754
      %2771 = vst [vmem:[#allocation2 + $0x358] sm:$0xff] %v2755
      %2772 = vst [vmem:[#allocation2 + $0x360] sm:$0xff] %v2756
      %2773 = vst [vmem:[#allocation2 + $0x368] sm:$0xff] %v2757
      %2774 = vst [vmem:[#allocation2 + $0x370] sm:$0xff] %v2758
      %2775 = vst [vmem:[#allocation2 + $0x378] sm:$0xff] %v2759
      %2776 = vrot.lane.b32.xlu0 %v1488, 96
      %v2777 = vpop.permute.xlu0 %2776
      %2778 = vrot.lane.b32.xlu0 %v1496, 96
      %v2779 = vpop.permute.xlu0 %2778
      %2780 = vrot.lane.b32.xlu0 %v1504, 96
      %v2781 = vpop.permute.xlu0 %2780
      %2782 = vrot.lane.b32.xlu0 %v1512, 96
      %v2783 = vpop.permute.xlu0 %2782
      %2784 = vrot.lane.b32.xlu0 %v1489, 96
      %v2785 = vpop.permute.xlu0 %2784
      %2786 = vrot.lane.b32.xlu0 %v1497, 96
      %v2787 = vpop.permute.xlu0 %2786
      %2788 = vrot.lane.b32.xlu0 %v1505, 96
      %v2789 = vpop.permute.xlu0 %2788
      %2790 = vrot.lane.b32.xlu0 %v1513, 96
      %v2791 = vpop.permute.xlu0 %2790
      %2792 = vrot.lane.b32.xlu0 %v1490, 96
      %v2793 = vpop.permute.xlu0 %2792
      %2794 = vrot.lane.b32.xlu0 %v1498, 96
      %v2795 = vpop.permute.xlu0 %2794
      %2796 = vrot.lane.b32.xlu0 %v1506, 96
      %v2797 = vpop.permute.xlu0 %2796
      %2798 = vrot.lane.b32.xlu0 %v1514, 96
      %v2799 = vpop.permute.xlu0 %2798
      %2800 = vrot.lane.b32.xlu0 %v1491, 96
      %v2801 = vpop.permute.xlu0 %2800
      %2802 = vrot.lane.b32.xlu0 %v1499, 96
      %v2803 = vpop.permute.xlu0 %2802
      %2804 = vrot.lane.b32.xlu0 %v1507, 96
      %v2805 = vpop.permute.xlu0 %2804
      %2806 = vrot.lane.b32.xlu0 %v1515, 96
      %v2807 = vpop.permute.xlu0 %2806
      %2808 = vrot.lane.b32.xlu0 %v1492, 96
      %v2809 = vpop.permute.xlu0 %2808
      %2810 = vrot.lane.b32.xlu0 %v1500, 96
      %v2811 = vpop.permute.xlu0 %2810
      %2812 = vrot.lane.b32.xlu0 %v1508, 96
      %v2813 = vpop.permute.xlu0 %2812
      %2814 = vrot.lane.b32.xlu0 %v1516, 96
      %v2815 = vpop.permute.xlu0 %2814
      %2816 = vrot.lane.b32.xlu0 %v1493, 96
      %v2817 = vpop.permute.xlu0 %2816
      %2818 = vrot.lane.b32.xlu0 %v1501, 96
      %v2819 = vpop.permute.xlu0 %2818
      %2820 = vrot.lane.b32.xlu0 %v1509, 96
      %v2821 = vpop.permute.xlu0 %2820
      %2822 = vrot.lane.b32.xlu0 %v1517, 96
      %v2823 = vpop.permute.xlu0 %2822
      %2824 = vrot.lane.b32.xlu0 %v1494, 96
      %v2825 = vpop.permute.xlu0 %2824
      %2826 = vrot.lane.b32.xlu0 %v1502, 96
      %v2827 = vpop.permute.xlu0 %2826
      %2828 = vrot.lane.b32.xlu0 %v1510, 96
      %v2829 = vpop.permute.xlu0 %2828
      %2830 = vrot.lane.b32.xlu0 %v1518, 96
      %v2831 = vpop.permute.xlu0 %2830
      %2832 = vrot.lane.b32.xlu0 %v1495, 96
      %v2833 = vpop.permute.xlu0 %2832
      %2834 = vrot.lane.b32.xlu0 %v1503, 96
      %v2835 = vpop.permute.xlu0 %2834
      %2836 = vrot.lane.b32.xlu0 %v1511, 96
      %v2837 = vpop.permute.xlu0 %2836
      %2838 = vrot.lane.b32.xlu0 %v1519, 96
      %v2839 = vpop.permute.xlu0 %2838
      %v2840 = vsel %vm986, %v2825, %v2833
      %v2841 = vsel %vm986, %v2827, %v2835
      %v2842 = vsel %vm986, %v2829, %v2837
      %v2843 = vsel %vm986, %v2831, %v2839
      %v2844 = vsel %vm986, %v2817, %v2825
      %v2845 = vsel %vm986, %v2819, %v2827
      %v2846 = vsel %vm986, %v2821, %v2829
      %v2847 = vsel %vm986, %v2823, %v2831
      %v2848 = vsel %vm986, %v2809, %v2817
      %v2849 = vsel %vm986, %v2811, %v2819
      %v2850 = vsel %vm986, %v2813, %v2821
      %v2851 = vsel %vm986, %v2815, %v2823
      %v2852 = vsel %vm986, %v2801, %v2809
      %v2853 = vsel %vm986, %v2803, %v2811
      %v2854 = vsel %vm986, %v2805, %v2813
      %v2855 = vsel %vm986, %v2807, %v2815
      %v2856 = vsel %vm986, %v2793, %v2801
      %v2857 = vsel %vm986, %v2795, %v2803
      %v2858 = vsel %vm986, %v2797, %v2805
      %v2859 = vsel %vm986, %v2799, %v2807
      %v2860 = vsel %vm986, %v2785, %v2793
      %v2861 = vsel %vm986, %v2787, %v2795
      %v2862 = vsel %vm986, %v2789, %v2797
      %v2863 = vsel %vm986, %v2791, %v2799
      %v2864 = vsel %vm986, %v2777, %v2785
      %v2865 = vsel %vm986, %v2779, %v2787
      %v2866 = vsel %vm986, %v2781, %v2789
      %v2867 = vsel %vm986, %v2783, %v2791
      %v2868 = vsel %vm986, %v2833, %v2777
      %v2869 = vsel %vm986, %v2835, %v2779
      %v2870 = vsel %vm986, %v2837, %v2781
      %v2871 = vsel %vm986, %v2839, %v2783
      %v2872 = vld [vmem:[%s995] ss:$8 sm:$0xf]
      %v2873 = vld [vmem:[%s995] ss:$8 sm:$0xf0]
      %v2874 = vor.u32 %v2872, %v2873
      %v2876 = vlaneseq
      %v2877 = vshrl.u32 %v2876, 7
      %v2878 = vsub.s32 0, %v2877
      %v2879 = vrot.slane %v2874, %v2878
      %v2880 = vlaneseq
      %v2881 = vshrl.u32 %v2880, 7
      %v2882 = vsub.s32 1, %v2881
      %v2883 = vrot.slane %v2874, %v2882
      %v2884 = vlaneseq
      %v2885 = vshrl.u32 %v2884, 7
      %v2886 = vsub.s32 2, %v2885
      %v2887 = vrot.slane %v2874, %v2886
      %v2888 = vlaneseq
      %v2889 = vshrl.u32 %v2888, 7
      %v2890 = vsub.s32 3, %v2889
      %v2891 = vrot.slane %v2874, %v2890
      %v2892 = vlaneseq
      %v2893 = vshrl.u32 %v2892, 7
      %v2894 = vsub.s32 4, %v2893
      %v2895 = vrot.slane %v2874, %v2894
      %v2896 = vlaneseq
      %v2897 = vshrl.u32 %v2896, 7
      %v2898 = vsub.s32 5, %v2897
      %v2899 = vrot.slane %v2874, %v2898
      %v2900 = vlaneseq
      %v2901 = vshrl.u32 %v2900, 7
      %v2902 = vsub.s32 6, %v2901
      %v2903 = vrot.slane %v2874, %v2902
      %v2904 = vlaneseq
      %v2905 = vshrl.u32 %v2904, 7
      %v2906 = vsub.s32 7, %v2905
      %v2907 = vrot.slane %v2874, %v2906
      %v2916 = vmul.f32 %v2864, %v2879
      %v2917 = vmul.f32 %v2860, %v2883
      %v2918 = vmul.f32 %v2856, %v2887
      %v2919 = vmul.f32 %v2852, %v2891
      %v2920 = vmul.f32 %v2848, %v2895
      %v2921 = vmul.f32 %v2844, %v2899
      %v2922 = vmul.f32 %v2840, %v2903
      %v2923 = vmul.f32 %v2868, %v2907
      %v2924 = vmul.f32 %v2865, %v2879
      %v2925 = vmul.f32 %v2861, %v2883
      %v2926 = vmul.f32 %v2857, %v2887
      %v2927 = vmul.f32 %v2853, %v2891
      %v2928 = vmul.f32 %v2849, %v2895
      %v2929 = vmul.f32 %v2845, %v2899
      %v2930 = vmul.f32 %v2841, %v2903
      %v2931 = vmul.f32 %v2869, %v2907
      %v2932 = vmul.f32 %v2866, %v2879
      %v2933 = vmul.f32 %v2862, %v2883
      %v2934 = vmul.f32 %v2858, %v2887
      %v2935 = vmul.f32 %v2854, %v2891
      %v2936 = vmul.f32 %v2850, %v2895
      %v2937 = vmul.f32 %v2846, %v2899
      %v2938 = vmul.f32 %v2842, %v2903
      %v2939 = vmul.f32 %v2870, %v2907
      %v2940 = vmul.f32 %v2867, %v2879
      %v2941 = vmul.f32 %v2863, %v2883
      %v2942 = vmul.f32 %v2859, %v2887
      %v2943 = vmul.f32 %v2855, %v2891
      %v2944 = vmul.f32 %v2851, %v2895
      %v2945 = vmul.f32 %v2847, %v2899
      %v2946 = vmul.f32 %v2843, %v2903
      %v2947 = vmul.f32 %v2871, %v2907
      %v2948 = vpack.c.bf16 %v2924, %v2916
      %v2949 = vpack.c.bf16 %v2925, %v2917
      %v2950 = vpack.c.bf16 %v2926, %v2918
      %v2951 = vpack.c.bf16 %v2927, %v2919
      %v2952 = vpack.c.bf16 %v2928, %v2920
      %v2953 = vpack.c.bf16 %v2929, %v2921
      %v2954 = vpack.c.bf16 %v2930, %v2922
      %v2955 = vpack.c.bf16 %v2931, %v2923
      %v2956 = vpack.c.bf16 %v2940, %v2932
      %v2957 = vpack.c.bf16 %v2941, %v2933
      %v2958 = vpack.c.bf16 %v2942, %v2934
      %v2959 = vpack.c.bf16 %v2943, %v2935
      %v2960 = vpack.c.bf16 %v2944, %v2936
      %v2961 = vpack.c.bf16 %v2945, %v2937
      %v2962 = vpack.c.bf16 %v2946, %v2938
      %v2963 = vpack.c.bf16 %v2947, %v2939
      %2964 = vst [vmem:[#allocation2 + $0x380] sm:$0xff] %v2948
      %2965 = vst [vmem:[#allocation2 + $0x388] sm:$0xff] %v2949
      %2966 = vst [vmem:[#allocation2 + $0x390] sm:$0xff] %v2950
      %2967 = vst [vmem:[#allocation2 + $0x398] sm:$0xff] %v2951
      %2968 = vst [vmem:[#allocation2 + $0x3a0] sm:$0xff] %v2952
      %2969 = vst [vmem:[#allocation2 + $0x3a8] sm:$0xff] %v2953
      %2970 = vst [vmem:[#allocation2 + $0x3b0] sm:$0xff] %v2954
      %2971 = vst [vmem:[#allocation2 + $0x3b8] sm:$0xff] %v2955
      %2972 = vst [vmem:[#allocation2 + $0x3c0] sm:$0xff] %v2956
      %2973 = vst [vmem:[#allocation2 + $0x3c8] sm:$0xff] %v2957
      %2974 = vst [vmem:[#allocation2 + $0x3d0] sm:$0xff] %v2958
      %2975 = vst [vmem:[#allocation2 + $0x3d8] sm:$0xff] %v2959
      %2976 = vst [vmem:[#allocation2 + $0x3e0] sm:$0xff] %v2960
      %2977 = vst [vmem:[#allocation2 + $0x3e8] sm:$0xff] %v2961
      %2978 = vst [vmem:[#allocation2 + $0x3f0] sm:$0xff] %v2962
      %2979 = vst [vmem:[#allocation2 + $0x3f8] sm:$0xff] %v2963
      %2980 = vrot.lane.b32.xlu0 %v1488, 95
      %v2981 = vpop.permute.xlu0 %2980
      %2982 = vrot.lane.b32.xlu0 %v1496, 95
      %v2983 = vpop.permute.xlu0 %2982
      %2984 = vrot.lane.b32.xlu0 %v1504, 95
      %v2985 = vpop.permute.xlu0 %2984
      %2986 = vrot.lane.b32.xlu0 %v1512, 95
      %v2987 = vpop.permute.xlu0 %2986
      %2988 = vrot.lane.b32.xlu0 %v1489, 95
      %v2989 = vpop.permute.xlu0 %2988
      %2990 = vrot.lane.b32.xlu0 %v1497, 95
      %v2991 = vpop.permute.xlu0 %2990
      %2992 = vrot.lane.b32.xlu0 %v1505, 95
      %v2993 = vpop.permute.xlu0 %2992
      %2994 = vrot.lane.b32.xlu0 %v1513, 95
      %v2995 = vpop.permute.xlu0 %2994
      %2996 = vrot.lane.b32.xlu0 %v1490, 95
      %v2997 = vpop.permute.xlu0 %2996
      %2998 = vrot.lane.b32.xlu0 %v1498, 95
      %v2999 = vpop.permute.xlu0 %2998
      %3000 = vrot.lane.b32.xlu0 %v1506, 95
      %v3001 = vpop.permute.xlu0 %3000
      %3002 = vrot.lane.b32.xlu0 %v1514, 95
      %v3003 = vpop.permute.xlu0 %3002
      %3004 = vrot.lane.b32.xlu0 %v1491, 95
      %v3005 = vpop.permute.xlu0 %3004
      %3006 = vrot.lane.b32.xlu0 %v1499, 95
      %v3007 = vpop.permute.xlu0 %3006
      %3008 = vrot.lane.b32.xlu0 %v1507, 95
      %v3009 = vpop.permute.xlu0 %3008
      %3010 = vrot.lane.b32.xlu0 %v1515, 95
      %v3011 = vpop.permute.xlu0 %3010
      %3012 = vrot.lane.b32.xlu0 %v1492, 95
      %v3013 = vpop.permute.xlu0 %3012
      %3014 = vrot.lane.b32.xlu0 %v1500, 95
      %v3015 = vpop.permute.xlu0 %3014
      %3016 = vrot.lane.b32.xlu0 %v1508, 95
      %v3017 = vpop.permute.xlu0 %3016
      %3018 = vrot.lane.b32.xlu0 %v1516, 95
      %v3019 = vpop.permute.xlu0 %3018
      %3020 = vrot.lane.b32.xlu0 %v1493, 95
      %v3021 = vpop.permute.xlu0 %3020
      %3022 = vrot.lane.b32.xlu0 %v1501, 95
      %v3023 = vpop.permute.xlu0 %3022
      %3024 = vrot.lane.b32.xlu0 %v1509, 95
      %v3025 = vpop.permute.xlu0 %3024
      %3026 = vrot.lane.b32.xlu0 %v1517, 95
      %v3027 = vpop.permute.xlu0 %3026
      %3028 = vrot.lane.b32.xlu0 %v1494, 95
      %v3029 = vpop.permute.xlu0 %3028
      %3030 = vrot.lane.b32.xlu0 %v1502, 95
      %v3031 = vpop.permute.xlu0 %3030
      %3032 = vrot.lane.b32.xlu0 %v1510, 95
      %v3033 = vpop.permute.xlu0 %3032
      %3034 = vrot.lane.b32.xlu0 %v1518, 95
      %v3035 = vpop.permute.xlu0 %3034
      %3036 = vrot.lane.b32.xlu0 %v1495, 95
      %v3037 = vpop.permute.xlu0 %3036
      %3038 = vrot.lane.b32.xlu0 %v1503, 95
      %v3039 = vpop.permute.xlu0 %3038
      %3040 = vrot.lane.b32.xlu0 %v1511, 95
      %v3041 = vpop.permute.xlu0 %3040
      %3042 = vrot.lane.b32.xlu0 %v1519, 95
      %v3043 = vpop.permute.xlu0 %3042
      %v3044 = vsel %vm1104, %v3029, %v3037
      %v3045 = vsel %vm1104, %v3031, %v3039
      %v3046 = vsel %vm1104, %v3033, %v3041
      %v3047 = vsel %vm1104, %v3035, %v3043
      %v3048 = vsel %vm1104, %v3021, %v3029
      %v3049 = vsel %vm1104, %v3023, %v3031
      %v3050 = vsel %vm1104, %v3025, %v3033
      %v3051 = vsel %vm1104, %v3027, %v3035
      %v3052 = vsel %vm1104, %v3013, %v3021
      %v3053 = vsel %vm1104, %v3015, %v3023
      %v3054 = vsel %vm1104, %v3017, %v3025
      %v3055 = vsel %vm1104, %v3019, %v3027
      %v3056 = vsel %vm1104, %v3005, %v3013
      %v3057 = vsel %vm1104, %v3007, %v3015
      %v3058 = vsel %vm1104, %v3009, %v3017
      %v3059 = vsel %vm1104, %v3011, %v3019
      %v3060 = vsel %vm1104, %v2997, %v3005
      %v3061 = vsel %vm1104, %v2999, %v3007
      %v3062 = vsel %vm1104, %v3001, %v3009
      %v3063 = vsel %vm1104, %v3003, %v3011
      %v3064 = vsel %vm1104, %v2989, %v2997
      %v3065 = vsel %vm1104, %v2991, %v2999
      %v3066 = vsel %vm1104, %v2993, %v3001
      %v3067 = vsel %vm1104, %v2995, %v3003
      %v3068 = vsel %vm1104, %v2981, %v2989
      %v3069 = vsel %vm1104, %v2983, %v2991
      %v3070 = vsel %vm1104, %v2985, %v2993
      %v3071 = vsel %vm1104, %v2987, %v2995
      %v3072 = vsel %vm1104, %v3037, %v2981
      %v3073 = vsel %vm1104, %v3039, %v2983
      %v3074 = vsel %vm1104, %v3041, %v2985
      %v3075 = vsel %vm1104, %v3043, %v2987
      %v3076 = vld [vmem:[%s1113] ss:$8 sm:$0xf]
      %v3077 = vld [vmem:[%s1113] ss:$8 sm:$0xf0]
      %v3078 = vor.u32 %v3076, %v3077
      %v3080 = vlaneseq
      %v3081 = vshrl.u32 %v3080, 7
      %v3082 = vsub.s32 0, %v3081
      %v3083 = vrot.slane %v3078, %v3082
      %v3084 = vlaneseq
      %v3085 = vshrl.u32 %v3084, 7
      %v3086 = vsub.s32 1, %v3085
      %v3087 = vrot.slane %v3078, %v3086
      %v3088 = vlaneseq
      %v3089 = vshrl.u32 %v3088, 7
      %v3090 = vsub.s32 2, %v3089
      %v3091 = vrot.slane %v3078, %v3090
      %v3092 = vlaneseq
      %v3093 = vshrl.u32 %v3092, 7
      %v3094 = vsub.s32 3, %v3093
      %v3095 = vrot.slane %v3078, %v3094
      %v3096 = vlaneseq
      %v3097 = vshrl.u32 %v3096, 7
      %v3098 = vsub.s32 4, %v3097
      %v3099 = vrot.slane %v3078, %v3098
      %v3100 = vlaneseq
      %v3101 = vshrl.u32 %v3100, 7
      %v3102 = vsub.s32 5, %v3101
      %v3103 = vrot.slane %v3078, %v3102
      %v3104 = vlaneseq
      %v3105 = vshrl.u32 %v3104, 7
      %v3106 = vsub.s32 6, %v3105
      %v3107 = vrot.slane %v3078, %v3106
      %v3108 = vlaneseq
      %v3109 = vshrl.u32 %v3108, 7
      %v3110 = vsub.s32 7, %v3109
      %v3111 = vrot.slane %v3078, %v3110
      %v3120 = vmul.f32 %v3068, %v3083
      %v3121 = vmul.f32 %v3064, %v3087
      %v3122 = vmul.f32 %v3060, %v3091
      %v3123 = vmul.f32 %v3056, %v3095
      %v3124 = vmul.f32 %v3052, %v3099
      %v3125 = vmul.f32 %v3048, %v3103
      %v3126 = vmul.f32 %v3044, %v3107
      %v3127 = vmul.f32 %v3072, %v3111
      %v3128 = vmul.f32 %v3069, %v3083
      %v3129 = vmul.f32 %v3065, %v3087
      %v3130 = vmul.f32 %v3061, %v3091
      %v3131 = vmul.f32 %v3057, %v3095
      %v3132 = vmul.f32 %v3053, %v3099
      %v3133 = vmul.f32 %v3049, %v3103
      %v3134 = vmul.f32 %v3045, %v3107
      %v3135 = vmul.f32 %v3073, %v3111
      %v3136 = vmul.f32 %v3070, %v3083
      %v3137 = vmul.f32 %v3066, %v3087
      %v3138 = vmul.f32 %v3062, %v3091
      %v3139 = vmul.f32 %v3058, %v3095
      %v3140 = vmul.f32 %v3054, %v3099
      %v3141 = vmul.f32 %v3050, %v3103
      %v3142 = vmul.f32 %v3046, %v3107
      %v3143 = vmul.f32 %v3074, %v3111
      %v3144 = vmul.f32 %v3071, %v3083
      %v3145 = vmul.f32 %v3067, %v3087
      %v3146 = vmul.f32 %v3063, %v3091
      %v3147 = vmul.f32 %v3059, %v3095
      %v3148 = vmul.f32 %v3055, %v3099
      %v3149 = vmul.f32 %v3051, %v3103
      %v3150 = vmul.f32 %v3047, %v3107
      %v3151 = vmul.f32 %v3075, %v3111
      %v3152 = vpack.c.bf16 %v3128, %v3120
      %v3153 = vpack.c.bf16 %v3129, %v3121
      %v3154 = vpack.c.bf16 %v3130, %v3122
      %v3155 = vpack.c.bf16 %v3131, %v3123
      %v3156 = vpack.c.bf16 %v3132, %v3124
      %v3157 = vpack.c.bf16 %v3133, %v3125
      %v3158 = vpack.c.bf16 %v3134, %v3126
      %v3159 = vpack.c.bf16 %v3135, %v3127
      %v3160 = vpack.c.bf16 %v3144, %v3136
      %v3161 = vpack.c.bf16 %v3145, %v3137
      %v3162 = vpack.c.bf16 %v3146, %v3138
      %v3163 = vpack.c.bf16 %v3147, %v3139
      %v3164 = vpack.c.bf16 %v3148, %v3140
      %v3165 = vpack.c.bf16 %v3149, %v3141
      %v3166 = vpack.c.bf16 %v3150, %v3142
      %v3167 = vpack.c.bf16 %v3151, %v3143
      %3168 = vst [vmem:[#allocation2 + $0x400] sm:$0xff] %v3152
      %3169 = vst [vmem:[#allocation2 + $0x408] sm:$0xff] %v3153
      %3170 = vst [vmem:[#allocation2 + $0x410] sm:$0xff] %v3154
      %3171 = vst [vmem:[#allocation2 + $0x418] sm:$0xff] %v3155
      %3172 = vst [vmem:[#allocation2 + $0x420] sm:$0xff] %v3156
      %3173 = vst [vmem:[#allocation2 + $0x428] sm:$0xff] %v3157
      %3174 = vst [vmem:[#allocation2 + $0x430] sm:$0xff] %v3158
      %3175 = vst [vmem:[#allocation2 + $0x438] sm:$0xff] %v3159
      %3176 = vst [vmem:[#allocation2 + $0x440] sm:$0xff] %v3160
      %3177 = vst [vmem:[#allocation2 + $0x448] sm:$0xff] %v3161
      %3178 = vst [vmem:[#allocation2 + $0x450] sm:$0xff] %v3162
      %3179 = vst [vmem:[#allocation2 + $0x458] sm:$0xff] %v3163
      %3180 = vst [vmem:[#allocation2 + $0x460] sm:$0xff] %v3164
      %3181 = vst [vmem:[#allocation2 + $0x468] sm:$0xff] %v3165
      %3182 = vst [vmem:[#allocation2 + $0x470] sm:$0xff] %v3166
      %3183 = vst [vmem:[#allocation2 + $0x478] sm:$0xff] %v3167
      %v3184 = vld [vmem:[%s4] sm:$0xff]
      %v3185 = vld [vmem:[%s4 + $0x8] sm:$0xf]
      %v3186 = vld [vmem:[%s4 + $0xc] sm:$0xff]
      %v3187 = vld [vmem:[%s4 + $0x14] sm:$0xf]
      %v3188 = vld [vmem:[%s4 + $0x18] sm:$0xff]
      %v3189 = vld [vmem:[%s4 + $0x20] sm:$0xf]
      %v3190 = vld [vmem:[%s4 + $0x24] sm:$0xff]
      %v3191 = vld [vmem:[%s4 + $0x2c] sm:$0xf]
      %v3192 = vld [vmem:[#allocation2] sm:$0xff]
      %v3193 = vld [vmem:[#allocation2 + $0x8] sm:$0xff]
      %v3194 = vld [vmem:[#allocation2 + $0x10] sm:$0xff]
      %v3195 = vld [vmem:[#allocation2 + $0x18] sm:$0xff]
      %v3196 = vld [vmem:[#allocation2 + $0x20] sm:$0xff]
      %v3197 = vld [vmem:[#allocation2 + $0x28] sm:$0xff]
      %v3198 = vld [vmem:[#allocation2 + $0x30] sm:$0xff]
      %v3199 = vld [vmem:[#allocation2 + $0x38] sm:$0xff]
      %v3200 = vld [vmem:[#allocation2 + $0x40] sm:$0xff]
      %v3201 = vld [vmem:[#allocation2 + $0x48] sm:$0xff]
      %v3202 = vld [vmem:[#allocation2 + $0x50] sm:$0xff]
      %v3203 = vld [vmem:[#allocation2 + $0x58] sm:$0xff]
      %v3204 = vld [vmem:[#allocation2 + $0x60] sm:$0xff]
      %v3205 = vld [vmem:[#allocation2 + $0x68] sm:$0xff]
      %v3206 = vld [vmem:[#allocation2 + $0x70] sm:$0xff]
      %v3207 = vld [vmem:[#allocation2 + $0x78] sm:$0xff]
      %v3208 = vld [vmem:[#allocation2 + $0x80] sm:$0xff]
      %v3209 = vld [vmem:[#allocation2 + $0x88] sm:$0xff]
      %v3210 = vld [vmem:[#allocation2 + $0x90] sm:$0xff]
      %v3211 = vld [vmem:[#allocation2 + $0x98] sm:$0xff]
      %v3212 = vld [vmem:[#allocation2 + $0xa0] sm:$0xff]
      %v3213 = vld [vmem:[#allocation2 + $0xa8] sm:$0xff]
      %v3214 = vld [vmem:[#allocation2 + $0xb0] sm:$0xff]
      %v3215 = vld [vmem:[#allocation2 + $0xb8] sm:$0xff]
      %v3216 = vld [vmem:[#allocation2 + $0xc0] sm:$0xff]
      %v3217 = vld [vmem:[#allocation2 + $0xc8] sm:$0xff]
      %v3218 = vld [vmem:[#allocation2 + $0xd0] sm:$0xff]
      %v3219 = vld [vmem:[#allocation2 + $0xd8] sm:$0xff]
      %v3220 = vld [vmem:[#allocation2 + $0xe0] sm:$0xff]
      %v3221 = vld [vmem:[#allocation2 + $0xe8] sm:$0xff]
      %v3222 = vld [vmem:[#allocation2 + $0xf0] sm:$0xff]
      %v3223 = vld [vmem:[#allocation2 + $0xf8] sm:$0xff]
      %v3224 = vld [vmem:[#allocation2 + $0x100] sm:$0xff]
      %v3225 = vld [vmem:[#allocation2 + $0x108] sm:$0xff]
      %v3226 = vld [vmem:[#allocation2 + $0x110] sm:$0xff]
      %v3227 = vld [vmem:[#allocation2 + $0x118] sm:$0xff]
      %v3228 = vld [vmem:[#allocation2 + $0x120] sm:$0xff]
      %v3229 = vld [vmem:[#allocation2 + $0x128] sm:$0xff]
      %v3230 = vld [vmem:[#allocation2 + $0x130] sm:$0xff]
      %v3231 = vld [vmem:[#allocation2 + $0x138] sm:$0xff]
      %v3232 = vld [vmem:[#allocation2 + $0x140] sm:$0xff]
      %v3233 = vld [vmem:[#allocation2 + $0x148] sm:$0xff]
      %v3234 = vld [vmem:[#allocation2 + $0x150] sm:$0xff]
      %v3235 = vld [vmem:[#allocation2 + $0x158] sm:$0xff]
      %v3236 = vld [vmem:[#allocation2 + $0x160] sm:$0xff]
      %v3237 = vld [vmem:[#allocation2 + $0x168] sm:$0xff]
      %v3238 = vld [vmem:[#allocation2 + $0x170] sm:$0xff]
      %v3239 = vld [vmem:[#allocation2 + $0x178] sm:$0xff]
      %v3240 = vld [vmem:[#allocation2 + $0x180] sm:$0xff]
      %v3241 = vld [vmem:[#allocation2 + $0x188] sm:$0xff]
      %v3242 = vld [vmem:[#allocation2 + $0x190] sm:$0xff]
      %v3243 = vld [vmem:[#allocation2 + $0x198] sm:$0xff]
      %v3244 = vld [vmem:[#allocation2 + $0x1a0] sm:$0xff]
      %v3245 = vld [vmem:[#allocation2 + $0x1a8] sm:$0xff]
      %v3246 = vld [vmem:[#allocation2 + $0x1b0] sm:$0xff]
      %v3247 = vld [vmem:[#allocation2 + $0x1b8] sm:$0xff]
      %v3248 = vld [vmem:[#allocation2 + $0x1c0] sm:$0xff]
      %v3249 = vld [vmem:[#allocation2 + $0x1c8] sm:$0xff]
      %v3250 = vld [vmem:[#allocation2 + $0x1d0] sm:$0xff]
      %v3251 = vld [vmem:[#allocation2 + $0x1d8] sm:$0xff]
      %v3252 = vld [vmem:[#allocation2 + $0x1e0] sm:$0xff]
      %v3253 = vld [vmem:[#allocation2 + $0x1e8] sm:$0xff]
      %v3254 = vld [vmem:[#allocation2 + $0x1f0] sm:$0xff]
      %v3255 = vld [vmem:[#allocation2 + $0x1f8] sm:$0xff]
      %v3256 = vld [vmem:[#allocation2 + $0x200] sm:$0xff]
      %v3257 = vld [vmem:[#allocation2 + $0x208] sm:$0xff]
      %v3258 = vld [vmem:[#allocation2 + $0x210] sm:$0xff]
      %v3259 = vld [vmem:[#allocation2 + $0x218] sm:$0xff]
      %v3260 = vld [vmem:[#allocation2 + $0x220] sm:$0xff]
      %v3261 = vld [vmem:[#allocation2 + $0x228] sm:$0xff]
      %v3262 = vld [vmem:[#allocation2 + $0x230] sm:$0xff]
      %v3263 = vld [vmem:[#allocation2 + $0x238] sm:$0xff]
      %v3264 = vld [vmem:[#allocation2 + $0x240] sm:$0xff]
      %v3265 = vld [vmem:[#allocation2 + $0x248] sm:$0xff]
      %v3266 = vld [vmem:[#allocation2 + $0x250] sm:$0xff]
      %v3267 = vld [vmem:[#allocation2 + $0x258] sm:$0xff]
      %v3268 = vld [vmem:[#allocation2 + $0x260] sm:$0xff]
      %v3269 = vld [vmem:[#allocation2 + $0x268] sm:$0xff]
      %v3270 = vld [vmem:[#allocation2 + $0x270] sm:$0xff]
      %v3271 = vld [vmem:[#allocation2 + $0x278] sm:$0xff]
      %v3272 = vld [vmem:[#allocation2 + $0x280] sm:$0xff]
      %v3273 = vld [vmem:[#allocation2 + $0x288] sm:$0xff]
      %v3274 = vld [vmem:[#allocation2 + $0x290] sm:$0xff]
      %v3275 = vld [vmem:[#allocation2 + $0x298] sm:$0xff]
      %v3276 = vld [vmem:[#allocation2 + $0x2a0] sm:$0xff]
      %v3277 = vld [vmem:[#allocation2 + $0x2a8] sm:$0xff]
      %v3278 = vld [vmem:[#allocation2 + $0x2b0] sm:$0xff]
      %v3279 = vld [vmem:[#allocation2 + $0x2b8] sm:$0xff]
      %v3280 = vld [vmem:[#allocation2 + $0x2c0] sm:$0xff]
      %v3281 = vld [vmem:[#allocation2 + $0x2c8] sm:$0xff]
      %v3282 = vld [vmem:[#allocation2 + $0x2d0] sm:$0xff]
      %v3283 = vld [vmem:[#allocation2 + $0x2d8] sm:$0xff]
      %v3284 = vld [vmem:[#allocation2 + $0x2e0] sm:$0xff]
      %v3285 = vld [vmem:[#allocation2 + $0x2e8] sm:$0xff]
      %v3286 = vld [vmem:[#allocation2 + $0x2f0] sm:$0xff]
      %v3287 = vld [vmem:[#allocation2 + $0x2f8] sm:$0xff]
      %v3288 = vld [vmem:[#allocation2 + $0x300] sm:$0xff]
      %v3289 = vld [vmem:[#allocation2 + $0x308] sm:$0xff]
      %v3290 = vld [vmem:[#allocation2 + $0x310] sm:$0xff]
      %v3291 = vld [vmem:[#allocation2 + $0x318] sm:$0xff]
      %v3292 = vld [vmem:[#allocation2 + $0x320] sm:$0xff]
      %v3293 = vld [vmem:[#allocation2 + $0x328] sm:$0xff]
      %v3294 = vld [vmem:[#allocation2 + $0x330] sm:$0xff]
      %v3295 = vld [vmem:[#allocation2 + $0x338] sm:$0xff]
      %v3296 = vld [vmem:[#allocation2 + $0x340] sm:$0xff]
      %v3297 = vld [vmem:[#allocation2 + $0x348] sm:$0xff]
      %v3298 = vld [vmem:[#allocation2 + $0x350] sm:$0xff]
      %v3299 = vld [vmem:[#allocation2 + $0x358] sm:$0xff]
      %v3300 = vld [vmem:[#allocation2 + $0x360] sm:$0xff]
      %v3301 = vld [vmem:[#allocation2 + $0x368] sm:$0xff]
      %v3302 = vld [vmem:[#allocation2 + $0x370] sm:$0xff]
      %v3303 = vld [vmem:[#allocation2 + $0x378] sm:$0xff]
      %v3304 = vld [vmem:[#allocation2 + $0x380] sm:$0xff]
      %v3305 = vld [vmem:[#allocation2 + $0x388] sm:$0xff]
      %v3306 = vld [vmem:[#allocation2 + $0x390] sm:$0xff]
      %v3307 = vld [vmem:[#allocation2 + $0x398] sm:$0xff]
      %v3308 = vld [vmem:[#allocation2 + $0x3a0] sm:$0xff]
      %v3309 = vld [vmem:[#allocation2 + $0x3a8] sm:$0xff]
      %v3310 = vld [vmem:[#allocation2 + $0x3b0] sm:$0xff]
      %v3311 = vld [vmem:[#allocation2 + $0x3b8] sm:$0xff]
      %v3312 = vld [vmem:[#allocation2 + $0x3c0] sm:$0xff]
      %v3313 = vld [vmem:[#allocation2 + $0x3c8] sm:$0xff]
      %v3314 = vld [vmem:[#allocation2 + $0x3d0] sm:$0xff]
      %v3315 = vld [vmem:[#allocation2 + $0x3d8] sm:$0xff]
      %v3316 = vld [vmem:[#allocation2 + $0x3e0] sm:$0xff]
      %v3317 = vld [vmem:[#allocation2 + $0x3e8] sm:$0xff]
      %v3318 = vld [vmem:[#allocation2 + $0x3f0] sm:$0xff]
      %v3319 = vld [vmem:[#allocation2 + $0x3f8] sm:$0xff]
      %v3320 = vld [vmem:[#allocation2 + $0x400] sm:$0xff]
      %v3321 = vld [vmem:[#allocation2 + $0x408] sm:$0xff]
      %v3322 = vld [vmem:[#allocation2 + $0x410] sm:$0xff]
      %v3323 = vld [vmem:[#allocation2 + $0x418] sm:$0xff]
      %v3324 = vld [vmem:[#allocation2 + $0x420] sm:$0xff]
      %v3325 = vld [vmem:[#allocation2 + $0x428] sm:$0xff]
      %v3326 = vld [vmem:[#allocation2 + $0x430] sm:$0xff]
      %v3327 = vld [vmem:[#allocation2 + $0x438] sm:$0xff]
      %v3328 = vld [vmem:[#allocation2 + $0x440] sm:$0xff]
      %v3329 = vld [vmem:[#allocation2 + $0x448] sm:$0xff]
      %v3330 = vld [vmem:[#allocation2 + $0x450] sm:$0xff]
      %v3331 = vld [vmem:[#allocation2 + $0x458] sm:$0xff]
      %v3332 = vld [vmem:[#allocation2 + $0x460] sm:$0xff]
      %v3333 = vld [vmem:[#allocation2 + $0x468] sm:$0xff]
      %v3334 = vld [vmem:[#allocation2 + $0x470] sm:$0xff]
      %v3335 = vld [vmem:[#allocation2 + $0x478] sm:$0xff]
      %v3336 = vld [vmem:[%s2] sm:$0xff]
      %v3337 = vld [vmem:[%s2 + $0x8] sm:$0xff]
      %v3338 = vld [vmem:[%s2 + $0x10] sm:$0xff]
      %v3339 = vld [vmem:[%s2 + $0x18] sm:$0xff]
      %3341 = vset.pattern.permute.xlu0 1
      %3342 = vperm.xlu0 %3341, %v3336
      %v3343 = vpop.permute.xlu0 %3342
      %3346 = vset.pattern.permute.xlu0 1
      %3347 = vperm.xlu0 %3346, %v3337
      %v3348 = vpop.permute.xlu0 %3347
      %3351 = vset.pattern.permute.xlu0 1
      %3352 = vperm.xlu0 %3351, %v3338
      %v3353 = vpop.permute.xlu0 %3352
      %3356 = vset.pattern.permute.xlu0 1
      %3357 = vperm.xlu0 %3356, %v3339
      %v3358 = vpop.permute.xlu0 %3357
      %v3368 = vunpack.c.l.b16 %v3184
      %v3369 = vunpack.c.h.b16 %v3184
      %v3370 = vunpack.c.l.b16 %v3185
      %v3371 = vunpack.c.l.b16 %v3186
      %v3372 = vunpack.c.h.b16 %v3186
      %v3373 = vunpack.c.l.b16 %v3187
      %v3374 = vunpack.c.l.b16 %v3188
      %v3375 = vunpack.c.h.b16 %v3188
      %v3376 = vunpack.c.l.b16 %v3189
      %v3377 = vunpack.c.l.b16 %v3190
      %v3378 = vunpack.c.h.b16 %v3190
      %v3379 = vunpack.c.l.b16 %v3191
      %v3380 = vpack.c.b16 %v3371, %v3368
      %v3381 = vpack.c.b16 %v3372, %v3369
      %v3382 = vpack.c.b16 %v3373, %v3370
      %v3383 = vpack.c.b16 %v3377, %v3374
      %v3384 = vpack.c.b16 %v3378, %v3375
      %v3385 = vpack.c.b16 %v3379, %v3376
      %vm3390 = vcmask 261120
      %v3392 = vsel %vm3390, %v3382, 0
      %v3395 = vsel %vm3390, %v3385, 0
      %3397 = vmatprep.subr.bf16.mxu0 %v3193
      %3398 = vmatpush1.bf16.msra.mxu0 %v3192
      %3399 = vmatprep.subr.bf16.mxu0 %v3201
      %3400 = vmatpush1.bf16.msra.mxu0 %v3200
      %3401 = vmatprep.subr.bf16.mxu0 %v3209
      %3402 = vmatpush1.bf16.msra.mxu0 %v3208
      %3403 = vmatprep.subr.bf16.mxu0 %v3217
      %3404 = vmatpush1.bf16.msra.mxu0 %v3216
      %3405 = vmatprep.subr.bf16.mxu0 %v3225
      %3406 = vmatpush1.bf16.msra.mxu0 %v3224
      %3407 = vmatprep.subr.bf16.mxu0 %v3233
      %3408 = vmatpush1.bf16.msra.mxu0 %v3232
      %3409 = vmatprep.subr.bf16.mxu0 %v3241
      %3410 = vmatpush1.bf16.msra.mxu0 %v3240
      %3411 = vmatprep.subr.bf16.mxu0 %v3249
      %3412 = vmatpush1.bf16.msra.mxu0 %v3248
      %3413 = vmatprep.subr.bf16.mxu0 %v3257
      %3414 = vmatpush1.bf16.msra.mxu0 %v3256
      %3415 = vmatprep.subr.bf16.mxu0 %v3265
      %3416 = vmatpush1.bf16.msra.mxu0 %v3264
      %3417 = vmatprep.subr.bf16.mxu0 %v3273
      %3418 = vmatpush1.bf16.msra.mxu0 %v3272
      %3419 = vmatprep.subr.bf16.mxu0 %v3281
      %3420 = vmatpush1.bf16.msra.mxu0 %v3280
      %3421 = vmatprep.subr.bf16.mxu0 %v3289
      %3422 = vmatpush1.bf16.msra.mxu0 %v3288
      %3423 = vmatprep.subr.bf16.mxu0 %v3297
      %3424 = vmatpush1.bf16.msra.mxu0 %v3296
      %3425 = vmatprep.subr.bf16.mxu0 %v3305
      %3426 = vmatpush1.bf16.msra.mxu0 %v3304
      %3427 = vmatprep.subr.bf16.mxu0 %v3313
      %3428 = vmatpush1.bf16.msra.mxu0 %v3312
      %3429 = vmatprep.mubr.bf16.mxu0 %v3381
      %3430 = vmatmul.mubr.bf16.gmra.mrb[0].mxu0 %v3380
      %v3431 = vpop.f32.mrb[0].mxu0
      %v3432 = vadd.f32 %v3343, %v3431
      %v3433 = vpop.f32.mrb[0].mxu0
      %v3434 = vadd.f32 %v3343, %v3433
      %v3435 = vpop.f32.mrb[0].mxu0
      %v3436 = vadd.f32 %v3348, %v3435
      %v3437 = vpop.f32.mrb[0].mxu0
      %v3438 = vadd.f32 %v3348, %v3437
      %3439 = vmatprep.mubr.bf16.mxu0 %v3384
      %3440 = vmatmul.mubr.bf16.gmra.mrb[0].mxu0 %v3383
      %v3441 = vpop.f32.mrb[0].mxu0
      %v3442 = vadd.f32 %v3353, %v3441
      %v3443 = vpop.f32.mrb[0].mxu0
      %v3444 = vadd.f32 %v3353, %v3443
      %v3445 = vpop.f32.mrb[0].mxu0
      %v3446 = vadd.f32 %v3358, %v3445
      %v3447 = vpop.f32.mrb[0].mxu0
      %v3448 = vadd.f32 %v3358, %v3447
      %3449 = vdwg.mxu0
      %3450 = vmatprep.subr.bf16.mxu0 %v3321
      %3451 = vmatpush1.bf16.msra.mxu0 %v3320
      %3452 = vmatprep.subr.bf16.mxu0 %v3329
      %3453 = vmatpush1.bf16.msra.mxu0 %v3328
      %3454 = vmatprep.subr.bf16.mxu0 0
      %3455 = vmatpush1.bf16.msra.mxu0 0
      %3456 = vmatprep.subr.bf16.mxu0 0
      %3457 = vmatpush1.bf16.msra.mxu0 0
      %3458 = vmatprep.subr.bf16.mxu0 0
      %3459 = vmatpush1.bf16.msra.mxu0 0
      %3460 = vmatprep.subr.bf16.mxu0 0
      %3461 = vmatpush1.bf16.msra.mxu0 0
      %3462 = vmatprep.subr.bf16.mxu0 0
      %3463 = vmatpush1.bf16.msra.mxu0 0
      %3464 = vmatprep.subr.bf16.mxu0 0
      %3465 = vmatpush1.bf16.msra.mxu0 0
      %3466 = vmatprep.subr.bf16.mxu0 0
      %3467 = vmatpush1.bf16.msra.mxu0 0
      %3468 = vmatprep.subr.bf16.mxu0 0
      %3469 = vmatpush1.bf16.msra.mxu0 0
      %3470 = vmatprep.subr.bf16.mxu0 0
      %3471 = vmatpush1.bf16.msra.mxu0 0
      %3472 = vmatprep.subr.bf16.mxu0 0
      %3473 = vmatpush1.bf16.msra.mxu0 0
      %3474 = vmatprep.subr.bf16.mxu0 0
      %3475 = vmatpush1.bf16.msra.mxu0 0
      %3476 = vmatprep.subr.bf16.mxu0 0
      %3477 = vmatpush1.bf16.msra.mxu0 0
      %3478 = vmatprep.subr.bf16.mxu0 0
      %3479 = vmatpush1.bf16.msra.mxu0 0
      %3480 = vmatprep.subr.bf16.mxu0 0
      %3481 = vmatpush1.bf16.msra.mxu0 0
      %3482 = vmatprep.mubr.bf16.mxu0 0
      %3483 = vmatmul.mubr.bf16.gmra.mrb[0].mxu0 %v3392
      %v3484 = vpop.f32.mrb[0].mxu0
      %v3485 = vadd.f32 %v3432, %v3484
      %v3486 = vpop.f32.mrb[0].mxu0
      %v3487 = vadd.f32 %v3434, %v3486
      %v3488 = vpop.f32.mrb[0].mxu0
      %v3489 = vadd.f32 %v3436, %v3488
      %v3490 = vpop.f32.mrb[0].mxu0
      %v3491 = vadd.f32 %v3438, %v3490
      %3492 = vmatprep.mubr.bf16.mxu0 0
      %3493 = vmatmul.mubr.bf16.gmra.mrb[0].mxu0 %v3395
      %v3494 = vpop.f32.mrb[0].mxu0
      %v3495 = vadd.f32 %v3442, %v3494
      %v3496 = vpop.f32.mrb[0].mxu0
      %v3497 = vadd.f32 %v3444, %v3496
      %v3498 = vpop.f32.mrb[0].mxu0
      %v3499 = vadd.f32 %v3446, %v3498
      %v3500 = vpop.f32.mrb[0].mxu0
      %v3501 = vadd.f32 %v3448, %v3500
      %3502 = vdwg.mxu0
      %3503 = vmatprep.subr.bf16.mxu0 %v3195
      %3504 = vmatpush1.bf16.msra.mxu0 %v3194
      %3505 = vmatprep.subr.bf16.mxu0 %v3203
      %3506 = vmatpush1.bf16.msra.mxu0 %v3202
      %3507 = vmatprep.subr.bf16.mxu0 %v3211
      %3508 = vmatpush1.bf16.msra.mxu0 %v3210
      %3509 = vmatprep.subr.bf16.mxu0 %v3219
      %3510 = vmatpush1.bf16.msra.mxu0 %v3218
      %3511 = vmatprep.subr.bf16.mxu0 %v3227
      %3512 = vmatpush1.bf16.msra.mxu0 %v3226
      %3513 = vmatprep.subr.bf16.mxu0 %v3235
      %3514 = vmatpush1.bf16.msra.mxu0 %v3234
      %3515 = vmatprep.subr.bf16.mxu0 %v3243
      %3516 = vmatpush1.bf16.msra.mxu0 %v3242
      %3517 = vmatprep.subr.bf16.mxu0 %v3251
      %3518 = vmatpush1.bf16.msra.mxu0 %v3250
      %3519 = vmatprep.subr.bf16.mxu0 %v3259
      %3520 = vmatpush1.bf16.msra.mxu0 %v3258
      %3521 = vmatprep.subr.bf16.mxu0 %v3267
      %3522 = vmatpush1.bf16.msra.mxu0 %v3266
      %3523 = vmatprep.subr.bf16.mxu0 %v3275
      %3524 = vmatpush1.bf16.msra.mxu0 %v3274
      %3525 = vmatprep.subr.bf16.mxu0 %v3283
      %3526 = vmatpush1.bf16.msra.mxu0 %v3282
      %3527 = vmatprep.subr.bf16.mxu0 %v3291
      %3528 = vmatpush1.bf16.msra.mxu0 %v3290
      %3529 = vmatprep.subr.bf16.mxu0 %v3299
      %3530 = vmatpush1.bf16.msra.mxu0 %v3298
      %3531 = vmatprep.subr.bf16.mxu0 %v3307
      %3532 = vmatpush1.bf16.msra.mxu0 %v3306
      %3533 = vmatprep.subr.bf16.mxu0 %v3315
      %3534 = vmatpush1.bf16.msra.mxu0 %v3314
      %3535 = vmatprep.mubr.bf16.mxu0 %v3381
      %3536 = vmatmul.mubr.bf16.gmra.mrb[0].mxu0 %v3380
      %v3537 = vpop.f32.mrb[0].mxu0
      %v3538 = vadd.f32 %v3343, %v3537
      %v3539 = vpop.f32.mrb[0].mxu0
      %v3540 = vadd.f32 %v3343, %v3539
      %v3541 = vpop.f32.mrb[0].mxu0
      %v3542 = vadd.f32 %v3348, %v3541
      %v3543 = vpop.f32.mrb[0].mxu0
      %v3544 = vadd.f32 %v3348, %v3543
      %3545 = vmatprep.mubr.bf16.mxu0 %v3384
      %3546 = vmatmul.mubr.bf16.gmra.mrb[0].mxu0 %v3383
      %v3547 = vpop.f32.mrb[0].mxu0
      %v3548 = vadd.f32 %v3353, %v3547
      %v3549 = vpop.f32.mrb[0].mxu0
      %v3550 = vadd.f32 %v3353, %v3549
      %v3551 = vpop.f32.mrb[0].mxu0
      %v3552 = vadd.f32 %v3358, %v3551
      %v3553 = vpop.f32.mrb[0].mxu0
      %v3554 = vadd.f32 %v3358, %v3553
      %3555 = vdwg.mxu0
      %3556 = vmatprep.subr.bf16.mxu0 %v3323
      %3557 = vmatpush1.bf16.msra.mxu0 %v3322
      %3558 = vmatprep.subr.bf16.mxu0 %v3331
      %3559 = vmatpush1.bf16.msra.mxu0 %v3330
      %3560 = vmatprep.subr.bf16.mxu0 0
      %3561 = vmatpush1.bf16.msra.mxu0 0
      %3562 = vmatprep.subr.bf16.mxu0 0
      %3563 = vmatpush1.bf16.msra.mxu0 0
      %3564 = vmatprep.subr.bf16.mxu0 0
      %3565 = vmatpush1.bf16.msra.mxu0 0
      %3566 = vmatprep.subr.bf16.mxu0 0
      %3567 = vmatpush1.bf16.msra.mxu0 0
      %3568 = vmatprep.subr.bf16.mxu0 0
      %3569 = vmatpush1.bf16.msra.mxu0 0
      %3570 = vmatprep.subr.bf16.mxu0 0
      %3571 = vmatpush1.bf16.msra.mxu0 0
      %3572 = vmatprep.subr.bf16.mxu0 0
      %3573 = vmatpush1.bf16.msra.mxu0 0
      %3574 = vmatprep.subr.bf16.mxu0 0
      %3575 = vmatpush1.bf16.msra.mxu0 0
      %3576 = vmatprep.subr.bf16.mxu0 0
      %3577 = vmatpush1.bf16.msra.mxu0 0
      %3578 = vmatprep.subr.bf16.mxu0 0
      %3579 = vmatpush1.bf16.msra.mxu0 0
      %3580 = vmatprep.subr.bf16.mxu0 0
      %3581 = vmatpush1.bf16.msra.mxu0 0
      %3582 = vmatprep.subr.bf16.mxu0 0
      %3583 = vmatpush1.bf16.msra.mxu0 0
      %3584 = vmatprep.subr.bf16.mxu0 0
      %3585 = vmatpush1.bf16.msra.mxu0 0
      %3586 = vmatprep.subr.bf16.mxu0 0
      %3587 = vmatpush1.bf16.msra.mxu0 0
      %3588 = vmatprep.mubr.bf16.mxu0 0
      %3589 = vmatmul.mubr.bf16.gmra.mrb[0].mxu0 %v3392
      %v3590 = vpop.f32.mrb[0].mxu0
      %v3591 = vadd.f32 %v3538, %v3590
      %v3592 = vpop.f32.mrb[0].mxu0
      %v3593 = vadd.f32 %v3540, %v3592
      %v3594 = vpop.f32.mrb[0].mxu0
      %v3595 = vadd.f32 %v3542, %v3594
      %v3596 = vpop.f32.mrb[0].mxu0
      %v3597 = vadd.f32 %v3544, %v3596
      %3598 = vmatprep.mubr.bf16.mxu0 0
      %3599 = vmatmul.mubr.bf16.gmra.mrb[0].mxu0 %v3395
      %v3600 = vpop.f32.mrb[0].mxu0
      %v3601 = vadd.f32 %v3548, %v3600
      %v3602 = vpop.f32.mrb[0].mxu0
      %v3603 = vadd.f32 %v3550, %v3602
      %v3604 = vpop.f32.mrb[0].mxu0
      %v3605 = vadd.f32 %v3552, %v3604
      %v3606 = vpop.f32.mrb[0].mxu0
      %v3607 = vadd.f32 %v3554, %v3606
      %3608 = vdwg.mxu0
      %3609 = vmatprep.subr.bf16.mxu0 %v3197
      %3610 = vmatpush1.bf16.msra.mxu0 %v3196
      %3611 = vmatprep.subr.bf16.mxu0 %v3205
      %3612 = vmatpush1.bf16.msra.mxu0 %v3204
      %3613 = vmatprep.subr.bf16.mxu0 %v3213
      %3614 = vmatpush1.bf16.msra.mxu0 %v3212
      %3615 = vmatprep.subr.bf16.mxu0 %v3221
      %3616 = vmatpush1.bf16.msra.mxu0 %v3220
      %3617 = vmatprep.subr.bf16.mxu0 %v3229
      %3618 = vmatpush1.bf16.msra.mxu0 %v3228
      %3619 = vmatprep.subr.bf16.mxu0 %v3237
      %3620 = vmatpush1.bf16.msra.mxu0 %v3236
      %3621 = vmatprep.subr.bf16.mxu0 %v3245
      %3622 = vmatpush1.bf16.msra.mxu0 %v3244
      %3623 = vmatprep.subr.bf16.mxu0 %v3253
      %3624 = vmatpush1.bf16.msra.mxu0 %v3252
      %3625 = vmatprep.subr.bf16.mxu0 %v3261
      %3626 = vmatpush1.bf16.msra.mxu0 %v3260
      %3627 = vmatprep.subr.bf16.mxu0 %v3269
      %3628 = vmatpush1.bf16.msra.mxu0 %v3268
      %3629 = vmatprep.subr.bf16.mxu0 %v3277
      %3630 = vmatpush1.bf16.msra.mxu0 %v3276
      %3631 = vmatprep.subr.bf16.mxu0 %v3285
      %3632 = vmatpush1.bf16.msra.mxu0 %v3284
      %3633 = vmatprep.subr.bf16.mxu0 %v3293
      %3634 = vmatpush1.bf16.msra.mxu0 %v3292
      %3635 = vmatprep.subr.bf16.mxu0 %v3301
      %3636 = vmatpush1.bf16.msra.mxu0 %v3300
      %3637 = vmatprep.subr.bf16.mxu0 %v3309
      %3638 = vmatpush1.bf16.msra.mxu0 %v3308
      %3639 = vmatprep.subr.bf16.mxu0 %v3317
      %3640 = vmatpush1.bf16.msra.mxu0 %v3316
      %3641 = vmatprep.mubr.bf16.mxu0 %v3381
      %3642 = vmatmul.mubr.bf16.gmra.mrb[0].mxu0 %v3380
      %v3643 = vpop.f32.mrb[0].mxu0
      %v3644 = vadd.f32 %v3343, %v3643
      %v3645 = vpop.f32.mrb[0].mxu0
      %v3646 = vadd.f32 %v3343, %v3645
      %v3647 = vpop.f32.mrb[0].mxu0
      %v3648 = vadd.f32 %v3348, %v3647
      %v3649 = vpop.f32.mrb[0].mxu0
      %v3650 = vadd.f32 %v3348, %v3649
      %3651 = vmatprep.mubr.bf16.mxu0 %v3384
      %3652 = vmatmul.mubr.bf16.gmra.mrb[0].mxu0 %v3383
      %v3653 = vpop.f32.mrb[0].mxu0
      %v3654 = vadd.f32 %v3353, %v3653
      %v3655 = vpop.f32.mrb[0].mxu0
      %v3656 = vadd.f32 %v3353, %v3655
      %v3657 = vpop.f32.mrb[0].mxu0
      %v3658 = vadd.f32 %v3358, %v3657
      %v3659 = vpop.f32.mrb[0].mxu0
      %v3660 = vadd.f32 %v3358, %v3659
      %3661 = vdwg.mxu0
      %3662 = vmatprep.subr.bf16.mxu0 %v3325
      %3663 = vmatpush1.bf16.msra.mxu0 %v3324
      %3664 = vmatprep.subr.bf16.mxu0 %v3333
      %3665 = vmatpush1.bf16.msra.mxu0 %v3332
      %3666 = vmatprep.subr.bf16.mxu0 0
      %3667 = vmatpush1.bf16.msra.mxu0 0
      %3668 = vmatprep.subr.bf16.mxu0 0
      %3669 = vmatpush1.bf16.msra.mxu0 0
      %3670 = vmatprep.subr.bf16.mxu0 0
      %3671 = vmatpush1.bf16.msra.mxu0 0
      %3672 = vmatprep.subr.bf16.mxu0 0
      %3673 = vmatpush1.bf16.msra.mxu0 0
      %3674 = vmatprep.subr.bf16.mxu0 0
      %3675 = vmatpush1.bf16.msra.mxu0 0
      %3676 = vmatprep.subr.bf16.mxu0 0
      %3677 = vmatpush1.bf16.msra.mxu0 0
      %3678 = vmatprep.subr.bf16.mxu0 0
      %3679 = vmatpush1.bf16.msra.mxu0 0
      %3680 = vmatprep.subr.bf16.mxu0 0
      %3681 = vmatpush1.bf16.msra.mxu0 0
      %3682 = vmatprep.subr.bf16.mxu0 0
      %3683 = vmatpush1.bf16.msra.mxu0 0
      %3684 = vmatprep.subr.bf16.mxu0 0
      %3685 = vmatpush1.bf16.msra.mxu0 0
      %3686 = vmatprep.subr.bf16.mxu0 0
      %3687 = vmatpush1.bf16.msra.mxu0 0
      %3688 = vmatprep.subr.bf16.mxu0 0
      %3689 = vmatpush1.bf16.msra.mxu0 0
      %3690 = vmatprep.subr.bf16.mxu0 0
      %3691 = vmatpush1.bf16.msra.mxu0 0
      %3692 = vmatprep.subr.bf16.mxu0 0
      %3693 = vmatpush1.bf16.msra.mxu0 0
      %3694 = vmatprep.mubr.bf16.mxu0 0
      %3695 = vmatmul.mubr.bf16.gmra.mrb[0].mxu0 %v3392
      %v3696 = vpop.f32.mrb[0].mxu0
      %v3697 = vadd.f32 %v3644, %v3696
      %v3698 = vpop.f32.mrb[0].mxu0
      %v3699 = vadd.f32 %v3646, %v3698
      %v3700 = vpop.f32.mrb[0].mxu0
      %v3701 = vadd.f32 %v3648, %v3700
      %v3702 = vpop.f32.mrb[0].mxu0
      %v3703 = vadd.f32 %v3650, %v3702
      %3704 = vmatprep.mubr.bf16.mxu0 0
      %3705 = vmatmul.mubr.bf16.gmra.mrb[0].mxu0 %v3395
      %v3706 = vpop.f32.mrb[0].mxu0
      %v3707 = vadd.f32 %v3654, %v3706
      %v3708 = vpop.f32.mrb[0].mxu0
      %v3709 = vadd.f32 %v3656, %v3708
      %v3710 = vpop.f32.mrb[0].mxu0
      %v3711 = vadd.f32 %v3658, %v3710
      %v3712 = vpop.f32.mrb[0].mxu0
      %v3713 = vadd.f32 %v3660, %v3712
      %3714 = vdwg.mxu0
      %3715 = vmatprep.subr.bf16.mxu0 %v3199
      %3716 = vmatpush1.bf16.msra.mxu0 %v3198
      %3717 = vmatprep.subr.bf16.mxu0 %v3207
      %3718 = vmatpush1.bf16.msra.mxu0 %v3206
      %3719 = vmatprep.subr.bf16.mxu0 %v3215
      %3720 = vmatpush1.bf16.msra.mxu0 %v3214
      %3721 = vmatprep.subr.bf16.mxu0 %v3223
      %3722 = vmatpush1.bf16.msra.mxu0 %v3222
      %3723 = vmatprep.subr.bf16.mxu0 %v3231
      %3724 = vmatpush1.bf16.msra.mxu0 %v3230
      %3725 = vmatprep.subr.bf16.mxu0 %v3239
      %3726 = vmatpush1.bf16.msra.mxu0 %v3238
      %3727 = vmatprep.subr.bf16.mxu0 %v3247
      %3728 = vmatpush1.bf16.msra.mxu0 %v3246
      %3729 = vmatprep.subr.bf16.mxu0 %v3255
      %3730 = vmatpush1.bf16.msra.mxu0 %v3254
      %3731 = vmatprep.subr.bf16.mxu0 %v3263
      %3732 = vmatpush1.bf16.msra.mxu0 %v3262
      %3733 = vmatprep.subr.bf16.mxu0 %v3271
      %3734 = vmatpush1.bf16.msra.mxu0 %v3270
      %3735 = vmatprep.subr.bf16.mxu0 %v3279
      %3736 = vmatpush1.bf16.msra.mxu0 %v3278
      %3737 = vmatprep.subr.bf16.mxu0 %v3287
      %3738 = vmatpush1.bf16.msra.mxu0 %v3286
      %3739 = vmatprep.subr.bf16.mxu0 %v3295
      %3740 = vmatpush1.bf16.msra.mxu0 %v3294
      %3741 = vmatprep.subr.bf16.mxu0 %v3303
      %3742 = vmatpush1.bf16.msra.mxu0 %v3302
      %3743 = vmatprep.subr.bf16.mxu0 %v3311
      %3744 = vmatpush1.bf16.msra.mxu0 %v3310
      %3745 = vmatprep.subr.bf16.mxu0 %v3319
      %3746 = vmatpush1.bf16.msra.mxu0 %v3318
      %3747 = vmatprep.mubr.bf16.mxu0 %v3381
      %3748 = vmatmul.mubr.bf16.gmra.mrb[0].mxu0 %v3380
      %v3749 = vpop.f32.mrb[0].mxu0
      %v3750 = vadd.f32 %v3343, %v3749
      %v3751 = vpop.f32.mrb[0].mxu0
      %v3752 = vadd.f32 %v3343, %v3751
      %v3753 = vpop.f32.mrb[0].mxu0
      %v3754 = vadd.f32 %v3348, %v3753
      %v3755 = vpop.f32.mrb[0].mxu0
      %v3756 = vadd.f32 %v3348, %v3755
      %3757 = vmatprep.mubr.bf16.mxu0 %v3384
      %3758 = vmatmul.mubr.bf16.gmra.mrb[0].mxu0 %v3383
      %v3759 = vpop.f32.mrb[0].mxu0
      %v3760 = vadd.f32 %v3353, %v3759
      %v3761 = vpop.f32.mrb[0].mxu0
      %v3762 = vadd.f32 %v3353, %v3761
      %v3763 = vpop.f32.mrb[0].mxu0
      %v3764 = vadd.f32 %v3358, %v3763
      %v3765 = vpop.f32.mrb[0].mxu0
      %v3766 = vadd.f32 %v3358, %v3765
      %3767 = vdwg.mxu0
      %3768 = vmatprep.subr.bf16.mxu0 %v3327
      %3769 = vmatpush1.bf16.msra.mxu0 %v3326
      %3770 = vmatprep.subr.bf16.mxu0 %v3335
      %3771 = vmatpush1.bf16.msra.mxu0 %v3334
      %3772 = vmatprep.subr.bf16.mxu0 0
      %3773 = vmatpush1.bf16.msra.mxu0 0
      %3774 = vmatprep.subr.bf16.mxu0 0
      %3775 = vmatpush1.bf16.msra.mxu0 0
      %3776 = vmatprep.subr.bf16.mxu0 0
      %3777 = vmatpush1.bf16.msra.mxu0 0
      %3778 = vmatprep.subr.bf16.mxu0 0
      %3779 = vmatpush1.bf16.msra.mxu0 0
      %3780 = vmatprep.subr.bf16.mxu0 0
      %3781 = vmatpush1.bf16.msra.mxu0 0
      %3782 = vmatprep.subr.bf16.mxu0 0
      %3783 = vmatpush1.bf16.msra.mxu0 0
      %3784 = vmatprep.subr.bf16.mxu0 0
      %3785 = vmatpush1.bf16.msra.mxu0 0
      %3786 = vmatprep.subr.bf16.mxu0 0
      %3787 = vmatpush1.bf16.msra.mxu0 0
      %3788 = vmatprep.subr.bf16.mxu0 0
      %3789 = vmatpush1.bf16.msra.mxu0 0
      %3790 = vmatprep.subr.bf16.mxu0 0
      %3791 = vmatpush1.bf16.msra.mxu0 0
      %3792 = vmatprep.subr.bf16.mxu0 0
      %3793 = vmatpush1.bf16.msra.mxu0 0
      %3794 = vmatprep.subr.bf16.mxu0 0
      %3795 = vmatpush1.bf16.msra.mxu0 0
      %3796 = vmatprep.subr.bf16.mxu0 0
      %3797 = vmatpush1.bf16.msra.mxu0 0
      %3798 = vmatprep.subr.bf16.mxu0 0
      %3799 = vmatpush1.bf16.msra.mxu0 0
      %3800 = vmatprep.mubr.bf16.mxu0 0
      %3801 = vmatmul.mubr.bf16.gmra.mrb[0].mxu0 %v3392
      %v3802 = vpop.f32.mrb[0].mxu0
      %v3803 = vadd.f32 %v3750, %v3802
      %v3804 = vpop.f32.mrb[0].mxu0
      %v3805 = vadd.f32 %v3752, %v3804
      %v3806 = vpop.f32.mrb[0].mxu0
      %v3807 = vadd.f32 %v3754, %v3806
      %v3808 = vpop.f32.mrb[0].mxu0
      %v3809 = vadd.f32 %v3756, %v3808
      %3810 = vmatprep.mubr.bf16.mxu0 0
      %3811 = vmatmul.mubr.bf16.gmra.mrb[0].mxu0 %v3395
      %v3812 = vpop.f32.mrb[0].mxu0
      %v3813 = vadd.f32 %v3760, %v3812
      %v3814 = vpop.f32.mrb[0].mxu0
      %v3815 = vadd.f32 %v3762, %v3814
      %v3816 = vpop.f32.mrb[0].mxu0
      %v3817 = vadd.f32 %v3764, %v3816
      %v3818 = vpop.f32.mrb[0].mxu0
      %v3819 = vadd.f32 %v3766, %v3818
      %3820 = vdwg.mxu0
      %v3821 = vmax.f32 %v3485, 0.0
      %v3822 = vmax.f32 %v3487, 0.0
      %v3823 = vmax.f32 %v3591, 0.0
      %v3824 = vmax.f32 %v3593, 0.0
      %v3825 = vmax.f32 %v3697, 0.0
      %v3826 = vmax.f32 %v3699, 0.0
      %v3827 = vmax.f32 %v3803, 0.0
      %v3828 = vmax.f32 %v3805, 0.0
      %v3829 = vmax.f32 %v3489, 0.0
      %v3830 = vmax.f32 %v3491, 0.0
      %v3831 = vmax.f32 %v3595, 0.0
      %v3832 = vmax.f32 %v3597, 0.0
      %v3833 = vmax.f32 %v3701, 0.0
      %v3834 = vmax.f32 %v3703, 0.0
      %v3835 = vmax.f32 %v3807, 0.0
      %v3836 = vmax.f32 %v3809, 0.0
      %v3837 = vmax.f32 %v3495, 0.0
      %v3838 = vmax.f32 %v3497, 0.0
      %v3839 = vmax.f32 %v3601, 0.0
      %v3840 = vmax.f32 %v3603, 0.0
      %v3841 = vmax.f32 %v3707, 0.0
      %v3842 = vmax.f32 %v3709, 0.0
      %v3843 = vmax.f32 %v3813, 0.0
      %v3844 = vmax.f32 %v3815, 0.0
      %v3845 = vmax.f32 %v3499, 0.0
      %v3846 = vmax.f32 %v3501, 0.0
      %v3847 = vmax.f32 %v3605, 0.0
      %v3848 = vmax.f32 %v3607, 0.0
      %v3849 = vmax.f32 %v3711, 0.0
      %v3850 = vmax.f32 %v3713, 0.0
      %v3851 = vmax.f32 %v3817, 0.0
      %v3852 = vmax.f32 %v3819, 0.0
      %3853 = vrot.lane.b32.xlu0 %v3821, 33
      %v3854 = vpop.permute.xlu0 %3853
      %3855 = vrot.lane.b32.xlu0 %v3829, 33
      %v3856 = vpop.permute.xlu0 %3855
      %3857 = vrot.lane.b32.xlu0 %v3837, 33
      %v3858 = vpop.permute.xlu0 %3857
      %3859 = vrot.lane.b32.xlu0 %v3845, 33
      %v3860 = vpop.permute.xlu0 %3859
      %3861 = vrot.lane.b32.xlu0 %v3822, 33
      %v3862 = vpop.permute.xlu0 %3861
      %3863 = vrot.lane.b32.xlu0 %v3830, 33
      %v3864 = vpop.permute.xlu0 %3863
      %3865 = vrot.lane.b32.xlu0 %v3838, 33
      %v3866 = vpop.permute.xlu0 %3865
      %3867 = vrot.lane.b32.xlu0 %v3846, 33
      %v3868 = vpop.permute.xlu0 %3867
      %3869 = vrot.lane.b32.xlu0 %v3823, 33
      %v3870 = vpop.permute.xlu0 %3869
      %3871 = vrot.lane.b32.xlu0 %v3831, 33
      %v3872 = vpop.permute.xlu0 %3871
      %3873 = vrot.lane.b32.xlu0 %v3839, 33
      %v3874 = vpop.permute.xlu0 %3873
      %3875 = vrot.lane.b32.xlu0 %v3847, 33
      %v3876 = vpop.permute.xlu0 %3875
      %3877 = vrot.lane.b32.xlu0 %v3824, 33
      %v3878 = vpop.permute.xlu0 %3877
      %3879 = vrot.lane.b32.xlu0 %v3832, 33
      %v3880 = vpop.permute.xlu0 %3879
      %3881 = vrot.lane.b32.xlu0 %v3840, 33
      %v3882 = vpop.permute.xlu0 %3881
      %3883 = vrot.lane.b32.xlu0 %v3848, 33
      %v3884 = vpop.permute.xlu0 %3883
      %3885 = vrot.lane.b32.xlu0 %v3825, 33
      %v3886 = vpop.permute.xlu0 %3885
      %3887 = vrot.lane.b32.xlu0 %v3833, 33
      %v3888 = vpop.permute.xlu0 %3887
      %3889 = vrot.lane.b32.xlu0 %v3841, 33
      %v3890 = vpop.permute.xlu0 %3889
      %3891 = vrot.lane.b32.xlu0 %v3849, 33
      %v3892 = vpop.permute.xlu0 %3891
      %3893 = vrot.lane.b32.xlu0 %v3826, 33
      %v3894 = vpop.permute.xlu0 %3893
      %3895 = vrot.lane.b32.xlu0 %v3834, 33
      %v3896 = vpop.permute.xlu0 %3895
      %3897 = vrot.lane.b32.xlu0 %v3842, 33
      %v3898 = vpop.permute.xlu0 %3897
      %3899 = vrot.lane.b32.xlu0 %v3850, 33
      %v3900 = vpop.permute.xlu0 %3899
      %3901 = vrot.lane.b32.xlu0 %v3827, 33
      %v3902 = vpop.permute.xlu0 %3901
      %3903 = vrot.lane.b32.xlu0 %v3835, 33
      %v3904 = vpop.permute.xlu0 %3903
      %3905 = vrot.lane.b32.xlu0 %v3843, 33
      %v3906 = vpop.permute.xlu0 %3905
      %3907 = vrot.lane.b32.xlu0 %v3851, 33
      %v3908 = vpop.permute.xlu0 %3907
      %3909 = vrot.lane.b32.xlu0 %v3828, 33
      %v3910 = vpop.permute.xlu0 %3909
      %3911 = vrot.lane.b32.xlu0 %v3836, 33
      %v3912 = vpop.permute.xlu0 %3911
      %3913 = vrot.lane.b32.xlu0 %v3844, 33
      %v3914 = vpop.permute.xlu0 %3913
      %3915 = vrot.lane.b32.xlu0 %v3852, 33
      %v3916 = vpop.permute.xlu0 %3915
      %v3917 = vsel %vm287, %v3902, %v3910
      %v3918 = vsel %vm287, %v3904, %v3912
      %v3919 = vsel %vm287, %v3906, %v3914
      %v3920 = vsel %vm287, %v3908, %v3916
      %v3921 = vsel %vm287, %v3894, %v3902
      %v3922 = vsel %vm287, %v3896, %v3904
      %v3923 = vsel %vm287, %v3898, %v3906
      %v3924 = vsel %vm287, %v3900, %v3908
      %v3925 = vsel %vm287, %v3886, %v3894
      %v3926 = vsel %vm287, %v3888, %v3896
      %v3927 = vsel %vm287, %v3890, %v3898
      %v3928 = vsel %vm287, %v3892, %v3900
      %v3929 = vsel %vm287, %v3878, %v3886
      %v3930 = vsel %vm287, %v3880, %v3888
      %v3931 = vsel %vm287, %v3882, %v3890
      %v3932 = vsel %vm287, %v3884, %v3892
      %v3933 = vsel %vm287, %v3870, %v3878
      %v3934 = vsel %vm287, %v3872, %v3880
      %v3935 = vsel %vm287, %v3874, %v3882
      %v3936 = vsel %vm287, %v3876, %v3884
      %v3937 = vsel %vm287, %v3862, %v3870
      %v3938 = vsel %vm287, %v3864, %v3872
      %v3939 = vsel %vm287, %v3866, %v3874
      %v3940 = vsel %vm287, %v3868, %v3876
      %v3941 = vsel %vm287, %v3854, %v3862
      %v3942 = vsel %vm287, %v3856, %v3864
      %v3943 = vsel %vm287, %v3858, %v3866
      %v3944 = vsel %vm287, %v3860, %v3868
      %v3945 = vsel %vm287, %v3910, %v3854
      %v3946 = vsel %vm287, %v3912, %v3856
      %v3947 = vsel %vm287, %v3914, %v3858
      %v3948 = vsel %vm287, %v3916, %v3860
      %v3949 = vld [vmem:[%s1] ss:$8 sm:$0xf]
      %v3950 = vld [vmem:[%s1] ss:$8 sm:$0xf0]
      %v3951 = vor.u32 %v3949, %v3950
      %v3953 = vlaneseq
      %v3954 = vshrl.u32 %v3953, 7
      %v3955 = vsub.s32 0, %v3954
      %v3956 = vrot.slane %v3951, %v3955
      %v3957 = vlaneseq
      %v3958 = vshrl.u32 %v3957, 7
      %v3959 = vsub.s32 1, %v3958
      %v3960 = vrot.slane %v3951, %v3959
      %v3961 = vlaneseq
      %v3962 = vshrl.u32 %v3961, 7
      %v3963 = vsub.s32 2, %v3962
      %v3964 = vrot.slane %v3951, %v3963
      %v3965 = vlaneseq
      %v3966 = vshrl.u32 %v3965, 7
      %v3967 = vsub.s32 3, %v3966
      %v3968 = vrot.slane %v3951, %v3967
      %v3969 = vlaneseq
      %v3970 = vshrl.u32 %v3969, 7
      %v3971 = vsub.s32 4, %v3970
      %v3972 = vrot.slane %v3951, %v3971
      %v3973 = vlaneseq
      %v3974 = vshrl.u32 %v3973, 7
      %v3975 = vsub.s32 5, %v3974
      %v3976 = vrot.slane %v3951, %v3975
      %v3977 = vlaneseq
      %v3978 = vshrl.u32 %v3977, 7
      %v3979 = vsub.s32 6, %v3978
      %v3980 = vrot.slane %v3951, %v3979
      %v3981 = vlaneseq
      %v3982 = vshrl.u32 %v3981, 7
      %v3983 = vsub.s32 7, %v3982
      %v3984 = vrot.slane %v3951, %v3983
      %v3993 = vmul.f32 %v3945, %v3956
      %v3994 = vmul.f32 %v3941, %v3960
      %v3995 = vmul.f32 %v3937, %v3964
      %v3996 = vmul.f32 %v3933, %v3968
      %v3997 = vmul.f32 %v3929, %v3972
      %v3998 = vmul.f32 %v3925, %v3976
      %v3999 = vmul.f32 %v3921, %v3980
      %v4000 = vmul.f32 %v3917, %v3984
      %v4001 = vmul.f32 %v3946, %v3956
      %v4002 = vmul.f32 %v3942, %v3960
      %v4003 = vmul.f32 %v3938, %v3964
      %v4004 = vmul.f32 %v3934, %v3968
      %v4005 = vmul.f32 %v3930, %v3972
      %v4006 = vmul.f32 %v3926, %v3976
      %v4007 = vmul.f32 %v3922, %v3980
      %v4008 = vmul.f32 %v3918, %v3984
      %v4009 = vmul.f32 %v3947, %v3956
      %v4010 = vmul.f32 %v3943, %v3960
      %v4011 = vmul.f32 %v3939, %v3964
      %v4012 = vmul.f32 %v3935, %v3968
      %v4013 = vmul.f32 %v3931, %v3972
      %v4014 = vmul.f32 %v3927, %v3976
      %v4015 = vmul.f32 %v3923, %v3980
      %v4016 = vmul.f32 %v3919, %v3984
      %v4017 = vmul.f32 %v3948, %v3956
      %v4018 = vmul.f32 %v3944, %v3960
      %v4019 = vmul.f32 %v3940, %v3964
      %v4020 = vmul.f32 %v3936, %v3968
      %v4021 = vmul.f32 %v3932, %v3972
      %v4022 = vmul.f32 %v3928, %v3976
      %v4023 = vmul.f32 %v3924, %v3980
      %v4024 = vmul.f32 %v3920, %v3984
      %v4025 = vpack.c.bf16 %v4001, %v3993
      %v4026 = vpack.c.bf16 %v4002, %v3994
      %v4027 = vpack.c.bf16 %v4003, %v3995
      %v4028 = vpack.c.bf16 %v4004, %v3996
      %v4029 = vpack.c.bf16 %v4005, %v3997
      %v4030 = vpack.c.bf16 %v4006, %v3998
      %v4031 = vpack.c.bf16 %v4007, %v3999
      %v4032 = vpack.c.bf16 %v4008, %v4000
      %v4033 = vpack.c.bf16 %v4017, %v4009
      %v4034 = vpack.c.bf16 %v4018, %v4010
      %v4035 = vpack.c.bf16 %v4019, %v4011
      %v4036 = vpack.c.bf16 %v4020, %v4012
      %v4037 = vpack.c.bf16 %v4021, %v4013
      %v4038 = vpack.c.bf16 %v4022, %v4014
      %v4039 = vpack.c.bf16 %v4023, %v4015
      %v4040 = vpack.c.bf16 %v4024, %v4016
      %4041 = vst [vmem:[#allocation2] sm:$0xff] %v4025
      %4042 = vst [vmem:[#allocation2 + $0x8] sm:$0xff] %v4026
      %4043 = vst [vmem:[#allocation2 + $0x10] sm:$0xff] %v4027
      %4044 = vst [vmem:[#allocation2 + $0x18] sm:$0xff] %v4028
      %4045 = vst [vmem:[#allocation2 + $0x20] sm:$0xff] %v4029
      %4046 = vst [vmem:[#allocation2 + $0x28] sm:$0xff] %v4030
      %4047 = vst [vmem:[#allocation2 + $0x30] sm:$0xff] %v4031
      %4048 = vst [vmem:[#allocation2 + $0x38] sm:$0xff] %v4032
      %4049 = vst [vmem:[#allocation2 + $0x40] sm:$0xff] %v4033
      %4050 = vst [vmem:[#allocation2 + $0x48] sm:$0xff] %v4034
      %4051 = vst [vmem:[#allocation2 + $0x50] sm:$0xff] %v4035
      %4052 = vst [vmem:[#allocation2 + $0x58] sm:$0xff] %v4036
      %4053 = vst [vmem:[#allocation2 + $0x60] sm:$0xff] %v4037
      %4054 = vst [vmem:[#allocation2 + $0x68] sm:$0xff] %v4038
      %4055 = vst [vmem:[#allocation2 + $0x70] sm:$0xff] %v4039
      %4056 = vst [vmem:[#allocation2 + $0x78] sm:$0xff] %v4040
      %4057 = vrot.lane.b32.xlu0 %v3821, 32
      %v4058 = vpop.permute.xlu0 %4057
      %4059 = vrot.lane.b32.xlu0 %v3829, 32
      %v4060 = vpop.permute.xlu0 %4059
      %4061 = vrot.lane.b32.xlu0 %v3837, 32
      %v4062 = vpop.permute.xlu0 %4061
      %4063 = vrot.lane.b32.xlu0 %v3845, 32
      %v4064 = vpop.permute.xlu0 %4063
      %4065 = vrot.lane.b32.xlu0 %v3822, 32
      %v4066 = vpop.permute.xlu0 %4065
      %4067 = vrot.lane.b32.xlu0 %v3830, 32
      %v4068 = vpop.permute.xlu0 %4067
      %4069 = vrot.lane.b32.xlu0 %v3838, 32
      %v4070 = vpop.permute.xlu0 %4069
      %4071 = vrot.lane.b32.xlu0 %v3846, 32
      %v4072 = vpop.permute.xlu0 %4071
      %4073 = vrot.lane.b32.xlu0 %v3823, 32
      %v4074 = vpop.permute.xlu0 %4073
      %4075 = vrot.lane.b32.xlu0 %v3831, 32
      %v4076 = vpop.permute.xlu0 %4075
      %4077 = vrot.lane.b32.xlu0 %v3839, 32
      %v4078 = vpop.permute.xlu0 %4077
      %4079 = vrot.lane.b32.xlu0 %v3847, 32
      %v4080 = vpop.permute.xlu0 %4079
      %4081 = vrot.lane.b32.xlu0 %v3824, 32
      %v4082 = vpop.permute.xlu0 %4081
      %4083 = vrot.lane.b32.xlu0 %v3832, 32
      %v4084 = vpop.permute.xlu0 %4083
      %4085 = vrot.lane.b32.xlu0 %v3840, 32
      %v4086 = vpop.permute.xlu0 %4085
      %4087 = vrot.lane.b32.xlu0 %v3848, 32
      %v4088 = vpop.permute.xlu0 %4087
      %4089 = vrot.lane.b32.xlu0 %v3825, 32
      %v4090 = vpop.permute.xlu0 %4089
      %4091 = vrot.lane.b32.xlu0 %v3833, 32
      %v4092 = vpop.permute.xlu0 %4091
      %4093 = vrot.lane.b32.xlu0 %v3841, 32
      %v4094 = vpop.permute.xlu0 %4093
      %4095 = vrot.lane.b32.xlu0 %v3849, 32
      %v4096 = vpop.permute.xlu0 %4095
      %4097 = vrot.lane.b32.xlu0 %v3826, 32
      %v4098 = vpop.permute.xlu0 %4097
      %4099 = vrot.lane.b32.xlu0 %v3834, 32
      %v4100 = vpop.permute.xlu0 %4099
      %4101 = vrot.lane.b32.xlu0 %v3842, 32
      %v4102 = vpop.permute.xlu0 %4101
      %4103 = vrot.lane.b32.xlu0 %v3850, 32
      %v4104 = vpop.permute.xlu0 %4103
      %4105 = vrot.lane.b32.xlu0 %v3827, 32
      %v4106 = vpop.permute.xlu0 %4105
      %4107 = vrot.lane.b32.xlu0 %v3835, 32
      %v4108 = vpop.permute.xlu0 %4107
      %4109 = vrot.lane.b32.xlu0 %v3843, 32
      %v4110 = vpop.permute.xlu0 %4109
      %4111 = vrot.lane.b32.xlu0 %v3851, 32
      %v4112 = vpop.permute.xlu0 %4111
      %4113 = vrot.lane.b32.xlu0 %v3828, 32
      %v4114 = vpop.permute.xlu0 %4113
      %4115 = vrot.lane.b32.xlu0 %v3836, 32
      %v4116 = vpop.permute.xlu0 %4115
      %4117 = vrot.lane.b32.xlu0 %v3844, 32
      %v4118 = vpop.permute.xlu0 %4117
      %4119 = vrot.lane.b32.xlu0 %v3852, 32
      %v4120 = vpop.permute.xlu0 %4119
      %v4121 = vsel %vm380, %v4106, %v4114
      %v4122 = vsel %vm380, %v4108, %v4116
      %v4123 = vsel %vm380, %v4110, %v4118
      %v4124 = vsel %vm380, %v4112, %v4120
      %v4125 = vsel %vm380, %v4098, %v4106
      %v4126 = vsel %vm380, %v4100, %v4108
      %v4127 = vsel %vm380, %v4102, %v4110
      %v4128 = vsel %vm380, %v4104, %v4112
      %v4129 = vsel %vm380, %v4090, %v4098
      %v4130 = vsel %vm380, %v4092, %v4100
      %v4131 = vsel %vm380, %v4094, %v4102
      %v4132 = vsel %vm380, %v4096, %v4104
      %v4133 = vsel %vm380, %v4082, %v4090
      %v4134 = vsel %vm380, %v4084, %v4092
      %v4135 = vsel %vm380, %v4086, %v4094
      %v4136 = vsel %vm380, %v4088, %v4096
      %v4137 = vsel %vm380, %v4074, %v4082
      %v4138 = vsel %vm380, %v4076, %v4084
      %v4139 = vsel %vm380, %v4078, %v4086
      %v4140 = vsel %vm380, %v4080, %v4088
      %v4141 = vsel %vm380, %v4066, %v4074
      %v4142 = vsel %vm380, %v4068, %v4076
      %v4143 = vsel %vm380, %v4070, %v4078
      %v4144 = vsel %vm380, %v4072, %v4080
      %v4145 = vsel %vm380, %v4058, %v4066
      %v4146 = vsel %vm380, %v4060, %v4068
      %v4147 = vsel %vm380, %v4062, %v4070
      %v4148 = vsel %vm380, %v4064, %v4072
      %v4149 = vsel %vm380, %v4114, %v4058
      %v4150 = vsel %vm380, %v4116, %v4060
      %v4151 = vsel %vm380, %v4118, %v4062
      %v4152 = vsel %vm380, %v4120, %v4064
      %v4153 = vld [vmem:[%s389] ss:$8 sm:$0xf]
      %v4154 = vld [vmem:[%s389] ss:$8 sm:$0xf0]
      %v4155 = vor.u32 %v4153, %v4154
      %v4157 = vlaneseq
      %v4158 = vshrl.u32 %v4157, 7
      %v4159 = vsub.s32 0, %v4158
      %v4160 = vrot.slane %v4155, %v4159
      %v4161 = vlaneseq
      %v4162 = vshrl.u32 %v4161, 7
      %v4163 = vsub.s32 1, %v4162
      %v4164 = vrot.slane %v4155, %v4163
      %v4165 = vlaneseq
      %v4166 = vshrl.u32 %v4165, 7
      %v4167 = vsub.s32 2, %v4166
      %v4168 = vrot.slane %v4155, %v4167
      %v4169 = vlaneseq
      %v4170 = vshrl.u32 %v4169, 7
      %v4171 = vsub.s32 3, %v4170
      %v4172 = vrot.slane %v4155, %v4171
      %v4173 = vlaneseq
      %v4174 = vshrl.u32 %v4173, 7
      %v4175 = vsub.s32 4, %v4174
      %v4176 = vrot.slane %v4155, %v4175
      %v4177 = vlaneseq
      %v4178 = vshrl.u32 %v4177, 7
      %v4179 = vsub.s32 5, %v4178
      %v4180 = vrot.slane %v4155, %v4179
      %v4181 = vlaneseq
      %v4182 = vshrl.u32 %v4181, 7
      %v4183 = vsub.s32 6, %v4182
      %v4184 = vrot.slane %v4155, %v4183
      %v4185 = vlaneseq
      %v4186 = vshrl.u32 %v4185, 7
      %v4187 = vsub.s32 7, %v4186
      %v4188 = vrot.slane %v4155, %v4187
      %v4197 = vmul.f32 %v4149, %v4160
      %v4198 = vmul.f32 %v4145, %v4164
      %v4199 = vmul.f32 %v4141, %v4168
      %v4200 = vmul.f32 %v4137, %v4172
      %v4201 = vmul.f32 %v4133, %v4176
      %v4202 = vmul.f32 %v4129, %v4180
      %v4203 = vmul.f32 %v4125, %v4184
      %v4204 = vmul.f32 %v4121, %v4188
      %v4205 = vmul.f32 %v4150, %v4160
      %v4206 = vmul.f32 %v4146, %v4164
      %v4207 = vmul.f32 %v4142, %v4168
      %v4208 = vmul.f32 %v4138, %v4172
      %v4209 = vmul.f32 %v4134, %v4176
      %v4210 = vmul.f32 %v4130, %v4180
      %v4211 = vmul.f32 %v4126, %v4184
      %v4212 = vmul.f32 %v4122, %v4188
      %v4213 = vmul.f32 %v4151, %v4160
      %v4214 = vmul.f32 %v4147, %v4164
      %v4215 = vmul.f32 %v4143, %v4168
      %v4216 = vmul.f32 %v4139, %v4172
      %v4217 = vmul.f32 %v4135, %v4176
      %v4218 = vmul.f32 %v4131, %v4180
      %v4219 = vmul.f32 %v4127, %v4184
      %v4220 = vmul.f32 %v4123, %v4188
      %v4221 = vmul.f32 %v4152, %v4160
      %v4222 = vmul.f32 %v4148, %v4164
      %v4223 = vmul.f32 %v4144, %v4168
      %v4224 = vmul.f32 %v4140, %v4172
      %v4225 = vmul.f32 %v4136, %v4176
      %v4226 = vmul.f32 %v4132, %v4180
      %v4227 = vmul.f32 %v4128, %v4184
      %v4228 = vmul.f32 %v4124, %v4188
      %v4229 = vpack.c.bf16 %v4205, %v4197
      %v4230 = vpack.c.bf16 %v4206, %v4198
      %v4231 = vpack.c.bf16 %v4207, %v4199
      %v4232 = vpack.c.bf16 %v4208, %v4200
      %v4233 = vpack.c.bf16 %v4209, %v4201
      %v4234 = vpack.c.bf16 %v4210, %v4202
      %v4235 = vpack.c.bf16 %v4211, %v4203
      %v4236 = vpack.c.bf16 %v4212, %v4204
      %v4237 = vpack.c.bf16 %v4221, %v4213
      %v4238 = vpack.c.bf16 %v4222, %v4214
      %v4239 = vpack.c.bf16 %v4223, %v4215
      %v4240 = vpack.c.bf16 %v4224, %v4216
      %v4241 = vpack.c.bf16 %v4225, %v4217
      %v4242 = vpack.c.bf16 %v4226, %v4218
      %v4243 = vpack.c.bf16 %v4227, %v4219
      %v4244 = vpack.c.bf16 %v4228, %v4220
      %4245 = vst [vmem:[#allocation2 + $0x80] sm:$0xff] %v4229
      %4246 = vst [vmem:[#allocation2 + $0x88] sm:$0xff] %v4230
      %4247 = vst [vmem:[#allocation2 + $0x90] sm:$0xff] %v4231
      %4248 = vst [vmem:[#allocation2 + $0x98] sm:$0xff] %v4232
      %4249 = vst [vmem:[#allocation2 + $0xa0] sm:$0xff] %v4233
      %4250 = vst [vmem:[#allocation2 + $0xa8] sm:$0xff] %v4234
      %4251 = vst [vmem:[#allocation2 + $0xb0] sm:$0xff] %v4235
      %4252 = vst [vmem:[#allocation2 + $0xb8] sm:$0xff] %v4236
      %4253 = vst [vmem:[#allocation2 + $0xc0] sm:$0xff] %v4237
      %4254 = vst [vmem:[#allocation2 + $0xc8] sm:$0xff] %v4238
      %4255 = vst [vmem:[#allocation2 + $0xd0] sm:$0xff] %v4239
      %4256 = vst [vmem:[#allocation2 + $0xd8] sm:$0xff] %v4240
      %4257 = vst [vmem:[#allocation2 + $0xe0] sm:$0xff] %v4241
      %4258 = vst [vmem:[#allocation2 + $0xe8] sm:$0xff] %v4242
      %4259 = vst [vmem:[#allocation2 + $0xf0] sm:$0xff] %v4243
      %4260 = vst [vmem:[#allocation2 + $0xf8] sm:$0xff] %v4244
      %4261 = vrot.lane.b32.xlu0 %v3821, 31
      %v4262 = vpop.permute.xlu0 %4261
      %4263 = vrot.lane.b32.xlu0 %v3829, 31
      %v4264 = vpop.permute.xlu0 %4263
      %4265 = vrot.lane.b32.xlu0 %v3837, 31
      %v4266 = vpop.permute.xlu0 %4265
      %4267 = vrot.lane.b32.xlu0 %v3845, 31
      %v4268 = vpop.permute.xlu0 %4267
      %4269 = vrot.lane.b32.xlu0 %v3822, 31
      %v4270 = vpop.permute.xlu0 %4269
      %4271 = vrot.lane.b32.xlu0 %v3830, 31
      %v4272 = vpop.permute.xlu0 %4271
      %4273 = vrot.lane.b32.xlu0 %v3838, 31
      %v4274 = vpop.permute.xlu0 %4273
      %4275 = vrot.lane.b32.xlu0 %v3846, 31
      %v4276 = vpop.permute.xlu0 %4275
      %4277 = vrot.lane.b32.xlu0 %v3823, 31
      %v4278 = vpop.permute.xlu0 %4277
      %4279 = vrot.lane.b32.xlu0 %v3831, 31
      %v4280 = vpop.permute.xlu0 %4279
      %4281 = vrot.lane.b32.xlu0 %v3839, 31
      %v4282 = vpop.permute.xlu0 %4281
      %4283 = vrot.lane.b32.xlu0 %v3847, 31
      %v4284 = vpop.permute.xlu0 %4283
      %4285 = vrot.lane.b32.xlu0 %v3824, 31
      %v4286 = vpop.permute.xlu0 %4285
      %4287 = vrot.lane.b32.xlu0 %v3832, 31
      %v4288 = vpop.permute.xlu0 %4287
      %4289 = vrot.lane.b32.xlu0 %v3840, 31
      %v4290 = vpop.permute.xlu0 %4289
      %4291 = vrot.lane.b32.xlu0 %v3848, 31
      %v4292 = vpop.permute.xlu0 %4291
      %4293 = vrot.lane.b32.xlu0 %v3825, 31
      %v4294 = vpop.permute.xlu0 %4293
      %4295 = vrot.lane.b32.xlu0 %v3833, 31
      %v4296 = vpop.permute.xlu0 %4295
      %4297 = vrot.lane.b32.xlu0 %v3841, 31
      %v4298 = vpop.permute.xlu0 %4297
      %4299 = vrot.lane.b32.xlu0 %v3849, 31
      %v4300 = vpop.permute.xlu0 %4299
      %4301 = vrot.lane.b32.xlu0 %v3826, 31
      %v4302 = vpop.permute.xlu0 %4301
      %4303 = vrot.lane.b32.xlu0 %v3834, 31
      %v4304 = vpop.permute.xlu0 %4303
      %4305 = vrot.lane.b32.xlu0 %v3842, 31
      %v4306 = vpop.permute.xlu0 %4305
      %4307 = vrot.lane.b32.xlu0 %v3850, 31
      %v4308 = vpop.permute.xlu0 %4307
      %4309 = vrot.lane.b32.xlu0 %v3827, 31
      %v4310 = vpop.permute.xlu0 %4309
      %4311 = vrot.lane.b32.xlu0 %v3835, 31
      %v4312 = vpop.permute.xlu0 %4311
      %4313 = vrot.lane.b32.xlu0 %v3843, 31
      %v4314 = vpop.permute.xlu0 %4313
      %4315 = vrot.lane.b32.xlu0 %v3851, 31
      %v4316 = vpop.permute.xlu0 %4315
      %4317 = vrot.lane.b32.xlu0 %v3828, 31
      %v4318 = vpop.permute.xlu0 %4317
      %4319 = vrot.lane.b32.xlu0 %v3836, 31
      %v4320 = vpop.permute.xlu0 %4319
      %4321 = vrot.lane.b32.xlu0 %v3844, 31
      %v4322 = vpop.permute.xlu0 %4321
      %4323 = vrot.lane.b32.xlu0 %v3852, 31
      %v4324 = vpop.permute.xlu0 %4323
      %v4325 = vsel %vm498, %v4310, %v4318
      %v4326 = vsel %vm498, %v4312, %v4320
      %v4327 = vsel %vm498, %v4314, %v4322
      %v4328 = vsel %vm498, %v4316, %v4324
      %v4329 = vsel %vm498, %v4302, %v4310
      %v4330 = vsel %vm498, %v4304, %v4312
      %v4331 = vsel %vm498, %v4306, %v4314
      %v4332 = vsel %vm498, %v4308, %v4316
      %v4333 = vsel %vm498, %v4294, %v4302
      %v4334 = vsel %vm498, %v4296, %v4304
      %v4335 = vsel %vm498, %v4298, %v4306
      %v4336 = vsel %vm498, %v4300, %v4308
      %v4337 = vsel %vm498, %v4286, %v4294
      %v4338 = vsel %vm498, %v4288, %v4296
      %v4339 = vsel %vm498, %v4290, %v4298
      %v4340 = vsel %vm498, %v4292, %v4300
      %v4341 = vsel %vm498, %v4278, %v4286
      %v4342 = vsel %vm498, %v4280, %v4288
      %v4343 = vsel %vm498, %v4282, %v4290
      %v4344 = vsel %vm498, %v4284, %v4292
      %v4345 = vsel %vm498, %v4270, %v4278
      %v4346 = vsel %vm498, %v4272, %v4280
      %v4347 = vsel %vm498, %v4274, %v4282
      %v4348 = vsel %vm498, %v4276, %v4284
      %v4349 = vsel %vm498, %v4262, %v4270
      %v4350 = vsel %vm498, %v4264, %v4272
      %v4351 = vsel %vm498, %v4266, %v4274
      %v4352 = vsel %vm498, %v4268, %v4276
      %v4353 = vsel %vm498, %v4318, %v4262
      %v4354 = vsel %vm498, %v4320, %v4264
      %v4355 = vsel %vm498, %v4322, %v4266
      %v4356 = vsel %vm498, %v4324, %v4268
      %v4357 = vld [vmem:[%s507] ss:$8 sm:$0xf]
      %v4358 = vld [vmem:[%s507] ss:$8 sm:$0xf0]
      %v4359 = vor.u32 %v4357, %v4358
      %v4361 = vlaneseq
      %v4362 = vshrl.u32 %v4361, 7
      %v4363 = vsub.s32 0, %v4362
      %v4364 = vrot.slane %v4359, %v4363
      %v4365 = vlaneseq
      %v4366 = vshrl.u32 %v4365, 7
      %v4367 = vsub.s32 1, %v4366
      %v4368 = vrot.slane %v4359, %v4367
      %v4369 = vlaneseq
      %v4370 = vshrl.u32 %v4369, 7
      %v4371 = vsub.s32 2, %v4370
      %v4372 = vrot.slane %v4359, %v4371
      %v4373 = vlaneseq
      %v4374 = vshrl.u32 %v4373, 7
      %v4375 = vsub.s32 3, %v4374
      %v4376 = vrot.slane %v4359, %v4375
      %v4377 = vlaneseq
      %v4378 = vshrl.u32 %v4377, 7
      %v4379 = vsub.s32 4, %v4378
      %v4380 = vrot.slane %v4359, %v4379
      %v4381 = vlaneseq
      %v4382 = vshrl.u32 %v4381, 7
      %v4383 = vsub.s32 5, %v4382
      %v4384 = vrot.slane %v4359, %v4383
      %v4385 = vlaneseq
      %v4386 = vshrl.u32 %v4385, 7
      %v4387 = vsub.s32 6, %v4386
      %v4388 = vrot.slane %v4359, %v4387
      %v4389 = vlaneseq
      %v4390 = vshrl.u32 %v4389, 7
      %v4391 = vsub.s32 7, %v4390
      %v4392 = vrot.slane %v4359, %v4391
      %v4401 = vmul.f32 %v4353, %v4364
      %v4402 = vmul.f32 %v4349, %v4368
      %v4403 = vmul.f32 %v4345, %v4372
      %v4404 = vmul.f32 %v4341, %v4376
      %v4405 = vmul.f32 %v4337, %v4380
      %v4406 = vmul.f32 %v4333, %v4384
      %v4407 = vmul.f32 %v4329, %v4388
      %v4408 = vmul.f32 %v4325, %v4392
      %v4409 = vmul.f32 %v4354, %v4364
      %v4410 = vmul.f32 %v4350, %v4368
      %v4411 = vmul.f32 %v4346, %v4372
      %v4412 = vmul.f32 %v4342, %v4376
      %v4413 = vmul.f32 %v4338, %v4380
      %v4414 = vmul.f32 %v4334, %v4384
      %v4415 = vmul.f32 %v4330, %v4388
      %v4416 = vmul.f32 %v4326, %v4392
      %v4417 = vmul.f32 %v4355, %v4364
      %v4418 = vmul.f32 %v4351, %v4368
      %v4419 = vmul.f32 %v4347, %v4372
      %v4420 = vmul.f32 %v4343, %v4376
      %v4421 = vmul.f32 %v4339, %v4380
      %v4422 = vmul.f32 %v4335, %v4384
      %v4423 = vmul.f32 %v4331, %v4388
      %v4424 = vmul.f32 %v4327, %v4392
      %v4425 = vmul.f32 %v4356, %v4364
      %v4426 = vmul.f32 %v4352, %v4368
      %v4427 = vmul.f32 %v4348, %v4372
      %v4428 = vmul.f32 %v4344, %v4376
      %v4429 = vmul.f32 %v4340, %v4380
      %v4430 = vmul.f32 %v4336, %v4384
      %v4431 = vmul.f32 %v4332, %v4388
      %v4432 = vmul.f32 %v4328, %v4392
      %v4433 = vpack.c.bf16 %v4409, %v4401
      %v4434 = vpack.c.bf16 %v4410, %v4402
      %v4435 = vpack.c.bf16 %v4411, %v4403
      %v4436 = vpack.c.bf16 %v4412, %v4404
      %v4437 = vpack.c.bf16 %v4413, %v4405
      %v4438 = vpack.c.bf16 %v4414, %v4406
      %v4439 = vpack.c.bf16 %v4415, %v4407
      %v4440 = vpack.c.bf16 %v4416, %v4408
      %v4441 = vpack.c.bf16 %v4425, %v4417
      %v4442 = vpack.c.bf16 %v4426, %v4418
      %v4443 = vpack.c.bf16 %v4427, %v4419
      %v4444 = vpack.c.bf16 %v4428, %v4420
      %v4445 = vpack.c.bf16 %v4429, %v4421
      %v4446 = vpack.c.bf16 %v4430, %v4422
      %v4447 = vpack.c.bf16 %v4431, %v4423
      %v4448 = vpack.c.bf16 %v4432, %v4424
      %4449 = vst [vmem:[#allocation2 + $0x100] sm:$0xff] %v4433
      %4450 = vst [vmem:[#allocation2 + $0x108] sm:$0xff] %v4434
      %4451 = vst [vmem:[#allocation2 + $0x110] sm:$0xff] %v4435
      %4452 = vst [vmem:[#allocation2 + $0x118] sm:$0xff] %v4436
      %4453 = vst [vmem:[#allocation2 + $0x120] sm:$0xff] %v4437
      %4454 = vst [vmem:[#allocation2 + $0x128] sm:$0xff] %v4438
      %4455 = vst [vmem:[#allocation2 + $0x130] sm:$0xff] %v4439
      %4456 = vst [vmem:[#allocation2 + $0x138] sm:$0xff] %v4440
      %4457 = vst [vmem:[#allocation2 + $0x140] sm:$0xff] %v4441
      %4458 = vst [vmem:[#allocation2 + $0x148] sm:$0xff] %v4442
      %4459 = vst [vmem:[#allocation2 + $0x150] sm:$0xff] %v4443
      %4460 = vst [vmem:[#allocation2 + $0x158] sm:$0xff] %v4444
      %4461 = vst [vmem:[#allocation2 + $0x160] sm:$0xff] %v4445
      %4462 = vst [vmem:[#allocation2 + $0x168] sm:$0xff] %v4446
      %4463 = vst [vmem:[#allocation2 + $0x170] sm:$0xff] %v4447
      %4464 = vst [vmem:[#allocation2 + $0x178] sm:$0xff] %v4448
      %4465 = vrot.lane.b32.xlu0 %v3821, 1
      %v4466 = vpop.permute.xlu0 %4465
      %4467 = vrot.lane.b32.xlu0 %v3829, 1
      %v4468 = vpop.permute.xlu0 %4467
      %4469 = vrot.lane.b32.xlu0 %v3837, 1
      %v4470 = vpop.permute.xlu0 %4469
      %4471 = vrot.lane.b32.xlu0 %v3845, 1
      %v4472 = vpop.permute.xlu0 %4471
      %4473 = vrot.lane.b32.xlu0 %v3822, 1
      %v4474 = vpop.permute.xlu0 %4473
      %4475 = vrot.lane.b32.xlu0 %v3830, 1
      %v4476 = vpop.permute.xlu0 %4475
      %4477 = vrot.lane.b32.xlu0 %v3838, 1
      %v4478 = vpop.permute.xlu0 %4477
      %4479 = vrot.lane.b32.xlu0 %v3846, 1
      %v4480 = vpop.permute.xlu0 %4479
      %4481 = vrot.lane.b32.xlu0 %v3823, 1
      %v4482 = vpop.permute.xlu0 %4481
      %4483 = vrot.lane.b32.xlu0 %v3831, 1
      %v4484 = vpop.permute.xlu0 %4483
      %4485 = vrot.lane.b32.xlu0 %v3839, 1
      %v4486 = vpop.permute.xlu0 %4485
      %4487 = vrot.lane.b32.xlu0 %v3847, 1
      %v4488 = vpop.permute.xlu0 %4487
      %4489 = vrot.lane.b32.xlu0 %v3824, 1
      %v4490 = vpop.permute.xlu0 %4489
      %4491 = vrot.lane.b32.xlu0 %v3832, 1
      %v4492 = vpop.permute.xlu0 %4491
      %4493 = vrot.lane.b32.xlu0 %v3840, 1
      %v4494 = vpop.permute.xlu0 %4493
      %4495 = vrot.lane.b32.xlu0 %v3848, 1
      %v4496 = vpop.permute.xlu0 %4495
      %4497 = vrot.lane.b32.xlu0 %v3825, 1
      %v4498 = vpop.permute.xlu0 %4497
      %4499 = vrot.lane.b32.xlu0 %v3833, 1
      %v4500 = vpop.permute.xlu0 %4499
      %4501 = vrot.lane.b32.xlu0 %v3841, 1
      %v4502 = vpop.permute.xlu0 %4501
      %4503 = vrot.lane.b32.xlu0 %v3849, 1
      %v4504 = vpop.permute.xlu0 %4503
      %4505 = vrot.lane.b32.xlu0 %v3826, 1
      %v4506 = vpop.permute.xlu0 %4505
      %4507 = vrot.lane.b32.xlu0 %v3834, 1
      %v4508 = vpop.permute.xlu0 %4507
      %4509 = vrot.lane.b32.xlu0 %v3842, 1
      %v4510 = vpop.permute.xlu0 %4509
      %4511 = vrot.lane.b32.xlu0 %v3850, 1
      %v4512 = vpop.permute.xlu0 %4511
      %4513 = vrot.lane.b32.xlu0 %v3827, 1
      %v4514 = vpop.permute.xlu0 %4513
      %4515 = vrot.lane.b32.xlu0 %v3835, 1
      %v4516 = vpop.permute.xlu0 %4515
      %4517 = vrot.lane.b32.xlu0 %v3843, 1
      %v4518 = vpop.permute.xlu0 %4517
      %4519 = vrot.lane.b32.xlu0 %v3851, 1
      %v4520 = vpop.permute.xlu0 %4519
      %4521 = vrot.lane.b32.xlu0 %v3828, 1
      %v4522 = vpop.permute.xlu0 %4521
      %4523 = vrot.lane.b32.xlu0 %v3836, 1
      %v4524 = vpop.permute.xlu0 %4523
      %4525 = vrot.lane.b32.xlu0 %v3844, 1
      %v4526 = vpop.permute.xlu0 %4525
      %4527 = vrot.lane.b32.xlu0 %v3852, 1
      %v4528 = vpop.permute.xlu0 %4527
      %v4529 = vsel %vm616, %v4514, %v4522
      %v4530 = vsel %vm616, %v4516, %v4524
      %v4531 = vsel %vm616, %v4518, %v4526
      %v4532 = vsel %vm616, %v4520, %v4528
      %v4533 = vsel %vm616, %v4506, %v4514
      %v4534 = vsel %vm616, %v4508, %v4516
      %v4535 = vsel %vm616, %v4510, %v4518
      %v4536 = vsel %vm616, %v4512, %v4520
      %v4537 = vsel %vm616, %v4498, %v4506
      %v4538 = vsel %vm616, %v4500, %v4508
      %v4539 = vsel %vm616, %v4502, %v4510
      %v4540 = vsel %vm616, %v4504, %v4512
      %v4541 = vsel %vm616, %v4490, %v4498
      %v4542 = vsel %vm616, %v4492, %v4500
      %v4543 = vsel %vm616, %v4494, %v4502
      %v4544 = vsel %vm616, %v4496, %v4504
      %v4545 = vsel %vm616, %v4482, %v4490
      %v4546 = vsel %vm616, %v4484, %v4492
      %v4547 = vsel %vm616, %v4486, %v4494
      %v4548 = vsel %vm616, %v4488, %v4496
      %v4549 = vsel %vm616, %v4474, %v4482
      %v4550 = vsel %vm616, %v4476, %v4484
      %v4551 = vsel %vm616, %v4478, %v4486
      %v4552 = vsel %vm616, %v4480, %v4488
      %v4553 = vsel %vm616, %v4466, %v4474
      %v4554 = vsel %vm616, %v4468, %v4476
      %v4555 = vsel %vm616, %v4470, %v4478
      %v4556 = vsel %vm616, %v4472, %v4480
      %v4557 = vsel %vm616, %v4522, %v4466
      %v4558 = vsel %vm616, %v4524, %v4468
      %v4559 = vsel %vm616, %v4526, %v4470
      %v4560 = vsel %vm616, %v4528, %v4472
      %v4561 = vld [vmem:[%s625] ss:$8 sm:$0xf]
      %v4562 = vld [vmem:[%s625] ss:$8 sm:$0xf0]
      %v4563 = vor.u32 %v4561, %v4562
      %v4565 = vlaneseq
      %v4566 = vshrl.u32 %v4565, 7
      %v4567 = vsub.s32 0, %v4566
      %v4568 = vrot.slane %v4563, %v4567
      %v4569 = vlaneseq
      %v4570 = vshrl.u32 %v4569, 7
      %v4571 = vsub.s32 1, %v4570
      %v4572 = vrot.slane %v4563, %v4571
      %v4573 = vlaneseq
      %v4574 = vshrl.u32 %v4573, 7
      %v4575 = vsub.s32 2, %v4574
      %v4576 = vrot.slane %v4563, %v4575
      %v4577 = vlaneseq
      %v4578 = vshrl.u32 %v4577, 7
      %v4579 = vsub.s32 3, %v4578
      %v4580 = vrot.slane %v4563, %v4579
      %v4581 = vlaneseq
      %v4582 = vshrl.u32 %v4581, 7
      %v4583 = vsub.s32 4, %v4582
      %v4584 = vrot.slane %v4563, %v4583
      %v4585 = vlaneseq
      %v4586 = vshrl.u32 %v4585, 7
      %v4587 = vsub.s32 5, %v4586
      %v4588 = vrot.slane %v4563, %v4587
      %v4589 = vlaneseq
      %v4590 = vshrl.u32 %v4589, 7
      %v4591 = vsub.s32 6, %v4590
      %v4592 = vrot.slane %v4563, %v4591
      %v4593 = vlaneseq
      %v4594 = vshrl.u32 %v4593, 7
      %v4595 = vsub.s32 7, %v4594
      %v4596 = vrot.slane %v4563, %v4595
      %v4605 = vmul.f32 %v4557, %v4568
      %v4606 = vmul.f32 %v4553, %v4572
      %v4607 = vmul.f32 %v4549, %v4576
      %v4608 = vmul.f32 %v4545, %v4580
      %v4609 = vmul.f32 %v4541, %v4584
      %v4610 = vmul.f32 %v4537, %v4588
      %v4611 = vmul.f32 %v4533, %v4592
      %v4612 = vmul.f32 %v4529, %v4596
      %v4613 = vmul.f32 %v4558, %v4568
      %v4614 = vmul.f32 %v4554, %v4572
      %v4615 = vmul.f32 %v4550, %v4576
      %v4616 = vmul.f32 %v4546, %v4580
      %v4617 = vmul.f32 %v4542, %v4584
      %v4618 = vmul.f32 %v4538, %v4588
      %v4619 = vmul.f32 %v4534, %v4592
      %v4620 = vmul.f32 %v4530, %v4596
      %v4621 = vmul.f32 %v4559, %v4568
      %v4622 = vmul.f32 %v4555, %v4572
      %v4623 = vmul.f32 %v4551, %v4576
      %v4624 = vmul.f32 %v4547, %v4580
      %v4625 = vmul.f32 %v4543, %v4584
      %v4626 = vmul.f32 %v4539, %v4588
      %v4627 = vmul.f32 %v4535, %v4592
      %v4628 = vmul.f32 %v4531, %v4596
      %v4629 = vmul.f32 %v4560, %v4568
      %v4630 = vmul.f32 %v4556, %v4572
      %v4631 = vmul.f32 %v4552, %v4576
      %v4632 = vmul.f32 %v4548, %v4580
      %v4633 = vmul.f32 %v4544, %v4584
      %v4634 = vmul.f32 %v4540, %v4588
      %v4635 = vmul.f32 %v4536, %v4592
      %v4636 = vmul.f32 %v4532, %v4596
      %v4637 = vpack.c.bf16 %v4613, %v4605
      %v4638 = vpack.c.bf16 %v4614, %v4606
      %v4639 = vpack.c.bf16 %v4615, %v4607
      %v4640 = vpack.c.bf16 %v4616, %v4608
      %v4641 = vpack.c.bf16 %v4617, %v4609
      %v4642 = vpack.c.bf16 %v4618, %v4610
      %v4643 = vpack.c.bf16 %v4619, %v4611
      %v4644 = vpack.c.bf16 %v4620, %v4612
      %v4645 = vpack.c.bf16 %v4629, %v4621
      %v4646 = vpack.c.bf16 %v4630, %v4622
      %v4647 = vpack.c.bf16 %v4631, %v4623
      %v4648 = vpack.c.bf16 %v4632, %v4624
      %v4649 = vpack.c.bf16 %v4633, %v4625
      %v4650 = vpack.c.bf16 %v4634, %v4626
      %v4651 = vpack.c.bf16 %v4635, %v4627
      %v4652 = vpack.c.bf16 %v4636, %v4628
      %4653 = vst [vmem:[#allocation2 + $0x180] sm:$0xff] %v4637
      %4654 = vst [vmem:[#allocation2 + $0x188] sm:$0xff] %v4638
      %4655 = vst [vmem:[#allocation2 + $0x190] sm:$0xff] %v4639
      %4656 = vst [vmem:[#allocation2 + $0x198] sm:$0xff] %v4640
      %4657 = vst [vmem:[#allocation2 + $0x1a0] sm:$0xff] %v4641
      %4658 = vst [vmem:[#allocation2 + $0x1a8] sm:$0xff] %v4642
      %4659 = vst [vmem:[#allocation2 + $0x1b0] sm:$0xff] %v4643
      %4660 = vst [vmem:[#allocation2 + $0x1b8] sm:$0xff] %v4644
      %4661 = vst [vmem:[#allocation2 + $0x1c0] sm:$0xff] %v4645
      %4662 = vst [vmem:[#allocation2 + $0x1c8] sm:$0xff] %v4646
      %4663 = vst [vmem:[#allocation2 + $0x1d0] sm:$0xff] %v4647
      %4664 = vst [vmem:[#allocation2 + $0x1d8] sm:$0xff] %v4648
      %4665 = vst [vmem:[#allocation2 + $0x1e0] sm:$0xff] %v4649
      %4666 = vst [vmem:[#allocation2 + $0x1e8] sm:$0xff] %v4650
      %4667 = vst [vmem:[#allocation2 + $0x1f0] sm:$0xff] %v4651
      %4668 = vst [vmem:[#allocation2 + $0x1f8] sm:$0xff] %v4652
      %v4669 = vpack.c.bf16 %v3829, %v3821
      %v4670 = vpack.c.bf16 %v3830, %v3822
      %v4671 = vpack.c.bf16 %v3831, %v3823
      %v4672 = vpack.c.bf16 %v3832, %v3824
      %v4673 = vpack.c.bf16 %v3833, %v3825
      %v4674 = vpack.c.bf16 %v3834, %v3826
      %v4675 = vpack.c.bf16 %v3835, %v3827
      %v4676 = vpack.c.bf16 %v3836, %v3828
      %v4677 = vpack.c.bf16 %v3845, %v3837
      %v4678 = vpack.c.bf16 %v3846, %v3838
      %v4679 = vpack.c.bf16 %v3847, %v3839
      %v4680 = vpack.c.bf16 %v3848, %v3840
      %v4681 = vpack.c.bf16 %v3849, %v3841
      %v4682 = vpack.c.bf16 %v3850, %v3842
      %v4683 = vpack.c.bf16 %v3851, %v3843
      %v4684 = vpack.c.bf16 %v3852, %v3844
      %4685 = vst [vmem:[#allocation2 + $0x200] sm:$0xff] %v4669
      %4686 = vst [vmem:[#allocation2 + $0x208] sm:$0xff] %v4670
      %4687 = vst [vmem:[#allocation2 + $0x210] sm:$0xff] %v4671
      %4688 = vst [vmem:[#allocation2 + $0x218] sm:$0xff] %v4672
      %4689 = vst [vmem:[#allocation2 + $0x220] sm:$0xff] %v4673
      %4690 = vst [vmem:[#allocation2 + $0x228] sm:$0xff] %v4674
      %4691 = vst [vmem:[#allocation2 + $0x230] sm:$0xff] %v4675
      %4692 = vst [vmem:[#allocation2 + $0x238] sm:$0xff] %v4676
      %4693 = vst [vmem:[#allocation2 + $0x240] sm:$0xff] %v4677
      %4694 = vst [vmem:[#allocation2 + $0x248] sm:$0xff] %v4678
      %4695 = vst [vmem:[#allocation2 + $0x250] sm:$0xff] %v4679
      %4696 = vst [vmem:[#allocation2 + $0x258] sm:$0xff] %v4680
      %4697 = vst [vmem:[#allocation2 + $0x260] sm:$0xff] %v4681
      %4698 = vst [vmem:[#allocation2 + $0x268] sm:$0xff] %v4682
      %4699 = vst [vmem:[#allocation2 + $0x270] sm:$0xff] %v4683
      %4700 = vst [vmem:[#allocation2 + $0x278] sm:$0xff] %v4684
      %4701 = vrot.lane.b32.xlu0 %v3821, 127
      %v4702 = vpop.permute.xlu0 %4701
      %4703 = vrot.lane.b32.xlu0 %v3829, 127
      %v4704 = vpop.permute.xlu0 %4703
      %4705 = vrot.lane.b32.xlu0 %v3837, 127
      %v4706 = vpop.permute.xlu0 %4705
      %4707 = vrot.lane.b32.xlu0 %v3845, 127
      %v4708 = vpop.permute.xlu0 %4707
      %4709 = vrot.lane.b32.xlu0 %v3822, 127
      %v4710 = vpop.permute.xlu0 %4709
      %4711 = vrot.lane.b32.xlu0 %v3830, 127
      %v4712 = vpop.permute.xlu0 %4711
      %4713 = vrot.lane.b32.xlu0 %v3838, 127
      %v4714 = vpop.permute.xlu0 %4713
      %4715 = vrot.lane.b32.xlu0 %v3846, 127
      %v4716 = vpop.permute.xlu0 %4715
      %4717 = vrot.lane.b32.xlu0 %v3823, 127
      %v4718 = vpop.permute.xlu0 %4717
      %4719 = vrot.lane.b32.xlu0 %v3831, 127
      %v4720 = vpop.permute.xlu0 %4719
      %4721 = vrot.lane.b32.xlu0 %v3839, 127
      %v4722 = vpop.permute.xlu0 %4721
      %4723 = vrot.lane.b32.xlu0 %v3847, 127
      %v4724 = vpop.permute.xlu0 %4723
      %4725 = vrot.lane.b32.xlu0 %v3824, 127
      %v4726 = vpop.permute.xlu0 %4725
      %4727 = vrot.lane.b32.xlu0 %v3832, 127
      %v4728 = vpop.permute.xlu0 %4727
      %4729 = vrot.lane.b32.xlu0 %v3840, 127
      %v4730 = vpop.permute.xlu0 %4729
      %4731 = vrot.lane.b32.xlu0 %v3848, 127
      %v4732 = vpop.permute.xlu0 %4731
      %4733 = vrot.lane.b32.xlu0 %v3825, 127
      %v4734 = vpop.permute.xlu0 %4733
      %4735 = vrot.lane.b32.xlu0 %v3833, 127
      %v4736 = vpop.permute.xlu0 %4735
      %4737 = vrot.lane.b32.xlu0 %v3841, 127
      %v4738 = vpop.permute.xlu0 %4737
      %4739 = vrot.lane.b32.xlu0 %v3849, 127
      %v4740 = vpop.permute.xlu0 %4739
      %4741 = vrot.lane.b32.xlu0 %v3826, 127
      %v4742 = vpop.permute.xlu0 %4741
      %4743 = vrot.lane.b32.xlu0 %v3834, 127
      %v4744 = vpop.permute.xlu0 %4743
      %4745 = vrot.lane.b32.xlu0 %v3842, 127
      %v4746 = vpop.permute.xlu0 %4745
      %4747 = vrot.lane.b32.xlu0 %v3850, 127
      %v4748 = vpop.permute.xlu0 %4747
      %4749 = vrot.lane.b32.xlu0 %v3827, 127
      %v4750 = vpop.permute.xlu0 %4749
      %4751 = vrot.lane.b32.xlu0 %v3835, 127
      %v4752 = vpop.permute.xlu0 %4751
      %4753 = vrot.lane.b32.xlu0 %v3843, 127
      %v4754 = vpop.permute.xlu0 %4753
      %4755 = vrot.lane.b32.xlu0 %v3851, 127
      %v4756 = vpop.permute.xlu0 %4755
      %4757 = vrot.lane.b32.xlu0 %v3828, 127
      %v4758 = vpop.permute.xlu0 %4757
      %4759 = vrot.lane.b32.xlu0 %v3836, 127
      %v4760 = vpop.permute.xlu0 %4759
      %4761 = vrot.lane.b32.xlu0 %v3844, 127
      %v4762 = vpop.permute.xlu0 %4761
      %4763 = vrot.lane.b32.xlu0 %v3852, 127
      %v4764 = vpop.permute.xlu0 %4763
      %v4765 = vsel %vm750, %v4750, %v4758
      %v4766 = vsel %vm750, %v4752, %v4760
      %v4767 = vsel %vm750, %v4754, %v4762
      %v4768 = vsel %vm750, %v4756, %v4764
      %v4769 = vsel %vm750, %v4742, %v4750
      %v4770 = vsel %vm750, %v4744, %v4752
      %v4771 = vsel %vm750, %v4746, %v4754
      %v4772 = vsel %vm750, %v4748, %v4756
      %v4773 = vsel %vm750, %v4734, %v4742
      %v4774 = vsel %vm750, %v4736, %v4744
      %v4775 = vsel %vm750, %v4738, %v4746
      %v4776 = vsel %vm750, %v4740, %v4748
      %v4777 = vsel %vm750, %v4726, %v4734
      %v4778 = vsel %vm750, %v4728, %v4736
      %v4779 = vsel %vm750, %v4730, %v4738
      %v4780 = vsel %vm750, %v4732, %v4740
      %v4781 = vsel %vm750, %v4718, %v4726
      %v4782 = vsel %vm750, %v4720, %v4728
      %v4783 = vsel %vm750, %v4722, %v4730
      %v4784 = vsel %vm750, %v4724, %v4732
      %v4785 = vsel %vm750, %v4710, %v4718
      %v4786 = vsel %vm750, %v4712, %v4720
      %v4787 = vsel %vm750, %v4714, %v4722
      %v4788 = vsel %vm750, %v4716, %v4724
      %v4789 = vsel %vm750, %v4702, %v4710
      %v4790 = vsel %vm750, %v4704, %v4712
      %v4791 = vsel %vm750, %v4706, %v4714
      %v4792 = vsel %vm750, %v4708, %v4716
      %v4793 = vsel %vm750, %v4758, %v4702
      %v4794 = vsel %vm750, %v4760, %v4704
      %v4795 = vsel %vm750, %v4762, %v4706
      %v4796 = vsel %vm750, %v4764, %v4708
      %v4797 = vld [vmem:[%s759] ss:$8 sm:$0xf]
      %v4798 = vld [vmem:[%s759] ss:$8 sm:$0xf0]
      %v4799 = vor.u32 %v4797, %v4798
      %v4801 = vlaneseq
      %v4802 = vshrl.u32 %v4801, 7
      %v4803 = vsub.s32 0, %v4802
      %v4804 = vrot.slane %v4799, %v4803
      %v4805 = vlaneseq
      %v4806 = vshrl.u32 %v4805, 7
      %v4807 = vsub.s32 1, %v4806
      %v4808 = vrot.slane %v4799, %v4807
      %v4809 = vlaneseq
      %v4810 = vshrl.u32 %v4809, 7
      %v4811 = vsub.s32 2, %v4810
      %v4812 = vrot.slane %v4799, %v4811
      %v4813 = vlaneseq
      %v4814 = vshrl.u32 %v4813, 7
      %v4815 = vsub.s32 3, %v4814
      %v4816 = vrot.slane %v4799, %v4815
      %v4817 = vlaneseq
      %v4818 = vshrl.u32 %v4817, 7
      %v4819 = vsub.s32 4, %v4818
      %v4820 = vrot.slane %v4799, %v4819
      %v4821 = vlaneseq
      %v4822 = vshrl.u32 %v4821, 7
      %v4823 = vsub.s32 5, %v4822
      %v4824 = vrot.slane %v4799, %v4823
      %v4825 = vlaneseq
      %v4826 = vshrl.u32 %v4825, 7
      %v4827 = vsub.s32 6, %v4826
      %v4828 = vrot.slane %v4799, %v4827
      %v4829 = vlaneseq
      %v4830 = vshrl.u32 %v4829, 7
      %v4831 = vsub.s32 7, %v4830
      %v4832 = vrot.slane %v4799, %v4831
      %v4841 = vmul.f32 %v4789, %v4804
      %v4842 = vmul.f32 %v4785, %v4808
      %v4843 = vmul.f32 %v4781, %v4812
      %v4844 = vmul.f32 %v4777, %v4816
      %v4845 = vmul.f32 %v4773, %v4820
      %v4846 = vmul.f32 %v4769, %v4824
      %v4847 = vmul.f32 %v4765, %v4828
      %v4848 = vmul.f32 %v4793, %v4832
      %v4849 = vmul.f32 %v4790, %v4804
      %v4850 = vmul.f32 %v4786, %v4808
      %v4851 = vmul.f32 %v4782, %v4812
      %v4852 = vmul.f32 %v4778, %v4816
      %v4853 = vmul.f32 %v4774, %v4820
      %v4854 = vmul.f32 %v4770, %v4824
      %v4855 = vmul.f32 %v4766, %v4828
      %v4856 = vmul.f32 %v4794, %v4832
      %v4857 = vmul.f32 %v4791, %v4804
      %v4858 = vmul.f32 %v4787, %v4808
      %v4859 = vmul.f32 %v4783, %v4812
      %v4860 = vmul.f32 %v4779, %v4816
      %v4861 = vmul.f32 %v4775, %v4820
      %v4862 = vmul.f32 %v4771, %v4824
      %v4863 = vmul.f32 %v4767, %v4828
      %v4864 = vmul.f32 %v4795, %v4832
      %v4865 = vmul.f32 %v4792, %v4804
      %v4866 = vmul.f32 %v4788, %v4808
      %v4867 = vmul.f32 %v4784, %v4812
      %v4868 = vmul.f32 %v4780, %v4816
      %v4869 = vmul.f32 %v4776, %v4820
      %v4870 = vmul.f32 %v4772, %v4824
      %v4871 = vmul.f32 %v4768, %v4828
      %v4872 = vmul.f32 %v4796, %v4832
      %v4873 = vpack.c.bf16 %v4849, %v4841
      %v4874 = vpack.c.bf16 %v4850, %v4842
      %v4875 = vpack.c.bf16 %v4851, %v4843
      %v4876 = vpack.c.bf16 %v4852, %v4844
      %v4877 = vpack.c.bf16 %v4853, %v4845
      %v4878 = vpack.c.bf16 %v4854, %v4846
      %v4879 = vpack.c.bf16 %v4855, %v4847
      %v4880 = vpack.c.bf16 %v4856, %v4848
      %v4881 = vpack.c.bf16 %v4865, %v4857
      %v4882 = vpack.c.bf16 %v4866, %v4858
      %v4883 = vpack.c.bf16 %v4867, %v4859
      %v4884 = vpack.c.bf16 %v4868, %v4860
      %v4885 = vpack.c.bf16 %v4869, %v4861
      %v4886 = vpack.c.bf16 %v4870, %v4862
      %v4887 = vpack.c.bf16 %v4871, %v4863
      %v4888 = vpack.c.bf16 %v4872, %v4864
      %4889 = vst [vmem:[#allocation2 + $0x280] sm:$0xff] %v4873
      %4890 = vst [vmem:[#allocation2 + $0x288] sm:$0xff] %v4874
      %4891 = vst [vmem:[#allocation2 + $0x290] sm:$0xff] %v4875
      %4892 = vst [vmem:[#allocation2 + $0x298] sm:$0xff] %v4876
      %4893 = vst [vmem:[#allocation2 + $0x2a0] sm:$0xff] %v4877
      %4894 = vst [vmem:[#allocation2 + $0x2a8] sm:$0xff] %v4878
      %4895 = vst [vmem:[#allocation2 + $0x2b0] sm:$0xff] %v4879
      %4896 = vst [vmem:[#allocation2 + $0x2b8] sm:$0xff] %v4880
      %4897 = vst [vmem:[#allocation2 + $0x2c0] sm:$0xff] %v4881
      %4898 = vst [vmem:[#allocation2 + $0x2c8] sm:$0xff] %v4882
      %4899 = vst [vmem:[#allocation2 + $0x2d0] sm:$0xff] %v4883
      %4900 = vst [vmem:[#allocation2 + $0x2d8] sm:$0xff] %v4884
      %4901 = vst [vmem:[#allocation2 + $0x2e0] sm:$0xff] %v4885
      %4902 = vst [vmem:[#allocation2 + $0x2e8] sm:$0xff] %v4886
      %4903 = vst [vmem:[#allocation2 + $0x2f0] sm:$0xff] %v4887
      %4904 = vst [vmem:[#allocation2 + $0x2f8] sm:$0xff] %v4888
      %4905 = vrot.lane.b32.xlu0 %v3821, 97
      %v4906 = vpop.permute.xlu0 %4905
      %4907 = vrot.lane.b32.xlu0 %v3829, 97
      %v4908 = vpop.permute.xlu0 %4907
      %4909 = vrot.lane.b32.xlu0 %v3837, 97
      %v4910 = vpop.permute.xlu0 %4909
      %4911 = vrot.lane.b32.xlu0 %v3845, 97
      %v4912 = vpop.permute.xlu0 %4911
      %4913 = vrot.lane.b32.xlu0 %v3822, 97
      %v4914 = vpop.permute.xlu0 %4913
      %4915 = vrot.lane.b32.xlu0 %v3830, 97
      %v4916 = vpop.permute.xlu0 %4915
      %4917 = vrot.lane.b32.xlu0 %v3838, 97
      %v4918 = vpop.permute.xlu0 %4917
      %4919 = vrot.lane.b32.xlu0 %v3846, 97
      %v4920 = vpop.permute.xlu0 %4919
      %4921 = vrot.lane.b32.xlu0 %v3823, 97
      %v4922 = vpop.permute.xlu0 %4921
      %4923 = vrot.lane.b32.xlu0 %v3831, 97
      %v4924 = vpop.permute.xlu0 %4923
      %4925 = vrot.lane.b32.xlu0 %v3839, 97
      %v4926 = vpop.permute.xlu0 %4925
      %4927 = vrot.lane.b32.xlu0 %v3847, 97
      %v4928 = vpop.permute.xlu0 %4927
      %4929 = vrot.lane.b32.xlu0 %v3824, 97
      %v4930 = vpop.permute.xlu0 %4929
      %4931 = vrot.lane.b32.xlu0 %v3832, 97
      %v4932 = vpop.permute.xlu0 %4931
      %4933 = vrot.lane.b32.xlu0 %v3840, 97
      %v4934 = vpop.permute.xlu0 %4933
      %4935 = vrot.lane.b32.xlu0 %v3848, 97
      %v4936 = vpop.permute.xlu0 %4935
      %4937 = vrot.lane.b32.xlu0 %v3825, 97
      %v4938 = vpop.permute.xlu0 %4937
      %4939 = vrot.lane.b32.xlu0 %v3833, 97
      %v4940 = vpop.permute.xlu0 %4939
      %4941 = vrot.lane.b32.xlu0 %v3841, 97
      %v4942 = vpop.permute.xlu0 %4941
      %4943 = vrot.lane.b32.xlu0 %v3849, 97
      %v4944 = vpop.permute.xlu0 %4943
      %4945 = vrot.lane.b32.xlu0 %v3826, 97
      %v4946 = vpop.permute.xlu0 %4945
      %4947 = vrot.lane.b32.xlu0 %v3834, 97
      %v4948 = vpop.permute.xlu0 %4947
      %4949 = vrot.lane.b32.xlu0 %v3842, 97
      %v4950 = vpop.permute.xlu0 %4949
      %4951 = vrot.lane.b32.xlu0 %v3850, 97
      %v4952 = vpop.permute.xlu0 %4951
      %4953 = vrot.lane.b32.xlu0 %v3827, 97
      %v4954 = vpop.permute.xlu0 %4953
      %4955 = vrot.lane.b32.xlu0 %v3835, 97
      %v4956 = vpop.permute.xlu0 %4955
      %4957 = vrot.lane.b32.xlu0 %v3843, 97
      %v4958 = vpop.permute.xlu0 %4957
      %4959 = vrot.lane.b32.xlu0 %v3851, 97
      %v4960 = vpop.permute.xlu0 %4959
      %4961 = vrot.lane.b32.xlu0 %v3828, 97
      %v4962 = vpop.permute.xlu0 %4961
      %4963 = vrot.lane.b32.xlu0 %v3836, 97
      %v4964 = vpop.permute.xlu0 %4963
      %4965 = vrot.lane.b32.xlu0 %v3844, 97
      %v4966 = vpop.permute.xlu0 %4965
      %4967 = vrot.lane.b32.xlu0 %v3852, 97
      %v4968 = vpop.permute.xlu0 %4967
      %v4969 = vsel %vm868, %v4954, %v4962
      %v4970 = vsel %vm868, %v4956, %v4964
      %v4971 = vsel %vm868, %v4958, %v4966
      %v4972 = vsel %vm868, %v4960, %v4968
      %v4973 = vsel %vm868, %v4946, %v4954
      %v4974 = vsel %vm868, %v4948, %v4956
      %v4975 = vsel %vm868, %v4950, %v4958
      %v4976 = vsel %vm868, %v4952, %v4960
      %v4977 = vsel %vm868, %v4938, %v4946
      %v4978 = vsel %vm868, %v4940, %v4948
      %v4979 = vsel %vm868, %v4942, %v4950
      %v4980 = vsel %vm868, %v4944, %v4952
      %v4981 = vsel %vm868, %v4930, %v4938
      %v4982 = vsel %vm868, %v4932, %v4940
      %v4983 = vsel %vm868, %v4934, %v4942
      %v4984 = vsel %vm868, %v4936, %v4944
      %v4985 = vsel %vm868, %v4922, %v4930
      %v4986 = vsel %vm868, %v4924, %v4932
      %v4987 = vsel %vm868, %v4926, %v4934
      %v4988 = vsel %vm868, %v4928, %v4936
      %v4989 = vsel %vm868, %v4914, %v4922
      %v4990 = vsel %vm868, %v4916, %v4924
      %v4991 = vsel %vm868, %v4918, %v4926
      %v4992 = vsel %vm868, %v4920, %v4928
      %v4993 = vsel %vm868, %v4906, %v4914
      %v4994 = vsel %vm868, %v4908, %v4916
      %v4995 = vsel %vm868, %v4910, %v4918
      %v4996 = vsel %vm868, %v4912, %v4920
      %v4997 = vsel %vm868, %v4962, %v4906
      %v4998 = vsel %vm868, %v4964, %v4908
      %v4999 = vsel %vm868, %v4966, %v4910
      %v5000 = vsel %vm868, %v4968, %v4912
      %v5001 = vld [vmem:[%s877] ss:$8 sm:$0xf]
      %v5002 = vld [vmem:[%s877] ss:$8 sm:$0xf0]
      %v5003 = vor.u32 %v5001, %v5002
      %v5005 = vlaneseq
      %v5006 = vshrl.u32 %v5005, 7
      %v5007 = vsub.s32 0, %v5006
      %v5008 = vrot.slane %v5003, %v5007
      %v5009 = vlaneseq
      %v5010 = vshrl.u32 %v5009, 7
      %v5011 = vsub.s32 1, %v5010
      %v5012 = vrot.slane %v5003, %v5011
      %v5013 = vlaneseq
      %v5014 = vshrl.u32 %v5013, 7
      %v5015 = vsub.s32 2, %v5014
      %v5016 = vrot.slane %v5003, %v5015
      %v5017 = vlaneseq
      %v5018 = vshrl.u32 %v5017, 7
      %v5019 = vsub.s32 3, %v5018
      %v5020 = vrot.slane %v5003, %v5019
      %v5021 = vlaneseq
      %v5022 = vshrl.u32 %v5021, 7
      %v5023 = vsub.s32 4, %v5022
      %v5024 = vrot.slane %v5003, %v5023
      %v5025 = vlaneseq
      %v5026 = vshrl.u32 %v5025, 7
      %v5027 = vsub.s32 5, %v5026
      %v5028 = vrot.slane %v5003, %v5027
      %v5029 = vlaneseq
      %v5030 = vshrl.u32 %v5029, 7
      %v5031 = vsub.s32 6, %v5030
      %v5032 = vrot.slane %v5003, %v5031
      %v5033 = vlaneseq
      %v5034 = vshrl.u32 %v5033, 7
      %v5035 = vsub.s32 7, %v5034
      %v5036 = vrot.slane %v5003, %v5035
      %v5045 = vmul.f32 %v4993, %v5008
      %v5046 = vmul.f32 %v4989, %v5012
      %v5047 = vmul.f32 %v4985, %v5016
      %v5048 = vmul.f32 %v4981, %v5020
      %v5049 = vmul.f32 %v4977, %v5024
      %v5050 = vmul.f32 %v4973, %v5028
      %v5051 = vmul.f32 %v4969, %v5032
      %v5052 = vmul.f32 %v4997, %v5036
      %v5053 = vmul.f32 %v4994, %v5008
      %v5054 = vmul.f32 %v4990, %v5012
      %v5055 = vmul.f32 %v4986, %v5016
      %v5056 = vmul.f32 %v4982, %v5020
      %v5057 = vmul.f32 %v4978, %v5024
      %v5058 = vmul.f32 %v4974, %v5028
      %v5059 = vmul.f32 %v4970, %v5032
      %v5060 = vmul.f32 %v4998, %v5036
      %v5061 = vmul.f32 %v4995, %v5008
      %v5062 = vmul.f32 %v4991, %v5012
      %v5063 = vmul.f32 %v4987, %v5016
      %v5064 = vmul.f32 %v4983, %v5020
      %v5065 = vmul.f32 %v4979, %v5024
      %v5066 = vmul.f32 %v4975, %v5028
      %v5067 = vmul.f32 %v4971, %v5032
      %v5068 = vmul.f32 %v4999, %v5036
      %v5069 = vmul.f32 %v4996, %v5008
      %v5070 = vmul.f32 %v4992, %v5012
      %v5071 = vmul.f32 %v4988, %v5016
      %v5072 = vmul.f32 %v4984, %v5020
      %v5073 = vmul.f32 %v4980, %v5024
      %v5074 = vmul.f32 %v4976, %v5028
      %v5075 = vmul.f32 %v4972, %v5032
      %v5076 = vmul.f32 %v5000, %v5036
      %v5077 = vpack.c.bf16 %v5053, %v5045
      %v5078 = vpack.c.bf16 %v5054, %v5046
      %v5079 = vpack.c.bf16 %v5055, %v5047
      %v5080 = vpack.c.bf16 %v5056, %v5048
      %v5081 = vpack.c.bf16 %v5057, %v5049
      %v5082 = vpack.c.bf16 %v5058, %v5050
      %v5083 = vpack.c.bf16 %v5059, %v5051
      %v5084 = vpack.c.bf16 %v5060, %v5052
      %v5085 = vpack.c.bf16 %v5069, %v5061
      %v5086 = vpack.c.bf16 %v5070, %v5062
      %v5087 = vpack.c.bf16 %v5071, %v5063
      %v5088 = vpack.c.bf16 %v5072, %v5064
      %v5089 = vpack.c.bf16 %v5073, %v5065
      %v5090 = vpack.c.bf16 %v5074, %v5066
      %v5091 = vpack.c.bf16 %v5075, %v5067
      %v5092 = vpack.c.bf16 %v5076, %v5068
      %5093 = vst [vmem:[#allocation2 + $0x300] sm:$0xff] %v5077
      %5094 = vst [vmem:[#allocation2 + $0x308] sm:$0xff] %v5078
      %5095 = vst [vmem:[#allocation2 + $0x310] sm:$0xff] %v5079
      %5096 = vst [vmem:[#allocation2 + $0x318] sm:$0xff] %v5080
      %5097 = vst [vmem:[#allocation2 + $0x320] sm:$0xff] %v5081
      %5098 = vst [vmem:[#allocation2 + $0x328] sm:$0xff] %v5082
      %5099 = vst [vmem:[#allocation2 + $0x330] sm:$0xff] %v5083
      %5100 = vst [vmem:[#allocation2 + $0x338] sm:$0xff] %v5084
      %5101 = vst [vmem:[#allocation2 + $0x340] sm:$0xff] %v5085
      %5102 = vst [vmem:[#allocation2 + $0x348] sm:$0xff] %v5086
      %5103 = vst [vmem:[#allocation2 + $0x350] sm:$0xff] %v5087
      %5104 = vst [vmem:[#allocation2 + $0x358] sm:$0xff] %v5088
      %5105 = vst [vmem:[#allocation2 + $0x360] sm:$0xff] %v5089
      %5106 = vst [vmem:[#allocation2 + $0x368] sm:$0xff] %v5090
      %5107 = vst [vmem:[#allocation2 + $0x370] sm:$0xff] %v5091
      %5108 = vst [vmem:[#allocation2 + $0x378] sm:$0xff] %v5092
      %5109 = vrot.lane.b32.xlu0 %v3821, 96
      %v5110 = vpop.permute.xlu0 %5109
      %5111 = vrot.lane.b32.xlu0 %v3829, 96
      %v5112 = vpop.permute.xlu0 %5111
      %5113 = vrot.lane.b32.xlu0 %v3837, 96
      %v5114 = vpop.permute.xlu0 %5113
      %5115 = vrot.lane.b32.xlu0 %v3845, 96
      %v5116 = vpop.permute.xlu0 %5115
      %5117 = vrot.lane.b32.xlu0 %v3822, 96
      %v5118 = vpop.permute.xlu0 %5117
      %5119 = vrot.lane.b32.xlu0 %v3830, 96
      %v5120 = vpop.permute.xlu0 %5119
      %5121 = vrot.lane.b32.xlu0 %v3838, 96
      %v5122 = vpop.permute.xlu0 %5121
      %5123 = vrot.lane.b32.xlu0 %v3846, 96
      %v5124 = vpop.permute.xlu0 %5123
      %5125 = vrot.lane.b32.xlu0 %v3823, 96
      %v5126 = vpop.permute.xlu0 %5125
      %5127 = vrot.lane.b32.xlu0 %v3831, 96
      %v5128 = vpop.permute.xlu0 %5127
      %5129 = vrot.lane.b32.xlu0 %v3839, 96
      %v5130 = vpop.permute.xlu0 %5129
      %5131 = vrot.lane.b32.xlu0 %v3847, 96
      %v5132 = vpop.permute.xlu0 %5131
      %5133 = vrot.lane.b32.xlu0 %v3824, 96
      %v5134 = vpop.permute.xlu0 %5133
      %5135 = vrot.lane.b32.xlu0 %v3832, 96
      %v5136 = vpop.permute.xlu0 %5135
      %5137 = vrot.lane.b32.xlu0 %v3840, 96
      %v5138 = vpop.permute.xlu0 %5137
      %5139 = vrot.lane.b32.xlu0 %v3848, 96
      %v5140 = vpop.permute.xlu0 %5139
      %5141 = vrot.lane.b32.xlu0 %v3825, 96
      %v5142 = vpop.permute.xlu0 %5141
      %5143 = vrot.lane.b32.xlu0 %v3833, 96
      %v5144 = vpop.permute.xlu0 %5143
      %5145 = vrot.lane.b32.xlu0 %v3841, 96
      %v5146 = vpop.permute.xlu0 %5145
      %5147 = vrot.lane.b32.xlu0 %v3849, 96
      %v5148 = vpop.permute.xlu0 %5147
      %5149 = vrot.lane.b32.xlu0 %v3826, 96
      %v5150 = vpop.permute.xlu0 %5149
      %5151 = vrot.lane.b32.xlu0 %v3834, 96
      %v5152 = vpop.permute.xlu0 %5151
      %5153 = vrot.lane.b32.xlu0 %v3842, 96
      %v5154 = vpop.permute.xlu0 %5153
      %5155 = vrot.lane.b32.xlu0 %v3850, 96
      %v5156 = vpop.permute.xlu0 %5155
      %5157 = vrot.lane.b32.xlu0 %v3827, 96
      %v5158 = vpop.permute.xlu0 %5157
      %5159 = vrot.lane.b32.xlu0 %v3835, 96
      %v5160 = vpop.permute.xlu0 %5159
      %5161 = vrot.lane.b32.xlu0 %v3843, 96
      %v5162 = vpop.permute.xlu0 %5161
      %5163 = vrot.lane.b32.xlu0 %v3851, 96
      %v5164 = vpop.permute.xlu0 %5163
      %5165 = vrot.lane.b32.xlu0 %v3828, 96
      %v5166 = vpop.permute.xlu0 %5165
      %5167 = vrot.lane.b32.xlu0 %v3836, 96
      %v5168 = vpop.permute.xlu0 %5167
      %5169 = vrot.lane.b32.xlu0 %v3844, 96
      %v5170 = vpop.permute.xlu0 %5169
      %5171 = vrot.lane.b32.xlu0 %v3852, 96
      %v5172 = vpop.permute.xlu0 %5171
      %v5173 = vsel %vm986, %v5158, %v5166
      %v5174 = vsel %vm986, %v5160, %v5168
      %v5175 = vsel %vm986, %v5162, %v5170
      %v5176 = vsel %vm986, %v5164, %v5172
      %v5177 = vsel %vm986, %v5150, %v5158
      %v5178 = vsel %vm986, %v5152, %v5160
      %v5179 = vsel %vm986, %v5154, %v5162
      %v5180 = vsel %vm986, %v5156, %v5164
      %v5181 = vsel %vm986, %v5142, %v5150
      %v5182 = vsel %vm986, %v5144, %v5152
      %v5183 = vsel %vm986, %v5146, %v5154
      %v5184 = vsel %vm986, %v5148, %v5156
      %v5185 = vsel %vm986, %v5134, %v5142
      %v5186 = vsel %vm986, %v5136, %v5144
      %v5187 = vsel %vm986, %v5138, %v5146
      %v5188 = vsel %vm986, %v5140, %v5148
      %v5189 = vsel %vm986, %v5126, %v5134
      %v5190 = vsel %vm986, %v5128, %v5136
      %v5191 = vsel %vm986, %v5130, %v5138
      %v5192 = vsel %vm986, %v5132, %v5140
      %v5193 = vsel %vm986, %v5118, %v5126
      %v5194 = vsel %vm986, %v5120, %v5128
      %v5195 = vsel %vm986, %v5122, %v5130
      %v5196 = vsel %vm986, %v5124, %v5132
      %v5197 = vsel %vm986, %v5110, %v5118
      %v5198 = vsel %vm986, %v5112, %v5120
      %v5199 = vsel %vm986, %v5114, %v5122
      %v5200 = vsel %vm986, %v5116, %v5124
      %v5201 = vsel %vm986, %v5166, %v5110
      %v5202 = vsel %vm986, %v5168, %v5112
      %v5203 = vsel %vm986, %v5170, %v5114
      %v5204 = vsel %vm986, %v5172, %v5116
      %v5205 = vld [vmem:[%s995] ss:$8 sm:$0xf]
      %v5206 = vld [vmem:[%s995] ss:$8 sm:$0xf0]
      %v5207 = vor.u32 %v5205, %v5206
      %v5209 = vlaneseq
      %v5210 = vshrl.u32 %v5209, 7
      %v5211 = vsub.s32 0, %v5210
      %v5212 = vrot.slane %v5207, %v5211
      %v5213 = vlaneseq
      %v5214 = vshrl.u32 %v5213, 7
      %v5215 = vsub.s32 1, %v5214
      %v5216 = vrot.slane %v5207, %v5215
      %v5217 = vlaneseq
      %v5218 = vshrl.u32 %v5217, 7
      %v5219 = vsub.s32 2, %v5218
      %v5220 = vrot.slane %v5207, %v5219
      %v5221 = vlaneseq
      %v5222 = vshrl.u32 %v5221, 7
      %v5223 = vsub.s32 3, %v5222
      %v5224 = vrot.slane %v5207, %v5223
      %v5225 = vlaneseq
      %v5226 = vshrl.u32 %v5225, 7
      %v5227 = vsub.s32 4, %v5226
      %v5228 = vrot.slane %v5207, %v5227
      %v5229 = vlaneseq
      %v5230 = vshrl.u32 %v5229, 7
      %v5231 = vsub.s32 5, %v5230
      %v5232 = vrot.slane %v5207, %v5231
      %v5233 = vlaneseq
      %v5234 = vshrl.u32 %v5233, 7
      %v5235 = vsub.s32 6, %v5234
      %v5236 = vrot.slane %v5207, %v5235
      %v5237 = vlaneseq
      %v5238 = vshrl.u32 %v5237, 7
      %v5239 = vsub.s32 7, %v5238
      %v5240 = vrot.slane %v5207, %v5239
      %v5249 = vmul.f32 %v5197, %v5212
      %v5250 = vmul.f32 %v5193, %v5216
      %v5251 = vmul.f32 %v5189, %v5220
      %v5252 = vmul.f32 %v5185, %v5224
      %v5253 = vmul.f32 %v5181, %v5228
      %v5254 = vmul.f32 %v5177, %v5232
      %v5255 = vmul.f32 %v5173, %v5236
      %v5256 = vmul.f32 %v5201, %v5240
      %v5257 = vmul.f32 %v5198, %v5212
      %v5258 = vmul.f32 %v5194, %v5216
      %v5259 = vmul.f32 %v5190, %v5220
      %v5260 = vmul.f32 %v5186, %v5224
      %v5261 = vmul.f32 %v5182, %v5228
      %v5262 = vmul.f32 %v5178, %v5232
      %v5263 = vmul.f32 %v5174, %v5236
      %v5264 = vmul.f32 %v5202, %v5240
      %v5265 = vmul.f32 %v5199, %v5212
      %v5266 = vmul.f32 %v5195, %v5216
      %v5267 = vmul.f32 %v5191, %v5220
      %v5268 = vmul.f32 %v5187, %v5224
      %v5269 = vmul.f32 %v5183, %v5228
      %v5270 = vmul.f32 %v5179, %v5232
      %v5271 = vmul.f32 %v5175, %v5236
      %v5272 = vmul.f32 %v5203, %v5240
      %v5273 = vmul.f32 %v5200, %v5212
      %v5274 = vmul.f32 %v5196, %v5216
      %v5275 = vmul.f32 %v5192, %v5220
      %v5276 = vmul.f32 %v5188, %v5224
      %v5277 = vmul.f32 %v5184, %v5228
      %v5278 = vmul.f32 %v5180, %v5232
      %v5279 = vmul.f32 %v5176, %v5236
      %v5280 = vmul.f32 %v5204, %v5240
      %v5281 = vpack.c.bf16 %v5257, %v5249
      %v5282 = vpack.c.bf16 %v5258, %v5250
      %v5283 = vpack.c.bf16 %v5259, %v5251
      %v5284 = vpack.c.bf16 %v5260, %v5252
      %v5285 = vpack.c.bf16 %v5261, %v5253
      %v5286 = vpack.c.bf16 %v5262, %v5254
      %v5287 = vpack.c.bf16 %v5263, %v5255
      %v5288 = vpack.c.bf16 %v5264, %v5256
      %v5289 = vpack.c.bf16 %v5273, %v5265
      %v5290 = vpack.c.bf16 %v5274, %v5266
      %v5291 = vpack.c.bf16 %v5275, %v5267
      %v5292 = vpack.c.bf16 %v5276, %v5268
      %v5293 = vpack.c.bf16 %v5277, %v5269
      %v5294 = vpack.c.bf16 %v5278, %v5270
      %v5295 = vpack.c.bf16 %v5279, %v5271
      %v5296 = vpack.c.bf16 %v5280, %v5272
      %5297 = vst [vmem:[#allocation2 + $0x380] sm:$0xff] %v5281
      %5298 = vst [vmem:[#allocation2 + $0x388] sm:$0xff] %v5282
      %5299 = vst [vmem:[#allocation2 + $0x390] sm:$0xff] %v5283
      %5300 = vst [vmem:[#allocation2 + $0x398] sm:$0xff] %v5284
      %5301 = vst [vmem:[#allocation2 + $0x3a0] sm:$0xff] %v5285
      %5302 = vst [vmem:[#allocation2 + $0x3a8] sm:$0xff] %v5286
      %5303 = vst [vmem:[#allocation2 + $0x3b0] sm:$0xff] %v5287
      %5304 = vst [vmem:[#allocation2 + $0x3b8] sm:$0xff] %v5288
      %5305 = vst [vmem:[#allocation2 + $0x3c0] sm:$0xff] %v5289
      %5306 = vst [vmem:[#allocation2 + $0x3c8] sm:$0xff] %v5290
      %5307 = vst [vmem:[#allocation2 + $0x3d0] sm:$0xff] %v5291
      %5308 = vst [vmem:[#allocation2 + $0x3d8] sm:$0xff] %v5292
      %5309 = vst [vmem:[#allocation2 + $0x3e0] sm:$0xff] %v5293
      %5310 = vst [vmem:[#allocation2 + $0x3e8] sm:$0xff] %v5294
      %5311 = vst [vmem:[#allocation2 + $0x3f0] sm:$0xff] %v5295
      %5312 = vst [vmem:[#allocation2 + $0x3f8] sm:$0xff] %v5296
      %5313 = vrot.lane.b32.xlu0 %v3821, 95
      %v5314 = vpop.permute.xlu0 %5313
      %5315 = vrot.lane.b32.xlu0 %v3829, 95
      %v5316 = vpop.permute.xlu0 %5315
      %5317 = vrot.lane.b32.xlu0 %v3837, 95
      %v5318 = vpop.permute.xlu0 %5317
      %5319 = vrot.lane.b32.xlu0 %v3845, 95
      %v5320 = vpop.permute.xlu0 %5319
      %5321 = vrot.lane.b32.xlu0 %v3822, 95
      %v5322 = vpop.permute.xlu0 %5321
      %5323 = vrot.lane.b32.xlu0 %v3830, 95
      %v5324 = vpop.permute.xlu0 %5323
      %5325 = vrot.lane.b32.xlu0 %v3838, 95
      %v5326 = vpop.permute.xlu0 %5325
      %5327 = vrot.lane.b32.xlu0 %v3846, 95
      %v5328 = vpop.permute.xlu0 %5327
      %5329 = vrot.lane.b32.xlu0 %v3823, 95
      %v5330 = vpop.permute.xlu0 %5329
      %5331 = vrot.lane.b32.xlu0 %v3831, 95
      %v5332 = vpop.permute.xlu0 %5331
      %5333 = vrot.lane.b32.xlu0 %v3839, 95
      %v5334 = vpop.permute.xlu0 %5333
      %5335 = vrot.lane.b32.xlu0 %v3847, 95
      %v5336 = vpop.permute.xlu0 %5335
      %5337 = vrot.lane.b32.xlu0 %v3824, 95
      %v5338 = vpop.permute.xlu0 %5337
      %5339 = vrot.lane.b32.xlu0 %v3832, 95
      %v5340 = vpop.permute.xlu0 %5339
      %5341 = vrot.lane.b32.xlu0 %v3840, 95
      %v5342 = vpop.permute.xlu0 %5341
      %5343 = vrot.lane.b32.xlu0 %v3848, 95
      %v5344 = vpop.permute.xlu0 %5343
      %5345 = vrot.lane.b32.xlu0 %v3825, 95
      %v5346 = vpop.permute.xlu0 %5345
      %5347 = vrot.lane.b32.xlu0 %v3833, 95
      %v5348 = vpop.permute.xlu0 %5347
      %5349 = vrot.lane.b32.xlu0 %v3841, 95
      %v5350 = vpop.permute.xlu0 %5349
      %5351 = vrot.lane.b32.xlu0 %v3849, 95
      %v5352 = vpop.permute.xlu0 %5351
      %5353 = vrot.lane.b32.xlu0 %v3826, 95
      %v5354 = vpop.permute.xlu0 %5353
      %5355 = vrot.lane.b32.xlu0 %v3834, 95
      %v5356 = vpop.permute.xlu0 %5355
      %5357 = vrot.lane.b32.xlu0 %v3842, 95
      %v5358 = vpop.permute.xlu0 %5357
      %5359 = vrot.lane.b32.xlu0 %v3850, 95
      %v5360 = vpop.permute.xlu0 %5359
      %5361 = vrot.lane.b32.xlu0 %v3827, 95
      %v5362 = vpop.permute.xlu0 %5361
      %5363 = vrot.lane.b32.xlu0 %v3835, 95
      %v5364 = vpop.permute.xlu0 %5363
      %5365 = vrot.lane.b32.xlu0 %v3843, 95
      %v5366 = vpop.permute.xlu0 %5365
      %5367 = vrot.lane.b32.xlu0 %v3851, 95
      %v5368 = vpop.permute.xlu0 %5367
      %5369 = vrot.lane.b32.xlu0 %v3828, 95
      %v5370 = vpop.permute.xlu0 %5369
      %5371 = vrot.lane.b32.xlu0 %v3836, 95
      %v5372 = vpop.permute.xlu0 %5371
      %5373 = vrot.lane.b32.xlu0 %v3844, 95
      %v5374 = vpop.permute.xlu0 %5373
      %5375 = vrot.lane.b32.xlu0 %v3852, 95
      %v5376 = vpop.permute.xlu0 %5375
      %v5377 = vsel %vm1104, %v5362, %v5370
      %v5378 = vsel %vm1104, %v5364, %v5372
      %v5379 = vsel %vm1104, %v5366, %v5374
      %v5380 = vsel %vm1104, %v5368, %v5376
      %v5381 = vsel %vm1104, %v5354, %v5362
      %v5382 = vsel %vm1104, %v5356, %v5364
      %v5383 = vsel %vm1104, %v5358, %v5366
      %v5384 = vsel %vm1104, %v5360, %v5368
      %v5385 = vsel %vm1104, %v5346, %v5354
      %v5386 = vsel %vm1104, %v5348, %v5356
      %v5387 = vsel %vm1104, %v5350, %v5358
      %v5388 = vsel %vm1104, %v5352, %v5360
      %v5389 = vsel %vm1104, %v5338, %v5346
      %v5390 = vsel %vm1104, %v5340, %v5348
      %v5391 = vsel %vm1104, %v5342, %v5350
      %v5392 = vsel %vm1104, %v5344, %v5352
      %v5393 = vsel %vm1104, %v5330, %v5338
      %v5394 = vsel %vm1104, %v5332, %v5340
      %v5395 = vsel %vm1104, %v5334, %v5342
      %v5396 = vsel %vm1104, %v5336, %v5344
      %v5397 = vsel %vm1104, %v5322, %v5330
      %v5398 = vsel %vm1104, %v5324, %v5332
      %v5399 = vsel %vm1104, %v5326, %v5334
      %v5400 = vsel %vm1104, %v5328, %v5336
      %v5401 = vsel %vm1104, %v5314, %v5322
      %v5402 = vsel %vm1104, %v5316, %v5324
      %v5403 = vsel %vm1104, %v5318, %v5326
      %v5404 = vsel %vm1104, %v5320, %v5328
      %v5405 = vsel %vm1104, %v5370, %v5314
      %v5406 = vsel %vm1104, %v5372, %v5316
      %v5407 = vsel %vm1104, %v5374, %v5318
      %v5408 = vsel %vm1104, %v5376, %v5320
      %v5409 = vld [vmem:[%s1113] ss:$8 sm:$0xf]
      %v5410 = vld [vmem:[%s1113] ss:$8 sm:$0xf0]
      %v5411 = vor.u32 %v5409, %v5410
      %v5413 = vlaneseq
      %v5414 = vshrl.u32 %v5413, 7
      %v5415 = vsub.s32 0, %v5414
      %v5416 = vrot.slane %v5411, %v5415
      %v5417 = vlaneseq
      %v5418 = vshrl.u32 %v5417, 7
      %v5419 = vsub.s32 1, %v5418
      %v5420 = vrot.slane %v5411, %v5419
      %v5421 = vlaneseq
      %v5422 = vshrl.u32 %v5421, 7
      %v5423 = vsub.s32 2, %v5422
      %v5424 = vrot.slane %v5411, %v5423
      %v5425 = vlaneseq
      %v5426 = vshrl.u32 %v5425, 7
      %v5427 = vsub.s32 3, %v5426
      %v5428 = vrot.slane %v5411, %v5427
      %v5429 = vlaneseq
      %v5430 = vshrl.u32 %v5429, 7
      %v5431 = vsub.s32 4, %v5430
      %v5432 = vrot.slane %v5411, %v5431
      %v5433 = vlaneseq
      %v5434 = vshrl.u32 %v5433, 7
      %v5435 = vsub.s32 5, %v5434
      %v5436 = vrot.slane %v5411, %v5435
      %v5437 = vlaneseq
      %v5438 = vshrl.u32 %v5437, 7
      %v5439 = vsub.s32 6, %v5438
      %v5440 = vrot.slane %v5411, %v5439
      %v5441 = vlaneseq
      %v5442 = vshrl.u32 %v5441, 7
      %v5443 = vsub.s32 7, %v5442
      %v5444 = vrot.slane %v5411, %v5443
      %v5453 = vmul.f32 %v5401, %v5416
      %v5454 = vmul.f32 %v5397, %v5420
      %v5455 = vmul.f32 %v5393, %v5424
      %v5456 = vmul.f32 %v5389, %v5428
      %v5457 = vmul.f32 %v5385, %v5432
      %v5458 = vmul.f32 %v5381, %v5436
      %v5459 = vmul.f32 %v5377, %v5440
      %v5460 = vmul.f32 %v5405, %v5444
      %v5461 = vmul.f32 %v5402, %v5416
      %v5462 = vmul.f32 %v5398, %v5420
      %v5463 = vmul.f32 %v5394, %v5424
      %v5464 = vmul.f32 %v5390, %v5428
      %v5465 = vmul.f32 %v5386, %v5432
      %v5466 = vmul.f32 %v5382, %v5436
      %v5467 = vmul.f32 %v5378, %v5440
      %v5468 = vmul.f32 %v5406, %v5444
      %v5469 = vmul.f32 %v5403, %v5416
      %v5470 = vmul.f32 %v5399, %v5420
      %v5471 = vmul.f32 %v5395, %v5424
      %v5472 = vmul.f32 %v5391, %v5428
      %v5473 = vmul.f32 %v5387, %v5432
      %v5474 = vmul.f32 %v5383, %v5436
      %v5475 = vmul.f32 %v5379, %v5440
      %v5476 = vmul.f32 %v5407, %v5444
      %v5477 = vmul.f32 %v5404, %v5416
      %v5478 = vmul.f32 %v5400, %v5420
      %v5479 = vmul.f32 %v5396, %v5424
      %v5480 = vmul.f32 %v5392, %v5428
      %v5481 = vmul.f32 %v5388, %v5432
      %v5482 = vmul.f32 %v5384, %v5436
      %v5483 = vmul.f32 %v5380, %v5440
      %v5484 = vmul.f32 %v5408, %v5444
      %v5485 = vpack.c.bf16 %v5461, %v5453
      %v5486 = vpack.c.bf16 %v5462, %v5454
      %v5487 = vpack.c.bf16 %v5463, %v5455
      %v5488 = vpack.c.bf16 %v5464, %v5456
      %v5489 = vpack.c.bf16 %v5465, %v5457
      %v5490 = vpack.c.bf16 %v5466, %v5458
      %v5491 = vpack.c.bf16 %v5467, %v5459
      %v5492 = vpack.c.bf16 %v5468, %v5460
      %v5493 = vpack.c.bf16 %v5477, %v5469
      %v5494 = vpack.c.bf16 %v5478, %v5470
      %v5495 = vpack.c.bf16 %v5479, %v5471
      %v5496 = vpack.c.bf16 %v5480, %v5472
      %v5497 = vpack.c.bf16 %v5481, %v5473
      %v5498 = vpack.c.bf16 %v5482, %v5474
      %v5499 = vpack.c.bf16 %v5483, %v5475
      %v5500 = vpack.c.bf16 %v5484, %v5476
      %5501 = vst [vmem:[#allocation2 + $0x400] sm:$0xff] %v5485
      %5502 = vst [vmem:[#allocation2 + $0x408] sm:$0xff] %v5486
      %5503 = vst [vmem:[#allocation2 + $0x410] sm:$0xff] %v5487
      %5504 = vst [vmem:[#allocation2 + $0x418] sm:$0xff] %v5488
      %5505 = vst [vmem:[#allocation2 + $0x420] sm:$0xff] %v5489
      %5506 = vst [vmem:[#allocation2 + $0x428] sm:$0xff] %v5490
      %5507 = vst [vmem:[#allocation2 + $0x430] sm:$0xff] %v5491
      %5508 = vst [vmem:[#allocation2 + $0x438] sm:$0xff] %v5492
      %5509 = vst [vmem:[#allocation2 + $0x440] sm:$0xff] %v5493
      %5510 = vst [vmem:[#allocation2 + $0x448] sm:$0xff] %v5494
      %5511 = vst [vmem:[#allocation2 + $0x450] sm:$0xff] %v5495
      %5512 = vst [vmem:[#allocation2 + $0x458] sm:$0xff] %v5496
      %5513 = vst [vmem:[#allocation2 + $0x460] sm:$0xff] %v5497
      %5514 = vst [vmem:[#allocation2 + $0x468] sm:$0xff] %v5498
      %5515 = vst [vmem:[#allocation2 + $0x470] sm:$0xff] %v5499
      %5516 = vst [vmem:[#allocation2 + $0x478] sm:$0xff] %v5500
      %v5517 = vld [vmem:[%s5] sm:$0xff]
      %v5518 = vld [vmem:[%s5 + $0x8] sm:$0xf]
      %v5519 = vld [vmem:[%s5 + $0xc] sm:$0xff]
      %v5520 = vld [vmem:[%s5 + $0x14] sm:$0xf]
      %v5521 = vld [vmem:[%s5 + $0x18] sm:$0xff]
      %v5522 = vld [vmem:[%s5 + $0x20] sm:$0xf]
      %v5523 = vld [vmem:[%s5 + $0x24] sm:$0xff]
      %v5524 = vld [vmem:[%s5 + $0x2c] sm:$0xf]
      %v5525 = vld [vmem:[#allocation2] sm:$0xff]
      %v5526 = vld [vmem:[#allocation2 + $0x8] sm:$0xff]
      %v5527 = vld [vmem:[#allocation2 + $0x10] sm:$0xff]
      %v5528 = vld [vmem:[#allocation2 + $0x18] sm:$0xff]
      %v5529 = vld [vmem:[#allocation2 + $0x20] sm:$0xff]
      %v5530 = vld [vmem:[#allocation2 + $0x28] sm:$0xff]
      %v5531 = vld [vmem:[#allocation2 + $0x30] sm:$0xff]
      %v5532 = vld [vmem:[#allocation2 + $0x38] sm:$0xff]
      %v5533 = vld [vmem:[#allocation2 + $0x40] sm:$0xff]
      %v5534 = vld [vmem:[#allocation2 + $0x48] sm:$0xff]
      %v5535 = vld [vmem:[#allocation2 + $0x50] sm:$0xff]
      %v5536 = vld [vmem:[#allocation2 + $0x58] sm:$0xff]
      %v5537 = vld [vmem:[#allocation2 + $0x60] sm:$0xff]
      %v5538 = vld [vmem:[#allocation2 + $0x68] sm:$0xff]
      %v5539 = vld [vmem:[#allocation2 + $0x70] sm:$0xff]
      %v5540 = vld [vmem:[#allocation2 + $0x78] sm:$0xff]
      %v5541 = vld [vmem:[#allocation2 + $0x80] sm:$0xff]
      %v5542 = vld [vmem:[#allocation2 + $0x88] sm:$0xff]
      %v5543 = vld [vmem:[#allocation2 + $0x90] sm:$0xff]
      %v5544 = vld [vmem:[#allocation2 + $0x98] sm:$0xff]
      %v5545 = vld [vmem:[#allocation2 + $0xa0] sm:$0xff]
      %v5546 = vld [vmem:[#allocation2 + $0xa8] sm:$0xff]
      %v5547 = vld [vmem:[#allocation2 + $0xb0] sm:$0xff]
      %v5548 = vld [vmem:[#allocation2 + $0xb8] sm:$0xff]
      %v5549 = vld [vmem:[#allocation2 + $0xc0] sm:$0xff]
      %v5550 = vld [vmem:[#allocation2 + $0xc8] sm:$0xff]
      %v5551 = vld [vmem:[#allocation2 + $0xd0] sm:$0xff]
      %v5552 = vld [vmem:[#allocation2 + $0xd8] sm:$0xff]
      %v5553 = vld [vmem:[#allocation2 + $0xe0] sm:$0xff]
      %v5554 = vld [vmem:[#allocation2 + $0xe8] sm:$0xff]
      %v5555 = vld [vmem:[#allocation2 + $0xf0] sm:$0xff]
      %v5556 = vld [vmem:[#allocation2 + $0xf8] sm:$0xff]
      %v5557 = vld [vmem:[#allocation2 + $0x100] sm:$0xff]
      %v5558 = vld [vmem:[#allocation2 + $0x108] sm:$0xff]
      %v5559 = vld [vmem:[#allocation2 + $0x110] sm:$0xff]
      %v5560 = vld [vmem:[#allocation2 + $0x118] sm:$0xff]
      %v5561 = vld [vmem:[#allocation2 + $0x120] sm:$0xff]
      %v5562 = vld [vmem:[#allocation2 + $0x128] sm:$0xff]
      %v5563 = vld [vmem:[#allocation2 + $0x130] sm:$0xff]
      %v5564 = vld [vmem:[#allocation2 + $0x138] sm:$0xff]
      %v5565 = vld [vmem:[#allocation2 + $0x140] sm:$0xff]
      %v5566 = vld [vmem:[#allocation2 + $0x148] sm:$0xff]
      %v5567 = vld [vmem:[#allocation2 + $0x150] sm:$0xff]
      %v5568 = vld [vmem:[#allocation2 + $0x158] sm:$0xff]
      %v5569 = vld [vmem:[#allocation2 + $0x160] sm:$0xff]
      %v5570 = vld [vmem:[#allocation2 + $0x168] sm:$0xff]
      %v5571 = vld [vmem:[#allocation2 + $0x170] sm:$0xff]
      %v5572 = vld [vmem:[#allocation2 + $0x178] sm:$0xff]
      %v5573 = vld [vmem:[#allocation2 + $0x180] sm:$0xff]
      %v5574 = vld [vmem:[#allocation2 + $0x188] sm:$0xff]
      %v5575 = vld [vmem:[#allocation2 + $0x190] sm:$0xff]
      %v5576 = vld [vmem:[#allocation2 + $0x198] sm:$0xff]
      %v5577 = vld [vmem:[#allocation2 + $0x1a0] sm:$0xff]
      %v5578 = vld [vmem:[#allocation2 + $0x1a8] sm:$0xff]
      %v5579 = vld [vmem:[#allocation2 + $0x1b0] sm:$0xff]
      %v5580 = vld [vmem:[#allocation2 + $0x1b8] sm:$0xff]
      %v5581 = vld [vmem:[#allocation2 + $0x1c0] sm:$0xff]
      %v5582 = vld [vmem:[#allocation2 + $0x1c8] sm:$0xff]
      %v5583 = vld [vmem:[#allocation2 + $0x1d0] sm:$0xff]
      %v5584 = vld [vmem:[#allocation2 + $0x1d8] sm:$0xff]
      %v5585 = vld [vmem:[#allocation2 + $0x1e0] sm:$0xff]
      %v5586 = vld [vmem:[#allocation2 + $0x1e8] sm:$0xff]
      %v5587 = vld [vmem:[#allocation2 + $0x1f0] sm:$0xff]
      %v5588 = vld [vmem:[#allocation2 + $0x1f8] sm:$0xff]
      %v5589 = vld [vmem:[#allocation2 + $0x200] sm:$0xff]
      %v5590 = vld [vmem:[#allocation2 + $0x208] sm:$0xff]
      %v5591 = vld [vmem:[#allocation2 + $0x210] sm:$0xff]
      %v5592 = vld [vmem:[#allocation2 + $0x218] sm:$0xff]
      %v5593 = vld [vmem:[#allocation2 + $0x220] sm:$0xff]
      %v5594 = vld [vmem:[#allocation2 + $0x228] sm:$0xff]
      %v5595 = vld [vmem:[#allocation2 + $0x230] sm:$0xff]
      %v5596 = vld [vmem:[#allocation2 + $0x238] sm:$0xff]
      %v5597 = vld [vmem:[#allocation2 + $0x240] sm:$0xff]
      %v5598 = vld [vmem:[#allocation2 + $0x248] sm:$0xff]
      %v5599 = vld [vmem:[#allocation2 + $0x250] sm:$0xff]
      %v5600 = vld [vmem:[#allocation2 + $0x258] sm:$0xff]
      %v5601 = vld [vmem:[#allocation2 + $0x260] sm:$0xff]
      %v5602 = vld [vmem:[#allocation2 + $0x268] sm:$0xff]
      %v5603 = vld [vmem:[#allocation2 + $0x270] sm:$0xff]
      %v5604 = vld [vmem:[#allocation2 + $0x278] sm:$0xff]
      %v5605 = vld [vmem:[#allocation2 + $0x280] sm:$0xff]
      %v5606 = vld [vmem:[#allocation2 + $0x288] sm:$0xff]
      %v5607 = vld [vmem:[#allocation2 + $0x290] sm:$0xff]
      %v5608 = vld [vmem:[#allocation2 + $0x298] sm:$0xff]
      %v5609 = vld [vmem:[#allocation2 + $0x2a0] sm:$0xff]
      %v5610 = vld [vmem:[#allocation2 + $0x2a8] sm:$0xff]
      %v5611 = vld [vmem:[#allocation2 + $0x2b0] sm:$0xff]
      %v5612 = vld [vmem:[#allocation2 + $0x2b8] sm:$0xff]
      %v5613 = vld [vmem:[#allocation2 + $0x2c0] sm:$0xff]
      %v5614 = vld [vmem:[#allocation2 + $0x2c8] sm:$0xff]
      %v5615 = vld [vmem:[#allocation2 + $0x2d0] sm:$0xff]
      %v5616 = vld [vmem:[#allocation2 + $0x2d8] sm:$0xff]
      %v5617 = vld [vmem:[#allocation2 + $0x2e0] sm:$0xff]
      %v5618 = vld [vmem:[#allocation2 + $0x2e8] sm:$0xff]
      %v5619 = vld [vmem:[#allocation2 + $0x2f0] sm:$0xff]
      %v5620 = vld [vmem:[#allocation2 + $0x2f8] sm:$0xff]
      %v5621 = vld [vmem:[#allocation2 + $0x300] sm:$0xff]
      %v5622 = vld [vmem:[#allocation2 + $0x308] sm:$0xff]
      %v5623 = vld [vmem:[#allocation2 + $0x310] sm:$0xff]
      %v5624 = vld [vmem:[#allocation2 + $0x318] sm:$0xff]
      %v5625 = vld [vmem:[#allocation2 + $0x320] sm:$0xff]
      %v5626 = vld [vmem:[#allocation2 + $0x328] sm:$0xff]
      %v5627 = vld [vmem:[#allocation2 + $0x330] sm:$0xff]
      %v5628 = vld [vmem:[#allocation2 + $0x338] sm:$0xff]
      %v5629 = vld [vmem:[#allocation2 + $0x340] sm:$0xff]
      %v5630 = vld [vmem:[#allocation2 + $0x348] sm:$0xff]
      %v5631 = vld [vmem:[#allocation2 + $0x350] sm:$0xff]
      %v5632 = vld [vmem:[#allocation2 + $0x358] sm:$0xff]
      %v5633 = vld [vmem:[#allocation2 + $0x360] sm:$0xff]
      %v5634 = vld [vmem:[#allocation2 + $0x368] sm:$0xff]
      %v5635 = vld [vmem:[#allocation2 + $0x370] sm:$0xff]
      %v5636 = vld [vmem:[#allocation2 + $0x378] sm:$0xff]
      %v5637 = vld [vmem:[#allocation2 + $0x380] sm:$0xff]
      %v5638 = vld [vmem:[#allocation2 + $0x388] sm:$0xff]
      %v5639 = vld [vmem:[#allocation2 + $0x390] sm:$0xff]
      %v5640 = vld [vmem:[#allocation2 + $0x398] sm:$0xff]
      %v5641 = vld [vmem:[#allocation2 + $0x3a0] sm:$0xff]
      %v5642 = vld [vmem:[#allocation2 + $0x3a8] sm:$0xff]
      %v5643 = vld [vmem:[#allocation2 + $0x3b0] sm:$0xff]
      %v5644 = vld [vmem:[#allocation2 + $0x3b8] sm:$0xff]
      %v5645 = vld [vmem:[#allocation2 + $0x3c0] sm:$0xff]
      %v5646 = vld [vmem:[#allocation2 + $0x3c8] sm:$0xff]
      %v5647 = vld [vmem:[#allocation2 + $0x3d0] sm:$0xff]
      %v5648 = vld [vmem:[#allocation2 + $0x3d8] sm:$0xff]
      %v5649 = vld [vmem:[#allocation2 + $0x3e0] sm:$0xff]
      %v5650 = vld [vmem:[#allocation2 + $0x3e8] sm:$0xff]
      %v5651 = vld [vmem:[#allocation2 + $0x3f0] sm:$0xff]
      %v5652 = vld [vmem:[#allocation2 + $0x3f8] sm:$0xff]
      %v5653 = vld [vmem:[#allocation2 + $0x400] sm:$0xff]
      %v5654 = vld [vmem:[#allocation2 + $0x408] sm:$0xff]
      %v5655 = vld [vmem:[#allocation2 + $0x410] sm:$0xff]
      %v5656 = vld [vmem:[#allocation2 + $0x418] sm:$0xff]
      %v5657 = vld [vmem:[#allocation2 + $0x420] sm:$0xff]
      %v5658 = vld [vmem:[#allocation2 + $0x428] sm:$0xff]
      %v5659 = vld [vmem:[#allocation2 + $0x430] sm:$0xff]
      %v5660 = vld [vmem:[#allocation2 + $0x438] sm:$0xff]
      %v5661 = vld [vmem:[#allocation2 + $0x440] sm:$0xff]
      %v5662 = vld [vmem:[#allocation2 + $0x448] sm:$0xff]
      %v5663 = vld [vmem:[#allocation2 + $0x450] sm:$0xff]
      %v5664 = vld [vmem:[#allocation2 + $0x458] sm:$0xff]
      %v5665 = vld [vmem:[#allocation2 + $0x460] sm:$0xff]
      %v5666 = vld [vmem:[#allocation2 + $0x468] sm:$0xff]
      %v5667 = vld [vmem:[#allocation2 + $0x470] sm:$0xff]
      %v5668 = vld [vmem:[#allocation2 + $0x478] sm:$0xff]
      %v5669 = vld [vmem:[%s2] sm:$0xff]
      %v5670 = vld [vmem:[%s2 + $0x8] sm:$0xff]
      %v5671 = vld [vmem:[%s2 + $0x10] sm:$0xff]
      %v5672 = vld [vmem:[%s2 + $0x18] sm:$0xff]
      %5674 = vset.pattern.permute.xlu0 2
      %5675 = vperm.xlu0 %5674, %v5669
      %v5676 = vpop.permute.xlu0 %5675
      %5679 = vset.pattern.permute.xlu0 2
      %5680 = vperm.xlu0 %5679, %v5670
      %v5681 = vpop.permute.xlu0 %5680
      %5684 = vset.pattern.permute.xlu0 2
      %5685 = vperm.xlu0 %5684, %v5671
      %v5686 = vpop.permute.xlu0 %5685
      %5689 = vset.pattern.permute.xlu0 2
      %5690 = vperm.xlu0 %5689, %v5672
      %v5691 = vpop.permute.xlu0 %5690
      %v5701 = vunpack.c.l.b16 %v5517
      %v5702 = vunpack.c.h.b16 %v5517
      %v5703 = vunpack.c.l.b16 %v5518
      %v5704 = vunpack.c.l.b16 %v5519
      %v5705 = vunpack.c.h.b16 %v5519
      %v5706 = vunpack.c.l.b16 %v5520
      %v5707 = vunpack.c.l.b16 %v5521
      %v5708 = vunpack.c.h.b16 %v5521
      %v5709 = vunpack.c.l.b16 %v5522
      %v5710 = vunpack.c.l.b16 %v5523
      %v5711 = vunpack.c.h.b16 %v5523
      %v5712 = vunpack.c.l.b16 %v5524
      %v5713 = vpack.c.b16 %v5704, %v5701
      %v5714 = vpack.c.b16 %v5705, %v5702
      %v5715 = vpack.c.b16 %v5706, %v5703
      %v5716 = vpack.c.b16 %v5710, %v5707
      %v5717 = vpack.c.b16 %v5711, %v5708
      %v5718 = vpack.c.b16 %v5712, %v5709
      %v5724 = vsel %vm3390, %v5715, 0
      %v5727 = vsel %vm3390, %v5718, 0
      %5729 = vmatprep.subr.bf16.mxu0 %v5526
      %5730 = vmatpush1.bf16.msra.mxu0 %v5525
      %5731 = vmatprep.subr.bf16.mxu0 %v5534
      %5732 = vmatpush1.bf16.msra.mxu0 %v5533
      %5733 = vmatprep.subr.bf16.mxu0 %v5542
      %5734 = vmatpush1.bf16.msra.mxu0 %v5541
      %5735 = vmatprep.subr.bf16.mxu0 %v5550
      %5736 = vmatpush1.bf16.msra.mxu0 %v5549
      %5737 = vmatprep.subr.bf16.mxu0 %v5558
      %5738 = vmatpush1.bf16.msra.mxu0 %v5557
      %5739 = vmatprep.subr.bf16.mxu0 %v5566
      %5740 = vmatpush1.bf16.msra.mxu0 %v5565
      %5741 = vmatprep.subr.bf16.mxu0 %v5574
      %5742 = vmatpush1.bf16.msra.mxu0 %v5573
      %5743 = vmatprep.subr.bf16.mxu0 %v5582
      %5744 = vmatpush1.bf16.msra.mxu0 %v5581
      %5745 = vmatprep.subr.bf16.mxu0 %v5590
      %5746 = vmatpush1.bf16.msra.mxu0 %v5589
      %5747 = vmatprep.subr.bf16.mxu0 %v5598
      %5748 = vmatpush1.bf16.msra.mxu0 %v5597
      %5749 = vmatprep.subr.bf16.mxu0 %v5606
      %5750 = vmatpush1.bf16.msra.mxu0 %v5605
      %5751 = vmatprep.subr.bf16.mxu0 %v5614
      %5752 = vmatpush1.bf16.msra.mxu0 %v5613
      %5753 = vmatprep.subr.bf16.mxu0 %v5622
      %5754 = vmatpush1.bf16.msra.mxu0 %v5621
      %5755 = vmatprep.subr.bf16.mxu0 %v5630
      %5756 = vmatpush1.bf16.msra.mxu0 %v5629
      %5757 = vmatprep.subr.bf16.mxu0 %v5638
      %5758 = vmatpush1.bf16.msra.mxu0 %v5637
      %5759 = vmatprep.subr.bf16.mxu0 %v5646
      %5760 = vmatpush1.bf16.msra.mxu0 %v5645
      %5761 = vmatprep.mubr.bf16.mxu0 %v5714
      %5762 = vmatmul.mubr.bf16.gmra.mrb[0].mxu0 %v5713
      %v5763 = vpop.f32.mrb[0].mxu0
      %v5764 = vadd.f32 %v5676, %v5763
      %v5765 = vpop.f32.mrb[0].mxu0
      %v5766 = vadd.f32 %v5676, %v5765
      %v5767 = vpop.f32.mrb[0].mxu0
      %v5768 = vadd.f32 %v5681, %v5767
      %v5769 = vpop.f32.mrb[0].mxu0
      %v5770 = vadd.f32 %v5681, %v5769
      %5771 = vmatprep.mubr.bf16.mxu0 %v5717
      %5772 = vmatmul.mubr.bf16.gmra.mrb[0].mxu0 %v5716
      %v5773 = vpop.f32.mrb[0].mxu0
      %v5774 = vadd.f32 %v5686, %v5773
      %v5775 = vpop.f32.mrb[0].mxu0
      %v5776 = vadd.f32 %v5686, %v5775
      %v5777 = vpop.f32.mrb[0].mxu0
      %v5778 = vadd.f32 %v5691, %v5777
      %v5779 = vpop.f32.mrb[0].mxu0
      %v5780 = vadd.f32 %v5691, %v5779
      %5781 = vdwg.mxu0
      %5782 = vmatprep.subr.bf16.mxu0 %v5654
      %5783 = vmatpush1.bf16.msra.mxu0 %v5653
      %5784 = vmatprep.subr.bf16.mxu0 %v5662
      %5785 = vmatpush1.bf16.msra.mxu0 %v5661
      %5786 = vmatprep.subr.bf16.mxu0 0
      %5787 = vmatpush1.bf16.msra.mxu0 0
      %5788 = vmatprep.subr.bf16.mxu0 0
      %5789 = vmatpush1.bf16.msra.mxu0 0
      %5790 = vmatprep.subr.bf16.mxu0 0
      %5791 = vmatpush1.bf16.msra.mxu0 0
      %5792 = vmatprep.subr.bf16.mxu0 0
      %5793 = vmatpush1.bf16.msra.mxu0 0
      %5794 = vmatprep.subr.bf16.mxu0 0
      %5795 = vmatpush1.bf16.msra.mxu0 0
      %5796 = vmatprep.subr.bf16.mxu0 0
      %5797 = vmatpush1.bf16.msra.mxu0 0
      %5798 = vmatprep.subr.bf16.mxu0 0
      %5799 = vmatpush1.bf16.msra.mxu0 0
      %5800 = vmatprep.subr.bf16.mxu0 0
      %5801 = vmatpush1.bf16.msra.mxu0 0
      %5802 = vmatprep.subr.bf16.mxu0 0
      %5803 = vmatpush1.bf16.msra.mxu0 0
      %5804 = vmatprep.subr.bf16.mxu0 0
      %5805 = vmatpush1.bf16.msra.mxu0 0
      %5806 = vmatprep.subr.bf16.mxu0 0
      %5807 = vmatpush1.bf16.msra.mxu0 0
      %5808 = vmatprep.subr.bf16.mxu0 0
      %5809 = vmatpush1.bf16.msra.mxu0 0
      %5810 = vmatprep.subr.bf16.mxu0 0
      %5811 = vmatpush1.bf16.msra.mxu0 0
      %5812 = vmatprep.subr.bf16.mxu0 0
      %5813 = vmatpush1.bf16.msra.mxu0 0
      %5814 = vmatprep.mubr.bf16.mxu0 0
      %5815 = vmatmul.mubr.bf16.gmra.mrb[0].mxu0 %v5724
      %v5816 = vpop.f32.mrb[0].mxu0
      %v5817 = vadd.f32 %v5764, %v5816
      %v5818 = vpop.f32.mrb[0].mxu0
      %v5819 = vadd.f32 %v5766, %v5818
      %v5820 = vpop.f32.mrb[0].mxu0
      %v5821 = vadd.f32 %v5768, %v5820
      %v5822 = vpop.f32.mrb[0].mxu0
      %v5823 = vadd.f32 %v5770, %v5822
      %5824 = vmatprep.mubr.bf16.mxu0 0
      %5825 = vmatmul.mubr.bf16.gmra.mrb[0].mxu0 %v5727
      %v5826 = vpop.f32.mrb[0].mxu0
      %v5827 = vadd.f32 %v5774, %v5826
      %v5828 = vpop.f32.mrb[0].mxu0
      %v5829 = vadd.f32 %v5776, %v5828
      %v5830 = vpop.f32.mrb[0].mxu0
      %v5831 = vadd.f32 %v5778, %v5830
      %v5832 = vpop.f32.mrb[0].mxu0
      %v5833 = vadd.f32 %v5780, %v5832
      %5834 = vdwg.mxu0
      %5835 = vmatprep.subr.bf16.mxu0 %v5528
      %5836 = vmatpush1.bf16.msra.mxu0 %v5527
      %5837 = vmatprep.subr.bf16.mxu0 %v5536
      %5838 = vmatpush1.bf16.msra.mxu0 %v5535
      %5839 = vmatprep.subr.bf16.mxu0 %v5544
      %5840 = vmatpush1.bf16.msra.mxu0 %v5543
      %5841 = vmatprep.subr.bf16.mxu0 %v5552
      %5842 = vmatpush1.bf16.msra.mxu0 %v5551
      %5843 = vmatprep.subr.bf16.mxu0 %v5560
      %5844 = vmatpush1.bf16.msra.mxu0 %v5559
      %5845 = vmatprep.subr.bf16.mxu0 %v5568
      %5846 = vmatpush1.bf16.msra.mxu0 %v5567
      %5847 = vmatprep.subr.bf16.mxu0 %v5576
      %5848 = vmatpush1.bf16.msra.mxu0 %v5575
      %5849 = vmatprep.subr.bf16.mxu0 %v5584
      %5850 = vmatpush1.bf16.msra.mxu0 %v5583
      %5851 = vmatprep.subr.bf16.mxu0 %v5592
      %5852 = vmatpush1.bf16.msra.mxu0 %v5591
      %5853 = vmatprep.subr.bf16.mxu0 %v5600
      %5854 = vmatpush1.bf16.msra.mxu0 %v5599
      %5855 = vmatprep.subr.bf16.mxu0 %v5608
      %5856 = vmatpush1.bf16.msra.mxu0 %v5607
      %5857 = vmatprep.subr.bf16.mxu0 %v5616
      %5858 = vmatpush1.bf16.msra.mxu0 %v5615
      %5859 = vmatprep.subr.bf16.mxu0 %v5624
      %5860 = vmatpush1.bf16.msra.mxu0 %v5623
      %5861 = vmatprep.subr.bf16.mxu0 %v5632
      %5862 = vmatpush1.bf16.msra.mxu0 %v5631
      %5863 = vmatprep.subr.bf16.mxu0 %v5640
      %5864 = vmatpush1.bf16.msra.mxu0 %v5639
      %5865 = vmatprep.subr.bf16.mxu0 %v5648
      %5866 = vmatpush1.bf16.msra.mxu0 %v5647
      %5867 = vmatprep.mubr.bf16.mxu0 %v5714
      %5868 = vmatmul.mubr.bf16.gmra.mrb[0].mxu0 %v5713
      %v5869 = vpop.f32.mrb[0].mxu0
      %v5870 = vadd.f32 %v5676, %v5869
      %v5871 = vpop.f32.mrb[0].mxu0
      %v5872 = vadd.f32 %v5676, %v5871
      %v5873 = vpop.f32.mrb[0].mxu0
      %v5874 = vadd.f32 %v5681, %v5873
      %v5875 = vpop.f32.mrb[0].mxu0
      %v5876 = vadd.f32 %v5681, %v5875
      %5877 = vmatprep.mubr.bf16.mxu0 %v5717
      %5878 = vmatmul.mubr.bf16.gmra.mrb[0].mxu0 %v5716
      %v5879 = vpop.f32.mrb[0].mxu0
      %v5880 = vadd.f32 %v5686, %v5879
      %v5881 = vpop.f32.mrb[0].mxu0
      %v5882 = vadd.f32 %v5686, %v5881
      %v5883 = vpop.f32.mrb[0].mxu0
      %v5884 = vadd.f32 %v5691, %v5883
      %v5885 = vpop.f32.mrb[0].mxu0
      %v5886 = vadd.f32 %v5691, %v5885
      %5887 = vdwg.mxu0
      %5888 = vmatprep.subr.bf16.mxu0 %v5656
      %5889 = vmatpush1.bf16.msra.mxu0 %v5655
      %5890 = vmatprep.subr.bf16.mxu0 %v5664
      %5891 = vmatpush1.bf16.msra.mxu0 %v5663
      %5892 = vmatprep.subr.bf16.mxu0 0
      %5893 = vmatpush1.bf16.msra.mxu0 0
      %5894 = vmatprep.subr.bf16.mxu0 0
      %5895 = vmatpush1.bf16.msra.mxu0 0
      %5896 = vmatprep.subr.bf16.mxu0 0
      %5897 = vmatpush1.bf16.msra.mxu0 0
      %5898 = vmatprep.subr.bf16.mxu0 0
      %5899 = vmatpush1.bf16.msra.mxu0 0
      %5900 = vmatprep.subr.bf16.mxu0 0
      %5901 = vmatpush1.bf16.msra.mxu0 0
      %5902 = vmatprep.subr.bf16.mxu0 0
      %5903 = vmatpush1.bf16.msra.mxu0 0
      %5904 = vmatprep.subr.bf16.mxu0 0
      %5905 = vmatpush1.bf16.msra.mxu0 0
      %5906 = vmatprep.subr.bf16.mxu0 0
      %5907 = vmatpush1.bf16.msra.mxu0 0
      %5908 = vmatprep.subr.bf16.mxu0 0
      %5909 = vmatpush1.bf16.msra.mxu0 0
      %5910 = vmatprep.subr.bf16.mxu0 0
      %5911 = vmatpush1.bf16.msra.mxu0 0
      %5912 = vmatprep.subr.bf16.mxu0 0
      %5913 = vmatpush1.bf16.msra.mxu0 0
      %5914 = vmatprep.subr.bf16.mxu0 0
      %5915 = vmatpush1.bf16.msra.mxu0 0
      %5916 = vmatprep.subr.bf16.mxu0 0
      %5917 = vmatpush1.bf16.msra.mxu0 0
      %5918 = vmatprep.subr.bf16.mxu0 0
      %5919 = vmatpush1.bf16.msra.mxu0 0
      %5920 = vmatprep.mubr.bf16.mxu0 0
      %5921 = vmatmul.mubr.bf16.gmra.mrb[0].mxu0 %v5724
      %v5922 = vpop.f32.mrb[0].mxu0
      %v5923 = vadd.f32 %v5870, %v5922
      %v5924 = vpop.f32.mrb[0].mxu0
      %v5925 = vadd.f32 %v5872, %v5924
      %v5926 = vpop.f32.mrb[0].mxu0
      %v5927 = vadd.f32 %v5874, %v5926
      %v5928 = vpop.f32.mrb[0].mxu0
      %v5929 = vadd.f32 %v5876, %v5928
      %5930 = vmatprep.mubr.bf16.mxu0 0
      %5931 = vmatmul.mubr.bf16.gmra.mrb[0].mxu0 %v5727
      %v5932 = vpop.f32.mrb[0].mxu0
      %v5933 = vadd.f32 %v5880, %v5932
      %v5934 = vpop.f32.mrb[0].mxu0
      %v5935 = vadd.f32 %v5882, %v5934
      %v5936 = vpop.f32.mrb[0].mxu0
      %v5937 = vadd.f32 %v5884, %v5936
      %v5938 = vpop.f32.mrb[0].mxu0
      %v5939 = vadd.f32 %v5886, %v5938
      %5940 = vdwg.mxu0
      %5941 = vmatprep.subr.bf16.mxu0 %v5530
      %5942 = vmatpush1.bf16.msra.mxu0 %v5529
      %5943 = vmatprep.subr.bf16.mxu0 %v5538
      %5944 = vmatpush1.bf16.msra.mxu0 %v5537
      %5945 = vmatprep.subr.bf16.mxu0 %v5546
      %5946 = vmatpush1.bf16.msra.mxu0 %v5545
      %5947 = vmatprep.subr.bf16.mxu0 %v5554
      %5948 = vmatpush1.bf16.msra.mxu0 %v5553
      %5949 = vmatprep.subr.bf16.mxu0 %v5562
      %5950 = vmatpush1.bf16.msra.mxu0 %v5561
      %5951 = vmatprep.subr.bf16.mxu0 %v5570
      %5952 = vmatpush1.bf16.msra.mxu0 %v5569
      %5953 = vmatprep.subr.bf16.mxu0 %v5578
      %5954 = vmatpush1.bf16.msra.mxu0 %v5577
      %5955 = vmatprep.subr.bf16.mxu0 %v5586
      %5956 = vmatpush1.bf16.msra.mxu0 %v5585
      %5957 = vmatprep.subr.bf16.mxu0 %v5594
      %5958 = vmatpush1.bf16.msra.mxu0 %v5593
      %5959 = vmatprep.subr.bf16.mxu0 %v5602
      %5960 = vmatpush1.bf16.msra.mxu0 %v5601
      %5961 = vmatprep.subr.bf16.mxu0 %v5610
      %5962 = vmatpush1.bf16.msra.mxu0 %v5609
      %5963 = vmatprep.subr.bf16.mxu0 %v5618
      %5964 = vmatpush1.bf16.msra.mxu0 %v5617
      %5965 = vmatprep.subr.bf16.mxu0 %v5626
      %5966 = vmatpush1.bf16.msra.mxu0 %v5625
      %5967 = vmatprep.subr.bf16.mxu0 %v5634
      %5968 = vmatpush1.bf16.msra.mxu0 %v5633
      %5969 = vmatprep.subr.bf16.mxu0 %v5642
      %5970 = vmatpush1.bf16.msra.mxu0 %v5641
      %5971 = vmatprep.subr.bf16.mxu0 %v5650
      %5972 = vmatpush1.bf16.msra.mxu0 %v5649
      %5973 = vmatprep.mubr.bf16.mxu0 %v5714
      %5974 = vmatmul.mubr.bf16.gmra.mrb[0].mxu0 %v5713
      %v5975 = vpop.f32.mrb[0].mxu0
      %v5976 = vadd.f32 %v5676, %v5975
      %v5977 = vpop.f32.mrb[0].mxu0
      %v5978 = vadd.f32 %v5676, %v5977
      %v5979 = vpop.f32.mrb[0].mxu0
      %v5980 = vadd.f32 %v5681, %v5979
      %v5981 = vpop.f32.mrb[0].mxu0
      %v5982 = vadd.f32 %v5681, %v5981
      %5983 = vmatprep.mubr.bf16.mxu0 %v5717
      %5984 = vmatmul.mubr.bf16.gmra.mrb[0].mxu0 %v5716
      %v5985 = vpop.f32.mrb[0].mxu0
      %v5986 = vadd.f32 %v5686, %v5985
      %v5987 = vpop.f32.mrb[0].mxu0
      %v5988 = vadd.f32 %v5686, %v5987
      %v5989 = vpop.f32.mrb[0].mxu0
      %v5990 = vadd.f32 %v5691, %v5989
      %v5991 = vpop.f32.mrb[0].mxu0
      %v5992 = vadd.f32 %v5691, %v5991
      %5993 = vdwg.mxu0
      %5994 = vmatprep.subr.bf16.mxu0 %v5658
      %5995 = vmatpush1.bf16.msra.mxu0 %v5657
      %5996 = vmatprep.subr.bf16.mxu0 %v5666
      %5997 = vmatpush1.bf16.msra.mxu0 %v5665
      %5998 = vmatprep.subr.bf16.mxu0 0
      %5999 = vmatpush1.bf16.msra.mxu0 0
      %6000 = vmatprep.subr.bf16.mxu0 0
      %6001 = vmatpush1.bf16.msra.mxu0 0
      %6002 = vmatprep.subr.bf16.mxu0 0
      %6003 = vmatpush1.bf16.msra.mxu0 0
      %6004 = vmatprep.subr.bf16.mxu0 0
      %6005 = vmatpush1.bf16.msra.mxu0 0
      %6006 = vmatprep.subr.bf16.mxu0 0
      %6007 = vmatpush1.bf16.msra.mxu0 0
      %6008 = vmatprep.subr.bf16.mxu0 0
      %6009 = vmatpush1.bf16.msra.mxu0 0
      %6010 = vmatprep.subr.bf16.mxu0 0
      %6011 = vmatpush1.bf16.msra.mxu0 0
      %6012 = vmatprep.subr.bf16.mxu0 0
      %6013 = vmatpush1.bf16.msra.mxu0 0
      %6014 = vmatprep.subr.bf16.mxu0 0
      %6015 = vmatpush1.bf16.msra.mxu0 0
      %6016 = vmatprep.subr.bf16.mxu0 0
      %6017 = vmatpush1.bf16.msra.mxu0 0
      %6018 = vmatprep.subr.bf16.mxu0 0
      %6019 = vmatpush1.bf16.msra.mxu0 0
      %6020 = vmatprep.subr.bf16.mxu0 0
      %6021 = vmatpush1.bf16.msra.mxu0 0
      %6022 = vmatprep.subr.bf16.mxu0 0
      %6023 = vmatpush1.bf16.msra.mxu0 0
      %6024 = vmatprep.subr.bf16.mxu0 0
      %6025 = vmatpush1.bf16.msra.mxu0 0
      %6026 = vmatprep.mubr.bf16.mxu0 0
      %6027 = vmatmul.mubr.bf16.gmra.mrb[0].mxu0 %v5724
      %v6028 = vpop.f32.mrb[0].mxu0
      %v6029 = vadd.f32 %v5976, %v6028
      %v6030 = vpop.f32.mrb[0].mxu0
      %v6031 = vadd.f32 %v5978, %v6030
      %v6032 = vpop.f32.mrb[0].mxu0
      %v6033 = vadd.f32 %v5980, %v6032
      %v6034 = vpop.f32.mrb[0].mxu0
      %v6035 = vadd.f32 %v5982, %v6034
      %6036 = vmatprep.mubr.bf16.mxu0 0
      %6037 = vmatmul.mubr.bf16.gmra.mrb[0].mxu0 %v5727
      %v6038 = vpop.f32.mrb[0].mxu0
      %v6039 = vadd.f32 %v5986, %v6038
      %v6040 = vpop.f32.mrb[0].mxu0
      %v6041 = vadd.f32 %v5988, %v6040
      %v6042 = vpop.f32.mrb[0].mxu0
      %v6043 = vadd.f32 %v5990, %v6042
      %v6044 = vpop.f32.mrb[0].mxu0
      %v6045 = vadd.f32 %v5992, %v6044
      %6046 = vdwg.mxu0
      %6047 = vmatprep.subr.bf16.mxu0 %v5532
      %6048 = vmatpush1.bf16.msra.mxu0 %v5531
      %6049 = vmatprep.subr.bf16.mxu0 %v5540
      %6050 = vmatpush1.bf16.msra.mxu0 %v5539
      %6051 = vmatprep.subr.bf16.mxu0 %v5548
      %6052 = vmatpush1.bf16.msra.mxu0 %v5547
      %6053 = vmatprep.subr.bf16.mxu0 %v5556
      %6054 = vmatpush1.bf16.msra.mxu0 %v5555
      %6055 = vmatprep.subr.bf16.mxu0 %v5564
      %6056 = vmatpush1.bf16.msra.mxu0 %v5563
      %6057 = vmatprep.subr.bf16.mxu0 %v5572
      %6058 = vmatpush1.bf16.msra.mxu0 %v5571
      %6059 = vmatprep.subr.bf16.mxu0 %v5580
      %6060 = vmatpush1.bf16.msra.mxu0 %v5579
      %6061 = vmatprep.subr.bf16.mxu0 %v5588
      %6062 = vmatpush1.bf16.msra.mxu0 %v5587
      %6063 = vmatprep.subr.bf16.mxu0 %v5596
      %6064 = vmatpush1.bf16.msra.mxu0 %v5595
      %6065 = vmatprep.subr.bf16.mxu0 %v5604
      %6066 = vmatpush1.bf16.msra.mxu0 %v5603
      %6067 = vmatprep.subr.bf16.mxu0 %v5612
      %6068 = vmatpush1.bf16.msra.mxu0 %v5611
      %6069 = vmatprep.subr.bf16.mxu0 %v5620
      %6070 = vmatpush1.bf16.msra.mxu0 %v5619
      %6071 = vmatprep.subr.bf16.mxu0 %v5628
      %6072 = vmatpush1.bf16.msra.mxu0 %v5627
      %6073 = vmatprep.subr.bf16.mxu0 %v5636
      %6074 = vmatpush1.bf16.msra.mxu0 %v5635
      %6075 = vmatprep.subr.bf16.mxu0 %v5644
      %6076 = vmatpush1.bf16.msra.mxu0 %v5643
      %6077 = vmatprep.subr.bf16.mxu0 %v5652
      %6078 = vmatpush1.bf16.msra.mxu0 %v5651
      %6079 = vmatprep.mubr.bf16.mxu0 %v5714
      %6080 = vmatmul.mubr.bf16.gmra.mrb[0].mxu0 %v5713
      %v6081 = vpop.f32.mrb[0].mxu0
      %v6082 = vadd.f32 %v5676, %v6081
      %v6083 = vpop.f32.mrb[0].mxu0
      %v6084 = vadd.f32 %v5676, %v6083
      %v6085 = vpop.f32.mrb[0].mxu0
      %v6086 = vadd.f32 %v5681, %v6085
      %v6087 = vpop.f32.mrb[0].mxu0
      %v6088 = vadd.f32 %v5681, %v6087
      %6089 = vmatprep.mubr.bf16.mxu0 %v5717
      %6090 = vmatmul.mubr.bf16.gmra.mrb[0].mxu0 %v5716
      %v6091 = vpop.f32.mrb[0].mxu0
      %v6092 = vadd.f32 %v5686, %v6091
      %v6093 = vpop.f32.mrb[0].mxu0
      %v6094 = vadd.f32 %v5686, %v6093
      %v6095 = vpop.f32.mrb[0].mxu0
      %v6096 = vadd.f32 %v5691, %v6095
      %v6097 = vpop.f32.mrb[0].mxu0
      %v6098 = vadd.f32 %v5691, %v6097
      %6099 = vdwg.mxu0
      %6100 = vmatprep.subr.bf16.mxu0 %v5660
      %6101 = vmatpush1.bf16.msra.mxu0 %v5659
      %6102 = vmatprep.subr.bf16.mxu0 %v5668
      %6103 = vmatpush1.bf16.msra.mxu0 %v5667
      %6104 = vmatprep.subr.bf16.mxu0 0
      %6105 = vmatpush1.bf16.msra.mxu0 0
      %6106 = vmatprep.subr.bf16.mxu0 0
      %6107 = vmatpush1.bf16.msra.mxu0 0
      %6108 = vmatprep.subr.bf16.mxu0 0
      %6109 = vmatpush1.bf16.msra.mxu0 0
      %6110 = vmatprep.subr.bf16.mxu0 0
      %6111 = vmatpush1.bf16.msra.mxu0 0
      %6112 = vmatprep.subr.bf16.mxu0 0
      %6113 = vmatpush1.bf16.msra.mxu0 0
      %6114 = vmatprep.subr.bf16.mxu0 0
      %6115 = vmatpush1.bf16.msra.mxu0 0
      %6116 = vmatprep.subr.bf16.mxu0 0
      %6117 = vmatpush1.bf16.msra.mxu0 0
      %6118 = vmatprep.subr.bf16.mxu0 0
      %6119 = vmatpush1.bf16.msra.mxu0 0
      %6120 = vmatprep.subr.bf16.mxu0 0
      %6121 = vmatpush1.bf16.msra.mxu0 0
      %6122 = vmatprep.subr.bf16.mxu0 0
      %6123 = vmatpush1.bf16.msra.mxu0 0
      %6124 = vmatprep.subr.bf16.mxu0 0
      %6125 = vmatpush1.bf16.msra.mxu0 0
      %6126 = vmatprep.subr.bf16.mxu0 0
      %6127 = vmatpush1.bf16.msra.mxu0 0
      %6128 = vmatprep.subr.bf16.mxu0 0
      %6129 = vmatpush1.bf16.msra.mxu0 0
      %6130 = vmatprep.subr.bf16.mxu0 0
      %6131 = vmatpush1.bf16.msra.mxu0 0
      %6132 = vmatprep.mubr.bf16.mxu0 0
      %6133 = vmatmul.mubr.bf16.gmra.mrb[0].mxu0 %v5724
      %v6134 = vpop.f32.mrb[0].mxu0
      %v6135 = vadd.f32 %v6082, %v6134
      %v6136 = vpop.f32.mrb[0].mxu0
      %v6137 = vadd.f32 %v6084, %v6136
      %v6138 = vpop.f32.mrb[0].mxu0
      %v6139 = vadd.f32 %v6086, %v6138
      %v6140 = vpop.f32.mrb[0].mxu0
      %v6141 = vadd.f32 %v6088, %v6140
      %6142 = vmatprep.mubr.bf16.mxu0 0
      %6143 = vmatmul.mubr.bf16.gmra.mrb[0].mxu0 %v5727
      %v6144 = vpop.f32.mrb[0].mxu0
      %v6145 = vadd.f32 %v6092, %v6144
      %v6146 = vpop.f32.mrb[0].mxu0
      %v6147 = vadd.f32 %v6094, %v6146
      %v6148 = vpop.f32.mrb[0].mxu0
      %v6149 = vadd.f32 %v6096, %v6148
      %v6150 = vpop.f32.mrb[0].mxu0
      %v6151 = vadd.f32 %v6098, %v6150
      %6152 = vdwg.mxu0
      %v6153 = vmax.f32 %v5817, 0.0
      %v6154 = vmax.f32 %v5819, 0.0
      %v6155 = vmax.f32 %v5923, 0.0
      %v6156 = vmax.f32 %v5925, 0.0
      %v6157 = vmax.f32 %v6029, 0.0
      %v6158 = vmax.f32 %v6031, 0.0
      %v6159 = vmax.f32 %v6135, 0.0
      %v6160 = vmax.f32 %v6137, 0.0
      %v6161 = vmax.f32 %v5821, 0.0
      %v6162 = vmax.f32 %v5823, 0.0
      %v6163 = vmax.f32 %v5927, 0.0
      %v6164 = vmax.f32 %v5929, 0.0
      %v6165 = vmax.f32 %v6033, 0.0
      %v6166 = vmax.f32 %v6035, 0.0
      %v6167 = vmax.f32 %v6139, 0.0
      %v6168 = vmax.f32 %v6141, 0.0
      %v6169 = vmax.f32 %v5827, 0.0
      %v6170 = vmax.f32 %v5829, 0.0
      %v6171 = vmax.f32 %v5933, 0.0
      %v6172 = vmax.f32 %v5935, 0.0
      %v6173 = vmax.f32 %v6039, 0.0
      %v6174 = vmax.f32 %v6041, 0.0
      %v6175 = vmax.f32 %v6145, 0.0
      %v6176 = vmax.f32 %v6147, 0.0
      %v6177 = vmax.f32 %v5831, 0.0
      %v6178 = vmax.f32 %v5833, 0.0
      %v6179 = vmax.f32 %v5937, 0.0
      %v6180 = vmax.f32 %v5939, 0.0
      %v6181 = vmax.f32 %v6043, 0.0
      %v6182 = vmax.f32 %v6045, 0.0
      %v6183 = vmax.f32 %v6149, 0.0
      %v6184 = vmax.f32 %v6151, 0.0
      %6185 = vst [vmem:[%s251] sm:$0xff] %v6153
      %6186 = vst [vmem:[%s251 + $0x8] sm:$0xff] %v6154
      %6187 = vst [vmem:[%s251 + $0x10] sm:$0xff] %v6155
      %6188 = vst [vmem:[%s251 + $0x18] sm:$0xff] %v6156
      %6189 = vst [vmem:[%s251 + $0x20] sm:$0xff] %v6157
      %6190 = vst [vmem:[%s251 + $0x28] sm:$0xff] %v6158
      %6191 = vst [vmem:[%s251 + $0x30] sm:$0xff] %v6159
      %6192 = vst [vmem:[%s251 + $0x38] sm:$0xff] %v6160
      %6193 = vst [vmem:[%s251 + $0x40] sm:$0xff] %v6161
      %6194 = vst [vmem:[%s251 + $0x48] sm:$0xff] %v6162
      %6195 = vst [vmem:[%s251 + $0x50] sm:$0xff] %v6163
      %6196 = vst [vmem:[%s251 + $0x58] sm:$0xff] %v6164
      %6197 = vst [vmem:[%s251 + $0x60] sm:$0xff] %v6165
      %6198 = vst [vmem:[%s251 + $0x68] sm:$0xff] %v6166
      %6199 = vst [vmem:[%s251 + $0x70] sm:$0xff] %v6167
      %6200 = vst [vmem:[%s251 + $0x78] sm:$0xff] %v6168
      %6201 = vst [vmem:[%s251 + $0x80] sm:$0xff] %v6169
      %6202 = vst [vmem:[%s251 + $0x88] sm:$0xff] %v6170
      %6203 = vst [vmem:[%s251 + $0x90] sm:$0xff] %v6171
      %6204 = vst [vmem:[%s251 + $0x98] sm:$0xff] %v6172
      %6205 = vst [vmem:[%s251 + $0xa0] sm:$0xff] %v6173
      %6206 = vst [vmem:[%s251 + $0xa8] sm:$0xff] %v6174
      %6207 = vst [vmem:[%s251 + $0xb0] sm:$0xff] %v6175
      %6208 = vst [vmem:[%s251 + $0xb8] sm:$0xff] %v6176
      %6209 = vst [vmem:[%s251 + $0xc0] sm:$0xff] %v6177
      %6210 = vst [vmem:[%s251 + $0xc8] sm:$0xff] %v6178
      %6211 = vst [vmem:[%s251 + $0xd0] sm:$0xff] %v6179
      %6212 = vst [vmem:[%s251 + $0xd8] sm:$0xff] %v6180
      %6213 = vst [vmem:[%s251 + $0xe0] sm:$0xff] %v6181
      %6214 = vst [vmem:[%s251 + $0xe8] sm:$0xff] %v6182
      %6215 = vst [vmem:[%s251 + $0xf0] sm:$0xff] %v6183
      %6216 = vst [vmem:[%s251 + $0xf8] sm:$0xff] %v6184
      %p6217 = scmp.lt.s32.totalorder %s17, 1
      %s6218 = scalar_select %p6217, %s17, 1
      %s6219 = smul.addr %s6218, 32
      %s6220 = smul.addr %s6219, 8
      %s6221 = scalar_lea.vmem %s6, %s6220
      // Predicated region
      $region45: #{encoder_forward.2} parent=43 // pred_check
        %p6222 = pneg %p166
      $region46: #{encoder_forward.2} parent=43 // pred_check_branch
        %6224 = sbr.rel (%p6222) target = $region48
      $region47: #{encoder_forward.2} parent=43 // pred_region
        _
      $region48: #{encoder_forward.2} parent=43 // pred_fallthru
        _
    $region44: #{encoder_forward.2} parent=5 // pred_fallthru
      _
    %p6225 = scmp.le.s32.totalorder 2, %s12
    // Predicated region
    $region49: #{encoder_forward.2} parent=5 // pred_check
      %p6226 = pneg %p6225
    $region50: #{encoder_forward.2} parent=5 // pred_check_branch
      %6228 = sbr.rel (%p6226) target = $region52
    $region51: #{encoder_forward.2} parent=5 // pred_region
      %s6229 = ssub.s32 %s12, 2
      // Predicated region
      $region53: #{encoder_forward.2} parent=51 // pred_check
        %p6230 = pneg %p172
      $region54: #{encoder_forward.2} parent=51 // pred_check_branch
        %6232 = sbr.rel (%p6230) target = $region56
      $region55: #{encoder_forward.2} parent=51 // pred_region
        %p6233 = scmp.lt.s32.totalorder %s18, 1
        %s6234 = scalar_select %p6233, %s18, 1
        %s6235 = smul.addr %s6234, 32
        %s6236 = smul.addr %s6235, 8
        %s6237 = scalar_lea.vmem %s6, %s6236
      $region56: #{encoder_forward.2} parent=51 // pred_fallthru
        _
    $region52: #{encoder_forward.2} parent=5 // pred_fallthru
      _
  $region6: #{encoder_forward.2} parent=0 // loop_footer
    %s16 = sadd.s32 1, %s12
  $region7: #{encoder_forward.2} parent=0 // loop_footer_branch
    %11 = sbr.rel target = $region3
  $region8: #{encoder_forward.2} parent=0 // loop_exit
    _

</llo_original>
